<compile_context>
chip_gen: v7x
topology: tpu7x:2x2x1
jax: 0.10.0
libtpu: 0.0.40
codegen_flags: <defaults>
</compile_context>

<pallas_src>
import functools

import jax
import jax.numpy as jnp
from jax import lax
from jax.experimental import pallas as pl
from jax.experimental.pallas import tpu as pltpu

C_IN = 3
C_OUT = 3
KSIZE = 3            # conv kernel 3x3, stride 1, padding 0
POOL = 3             # MaxPool2d(kernel_size=3): stride 3, padding 0, floor mode
PWIN = POOL ** 3     # three stacked pools == one 27x27 non-overlapping pool


def _tree_max(vals):
    # Balanced pairwise max: shorter dependency chains on the VPU.
    vals = list(vals)
    while len(vals) > 1:
        nxt = [jnp.maximum(vals[i], vals[i + 1]) for i in range(0, len(vals) - 1, 2)]
        if len(vals) % 2:
            nxt.append(vals[-1])
        vals = nxt
    return vals[0]


def _model_kernel(w_ref, b_ref, x_ref, o_ref, scratch, *,
                  nb_pairs, img_w, hc, wcomb, ho, wo):
    # ---- hoist all SMEM scalar reads before any vector work ----
    wv = [w_ref[i] for i in range(C_OUT * C_IN * KSIZE * KSIZE)]
    bv = [b_ref[c] for c in range(C_OUT)]

    # ---- Conv2d(3,3,k=3,s=1,p=0) on lane-packed image pairs ----
    # Each pair slab is (H, 2W); its conv output is (hc, 2W-2) where columns
    # [0, wc) belong to image A, [W, W+wc) to image B, and the two boundary
    # columns [wc, W) are junk that no floor-mode pool window ever touches.
    for nb in range(nb_pairs):
        accs = [jnp.zeros((hc, wcomb), jnp.float32) for _ in range(C_OUT)]
        for ci in range(C_IN):
            xc = x_ref[nb, ci].astype(jnp.float32)           # (H, 2W), loaded once
            for ki in range(KSIZE):
                for kj in range(KSIZE):
                    sl = xc[ki:ki + hc, kj:kj + wcomb]       # shifted slice, built once
                    for co in range(C_OUT):
                        w_val = wv[((co * C_IN + ci) * KSIZE + ki) * KSIZE + kj]
                        accs[co] = accs[co] + w_val * sl
        # Stack (pair, channel) conv outputs along the sublane axis of scratch.
        for co in range(C_OUT):
            base = (nb * C_OUT + co) * hc
            scratch[base:base + hc, 0:wcomb] = accs[co] + bv[co]

    # ---- one exact 27x27 non-overlapping max pool (== 3 stacked 3x3 pools) ----
    n_rows = nb_pairs * C_OUT * ho

    # H (sublane) pooling via strided ref reads, max on the VPU.
    if hc % PWIN == 0:
        # (pair, channel) blocks are 27-row aligned -> one strided read per
        # window offset covers every block / image at once.
        hpool = _tree_max(
            scratch[pl.ds(s, n_rows, stride=PWIN), pl.ds(0, wcomb)]
            for s in range(PWIN))
    else:
        # General floor-truncating path: pool each block separately.
        # TODO(synk): slower fallback; only the hc % 27 == 0 fast path is
        # exercised by the test below.
        parts = []
        for blk in range(nb_pairs * C_OUT):
            base = blk * hc
            parts.append(_tree_max(
                scratch[pl.ds(base + s, ho, stride=PWIN), pl.ds(0, wcomb)]
                for s in range(PWIN)))
        hpool = jnp.concatenate(parts, axis=0)

    # W (lane) pooling: static 27-wide lane slice + cross-lane reduce-max (XLU)
    # per output column, for each image half of the packed pair.  No MXU work.
    cols = []
    for half in range(2):
        for j in range(wo):
            start = half * img_w + PWIN * j
            win = hpool[:, start:start + PWIN]                   # (n_rows, 27)
            cols.append(jnp.max(win, axis=-1, keepdims=True))    # (n_rows, 1)
    y = jnp.concatenate(cols, axis=-1)                           # (n_rows, 2*wo)

    rows_per_pair = C_OUT * ho
    for nb in range(nb_pairs):
        o_ref[nb] = y[nb * rows_per_pair:(nb + 1) * rows_per_pair, :].astype(o_ref.dtype)


def model_forward(x, w, b, *, pairs_per_step=4):
    N, C, H, W = x.shape
    assert C == C_IN
    hc, wc = H - (KSIZE - 1), W - (KSIZE - 1)
    ho, wo = hc // PWIN, wc // PWIN
    assert ho > 0 and wo > 0, "input too small for conv + three pools"

    # --- pack two images per lane slab (pad batch to an even size) ---
    if N % 2:
        x = jnp.concatenate([x, jnp.zeros((1, C, H, W), x.dtype)], axis=0)
    n_pairs = x.shape[0] // 2

    # --- grid: pairs_blk pairs per step, >= 2 steps when possible (v7x 2 TCs) ---
    n_steps = max(pl.cdiv(n_pairs, pairs_per_step), min(n_pairs, 2))
    pairs_blk = pl.cdiv(n_pairs, n_steps)
    pairs_pad = n_steps * pairs_blk
    if pairs_pad > n_pairs:
        x = jnp.concatenate(
            [x, jnp.zeros((2 * (pairs_pad - n_pairs), C, H, W), x.dtype)], axis=0)

    # (pairs, 2, C, H, W) -> (pairs, C, H, 2W): the pair goes side-by-side along
    # the lane axis (one cheap host-side relayout of a tiny input).
    xp = x.reshape(pairs_pad, 2, C, H, W).transpose(0, 2, 3, 1, 4)
    xp = xp.reshape(pairs_pad, C, H, 2 * W)

    wcomb = 2 * W - 2
    kernel = functools.partial(_model_kernel, nb_pairs=pairs_blk, img_w=W,
                               hc=hc, wcomb=wcomb, ho=ho, wo=wo)
    out = pl.pallas_call(
        kernel,
        out_shape=jax.ShapeDtypeStruct((pairs_pad, C_OUT * ho, 2 * wo), x.dtype),
        grid=(n_steps,),
        in_specs=[
            pl.BlockSpec(memory_space=pltpu.MemorySpace.SMEM),    # flat conv weights (81,)
            pl.BlockSpec(memory_space=pltpu.MemorySpace.SMEM),    # bias (3,)
            pl.BlockSpec((pairs_blk, C, H, 2 * W), lambda g: (g, 0, 0, 0)),
        ],
        out_specs=pl.BlockSpec((pairs_blk, C_OUT * ho, 2 * wo), lambda g: (g, 0, 0)),
        scratch_shapes=[pltpu.VMEM((pairs_blk * C_OUT * hc, wcomb), jnp.float32)],
        # Batch (pair-block) axis stays parallel so v7x can shard the >=2 grid
        # steps across its two TensorCores; on single-TC v5e/v6e the per-step
        # overhead is now amortized over pairs_blk image pairs.
        compiler_params=pltpu.CompilerParams(dimension_semantics=("parallel",)),
    )(w.reshape(-1), b, xp)

    # (pairs, C_OUT, ho, 2, wo) -> (2*pairs, C_OUT, ho, wo), drop batch padding.
    out = out.reshape(pairs_pad, C_OUT, ho, 2, wo).transpose(0, 3, 1, 2, 4)
    return out.reshape(2 * pairs_pad, C_OUT, ho, wo)[:N]


if __name__ == "__main__":
    key = jax.random.PRNGKey(0)
    kx, kw, kb = jax.random.split(key, 3)

    # Small shapes consistent with the module: 3 input channels; spatial
    # 56 -> conv 54 -> pools 18 -> 6 -> 2.
    N, C, H, W = 8, 3, 56, 56
    x = jax.random.normal(kx, (N, C, H, W), dtype=jnp.float32)

    # Deterministic, PyTorch-style uniform(-1/sqrt(fan_in), 1/sqrt(fan_in)) init.
    fan_in = C_IN * KSIZE * KSIZE
    bound = 1.0 / (fan_in ** 0.5)
    w = jax.random.uniform(kw, (C_OUT, C_IN, KSIZE, KSIZE), jnp.float32, -bound, bound)
    b = jax.random.uniform(kb, (C_OUT,), jnp.float32, -bound, bound)

    out = jax.block_until_ready(model_forward(x, w, b))

    # Plain-JAX reference for sanity.
    ref = lax.conv_general_dilated(x, w, (1, 1), "VALID",
                                   dimension_numbers=("NCHW", "OIHW", "NCHW"))
    ref = ref + b[None, :, None, None]
    for _ in range(3):
        ref = lax.reduce_window(ref, -jnp.inf, lax.max,
                                (1, 1, POOL, POOL), (1, 1, POOL, POOL), "VALID")
    assert out.shape == ref.shape == (N, C_OUT, 2, 2)
    assert jnp.allclose(out, ref, atol=1e-3, rtol=1e-3)

    print("KERNEL_OK")
</pallas_src>

<mosaic_0001>
module attributes {stable_mosaic.version = 11 : i64} {
  func.func @_model_kernel(%arg0: i32, %arg1: memref<81xf32, #tpu.memory_space<smem>>, %arg2: memref<3xf32, #tpu.memory_space<smem>>, %arg3: memref<2x3x56x112xf32, #tpu.memory_space<vmem>>, %arg4: memref<2x6x4xf32, #tpu.memory_space<vmem>>, %arg5: memref<324x110xf32, #tpu.memory_space<vmem>>) attributes {dimension_semantics = [#tpu.dimension_semantics<parallel>], iteration_bounds = array<i64: 2>, scalar_prefetch = 0 : i64, scratch_operands = 1 : i64, tpu.core_type = #tpu.core_type<tc>, window_params = [{transform_indices = @transform_0, window_bounds = array<i64: 81>}, {transform_indices = @transform_1, window_bounds = array<i64: 3>}, {transform_indices = @transform_2, window_bounds = array<i64: 2, 3, 56, 112>}, {transform_indices = @transform_3, window_bounds = array<i64: 2, 6, 4>}]} {
    %c0 = arith.constant 0 : index
    %0 = memref.load %arg1[%c0] : memref<81xf32, #tpu.memory_space<smem>>
    %c1 = arith.constant 1 : index
    %1 = memref.load %arg1[%c1] : memref<81xf32, #tpu.memory_space<smem>>
    %c2 = arith.constant 2 : index
    %2 = memref.load %arg1[%c2] : memref<81xf32, #tpu.memory_space<smem>>
    %c3 = arith.constant 3 : index
    %3 = memref.load %arg1[%c3] : memref<81xf32, #tpu.memory_space<smem>>
    %c4 = arith.constant 4 : index
    %4 = memref.load %arg1[%c4] : memref<81xf32, #tpu.memory_space<smem>>
    %c5 = arith.constant 5 : index
    %5 = memref.load %arg1[%c5] : memref<81xf32, #tpu.memory_space<smem>>
    %c6 = arith.constant 6 : index
    %6 = memref.load %arg1[%c6] : memref<81xf32, #tpu.memory_space<smem>>
    %c7 = arith.constant 7 : index
    %7 = memref.load %arg1[%c7] : memref<81xf32, #tpu.memory_space<smem>>
    %c8 = arith.constant 8 : index
    %8 = memref.load %arg1[%c8] : memref<81xf32, #tpu.memory_space<smem>>
    %c9 = arith.constant 9 : index
    %9 = memref.load %arg1[%c9] : memref<81xf32, #tpu.memory_space<smem>>
    %c10 = arith.constant 10 : index
    %10 = memref.load %arg1[%c10] : memref<81xf32, #tpu.memory_space<smem>>
    %c11 = arith.constant 11 : index
    %11 = memref.load %arg1[%c11] : memref<81xf32, #tpu.memory_space<smem>>
    %c12 = arith.constant 12 : index
    %12 = memref.load %arg1[%c12] : memref<81xf32, #tpu.memory_space<smem>>
    %c13 = arith.constant 13 : index
    %13 = memref.load %arg1[%c13] : memref<81xf32, #tpu.memory_space<smem>>
    %c14 = arith.constant 14 : index
    %14 = memref.load %arg1[%c14] : memref<81xf32, #tpu.memory_space<smem>>
    %c15 = arith.constant 15 : index
    %15 = memref.load %arg1[%c15] : memref<81xf32, #tpu.memory_space<smem>>
    %c16 = arith.constant 16 : index
    %16 = memref.load %arg1[%c16] : memref<81xf32, #tpu.memory_space<smem>>
    %c17 = arith.constant 17 : index
    %17 = memref.load %arg1[%c17] : memref<81xf32, #tpu.memory_space<smem>>
    %c18 = arith.constant 18 : index
    %18 = memref.load %arg1[%c18] : memref<81xf32, #tpu.memory_space<smem>>
    %c19 = arith.constant 19 : index
    %19 = memref.load %arg1[%c19] : memref<81xf32, #tpu.memory_space<smem>>
    %c20 = arith.constant 20 : index
    %20 = memref.load %arg1[%c20] : memref<81xf32, #tpu.memory_space<smem>>
    %c21 = arith.constant 21 : index
    %21 = memref.load %arg1[%c21] : memref<81xf32, #tpu.memory_space<smem>>
    %c22 = arith.constant 22 : index
    %22 = memref.load %arg1[%c22] : memref<81xf32, #tpu.memory_space<smem>>
    %c23 = arith.constant 23 : index
    %23 = memref.load %arg1[%c23] : memref<81xf32, #tpu.memory_space<smem>>
    %c24 = arith.constant 24 : index
    %24 = memref.load %arg1[%c24] : memref<81xf32, #tpu.memory_space<smem>>
    %c25 = arith.constant 25 : index
    %25 = memref.load %arg1[%c25] : memref<81xf32, #tpu.memory_space<smem>>
    %c26 = arith.constant 26 : index
    %26 = memref.load %arg1[%c26] : memref<81xf32, #tpu.memory_space<smem>>
    %c27 = arith.constant 27 : index
    %27 = memref.load %arg1[%c27] : memref<81xf32, #tpu.memory_space<smem>>
    %c28 = arith.constant 28 : index
    %28 = memref.load %arg1[%c28] : memref<81xf32, #tpu.memory_space<smem>>
    %c29 = arith.constant 29 : index
    %29 = memref.load %arg1[%c29] : memref<81xf32, #tpu.memory_space<smem>>
    %c30 = arith.constant 30 : index
    %30 = memref.load %arg1[%c30] : memref<81xf32, #tpu.memory_space<smem>>
    %c31 = arith.constant 31 : index
    %31 = memref.load %arg1[%c31] : memref<81xf32, #tpu.memory_space<smem>>
    %c32 = arith.constant 32 : index
    %32 = memref.load %arg1[%c32] : memref<81xf32, #tpu.memory_space<smem>>
    %c33 = arith.constant 33 : index
    %33 = memref.load %arg1[%c33] : memref<81xf32, #tpu.memory_space<smem>>
    %c34 = arith.constant 34 : index
    %34 = memref.load %arg1[%c34] : memref<81xf32, #tpu.memory_space<smem>>
    %c35 = arith.constant 35 : index
    %35 = memref.load %arg1[%c35] : memref<81xf32, #tpu.memory_space<smem>>
    %c36 = arith.constant 36 : index
    %36 = memref.load %arg1[%c36] : memref<81xf32, #tpu.memory_space<smem>>
    %c37 = arith.constant 37 : index
    %37 = memref.load %arg1[%c37] : memref<81xf32, #tpu.memory_space<smem>>
    %c38 = arith.constant 38 : index
    %38 = memref.load %arg1[%c38] : memref<81xf32, #tpu.memory_space<smem>>
    %c39 = arith.constant 39 : index
    %39 = memref.load %arg1[%c39] : memref<81xf32, #tpu.memory_space<smem>>
    %c40 = arith.constant 40 : index
    %40 = memref.load %arg1[%c40] : memref<81xf32, #tpu.memory_space<smem>>
    %c41 = arith.constant 41 : index
    %41 = memref.load %arg1[%c41] : memref<81xf32, #tpu.memory_space<smem>>
    %c42 = arith.constant 42 : index
    %42 = memref.load %arg1[%c42] : memref<81xf32, #tpu.memory_space<smem>>
    %c43 = arith.constant 43 : index
    %43 = memref.load %arg1[%c43] : memref<81xf32, #tpu.memory_space<smem>>
    %c44 = arith.constant 44 : index
    %44 = memref.load %arg1[%c44] : memref<81xf32, #tpu.memory_space<smem>>
    %c45 = arith.constant 45 : index
    %45 = memref.load %arg1[%c45] : memref<81xf32, #tpu.memory_space<smem>>
    %c46 = arith.constant 46 : index
    %46 = memref.load %arg1[%c46] : memref<81xf32, #tpu.memory_space<smem>>
    %c47 = arith.constant 47 : index
    %47 = memref.load %arg1[%c47] : memref<81xf32, #tpu.memory_space<smem>>
    %c48 = arith.constant 48 : index
    %48 = memref.load %arg1[%c48] : memref<81xf32, #tpu.memory_space<smem>>
    %c49 = arith.constant 49 : index
    %49 = memref.load %arg1[%c49] : memref<81xf32, #tpu.memory_space<smem>>
    %c50 = arith.constant 50 : index
    %50 = memref.load %arg1[%c50] : memref<81xf32, #tpu.memory_space<smem>>
    %c51 = arith.constant 51 : index
    %51 = memref.load %arg1[%c51] : memref<81xf32, #tpu.memory_space<smem>>
    %c52 = arith.constant 52 : index
    %52 = memref.load %arg1[%c52] : memref<81xf32, #tpu.memory_space<smem>>
    %c53 = arith.constant 53 : index
    %53 = memref.load %arg1[%c53] : memref<81xf32, #tpu.memory_space<smem>>
    %c54 = arith.constant 54 : index
    %54 = memref.load %arg1[%c54] : memref<81xf32, #tpu.memory_space<smem>>
    %c55 = arith.constant 55 : index
    %55 = memref.load %arg1[%c55] : memref<81xf32, #tpu.memory_space<smem>>
    %c56 = arith.constant 56 : index
    %56 = memref.load %arg1[%c56] : memref<81xf32, #tpu.memory_space<smem>>
    %c57 = arith.constant 57 : index
    %57 = memref.load %arg1[%c57] : memref<81xf32, #tpu.memory_space<smem>>
    %c58 = arith.constant 58 : index
    %58 = memref.load %arg1[%c58] : memref<81xf32, #tpu.memory_space<smem>>
    %c59 = arith.constant 59 : index
    %59 = memref.load %arg1[%c59] : memref<81xf32, #tpu.memory_space<smem>>
    %c60 = arith.constant 60 : index
    %60 = memref.load %arg1[%c60] : memref<81xf32, #tpu.memory_space<smem>>
    %c61 = arith.constant 61 : index
    %61 = memref.load %arg1[%c61] : memref<81xf32, #tpu.memory_space<smem>>
    %c62 = arith.constant 62 : index
    %62 = memref.load %arg1[%c62] : memref<81xf32, #tpu.memory_space<smem>>
    %c63 = arith.constant 63 : index
    %63 = memref.load %arg1[%c63] : memref<81xf32, #tpu.memory_space<smem>>
    %c64 = arith.constant 64 : index
    %64 = memref.load %arg1[%c64] : memref<81xf32, #tpu.memory_space<smem>>
    %c65 = arith.constant 65 : index
    %65 = memref.load %arg1[%c65] : memref<81xf32, #tpu.memory_space<smem>>
    %c66 = arith.constant 66 : index
    %66 = memref.load %arg1[%c66] : memref<81xf32, #tpu.memory_space<smem>>
    %c67 = arith.constant 67 : index
    %67 = memref.load %arg1[%c67] : memref<81xf32, #tpu.memory_space<smem>>
    %c68 = arith.constant 68 : index
    %68 = memref.load %arg1[%c68] : memref<81xf32, #tpu.memory_space<smem>>
    %c69 = arith.constant 69 : index
    %69 = memref.load %arg1[%c69] : memref<81xf32, #tpu.memory_space<smem>>
    %c70 = arith.constant 70 : index
    %70 = memref.load %arg1[%c70] : memref<81xf32, #tpu.memory_space<smem>>
    %c71 = arith.constant 71 : index
    %71 = memref.load %arg1[%c71] : memref<81xf32, #tpu.memory_space<smem>>
    %c72 = arith.constant 72 : index
    %72 = memref.load %arg1[%c72] : memref<81xf32, #tpu.memory_space<smem>>
    %c73 = arith.constant 73 : index
    %73 = memref.load %arg1[%c73] : memref<81xf32, #tpu.memory_space<smem>>
    %c74 = arith.constant 74 : index
    %74 = memref.load %arg1[%c74] : memref<81xf32, #tpu.memory_space<smem>>
    %c75 = arith.constant 75 : index
    %75 = memref.load %arg1[%c75] : memref<81xf32, #tpu.memory_space<smem>>
    %c76 = arith.constant 76 : index
    %76 = memref.load %arg1[%c76] : memref<81xf32, #tpu.memory_space<smem>>
    %c77 = arith.constant 77 : index
    %77 = memref.load %arg1[%c77] : memref<81xf32, #tpu.memory_space<smem>>
    %c78 = arith.constant 78 : index
    %78 = memref.load %arg1[%c78] : memref<81xf32, #tpu.memory_space<smem>>
    %c79 = arith.constant 79 : index
    %79 = memref.load %arg1[%c79] : memref<81xf32, #tpu.memory_space<smem>>
    %c80 = arith.constant 80 : index
    %80 = memref.load %arg1[%c80] : memref<81xf32, #tpu.memory_space<smem>>
    %c0_0 = arith.constant 0 : index
    %81 = memref.load %arg2[%c0_0] : memref<3xf32, #tpu.memory_space<smem>>
    %c1_1 = arith.constant 1 : index
    %82 = memref.load %arg2[%c1_1] : memref<3xf32, #tpu.memory_space<smem>>
    %c2_2 = arith.constant 2 : index
    %83 = memref.load %arg2[%c2_2] : memref<3xf32, #tpu.memory_space<smem>>
    %cst = arith.constant 0.000000e+00 : f32
    %84 = vector.broadcast %cst : f32 to vector<54x110xf32>
    %cst_3 = arith.constant 0.000000e+00 : f32
    %85 = vector.broadcast %cst_3 : f32 to vector<54x110xf32>
    %cst_4 = arith.constant 0.000000e+00 : f32
    %86 = vector.broadcast %cst_4 : f32 to vector<54x110xf32>
    %c0_5 = arith.constant 0 : index
    %c0_6 = arith.constant 0 : index
    %c0_7 = arith.constant 0 : index
    %c0_8 = arith.constant 0 : index
    %87 = vector.load %arg3[%c0_5, %c0_6, %c0_7, %c0_8] : memref<2x3x56x112xf32, #tpu.memory_space<vmem>>, vector<1x1x56x112xf32>
    %88 = vector.shape_cast %87 : vector<1x1x56x112xf32> to vector<56x112xf32>
    %89 = vector.extract_strided_slice %88 {offsets = [0, 0], sizes = [54, 110], strides = [1, 1]} : vector<56x112xf32> to vector<54x110xf32>
    %90 = vector.broadcast %0 : f32 to vector<54x110xf32>
    %91 = arith.mulf %90, %89 : vector<54x110xf32>
    %92 = arith.addf %84, %91 : vector<54x110xf32>
    %93 = vector.broadcast %27 : f32 to vector<54x110xf32>
    %94 = arith.mulf %93, %89 : vector<54x110xf32>
    %95 = arith.addf %85, %94 : vector<54x110xf32>
    %96 = vector.broadcast %54 : f32 to vector<54x110xf32>
    %97 = arith.mulf %96, %89 : vector<54x110xf32>
    %98 = arith.addf %86, %97 : vector<54x110xf32>
    %99 = vector.extract_strided_slice %88 {offsets = [0, 1], sizes = [54, 110], strides = [1, 1]} : vector<56x112xf32> to vector<54x110xf32>
    %100 = vector.broadcast %1 : f32 to vector<54x110xf32>
    %101 = arith.mulf %100, %99 : vector<54x110xf32>
    %102 = arith.addf %92, %101 : vector<54x110xf32>
    %103 = vector.broadcast %28 : f32 to vector<54x110xf32>
    %104 = arith.mulf %103, %99 : vector<54x110xf32>
    %105 = arith.addf %95, %104 : vector<54x110xf32>
    %106 = vector.broadcast %55 : f32 to vector<54x110xf32>
    %107 = arith.mulf %106, %99 : vector<54x110xf32>
    %108 = arith.addf %98, %107 : vector<54x110xf32>
    %109 = vector.extract_strided_slice %88 {offsets = [0, 2], sizes = [54, 110], strides = [1, 1]} : vector<56x112xf32> to vector<54x110xf32>
    %110 = vector.broadcast %2 : f32 to vector<54x110xf32>
    %111 = arith.mulf %110, %109 : vector<54x110xf32>
    %112 = arith.addf %102, %111 : vector<54x110xf32>
    %113 = vector.broadcast %29 : f32 to vector<54x110xf32>
    %114 = arith.mulf %113, %109 : vector<54x110xf32>
    %115 = arith.addf %105, %114 : vector<54x110xf32>
    %116 = vector.broadcast %56 : f32 to vector<54x110xf32>
    %117 = arith.mulf %116, %109 : vector<54x110xf32>
    %118 = arith.addf %108, %117 : vector<54x110xf32>
    %119 = vector.extract_strided_slice %88 {offsets = [1, 0], sizes = [54, 110], strides = [1, 1]} : vector<56x112xf32> to vector<54x110xf32>
    %120 = vector.broadcast %3 : f32 to vector<54x110xf32>
    %121 = arith.mulf %120, %119 : vector<54x110xf32>
    %122 = arith.addf %112, %121 : vector<54x110xf32>
    %123 = vector.broadcast %30 : f32 to vector<54x110xf32>
    %124 = arith.mulf %123, %119 : vector<54x110xf32>
    %125 = arith.addf %115, %124 : vector<54x110xf32>
    %126 = vector.broadcast %57 : f32 to vector<54x110xf32>
    %127 = arith.mulf %126, %119 : vector<54x110xf32>
    %128 = arith.addf %118, %127 : vector<54x110xf32>
    %129 = vector.extract_strided_slice %88 {offsets = [1, 1], sizes = [54, 110], strides = [1, 1]} : vector<56x112xf32> to vector<54x110xf32>
    %130 = vector.broadcast %4 : f32 to vector<54x110xf32>
    %131 = arith.mulf %130, %129 : vector<54x110xf32>
    %132 = arith.addf %122, %131 : vector<54x110xf32>
    %133 = vector.broadcast %31 : f32 to vector<54x110xf32>
    %134 = arith.mulf %133, %129 : vector<54x110xf32>
    %135 = arith.addf %125, %134 : vector<54x110xf32>
    %136 = vector.broadcast %58 : f32 to vector<54x110xf32>
    %137 = arith.mulf %136, %129 : vector<54x110xf32>
    %138 = arith.addf %128, %137 : vector<54x110xf32>
    %139 = vector.extract_strided_slice %88 {offsets = [1, 2], sizes = [54, 110], strides = [1, 1]} : vector<56x112xf32> to vector<54x110xf32>
    %140 = vector.broadcast %5 : f32 to vector<54x110xf32>
    %141 = arith.mulf %140, %139 : vector<54x110xf32>
    %142 = arith.addf %132, %141 : vector<54x110xf32>
    %143 = vector.broadcast %32 : f32 to vector<54x110xf32>
    %144 = arith.mulf %143, %139 : vector<54x110xf32>
    %145 = arith.addf %135, %144 : vector<54x110xf32>
    %146 = vector.broadcast %59 : f32 to vector<54x110xf32>
    %147 = arith.mulf %146, %139 : vector<54x110xf32>
    %148 = arith.addf %138, %147 : vector<54x110xf32>
    %149 = vector.extract_strided_slice %88 {offsets = [2, 0], sizes = [54, 110], strides = [1, 1]} : vector<56x112xf32> to vector<54x110xf32>
    %150 = vector.broadcast %6 : f32 to vector<54x110xf32>
    %151 = arith.mulf %150, %149 : vector<54x110xf32>
    %152 = arith.addf %142, %151 : vector<54x110xf32>
    %153 = vector.broadcast %33 : f32 to vector<54x110xf32>
    %154 = arith.mulf %153, %149 : vector<54x110xf32>
    %155 = arith.addf %145, %154 : vector<54x110xf32>
    %156 = vector.broadcast %60 : f32 to vector<54x110xf32>
    %157 = arith.mulf %156, %149 : vector<54x110xf32>
    %158 = arith.addf %148, %157 : vector<54x110xf32>
    %159 = vector.extract_strided_slice %88 {offsets = [2, 1], sizes = [54, 110], strides = [1, 1]} : vector<56x112xf32> to vector<54x110xf32>
    %160 = vector.broadcast %7 : f32 to vector<54x110xf32>
    %161 = arith.mulf %160, %159 : vector<54x110xf32>
    %162 = arith.addf %152, %161 : vector<54x110xf32>
    %163 = vector.broadcast %34 : f32 to vector<54x110xf32>
    %164 = arith.mulf %163, %159 : vector<54x110xf32>
    %165 = arith.addf %155, %164 : vector<54x110xf32>
    %166 = vector.broadcast %61 : f32 to vector<54x110xf32>
    %167 = arith.mulf %166, %159 : vector<54x110xf32>
    %168 = arith.addf %158, %167 : vector<54x110xf32>
    %169 = vector.extract_strided_slice %88 {offsets = [2, 2], sizes = [54, 110], strides = [1, 1]} : vector<56x112xf32> to vector<54x110xf32>
    %170 = vector.broadcast %8 : f32 to vector<54x110xf32>
    %171 = arith.mulf %170, %169 : vector<54x110xf32>
    %172 = arith.addf %162, %171 : vector<54x110xf32>
    %173 = vector.broadcast %35 : f32 to vector<54x110xf32>
    %174 = arith.mulf %173, %169 : vector<54x110xf32>
    %175 = arith.addf %165, %174 : vector<54x110xf32>
    %176 = vector.broadcast %62 : f32 to vector<54x110xf32>
    %177 = arith.mulf %176, %169 : vector<54x110xf32>
    %178 = arith.addf %168, %177 : vector<54x110xf32>
    %c0_9 = arith.constant 0 : index
    %c1_10 = arith.constant 1 : index
    %c0_11 = arith.constant 0 : index
    %c0_12 = arith.constant 0 : index
    %179 = vector.load %arg3[%c0_9, %c1_10, %c0_11, %c0_12] : memref<2x3x56x112xf32, #tpu.memory_space<vmem>>, vector<1x1x56x112xf32>
    %180 = vector.shape_cast %179 : vector<1x1x56x112xf32> to vector<56x112xf32>
    %181 = vector.extract_strided_slice %180 {offsets = [0, 0], sizes = [54, 110], strides = [1, 1]} : vector<56x112xf32> to vector<54x110xf32>
    %182 = vector.broadcast %9 : f32 to vector<54x110xf32>
    %183 = arith.mulf %182, %181 : vector<54x110xf32>
    %184 = arith.addf %172, %183 : vector<54x110xf32>
    %185 = vector.broadcast %36 : f32 to vector<54x110xf32>
    %186 = arith.mulf %185, %181 : vector<54x110xf32>
    %187 = arith.addf %175, %186 : vector<54x110xf32>
    %188 = vector.broadcast %63 : f32 to vector<54x110xf32>
    %189 = arith.mulf %188, %181 : vector<54x110xf32>
    %190 = arith.addf %178, %189 : vector<54x110xf32>
    %191 = vector.extract_strided_slice %180 {offsets = [0, 1], sizes = [54, 110], strides = [1, 1]} : vector<56x112xf32> to vector<54x110xf32>
    %192 = vector.broadcast %10 : f32 to vector<54x110xf32>
    %193 = arith.mulf %192, %191 : vector<54x110xf32>
    %194 = arith.addf %184, %193 : vector<54x110xf32>
    %195 = vector.broadcast %37 : f32 to vector<54x110xf32>
    %196 = arith.mulf %195, %191 : vector<54x110xf32>
    %197 = arith.addf %187, %196 : vector<54x110xf32>
    %198 = vector.broadcast %64 : f32 to vector<54x110xf32>
    %199 = arith.mulf %198, %191 : vector<54x110xf32>
    %200 = arith.addf %190, %199 : vector<54x110xf32>
    %201 = vector.extract_strided_slice %180 {offsets = [0, 2], sizes = [54, 110], strides = [1, 1]} : vector<56x112xf32> to vector<54x110xf32>
    %202 = vector.broadcast %11 : f32 to vector<54x110xf32>
    %203 = arith.mulf %202, %201 : vector<54x110xf32>
    %204 = arith.addf %194, %203 : vector<54x110xf32>
    %205 = vector.broadcast %38 : f32 to vector<54x110xf32>
    %206 = arith.mulf %205, %201 : vector<54x110xf32>
    %207 = arith.addf %197, %206 : vector<54x110xf32>
    %208 = vector.broadcast %65 : f32 to vector<54x110xf32>
    %209 = arith.mulf %208, %201 : vector<54x110xf32>
    %210 = arith.addf %200, %209 : vector<54x110xf32>
    %211 = vector.extract_strided_slice %180 {offsets = [1, 0], sizes = [54, 110], strides = [1, 1]} : vector<56x112xf32> to vector<54x110xf32>
    %212 = vector.broadcast %12 : f32 to vector<54x110xf32>
    %213 = arith.mulf %212, %211 : vector<54x110xf32>
    %214 = arith.addf %204, %213 : vector<54x110xf32>
    %215 = vector.broadcast %39 : f32 to vector<54x110xf32>
    %216 = arith.mulf %215, %211 : vector<54x110xf32>
    %217 = arith.addf %207, %216 : vector<54x110xf32>
    %218 = vector.broadcast %66 : f32 to vector<54x110xf32>
    %219 = arith.mulf %218, %211 : vector<54x110xf32>
    %220 = arith.addf %210, %219 : vector<54x110xf32>
    %221 = vector.extract_strided_slice %180 {offsets = [1, 1], sizes = [54, 110], strides = [1, 1]} : vector<56x112xf32> to vector<54x110xf32>
    %222 = vector.broadcast %13 : f32 to vector<54x110xf32>
    %223 = arith.mulf %222, %221 : vector<54x110xf32>
    %224 = arith.addf %214, %223 : vector<54x110xf32>
    %225 = vector.broadcast %40 : f32 to vector<54x110xf32>
    %226 = arith.mulf %225, %221 : vector<54x110xf32>
    %227 = arith.addf %217, %226 : vector<54x110xf32>
    %228 = vector.broadcast %67 : f32 to vector<54x110xf32>
    %229 = arith.mulf %228, %221 : vector<54x110xf32>
    %230 = arith.addf %220, %229 : vector<54x110xf32>
    %231 = vector.extract_strided_slice %180 {offsets = [1, 2], sizes = [54, 110], strides = [1, 1]} : vector<56x112xf32> to vector<54x110xf32>
    %232 = vector.broadcast %14 : f32 to vector<54x110xf32>
    %233 = arith.mulf %232, %231 : vector<54x110xf32>
    %234 = arith.addf %224, %233 : vector<54x110xf32>
    %235 = vector.broadcast %41 : f32 to vector<54x110xf32>
    %236 = arith.mulf %235, %231 : vector<54x110xf32>
    %237 = arith.addf %227, %236 : vector<54x110xf32>
    %238 = vector.broadcast %68 : f32 to vector<54x110xf32>
    %239 = arith.mulf %238, %231 : vector<54x110xf32>
    %240 = arith.addf %230, %239 : vector<54x110xf32>
    %241 = vector.extract_strided_slice %180 {offsets = [2, 0], sizes = [54, 110], strides = [1, 1]} : vector<56x112xf32> to vector<54x110xf32>
    %242 = vector.broadcast %15 : f32 to vector<54x110xf32>
    %243 = arith.mulf %242, %241 : vector<54x110xf32>
    %244 = arith.addf %234, %243 : vector<54x110xf32>
    %245 = vector.broadcast %42 : f32 to vector<54x110xf32>
    %246 = arith.mulf %245, %241 : vector<54x110xf32>
    %247 = arith.addf %237, %246 : vector<54x110xf32>
    %248 = vector.broadcast %69 : f32 to vector<54x110xf32>
    %249 = arith.mulf %248, %241 : vector<54x110xf32>
    %250 = arith.addf %240, %249 : vector<54x110xf32>
    %251 = vector.extract_strided_slice %180 {offsets = [2, 1], sizes = [54, 110], strides = [1, 1]} : vector<56x112xf32> to vector<54x110xf32>
    %252 = vector.broadcast %16 : f32 to vector<54x110xf32>
    %253 = arith.mulf %252, %251 : vector<54x110xf32>
    %254 = arith.addf %244, %253 : vector<54x110xf32>
    %255 = vector.broadcast %43 : f32 to vector<54x110xf32>
    %256 = arith.mulf %255, %251 : vector<54x110xf32>
    %257 = arith.addf %247, %256 : vector<54x110xf32>
    %258 = vector.broadcast %70 : f32 to vector<54x110xf32>
    %259 = arith.mulf %258, %251 : vector<54x110xf32>
    %260 = arith.addf %250, %259 : vector<54x110xf32>
    %261 = vector.extract_strided_slice %180 {offsets = [2, 2], sizes = [54, 110], strides = [1, 1]} : vector<56x112xf32> to vector<54x110xf32>
    %262 = vector.broadcast %17 : f32 to vector<54x110xf32>
    %263 = arith.mulf %262, %261 : vector<54x110xf32>
    %264 = arith.addf %254, %263 : vector<54x110xf32>
    %265 = vector.broadcast %44 : f32 to vector<54x110xf32>
    %266 = arith.mulf %265, %261 : vector<54x110xf32>
    %267 = arith.addf %257, %266 : vector<54x110xf32>
    %268 = vector.broadcast %71 : f32 to vector<54x110xf32>
    %269 = arith.mulf %268, %261 : vector<54x110xf32>
    %270 = arith.addf %260, %269 : vector<54x110xf32>
    %c0_13 = arith.constant 0 : index
    %c2_14 = arith.constant 2 : index
    %c0_15 = arith.constant 0 : index
    %c0_16 = arith.constant 0 : index
    %271 = vector.load %arg3[%c0_13, %c2_14, %c0_15, %c0_16] : memref<2x3x56x112xf32, #tpu.memory_space<vmem>>, vector<1x1x56x112xf32>
    %272 = vector.shape_cast %271 : vector<1x1x56x112xf32> to vector<56x112xf32>
    %273 = vector.extract_strided_slice %272 {offsets = [0, 0], sizes = [54, 110], strides = [1, 1]} : vector<56x112xf32> to vector<54x110xf32>
    %274 = vector.broadcast %18 : f32 to vector<54x110xf32>
    %275 = arith.mulf %274, %273 : vector<54x110xf32>
    %276 = arith.addf %264, %275 : vector<54x110xf32>
    %277 = vector.broadcast %45 : f32 to vector<54x110xf32>
    %278 = arith.mulf %277, %273 : vector<54x110xf32>
    %279 = arith.addf %267, %278 : vector<54x110xf32>
    %280 = vector.broadcast %72 : f32 to vector<54x110xf32>
    %281 = arith.mulf %280, %273 : vector<54x110xf32>
    %282 = arith.addf %270, %281 : vector<54x110xf32>
    %283 = vector.extract_strided_slice %272 {offsets = [0, 1], sizes = [54, 110], strides = [1, 1]} : vector<56x112xf32> to vector<54x110xf32>
    %284 = vector.broadcast %19 : f32 to vector<54x110xf32>
    %285 = arith.mulf %284, %283 : vector<54x110xf32>
    %286 = arith.addf %276, %285 : vector<54x110xf32>
    %287 = vector.broadcast %46 : f32 to vector<54x110xf32>
    %288 = arith.mulf %287, %283 : vector<54x110xf32>
    %289 = arith.addf %279, %288 : vector<54x110xf32>
    %290 = vector.broadcast %73 : f32 to vector<54x110xf32>
    %291 = arith.mulf %290, %283 : vector<54x110xf32>
    %292 = arith.addf %282, %291 : vector<54x110xf32>
    %293 = vector.extract_strided_slice %272 {offsets = [0, 2], sizes = [54, 110], strides = [1, 1]} : vector<56x112xf32> to vector<54x110xf32>
    %294 = vector.broadcast %20 : f32 to vector<54x110xf32>
    %295 = arith.mulf %294, %293 : vector<54x110xf32>
    %296 = arith.addf %286, %295 : vector<54x110xf32>
    %297 = vector.broadcast %47 : f32 to vector<54x110xf32>
    %298 = arith.mulf %297, %293 : vector<54x110xf32>
    %299 = arith.addf %289, %298 : vector<54x110xf32>
    %300 = vector.broadcast %74 : f32 to vector<54x110xf32>
    %301 = arith.mulf %300, %293 : vector<54x110xf32>
    %302 = arith.addf %292, %301 : vector<54x110xf32>
    %303 = vector.extract_strided_slice %272 {offsets = [1, 0], sizes = [54, 110], strides = [1, 1]} : vector<56x112xf32> to vector<54x110xf32>
    %304 = vector.broadcast %21 : f32 to vector<54x110xf32>
    %305 = arith.mulf %304, %303 : vector<54x110xf32>
    %306 = arith.addf %296, %305 : vector<54x110xf32>
    %307 = vector.broadcast %48 : f32 to vector<54x110xf32>
    %308 = arith.mulf %307, %303 : vector<54x110xf32>
    %309 = arith.addf %299, %308 : vector<54x110xf32>
    %310 = vector.broadcast %75 : f32 to vector<54x110xf32>
    %311 = arith.mulf %310, %303 : vector<54x110xf32>
    %312 = arith.addf %302, %311 : vector<54x110xf32>
    %313 = vector.extract_strided_slice %272 {offsets = [1, 1], sizes = [54, 110], strides = [1, 1]} : vector<56x112xf32> to vector<54x110xf32>
    %314 = vector.broadcast %22 : f32 to vector<54x110xf32>
    %315 = arith.mulf %314, %313 : vector<54x110xf32>
    %316 = arith.addf %306, %315 : vector<54x110xf32>
    %317 = vector.broadcast %49 : f32 to vector<54x110xf32>
    %318 = arith.mulf %317, %313 : vector<54x110xf32>
    %319 = arith.addf %309, %318 : vector<54x110xf32>
    %320 = vector.broadcast %76 : f32 to vector<54x110xf32>
    %321 = arith.mulf %320, %313 : vector<54x110xf32>
    %322 = arith.addf %312, %321 : vector<54x110xf32>
    %323 = vector.extract_strided_slice %272 {offsets = [1, 2], sizes = [54, 110], strides = [1, 1]} : vector<56x112xf32> to vector<54x110xf32>
    %324 = vector.broadcast %23 : f32 to vector<54x110xf32>
    %325 = arith.mulf %324, %323 : vector<54x110xf32>
    %326 = arith.addf %316, %325 : vector<54x110xf32>
    %327 = vector.broadcast %50 : f32 to vector<54x110xf32>
    %328 = arith.mulf %327, %323 : vector<54x110xf32>
    %329 = arith.addf %319, %328 : vector<54x110xf32>
    %330 = vector.broadcast %77 : f32 to vector<54x110xf32>
    %331 = arith.mulf %330, %323 : vector<54x110xf32>
    %332 = arith.addf %322, %331 : vector<54x110xf32>
    %333 = vector.extract_strided_slice %272 {offsets = [2, 0], sizes = [54, 110], strides = [1, 1]} : vector<56x112xf32> to vector<54x110xf32>
    %334 = vector.broadcast %24 : f32 to vector<54x110xf32>
    %335 = arith.mulf %334, %333 : vector<54x110xf32>
    %336 = arith.addf %326, %335 : vector<54x110xf32>
    %337 = vector.broadcast %51 : f32 to vector<54x110xf32>
    %338 = arith.mulf %337, %333 : vector<54x110xf32>
    %339 = arith.addf %329, %338 : vector<54x110xf32>
    %340 = vector.broadcast %78 : f32 to vector<54x110xf32>
    %341 = arith.mulf %340, %333 : vector<54x110xf32>
    %342 = arith.addf %332, %341 : vector<54x110xf32>
    %343 = vector.extract_strided_slice %272 {offsets = [2, 1], sizes = [54, 110], strides = [1, 1]} : vector<56x112xf32> to vector<54x110xf32>
    %344 = vector.broadcast %25 : f32 to vector<54x110xf32>
    %345 = arith.mulf %344, %343 : vector<54x110xf32>
    %346 = arith.addf %336, %345 : vector<54x110xf32>
    %347 = vector.broadcast %52 : f32 to vector<54x110xf32>
    %348 = arith.mulf %347, %343 : vector<54x110xf32>
    %349 = arith.addf %339, %348 : vector<54x110xf32>
    %350 = vector.broadcast %79 : f32 to vector<54x110xf32>
    %351 = arith.mulf %350, %343 : vector<54x110xf32>
    %352 = arith.addf %342, %351 : vector<54x110xf32>
    %353 = vector.extract_strided_slice %272 {offsets = [2, 2], sizes = [54, 110], strides = [1, 1]} : vector<56x112xf32> to vector<54x110xf32>
    %354 = vector.broadcast %26 : f32 to vector<54x110xf32>
    %355 = arith.mulf %354, %353 : vector<54x110xf32>
    %356 = arith.addf %346, %355 : vector<54x110xf32>
    %357 = vector.broadcast %53 : f32 to vector<54x110xf32>
    %358 = arith.mulf %357, %353 : vector<54x110xf32>
    %359 = arith.addf %349, %358 : vector<54x110xf32>
    %360 = vector.broadcast %80 : f32 to vector<54x110xf32>
    %361 = arith.mulf %360, %353 : vector<54x110xf32>
    %362 = arith.addf %352, %361 : vector<54x110xf32>
    %363 = vector.broadcast %81 : f32 to vector<54x110xf32>
    %364 = arith.addf %356, %363 : vector<54x110xf32>
    %c0_17 = arith.constant 0 : index
    %c0_18 = arith.constant 0 : index
    %365 = vector.load %arg5[%c0_17, %c0_18] : memref<324x110xf32, #tpu.memory_space<vmem>>, vector<54x110xf32>
    tpu.vector_store %arg5[%c0_17, %c0_18], %364 {strides = array<i32>} : memref<324x110xf32, #tpu.memory_space<vmem>>, vector<54x110xf32>,
    %366 = vector.broadcast %82 : f32 to vector<54x110xf32>
    %367 = arith.addf %359, %366 : vector<54x110xf32>
    %c54_19 = arith.constant 54 : index
    %c0_20 = arith.constant 0 : index
    %368 = vector.load %arg5[%c54_19, %c0_20] : memref<324x110xf32, #tpu.memory_space<vmem>>, vector<54x110xf32>
    tpu.vector_store %arg5[%c54_19, %c0_20], %367 {strides = array<i32>} : memref<324x110xf32, #tpu.memory_space<vmem>>, vector<54x110xf32>,
    %369 = vector.broadcast %83 : f32 to vector<54x110xf32>
    %370 = arith.addf %362, %369 : vector<54x110xf32>
    %c108 = arith.constant 108 : index
    %c0_21 = arith.constant 0 : index
    %371 = vector.load %arg5[%c108, %c0_21] : memref<324x110xf32, #tpu.memory_space<vmem>>, vector<54x110xf32>
    tpu.vector_store %arg5[%c108, %c0_21], %370 {strides = array<i32>} : memref<324x110xf32, #tpu.memory_space<vmem>>, vector<54x110xf32>,
    %cst_22 = arith.constant 0.000000e+00 : f32
    %372 = vector.broadcast %cst_22 : f32 to vector<54x110xf32>
    %cst_23 = arith.constant 0.000000e+00 : f32
    %373 = vector.broadcast %cst_23 : f32 to vector<54x110xf32>
    %cst_24 = arith.constant 0.000000e+00 : f32
    %374 = vector.broadcast %cst_24 : f32 to vector<54x110xf32>
    %c1_25 = arith.constant 1 : index
    %c0_26 = arith.constant 0 : index
    %c0_27 = arith.constant 0 : index
    %c0_28 = arith.constant 0 : index
    %375 = vector.load %arg3[%c1_25, %c0_26, %c0_27, %c0_28] : memref<2x3x56x112xf32, #tpu.memory_space<vmem>>, vector<1x1x56x112xf32>
    %376 = vector.shape_cast %375 : vector<1x1x56x112xf32> to vector<56x112xf32>
    %377 = vector.extract_strided_slice %376 {offsets = [0, 0], sizes = [54, 110], strides = [1, 1]} : vector<56x112xf32> to vector<54x110xf32>
    %378 = vector.broadcast %0 : f32 to vector<54x110xf32>
    %379 = arith.mulf %378, %377 : vector<54x110xf32>
    %380 = arith.addf %372, %379 : vector<54x110xf32>
    %381 = vector.broadcast %27 : f32 to vector<54x110xf32>
    %382 = arith.mulf %381, %377 : vector<54x110xf32>
    %383 = arith.addf %373, %382 : vector<54x110xf32>
    %384 = vector.broadcast %54 : f32 to vector<54x110xf32>
    %385 = arith.mulf %384, %377 : vector<54x110xf32>
    %386 = arith.addf %374, %385 : vector<54x110xf32>
    %387 = vector.extract_strided_slice %376 {offsets = [0, 1], sizes = [54, 110], strides = [1, 1]} : vector<56x112xf32> to vector<54x110xf32>
    %388 = vector.broadcast %1 : f32 to vector<54x110xf32>
    %389 = arith.mulf %388, %387 : vector<54x110xf32>
    %390 = arith.addf %380, %389 : vector<54x110xf32>
    %391 = vector.broadcast %28 : f32 to vector<54x110xf32>
    %392 = arith.mulf %391, %387 : vector<54x110xf32>
    %393 = arith.addf %383, %392 : vector<54x110xf32>
    %394 = vector.broadcast %55 : f32 to vector<54x110xf32>
    %395 = arith.mulf %394, %387 : vector<54x110xf32>
    %396 = arith.addf %386, %395 : vector<54x110xf32>
    %397 = vector.extract_strided_slice %376 {offsets = [0, 2], sizes = [54, 110], strides = [1, 1]} : vector<56x112xf32> to vector<54x110xf32>
    %398 = vector.broadcast %2 : f32 to vector<54x110xf32>
    %399 = arith.mulf %398, %397 : vector<54x110xf32>
    %400 = arith.addf %390, %399 : vector<54x110xf32>
    %401 = vector.broadcast %29 : f32 to vector<54x110xf32>
    %402 = arith.mulf %401, %397 : vector<54x110xf32>
    %403 = arith.addf %393, %402 : vector<54x110xf32>
    %404 = vector.broadcast %56 : f32 to vector<54x110xf32>
    %405 = arith.mulf %404, %397 : vector<54x110xf32>
    %406 = arith.addf %396, %405 : vector<54x110xf32>
    %407 = vector.extract_strided_slice %376 {offsets = [1, 0], sizes = [54, 110], strides = [1, 1]} : vector<56x112xf32> to vector<54x110xf32>
    %408 = vector.broadcast %3 : f32 to vector<54x110xf32>
    %409 = arith.mulf %408, %407 : vector<54x110xf32>
    %410 = arith.addf %400, %409 : vector<54x110xf32>
    %411 = vector.broadcast %30 : f32 to vector<54x110xf32>
    %412 = arith.mulf %411, %407 : vector<54x110xf32>
    %413 = arith.addf %403, %412 : vector<54x110xf32>
    %414 = vector.broadcast %57 : f32 to vector<54x110xf32>
    %415 = arith.mulf %414, %407 : vector<54x110xf32>
    %416 = arith.addf %406, %415 : vector<54x110xf32>
    %417 = vector.extract_strided_slice %376 {offsets = [1, 1], sizes = [54, 110], strides = [1, 1]} : vector<56x112xf32> to vector<54x110xf32>
    %418 = vector.broadcast %4 : f32 to vector<54x110xf32>
    %419 = arith.mulf %418, %417 : vector<54x110xf32>
    %420 = arith.addf %410, %419 : vector<54x110xf32>
    %421 = vector.broadcast %31 : f32 to vector<54x110xf32>
    %422 = arith.mulf %421, %417 : vector<54x110xf32>
    %423 = arith.addf %413, %422 : vector<54x110xf32>
    %424 = vector.broadcast %58 : f32 to vector<54x110xf32>
    %425 = arith.mulf %424, %417 : vector<54x110xf32>
    %426 = arith.addf %416, %425 : vector<54x110xf32>
    %427 = vector.extract_strided_slice %376 {offsets = [1, 2], sizes = [54, 110], strides = [1, 1]} : vector<56x112xf32> to vector<54x110xf32>
    %428 = vector.broadcast %5 : f32 to vector<54x110xf32>
    %429 = arith.mulf %428, %427 : vector<54x110xf32>
    %430 = arith.addf %420, %429 : vector<54x110xf32>
    %431 = vector.broadcast %32 : f32 to vector<54x110xf32>
    %432 = arith.mulf %431, %427 : vector<54x110xf32>
    %433 = arith.addf %423, %432 : vector<54x110xf32>
    %434 = vector.broadcast %59 : f32 to vector<54x110xf32>
    %435 = arith.mulf %434, %427 : vector<54x110xf32>
    %436 = arith.addf %426, %435 : vector<54x110xf32>
    %437 = vector.extract_strided_slice %376 {offsets = [2, 0], sizes = [54, 110], strides = [1, 1]} : vector<56x112xf32> to vector<54x110xf32>
    %438 = vector.broadcast %6 : f32 to vector<54x110xf32>
    %439 = arith.mulf %438, %437 : vector<54x110xf32>
    %440 = arith.addf %430, %439 : vector<54x110xf32>
    %441 = vector.broadcast %33 : f32 to vector<54x110xf32>
    %442 = arith.mulf %441, %437 : vector<54x110xf32>
    %443 = arith.addf %433, %442 : vector<54x110xf32>
    %444 = vector.broadcast %60 : f32 to vector<54x110xf32>
    %445 = arith.mulf %444, %437 : vector<54x110xf32>
    %446 = arith.addf %436, %445 : vector<54x110xf32>
    %447 = vector.extract_strided_slice %376 {offsets = [2, 1], sizes = [54, 110], strides = [1, 1]} : vector<56x112xf32> to vector<54x110xf32>
    %448 = vector.broadcast %7 : f32 to vector<54x110xf32>
    %449 = arith.mulf %448, %447 : vector<54x110xf32>
    %450 = arith.addf %440, %449 : vector<54x110xf32>
    %451 = vector.broadcast %34 : f32 to vector<54x110xf32>
    %452 = arith.mulf %451, %447 : vector<54x110xf32>
    %453 = arith.addf %443, %452 : vector<54x110xf32>
    %454 = vector.broadcast %61 : f32 to vector<54x110xf32>
    %455 = arith.mulf %454, %447 : vector<54x110xf32>
    %456 = arith.addf %446, %455 : vector<54x110xf32>
    %457 = vector.extract_strided_slice %376 {offsets = [2, 2], sizes = [54, 110], strides = [1, 1]} : vector<56x112xf32> to vector<54x110xf32>
    %458 = vector.broadcast %8 : f32 to vector<54x110xf32>
    %459 = arith.mulf %458, %457 : vector<54x110xf32>
    %460 = arith.addf %450, %459 : vector<54x110xf32>
    %461 = vector.broadcast %35 : f32 to vector<54x110xf32>
    %462 = arith.mulf %461, %457 : vector<54x110xf32>
    %463 = arith.addf %453, %462 : vector<54x110xf32>
    %464 = vector.broadcast %62 : f32 to vector<54x110xf32>
    %465 = arith.mulf %464, %457 : vector<54x110xf32>
    %466 = arith.addf %456, %465 : vector<54x110xf32>
    %c1_29 = arith.constant 1 : index
    %c1_30 = arith.constant 1 : index
    %c0_31 = arith.constant 0 : index
    %c0_32 = arith.constant 0 : index
    %467 = vector.load %arg3[%c1_29, %c1_30, %c0_31, %c0_32] : memref<2x3x56x112xf32, #tpu.memory_space<vmem>>, vector<1x1x56x112xf32>
    %468 = vector.shape_cast %467 : vector<1x1x56x112xf32> to vector<56x112xf32>
    %469 = vector.extract_strided_slice %468 {offsets = [0, 0], sizes = [54, 110], strides = [1, 1]} : vector<56x112xf32> to vector<54x110xf32>
    %470 = vector.broadcast %9 : f32 to vector<54x110xf32>
    %471 = arith.mulf %470, %469 : vector<54x110xf32>
    %472 = arith.addf %460, %471 : vector<54x110xf32>
    %473 = vector.broadcast %36 : f32 to vector<54x110xf32>
    %474 = arith.mulf %473, %469 : vector<54x110xf32>
    %475 = arith.addf %463, %474 : vector<54x110xf32>
    %476 = vector.broadcast %63 : f32 to vector<54x110xf32>
    %477 = arith.mulf %476, %469 : vector<54x110xf32>
    %478 = arith.addf %466, %477 : vector<54x110xf32>
    %479 = vector.extract_strided_slice %468 {offsets = [0, 1], sizes = [54, 110], strides = [1, 1]} : vector<56x112xf32> to vector<54x110xf32>
    %480 = vector.broadcast %10 : f32 to vector<54x110xf32>
    %481 = arith.mulf %480, %479 : vector<54x110xf32>
    %482 = arith.addf %472, %481 : vector<54x110xf32>
    %483 = vector.broadcast %37 : f32 to vector<54x110xf32>
    %484 = arith.mulf %483, %479 : vector<54x110xf32>
    %485 = arith.addf %475, %484 : vector<54x110xf32>
    %486 = vector.broadcast %64 : f32 to vector<54x110xf32>
    %487 = arith.mulf %486, %479 : vector<54x110xf32>
    %488 = arith.addf %478, %487 : vector<54x110xf32>
    %489 = vector.extract_strided_slice %468 {offsets = [0, 2], sizes = [54, 110], strides = [1, 1]} : vector<56x112xf32> to vector<54x110xf32>
    %490 = vector.broadcast %11 : f32 to vector<54x110xf32>
    %491 = arith.mulf %490, %489 : vector<54x110xf32>
    %492 = arith.addf %482, %491 : vector<54x110xf32>
    %493 = vector.broadcast %38 : f32 to vector<54x110xf32>
    %494 = arith.mulf %493, %489 : vector<54x110xf32>
    %495 = arith.addf %485, %494 : vector<54x110xf32>
    %496 = vector.broadcast %65 : f32 to vector<54x110xf32>
    %497 = arith.mulf %496, %489 : vector<54x110xf32>
    %498 = arith.addf %488, %497 : vector<54x110xf32>
    %499 = vector.extract_strided_slice %468 {offsets = [1, 0], sizes = [54, 110], strides = [1, 1]} : vector<56x112xf32> to vector<54x110xf32>
    %500 = vector.broadcast %12 : f32 to vector<54x110xf32>
    %501 = arith.mulf %500, %499 : vector<54x110xf32>
    %502 = arith.addf %492, %501 : vector<54x110xf32>
    %503 = vector.broadcast %39 : f32 to vector<54x110xf32>
    %504 = arith.mulf %503, %499 : vector<54x110xf32>
    %505 = arith.addf %495, %504 : vector<54x110xf32>
    %506 = vector.broadcast %66 : f32 to vector<54x110xf32>
    %507 = arith.mulf %506, %499 : vector<54x110xf32>
    %508 = arith.addf %498, %507 : vector<54x110xf32>
    %509 = vector.extract_strided_slice %468 {offsets = [1, 1], sizes = [54, 110], strides = [1, 1]} : vector<56x112xf32> to vector<54x110xf32>
    %510 = vector.broadcast %13 : f32 to vector<54x110xf32>
    %511 = arith.mulf %510, %509 : vector<54x110xf32>
    %512 = arith.addf %502, %511 : vector<54x110xf32>
    %513 = vector.broadcast %40 : f32 to vector<54x110xf32>
    %514 = arith.mulf %513, %509 : vector<54x110xf32>
    %515 = arith.addf %505, %514 : vector<54x110xf32>
    %516 = vector.broadcast %67 : f32 to vector<54x110xf32>
    %517 = arith.mulf %516, %509 : vector<54x110xf32>
    %518 = arith.addf %508, %517 : vector<54x110xf32>
    %519 = vector.extract_strided_slice %468 {offsets = [1, 2], sizes = [54, 110], strides = [1, 1]} : vector<56x112xf32> to vector<54x110xf32>
    %520 = vector.broadcast %14 : f32 to vector<54x110xf32>
    %521 = arith.mulf %520, %519 : vector<54x110xf32>
    %522 = arith.addf %512, %521 : vector<54x110xf32>
    %523 = vector.broadcast %41 : f32 to vector<54x110xf32>
    %524 = arith.mulf %523, %519 : vector<54x110xf32>
    %525 = arith.addf %515, %524 : vector<54x110xf32>
    %526 = vector.broadcast %68 : f32 to vector<54x110xf32>
    %527 = arith.mulf %526, %519 : vector<54x110xf32>
    %528 = arith.addf %518, %527 : vector<54x110xf32>
    %529 = vector.extract_strided_slice %468 {offsets = [2, 0], sizes = [54, 110], strides = [1, 1]} : vector<56x112xf32> to vector<54x110xf32>
    %530 = vector.broadcast %15 : f32 to vector<54x110xf32>
    %531 = arith.mulf %530, %529 : vector<54x110xf32>
    %532 = arith.addf %522, %531 : vector<54x110xf32>
    %533 = vector.broadcast %42 : f32 to vector<54x110xf32>
    %534 = arith.mulf %533, %529 : vector<54x110xf32>
    %535 = arith.addf %525, %534 : vector<54x110xf32>
    %536 = vector.broadcast %69 : f32 to vector<54x110xf32>
    %537 = arith.mulf %536, %529 : vector<54x110xf32>
    %538 = arith.addf %528, %537 : vector<54x110xf32>
    %539 = vector.extract_strided_slice %468 {offsets = [2, 1], sizes = [54, 110], strides = [1, 1]} : vector<56x112xf32> to vector<54x110xf32>
    %540 = vector.broadcast %16 : f32 to vector<54x110xf32>
    %541 = arith.mulf %540, %539 : vector<54x110xf32>
    %542 = arith.addf %532, %541 : vector<54x110xf32>
    %543 = vector.broadcast %43 : f32 to vector<54x110xf32>
    %544 = arith.mulf %543, %539 : vector<54x110xf32>
    %545 = arith.addf %535, %544 : vector<54x110xf32>
    %546 = vector.broadcast %70 : f32 to vector<54x110xf32>
    %547 = arith.mulf %546, %539 : vector<54x110xf32>
    %548 = arith.addf %538, %547 : vector<54x110xf32>
    %549 = vector.extract_strided_slice %468 {offsets = [2, 2], sizes = [54, 110], strides = [1, 1]} : vector<56x112xf32> to vector<54x110xf32>
    %550 = vector.broadcast %17 : f32 to vector<54x110xf32>
    %551 = arith.mulf %550, %549 : vector<54x110xf32>
    %552 = arith.addf %542, %551 : vector<54x110xf32>
    %553 = vector.broadcast %44 : f32 to vector<54x110xf32>
    %554 = arith.mulf %553, %549 : vector<54x110xf32>
    %555 = arith.addf %545, %554 : vector<54x110xf32>
    %556 = vector.broadcast %71 : f32 to vector<54x110xf32>
    %557 = arith.mulf %556, %549 : vector<54x110xf32>
    %558 = arith.addf %548, %557 : vector<54x110xf32>
    %c1_33 = arith.constant 1 : index
    %c2_34 = arith.constant 2 : index
    %c0_35 = arith.constant 0 : index
    %c0_36 = arith.constant 0 : index
    %559 = vector.load %arg3[%c1_33, %c2_34, %c0_35, %c0_36] : memref<2x3x56x112xf32, #tpu.memory_space<vmem>>, vector<1x1x56x112xf32>
    %560 = vector.shape_cast %559 : vector<1x1x56x112xf32> to vector<56x112xf32>
    %561 = vector.extract_strided_slice %560 {offsets = [0, 0], sizes = [54, 110], strides = [1, 1]} : vector<56x112xf32> to vector<54x110xf32>
    %562 = vector.broadcast %18 : f32 to vector<54x110xf32>
    %563 = arith.mulf %562, %561 : vector<54x110xf32>
    %564 = arith.addf %552, %563 : vector<54x110xf32>
    %565 = vector.broadcast %45 : f32 to vector<54x110xf32>
    %566 = arith.mulf %565, %561 : vector<54x110xf32>
    %567 = arith.addf %555, %566 : vector<54x110xf32>
    %568 = vector.broadcast %72 : f32 to vector<54x110xf32>
    %569 = arith.mulf %568, %561 : vector<54x110xf32>
    %570 = arith.addf %558, %569 : vector<54x110xf32>
    %571 = vector.extract_strided_slice %560 {offsets = [0, 1], sizes = [54, 110], strides = [1, 1]} : vector<56x112xf32> to vector<54x110xf32>
    %572 = vector.broadcast %19 : f32 to vector<54x110xf32>
    %573 = arith.mulf %572, %571 : vector<54x110xf32>
    %574 = arith.addf %564, %573 : vector<54x110xf32>
    %575 = vector.broadcast %46 : f32 to vector<54x110xf32>
    %576 = arith.mulf %575, %571 : vector<54x110xf32>
    %577 = arith.addf %567, %576 : vector<54x110xf32>
    %578 = vector.broadcast %73 : f32 to vector<54x110xf32>
    %579 = arith.mulf %578, %571 : vector<54x110xf32>
    %580 = arith.addf %570, %579 : vector<54x110xf32>
    %581 = vector.extract_strided_slice %560 {offsets = [0, 2], sizes = [54, 110], strides = [1, 1]} : vector<56x112xf32> to vector<54x110xf32>
    %582 = vector.broadcast %20 : f32 to vector<54x110xf32>
    %583 = arith.mulf %582, %581 : vector<54x110xf32>
    %584 = arith.addf %574, %583 : vector<54x110xf32>
    %585 = vector.broadcast %47 : f32 to vector<54x110xf32>
    %586 = arith.mulf %585, %581 : vector<54x110xf32>
    %587 = arith.addf %577, %586 : vector<54x110xf32>
    %588 = vector.broadcast %74 : f32 to vector<54x110xf32>
    %589 = arith.mulf %588, %581 : vector<54x110xf32>
    %590 = arith.addf %580, %589 : vector<54x110xf32>
    %591 = vector.extract_strided_slice %560 {offsets = [1, 0], sizes = [54, 110], strides = [1, 1]} : vector<56x112xf32> to vector<54x110xf32>
    %592 = vector.broadcast %21 : f32 to vector<54x110xf32>
    %593 = arith.mulf %592, %591 : vector<54x110xf32>
    %594 = arith.addf %584, %593 : vector<54x110xf32>
    %595 = vector.broadcast %48 : f32 to vector<54x110xf32>
    %596 = arith.mulf %595, %591 : vector<54x110xf32>
    %597 = arith.addf %587, %596 : vector<54x110xf32>
    %598 = vector.broadcast %75 : f32 to vector<54x110xf32>
    %599 = arith.mulf %598, %591 : vector<54x110xf32>
    %600 = arith.addf %590, %599 : vector<54x110xf32>
    %601 = vector.extract_strided_slice %560 {offsets = [1, 1], sizes = [54, 110], strides = [1, 1]} : vector<56x112xf32> to vector<54x110xf32>
    %602 = vector.broadcast %22 : f32 to vector<54x110xf32>
    %603 = arith.mulf %602, %601 : vector<54x110xf32>
    %604 = arith.addf %594, %603 : vector<54x110xf32>
    %605 = vector.broadcast %49 : f32 to vector<54x110xf32>
    %606 = arith.mulf %605, %601 : vector<54x110xf32>
    %607 = arith.addf %597, %606 : vector<54x110xf32>
    %608 = vector.broadcast %76 : f32 to vector<54x110xf32>
    %609 = arith.mulf %608, %601 : vector<54x110xf32>
    %610 = arith.addf %600, %609 : vector<54x110xf32>
    %611 = vector.extract_strided_slice %560 {offsets = [1, 2], sizes = [54, 110], strides = [1, 1]} : vector<56x112xf32> to vector<54x110xf32>
    %612 = vector.broadcast %23 : f32 to vector<54x110xf32>
    %613 = arith.mulf %612, %611 : vector<54x110xf32>
    %614 = arith.addf %604, %613 : vector<54x110xf32>
    %615 = vector.broadcast %50 : f32 to vector<54x110xf32>
    %616 = arith.mulf %615, %611 : vector<54x110xf32>
    %617 = arith.addf %607, %616 : vector<54x110xf32>
    %618 = vector.broadcast %77 : f32 to vector<54x110xf32>
    %619 = arith.mulf %618, %611 : vector<54x110xf32>
    %620 = arith.addf %610, %619 : vector<54x110xf32>
    %621 = vector.extract_strided_slice %560 {offsets = [2, 0], sizes = [54, 110], strides = [1, 1]} : vector<56x112xf32> to vector<54x110xf32>
    %622 = vector.broadcast %24 : f32 to vector<54x110xf32>
    %623 = arith.mulf %622, %621 : vector<54x110xf32>
    %624 = arith.addf %614, %623 : vector<54x110xf32>
    %625 = vector.broadcast %51 : f32 to vector<54x110xf32>
    %626 = arith.mulf %625, %621 : vector<54x110xf32>
    %627 = arith.addf %617, %626 : vector<54x110xf32>
    %628 = vector.broadcast %78 : f32 to vector<54x110xf32>
    %629 = arith.mulf %628, %621 : vector<54x110xf32>
    %630 = arith.addf %620, %629 : vector<54x110xf32>
    %631 = vector.extract_strided_slice %560 {offsets = [2, 1], sizes = [54, 110], strides = [1, 1]} : vector<56x112xf32> to vector<54x110xf32>
    %632 = vector.broadcast %25 : f32 to vector<54x110xf32>
    %633 = arith.mulf %632, %631 : vector<54x110xf32>
    %634 = arith.addf %624, %633 : vector<54x110xf32>
    %635 = vector.broadcast %52 : f32 to vector<54x110xf32>
    %636 = arith.mulf %635, %631 : vector<54x110xf32>
    %637 = arith.addf %627, %636 : vector<54x110xf32>
    %638 = vector.broadcast %79 : f32 to vector<54x110xf32>
    %639 = arith.mulf %638, %631 : vector<54x110xf32>
    %640 = arith.addf %630, %639 : vector<54x110xf32>
    %641 = vector.extract_strided_slice %560 {offsets = [2, 2], sizes = [54, 110], strides = [1, 1]} : vector<56x112xf32> to vector<54x110xf32>
    %642 = vector.broadcast %26 : f32 to vector<54x110xf32>
    %643 = arith.mulf %642, %641 : vector<54x110xf32>
    %644 = arith.addf %634, %643 : vector<54x110xf32>
    %645 = vector.broadcast %53 : f32 to vector<54x110xf32>
    %646 = arith.mulf %645, %641 : vector<54x110xf32>
    %647 = arith.addf %637, %646 : vector<54x110xf32>
    %648 = vector.broadcast %80 : f32 to vector<54x110xf32>
    %649 = arith.mulf %648, %641 : vector<54x110xf32>
    %650 = arith.addf %640, %649 : vector<54x110xf32>
    %651 = vector.broadcast %81 : f32 to vector<54x110xf32>
    %652 = arith.addf %644, %651 : vector<54x110xf32>
    %c162 = arith.constant 162 : index
    %c0_37 = arith.constant 0 : index
    %653 = vector.load %arg5[%c162, %c0_37] : memref<324x110xf32, #tpu.memory_space<vmem>>, vector<54x110xf32>
    tpu.vector_store %arg5[%c162, %c0_37], %652 {strides = array<i32>} : memref<324x110xf32, #tpu.memory_space<vmem>>, vector<54x110xf32>,
    %654 = vector.broadcast %82 : f32 to vector<54x110xf32>
    %655 = arith.addf %647, %654 : vector<54x110xf32>
    %c216 = arith.constant 216 : index
    %c0_38 = arith.constant 0 : index
    %656 = vector.load %arg5[%c216, %c0_38] : memref<324x110xf32, #tpu.memory_space<vmem>>, vector<54x110xf32>
    tpu.vector_store %arg5[%c216, %c0_38], %655 {strides = array<i32>} : memref<324x110xf32, #tpu.memory_space<vmem>>, vector<54x110xf32>,
    %657 = vector.broadcast %83 : f32 to vector<54x110xf32>
    %658 = arith.addf %650, %657 : vector<54x110xf32>
    %c270 = arith.constant 270 : index
    %c0_39 = arith.constant 0 : index
    %659 = vector.load %arg5[%c270, %c0_39] : memref<324x110xf32, #tpu.memory_space<vmem>>, vector<54x110xf32>
    tpu.vector_store %arg5[%c270, %c0_39], %658 {strides = array<i32>} : memref<324x110xf32, #tpu.memory_space<vmem>>, vector<54x110xf32>,
    %c0_40 = arith.constant 0 : index
    %c0_41 = arith.constant 0 : index
    %660 = tpu.strided_load %arg5[%c0_40, %c0_41] {strides = array<i32: 27, 1>} : memref<324x110xf32, #tpu.memory_space<vmem>>, vector<12x110xf32>
    %c1_42 = arith.constant 1 : index
    %c0_43 = arith.constant 0 : index
    %661 = tpu.strided_load %arg5[%c1_42, %c0_43] {strides = array<i32: 27, 1>} : memref<324x110xf32, #tpu.memory_space<vmem>>, vector<12x110xf32>
    %c2_44 = arith.constant 2 : index
    %c0_45 = arith.constant 0 : index
    %662 = tpu.strided_load %arg5[%c2_44, %c0_45] {strides = array<i32: 27, 1>} : memref<324x110xf32, #tpu.memory_space<vmem>>, vector<12x110xf32>
    %c3_46 = arith.constant 3 : index
    %c0_47 = arith.constant 0 : index
    %663 = tpu.strided_load %arg5[%c3_46, %c0_47] {strides = array<i32: 27, 1>} : memref<324x110xf32, #tpu.memory_space<vmem>>, vector<12x110xf32>
    %c4_48 = arith.constant 4 : index
    %c0_49 = arith.constant 0 : index
    %664 = tpu.strided_load %arg5[%c4_48, %c0_49] {strides = array<i32: 27, 1>} : memref<324x110xf32, #tpu.memory_space<vmem>>, vector<12x110xf32>
    %c5_50 = arith.constant 5 : index
    %c0_51 = arith.constant 0 : index
    %665 = tpu.strided_load %arg5[%c5_50, %c0_51] {strides = array<i32: 27, 1>} : memref<324x110xf32, #tpu.memory_space<vmem>>, vector<12x110xf32>
    %c6_52 = arith.constant 6 : index
    %c0_53 = arith.constant 0 : index
    %666 = tpu.strided_load %arg5[%c6_52, %c0_53] {strides = array<i32: 27, 1>} : memref<324x110xf32, #tpu.memory_space<vmem>>, vector<12x110xf32>
    %c7_54 = arith.constant 7 : index
    %c0_55 = arith.constant 0 : index
    %667 = tpu.strided_load %arg5[%c7_54, %c0_55] {strides = array<i32: 27, 1>} : memref<324x110xf32, #tpu.memory_space<vmem>>, vector<12x110xf32>
    %c8_56 = arith.constant 8 : index
    %c0_57 = arith.constant 0 : index
    %668 = tpu.strided_load %arg5[%c8_56, %c0_57] {strides = array<i32: 27, 1>} : memref<324x110xf32, #tpu.memory_space<vmem>>, vector<12x110xf32>
    %c9_58 = arith.constant 9 : index
    %c0_59 = arith.constant 0 : index
    %669 = tpu.strided_load %arg5[%c9_58, %c0_59] {strides = array<i32: 27, 1>} : memref<324x110xf32, #tpu.memory_space<vmem>>, vector<12x110xf32>
    %c10_60 = arith.constant 10 : index
    %c0_61 = arith.constant 0 : index
    %670 = tpu.strided_load %arg5[%c10_60, %c0_61] {strides = array<i32: 27, 1>} : memref<324x110xf32, #tpu.memory_space<vmem>>, vector<12x110xf32>
    %c11_62 = arith.constant 11 : index
    %c0_63 = arith.constant 0 : index
    %671 = tpu.strided_load %arg5[%c11_62, %c0_63] {strides = array<i32: 27, 1>} : memref<324x110xf32, #tpu.memory_space<vmem>>, vector<12x110xf32>
    %c12_64 = arith.constant 12 : index
    %c0_65 = arith.constant 0 : index
    %672 = tpu.strided_load %arg5[%c12_64, %c0_65] {strides = array<i32: 27, 1>} : memref<324x110xf32, #tpu.memory_space<vmem>>, vector<12x110xf32>
    %c13_66 = arith.constant 13 : index
    %c0_67 = arith.constant 0 : index
    %673 = tpu.strided_load %arg5[%c13_66, %c0_67] {strides = array<i32: 27, 1>} : memref<324x110xf32, #tpu.memory_space<vmem>>, vector<12x110xf32>
    %c14_68 = arith.constant 14 : index
    %c0_69 = arith.constant 0 : index
    %674 = tpu.strided_load %arg5[%c14_68, %c0_69] {strides = array<i32: 27, 1>} : memref<324x110xf32, #tpu.memory_space<vmem>>, vector<12x110xf32>
    %c15_70 = arith.constant 15 : index
    %c0_71 = arith.constant 0 : index
    %675 = tpu.strided_load %arg5[%c15_70, %c0_71] {strides = array<i32: 27, 1>} : memref<324x110xf32, #tpu.memory_space<vmem>>, vector<12x110xf32>
    %c16_72 = arith.constant 16 : index
    %c0_73 = arith.constant 0 : index
    %676 = tpu.strided_load %arg5[%c16_72, %c0_73] {strides = array<i32: 27, 1>} : memref<324x110xf32, #tpu.memory_space<vmem>>, vector<12x110xf32>
    %c17_74 = arith.constant 17 : index
    %c0_75 = arith.constant 0 : index
    %677 = tpu.strided_load %arg5[%c17_74, %c0_75] {strides = array<i32: 27, 1>} : memref<324x110xf32, #tpu.memory_space<vmem>>, vector<12x110xf32>
    %c18_76 = arith.constant 18 : index
    %c0_77 = arith.constant 0 : index
    %678 = tpu.strided_load %arg5[%c18_76, %c0_77] {strides = array<i32: 27, 1>} : memref<324x110xf32, #tpu.memory_space<vmem>>, vector<12x110xf32>
    %c19_78 = arith.constant 19 : index
    %c0_79 = arith.constant 0 : index
    %679 = tpu.strided_load %arg5[%c19_78, %c0_79] {strides = array<i32: 27, 1>} : memref<324x110xf32, #tpu.memory_space<vmem>>, vector<12x110xf32>
    %c20_80 = arith.constant 20 : index
    %c0_81 = arith.constant 0 : index
    %680 = tpu.strided_load %arg5[%c20_80, %c0_81] {strides = array<i32: 27, 1>} : memref<324x110xf32, #tpu.memory_space<vmem>>, vector<12x110xf32>
    %c21_82 = arith.constant 21 : index
    %c0_83 = arith.constant 0 : index
    %681 = tpu.strided_load %arg5[%c21_82, %c0_83] {strides = array<i32: 27, 1>} : memref<324x110xf32, #tpu.memory_space<vmem>>, vector<12x110xf32>
    %c22_84 = arith.constant 22 : index
    %c0_85 = arith.constant 0 : index
    %682 = tpu.strided_load %arg5[%c22_84, %c0_85] {strides = array<i32: 27, 1>} : memref<324x110xf32, #tpu.memory_space<vmem>>, vector<12x110xf32>
    %c23_86 = arith.constant 23 : index
    %c0_87 = arith.constant 0 : index
    %683 = tpu.strided_load %arg5[%c23_86, %c0_87] {strides = array<i32: 27, 1>} : memref<324x110xf32, #tpu.memory_space<vmem>>, vector<12x110xf32>
    %c24_88 = arith.constant 24 : index
    %c0_89 = arith.constant 0 : index
    %684 = tpu.strided_load %arg5[%c24_88, %c0_89] {strides = array<i32: 27, 1>} : memref<324x110xf32, #tpu.memory_space<vmem>>, vector<12x110xf32>
    %c25_90 = arith.constant 25 : index
    %c0_91 = arith.constant 0 : index
    %685 = tpu.strided_load %arg5[%c25_90, %c0_91] {strides = array<i32: 27, 1>} : memref<324x110xf32, #tpu.memory_space<vmem>>, vector<12x110xf32>
    %c26_92 = arith.constant 26 : index
    %c0_93 = arith.constant 0 : index
    %686 = tpu.strided_load %arg5[%c26_92, %c0_93] {strides = array<i32: 27, 1>} : memref<324x110xf32, #tpu.memory_space<vmem>>, vector<12x110xf32>
    %687 = arith.maximumf %660, %661 : vector<12x110xf32>
    %688 = arith.maximumf %662, %663 : vector<12x110xf32>
    %689 = arith.maximumf %664, %665 : vector<12x110xf32>
    %690 = arith.maximumf %666, %667 : vector<12x110xf32>
    %691 = arith.maximumf %668, %669 : vector<12x110xf32>
    %692 = arith.maximumf %670, %671 : vector<12x110xf32>
    %693 = arith.maximumf %672, %673 : vector<12x110xf32>
    %694 = arith.maximumf %674, %675 : vector<12x110xf32>
    %695 = arith.maximumf %676, %677 : vector<12x110xf32>
    %696 = arith.maximumf %678, %679 : vector<12x110xf32>
    %697 = arith.maximumf %680, %681 : vector<12x110xf32>
    %698 = arith.maximumf %682, %683 : vector<12x110xf32>
    %699 = arith.maximumf %684, %685 : vector<12x110xf32>
    %700 = arith.maximumf %687, %688 : vector<12x110xf32>
    %701 = arith.maximumf %689, %690 : vector<12x110xf32>
    %702 = arith.maximumf %691, %692 : vector<12x110xf32>
    %703 = arith.maximumf %693, %694 : vector<12x110xf32>
    %704 = arith.maximumf %695, %696 : vector<12x110xf32>
    %705 = arith.maximumf %697, %698 : vector<12x110xf32>
    %706 = arith.maximumf %699, %686 : vector<12x110xf32>
    %707 = arith.maximumf %700, %701 : vector<12x110xf32>
    %708 = arith.maximumf %702, %703 : vector<12x110xf32>
    %709 = arith.maximumf %704, %705 : vector<12x110xf32>
    %710 = arith.maximumf %707, %708 : vector<12x110xf32>
    %711 = arith.maximumf %709, %706 : vector<12x110xf32>
    %712 = arith.maximumf %710, %711 : vector<12x110xf32>
    %713 = vector.extract_strided_slice %712 {offsets = [0, 0], sizes = [12, 27], strides = [1, 1]} : vector<12x110xf32> to vector<12x27xf32>
    %cst_94 = arith.constant dense<0xFF800000> : vector<12xf32>
    %714 = vector.multi_reduction <maximumf>, %713, %cst_94 [1] : vector<12x27xf32> to vector<12xf32>
    %715 = vector.shape_cast %714 : vector<12xf32> to vector<12x1xf32>
    %716 = vector.extract_strided_slice %712 {offsets = [0, 27], sizes = [12, 27], strides = [1, 1]} : vector<12x110xf32> to vector<12x27xf32>
    %cst_95 = arith.constant dense<0xFF800000> : vector<12xf32>
    %717 = vector.multi_reduction <maximumf>, %716, %cst_95 [1] : vector<12x27xf32> to vector<12xf32>
    %718 = vector.shape_cast %717 : vector<12xf32> to vector<12x1xf32>
    %719 = vector.extract_strided_slice %712 {offsets = [0, 56], sizes = [12, 27], strides = [1, 1]} : vector<12x110xf32> to vector<12x27xf32>
    %cst_96 = arith.constant dense<0xFF800000> : vector<12xf32>
    %720 = vector.multi_reduction <maximumf>, %719, %cst_96 [1] : vector<12x27xf32> to vector<12xf32>
    %721 = vector.shape_cast %720 : vector<12xf32> to vector<12x1xf32>
    %722 = vector.extract_strided_slice %712 {offsets = [0, 83], sizes = [12, 27], strides = [1, 1]} : vector<12x110xf32> to vector<12x27xf32>
    %cst_97 = arith.constant dense<0xFF800000> : vector<12xf32>
    %723 = vector.multi_reduction <maximumf>, %722, %cst_97 [1] : vector<12x27xf32> to vector<12xf32>
    %724 = vector.shape_cast %723 : vector<12xf32> to vector<12x1xf32>
    %725 = tpu.concatenate %715, %718, %721, %724 in 1 : vector<12x1xf32>, vector<12x1xf32>, vector<12x1xf32>, vector<12x1xf32> -> vector<12x4xf32>
    %726 = vector.extract_strided_slice %725 {offsets = [0, 0], sizes = [6, 4], strides = [1, 1]} : vector<12x4xf32> to vector<6x4xf32>
    %c0_98 = arith.constant 0 : index
    %c0_99 = arith.constant 0 : index
    %c0_100 = arith.constant 0 : index
    %727 = vector.load %arg4[%c0_98, %c0_99, %c0_100] : memref<2x6x4xf32, #tpu.memory_space<vmem>>, vector<1x6x4xf32>
    %728 = vector.shape_cast %727 : vector<1x6x4xf32> to vector<6x4xf32>
    %729 = vector.shape_cast %726 : vector<6x4xf32> to vector<1x6x4xf32>
    tpu.vector_store %arg4[%c0_98, %c0_99, %c0_100], %729 {strides = array<i32>} : memref<2x6x4xf32, #tpu.memory_space<vmem>>, vector<1x6x4xf32>,
    %730 = vector.extract_strided_slice %725 {offsets = [6, 0], sizes = [6, 4], strides = [1, 1]} : vector<12x4xf32> to vector<6x4xf32>
    %c1_101 = arith.constant 1 : index
    %c0_102 = arith.constant 0 : index
    %c0_103 = arith.constant 0 : index
    %731 = vector.load %arg4[%c1_101, %c0_102, %c0_103] : memref<2x6x4xf32, #tpu.memory_space<vmem>>, vector<1x6x4xf32>
    %732 = vector.shape_cast %731 : vector<1x6x4xf32> to vector<6x4xf32>
    %733 = vector.shape_cast %730 : vector<6x4xf32> to vector<1x6x4xf32>
    tpu.vector_store %arg4[%c1_101, %c0_102, %c0_103], %733 {strides = array<i32>} : memref<2x6x4xf32, #tpu.memory_space<vmem>>, vector<1x6x4xf32>,
    return
  }
  func.func @transform_0(%arg0: i32) -> i32 {
    %c0_i32 = arith.constant 0 : i32
    %c0_i32_0 = arith.constant 0 : i32
    return %c0_i32 : i32
  }
  func.func @transform_1(%arg0: i32) -> i32 {
    %c0_i32 = arith.constant 0 : i32
    %c0_i32_0 = arith.constant 0 : i32
    return %c0_i32 : i32
  }
  func.func @transform_2(%arg0: i32) -> (i32, i32, i32, i32) {
    %c0_i32 = arith.constant 0 : i32
    %c0_i32_0 = arith.constant 0 : i32
    %c0_i32_1 = arith.constant 0 : i32
    %c0_i32_2 = arith.constant 0 : i32
    return %arg0, %c0_i32, %c0_i32_0, %c0_i32_1 : i32, i32, i32, i32
  }
  func.func @transform_3(%arg0: i32) -> (i32, i32, i32) {
    %c0_i32 = arith.constant 0 : i32
    %c0_i32_0 = arith.constant 0 : i32
    %c0_i32_1 = arith.constant 0 : i32
    return %arg0, %c0_i32, %c0_i32_0 : i32, i32, i32
  }
}

</mosaic_0001>

<llo_original>
// kernel: tpu_custom_call.1
$region0: #{tpu_custom_call.1}
  #allocation0 [shape = 'u32[]', space=smem, size = 0x4, offset = 0x4, fixed_abs, tag = 'smem constant byte address 0x4 - core index']
  #allocation1 [shape = 'u32[144,128]{1,0:T(1,128)}', space=vmem, size = 0x12000, scoped, tag = 'internal scratch']
  #allocation2 [shape = 'f32[324,110]{1,0:T(8,128)}', space=vmem, size = 0x29000, scoped, tag = 'scratch operand']
  %s0 = inlined_call_operand.hbm [shape: f32[81], index: 0, kind: input, shape index: {}]
  %s1 = inlined_call_operand.vmem [shape: f32[3], index: 1, kind: input, shape index: {}]
  %s2 = inlined_call_operand.hbm [shape: f32[4,3,56,112], index: 2, kind: input, shape index: {}]
  %s3 = inlined_call_operand.vmem [shape: f32[4,6,4], index: 3, kind: output, shape index: {}]
  %s4 = sld [smem:[#allocation0]]
  $region57: #{tpu_custom_call.1} parent=0
    _
  %s6 = ssub.s32 1, %s4
  %s7 = scalar_select 0, %s6, %s4
  $region1: #{tpu_custom_call.1} parent=0
    #allocation3 [shape = 'u8[512]{0}', space=smem, size = 0x200, scoped, tag = 'input window, operand 0, single buffered']
    #allocation4 [shape = 's32[2]{0}', space=sflag, size = 0x8, scoped, tag = 'scoped memory for tpu_custom_call.1']
    #allocation5 [shape = 's32[2]{0}', space=sflag, size = 0x8, scoped, tag = 'scoped memory for tpu_custom_call.1']
    #allocation6 [shape = 's32[2]{0}', space=sflag, size = 0x8, scoped, tag = 'scoped memory for tpu_custom_call.1']
    #allocation7 [shape = 'u8[512]{0}', space=smem, size = 0x200, scoped, tag = 'input window, operand 1, single buffered']
    #allocation8 [shape = 'u8[344064]{0}', space=vmem, size = 0x54000, scoped, tag = 'input window, operand 2']
    %8 = vsyncpa [#allocation5], 0
    %9 = vsyncpa [#allocation6], 0
    %10 = vsyncpa [#allocation4], 0
    %s11 = scalar_lea.sflag [#allocation4], 1
    %12 = vsyncpa %s11, 0
    loop: start=0, step=1, limit=4
    $region2: #{tpu_custom_call.1} parent=1 // loop_pre_header
      _
    $region3: #{tpu_custom_call.1} parent=1 // loop_header
      %s14 = sphi 0, %s18
      %p15 = scmp.ge.s32.totalorder %s14, 4
      %s22 = sphi 0, %s22
      %s24 = sphi 0, %s22
      %s25 = sphi 0, %s24
      %s39 = sphi 0, %s25
      %s43 = sphi 0, %s43
      %s45 = sphi 0, %s43
      %s46 = sphi 0, %s45
      %s60 = sphi 0, %s46
      %s66 = sphi 0, %s68
      %s69 = sphi 0, %s66
      %s70 = sphi 0, %s69
      %s86 = sphi 0, %s70
      %s92 = sphi 0, %s94
      %s95 = sphi 0, %s92
      %s96 = sphi 0, %s95
      %s112 = sphi 0, %s96
    $region4: #{tpu_custom_call.1} parent=1 // loop_header_branch
      %17 = sbr.rel (%p15) target = $region8
    $region5: #{tpu_custom_call.1} parent=1 // loop_body
      %s19 = ssub.s32 %s14, 1
      %s20 = ssub.s32 %s14, 2
      %s21 = sadd.s32 %s14, 1
      %s23 = sadd.s32 %s22, 1
      %p26 = scmp.eq.s32.totalorder %s14, 1
      %p27 = scmp.ne.s32.totalorder %s22, %s24
      %p28 = scmp.eq.s32.totalorder %s14, 0
      %p29 = por %p27, %p28
      %p30 = scmp.ne.s32.totalorder %s22, %s24
      %p31 = scmp.eq.s32.totalorder %s19, 1
      %p32 = por %p30, %p31
      %p33 = scmp.ne.s32.totalorder %s24, %s25
      %p34 = scmp.eq.s32.totalorder %s19, 0
      %p35 = por %p33, %p34
      %p36 = scmp.ne.s32.totalorder %s24, %s25
      %p37 = scmp.eq.s32.totalorder %s20, 1
      %p38 = por %p36, %p37
      %p40 = scmp.ne.s32.totalorder %s25, %s39
      %p41 = scmp.eq.s32.totalorder %s20, 0
      %p42 = por %p40, %p41
      %s44 = sadd.s32 %s43, 1
      %p47 = scmp.eq.s32.totalorder %s14, 1
      %p48 = scmp.ne.s32.totalorder %s43, %s45
      %p49 = scmp.eq.s32.totalorder %s14, 0
      %p50 = por %p48, %p49
      %p51 = scmp.ne.s32.totalorder %s43, %s45
      %p52 = scmp.eq.s32.totalorder %s19, 1
      %p53 = por %p51, %p52
      %p54 = scmp.ne.s32.totalorder %s45, %s46
      %p55 = scmp.eq.s32.totalorder %s19, 0
      %p56 = por %p54, %p55
      %p57 = scmp.ne.s32.totalorder %s45, %s46
      %p58 = scmp.eq.s32.totalorder %s20, 1
      %p59 = por %p57, %p58
      %p61 = scmp.ne.s32.totalorder %s46, %s60
      %p62 = scmp.eq.s32.totalorder %s20, 0
      %p63 = por %p61, %p62
      %s64 = ssub.s32 %s14, %s21
      %p65 = scmp.eq.s32.totalorder %s64, 0
      %s67 = sadd.s32 %s66, 1
      %s68 = scalar_select %p65, %s66, %s67
      %p71 = pneg %p65
      %p72 = scmp.eq.s32.totalorder %s14, 1
      %p73 = por %p71, %p72
      %p74 = scmp.ne.s32.totalorder %s66, %s69
      %p75 = scmp.eq.s32.totalorder %s14, 0
      %p76 = por %p74, %p75
      %p77 = scmp.ne.s32.totalorder %s66, %s69
      %p78 = scmp.eq.s32.totalorder %s19, 1
      %p79 = por %p77, %p78
      %p80 = scmp.ne.s32.totalorder %s69, %s70
      %p81 = scmp.eq.s32.totalorder %s19, 0
      %p82 = por %p80, %p81
      %p83 = scmp.ne.s32.totalorder %s69, %s70
      %p84 = scmp.eq.s32.totalorder %s20, 1
      %p85 = por %p83, %p84
      %p87 = scmp.ne.s32.totalorder %s70, %s86
      %p88 = scmp.eq.s32.totalorder %s20, 0
      %p89 = por %p87, %p88
      %s90 = ssub.s32 %s14, %s21
      %p91 = scmp.eq.s32.totalorder %s90, 0
      %s93 = sadd.s32 %s92, 1
      %s94 = scalar_select %p91, %s92, %s93
      %p97 = pneg %p91
      %p98 = scmp.eq.s32.totalorder %s14, 1
      %p99 = por %p97, %p98
      %p100 = scmp.ne.s32.totalorder %s92, %s95
      %p101 = scmp.eq.s32.totalorder %s14, 0
      %p102 = por %p100, %p101
      %p103 = scmp.ne.s32.totalorder %s92, %s95
      %p104 = scmp.eq.s32.totalorder %s19, 1
      %p105 = por %p103, %p104
      %p106 = scmp.ne.s32.totalorder %s95, %s96
      %p107 = scmp.eq.s32.totalorder %s19, 0
      %p108 = por %p106, %p107
      %p109 = scmp.ne.s32.totalorder %s95, %s96
      %p110 = scmp.eq.s32.totalorder %s20, 1
      %p111 = por %p109, %p110
      %p113 = scmp.ne.s32.totalorder %s96, %s112
      %p114 = scmp.eq.s32.totalorder %s20, 0
      %p115 = por %p113, %p114
      %p116 = scmp.le.s32.totalorder 1, %s14
      %p117 = scmp.lt.s32.totalorder %s14, 3
      %p118 = pnand %p116, %p117
      %p119 = pneg %p118
      // Predicated region
      $region9: #{tpu_custom_call.1} parent=5 // pred_check
        _
      $region10: #{tpu_custom_call.1} parent=5 // pred_check_branch
        %121 = sbr.rel (%p118) target = $region12
      $region11: #{tpu_custom_call.1} parent=5 // pred_region
        %s122 = ssub.s32 %s14, 1
        // Predicated region
        $region13: #{tpu_custom_call.1} parent=11 // pred_check
          %p123 = pneg %p35
        $region14: #{tpu_custom_call.1} parent=11 // pred_check_branch
          %125 = sbr.rel (%p123) target = $region16
        $region15: #{tpu_custom_call.1} parent=11 // pred_region
          %s127 = ssub.s32 16, 16
          %128 = vsyncadd [#allocation5], %s127
          %131 = dma.hbm_to_smem %s0, 16, [#allocation3], [#allocation5]
        $region16: #{tpu_custom_call.1} parent=11 // pred_fallthru
          _
        // Predicated region
        $region17: #{tpu_custom_call.1} parent=11 // pred_check
          %p132 = pneg %p56
        $region18: #{tpu_custom_call.1} parent=11 // pred_check_branch
          %134 = sbr.rel (%p132) target = $region20
        $region19: #{tpu_custom_call.1} parent=11 // pred_region
          %s136 = ssub.s32 16, 16
          %137 = vsyncadd [#allocation6], %s136
          %s139 = sshll.u32 %s1, 4
          %s140 = int_to_ptr.vmem [resolvable:$true] %s139
          %142 = dma.vmem_to_smem %s140, 16, [#allocation7], [#allocation6]
        $region20: #{tpu_custom_call.1} parent=11 // pred_fallthru
          _
      $region12: #{tpu_custom_call.1} parent=5 // pred_fallthru
        _
      %p143 = scmp.lt.s32.totalorder %s14, 2
      // Predicated region
      $region21: #{tpu_custom_call.1} parent=5 // pred_check
        %p144 = pneg %p143
      $region22: #{tpu_custom_call.1} parent=5 // pred_check_branch
        %146 = sbr.rel (%p144) target = $region24
      $region23: #{tpu_custom_call.1} parent=5 // pred_region
        // Predicated region
        $region25: #{tpu_custom_call.1} parent=23 // pred_check
          %p147 = pneg %p76
        $region26: #{tpu_custom_call.1} parent=23 // pred_check_branch
          %149 = sbr.rel (%p147) target = $region28
        $region27: #{tpu_custom_call.1} parent=23 // pred_region
          %s150 = sand.u32 %s66, 1
          %s151 = scalar_lea.sflag [#allocation4], %s150
          %s152 = sand.u32 %s66, 1
          %s153 = smul.addr %s152, 336
          %s154 = scalar_lea.vmem [#allocation8], %s153
          %s155 = smul.u32 2, %s14
          %s157 = ssub.s32 5376, 5376
          %158 = vsyncadd %s151, %s157
          %s159 = smul.addr %s155, 21
          %s160 = smul.addr %s159, 128
          %s161 = scalar_lea.hbm %s2, %s160
          %s162 = sshll.u32 %s154, 4
          %s163 = int_to_ptr.vmem [resolvable:$true] %s162
          %168 = dma.hbm_to_vmem [thread:$0]  %s161, 5376, %s163, %s151, 128, 128, 8
        $region28: #{tpu_custom_call.1} parent=23 // pred_fallthru
          _
      $region24: #{tpu_custom_call.1} parent=5 // pred_fallthru
        _
      %p169 = scmp.le.s32.totalorder 1, %s14
      %p170 = scmp.lt.s32.totalorder %s14, 3
      %p171 = pnand %p169, %p170
      %p172 = pneg %p171
      // Predicated region
      $region29: #{tpu_custom_call.1} parent=5 // pred_check
        _
      $region30: #{tpu_custom_call.1} parent=5 // pred_check_branch
        %174 = sbr.rel (%p171) target = $region32
      $region31: #{tpu_custom_call.1} parent=5 // pred_region
        %s175 = ssub.s32 %s14, 1
        // Predicated region
        $region33: #{tpu_custom_call.1} parent=31 // pred_check
          %p176 = pneg %p35
        $region34: #{tpu_custom_call.1} parent=31 // pred_check_branch
          %178 = sbr.rel (%p176) target = $region36
        $region35: #{tpu_custom_call.1} parent=31 // pred_region
          %179 = dma.done [#allocation5], 16
        $region36: #{tpu_custom_call.1} parent=31 // pred_fallthru
          _
        // Predicated region
        $region37: #{tpu_custom_call.1} parent=31 // pred_check
          %p180 = pneg %p56
        $region38: #{tpu_custom_call.1} parent=31 // pred_check_branch
          %182 = sbr.rel (%p180) target = $region40
        $region39: #{tpu_custom_call.1} parent=31 // pred_region
          %183 = dma.done [#allocation6], 16
        $region40: #{tpu_custom_call.1} parent=31 // pred_fallthru
          _
        %s184 = sand.u32 %s69, 1
        %s185 = scalar_lea.sflag [#allocation4], %s184
        %s186 = sand.u32 %s69, 1
        %s187 = smul.addr %s186, 336
        %s188 = scalar_lea.vmem [#allocation8], %s187
        // Predicated region
        $region41: #{tpu_custom_call.1} parent=31 // pred_check
          %p189 = pneg %p82
        $region42: #{tpu_custom_call.1} parent=31 // pred_check_branch
          %191 = sbr.rel (%p189) target = $region44
        $region43: #{tpu_custom_call.1} parent=31 // pred_region
          %192 = dma.done %s185, 5376
        $region44: #{tpu_custom_call.1} parent=31 // pred_fallthru
          _
        %193 = sfence
        %p194 = pneg %p35
        %p195 = pneg %p32
        %p196 = pneg %p56
        %p197 = pneg %p53
        %s198 = sand.u32 %s69, 1
        %s199 = scalar_lea.sflag [#allocation4], %s198
        %s200 = sand.u32 %s69, 1
        %s201 = smul.addr %s200, 336
        %s202 = scalar_lea.vmem [#allocation8], %s201
        %p203 = pneg %p82
        %p204 = pneg %p79
        %p205 = pneg %p108
        %p206 = pneg %p105
        %s207 = smul.u32 2, %s19
        %p208 = scmp.lt.s32.totalorder %s207, 3
        %s209 = scalar_select %p208, %s207, 3
        %s210 = smul.addr %s209, 8
        %s211 = scalar_lea.vmem %s3, %s210
        %s212 = smul.u32 2, %s19
        %s213 = smul.u32 2, %s19
        %p214 = scmp.lt.s32.totalorder %s213, 3
        %s215 = scalar_select %p214, %s213, 3
        %s216 = smul.addr %s215, 8
        %s217 = scalar_lea.vmem %s3, %s216
        %s218 = smul.u32 2, %s19
        %s219 = sld [smem:[#allocation3]]
        %s220 = sld [smem:[#allocation3 + $0x1]]
        %s221 = sld [smem:[#allocation3 + $0x2]]
        %s222 = sld [smem:[#allocation3 + $0x3]]
        %s223 = sld [smem:[#allocation3 + $0x4]]
        %s224 = sld [smem:[#allocation3 + $0x5]]
        %s225 = sld [smem:[#allocation3 + $0x6]]
        %s226 = sld [smem:[#allocation3 + $0x7]]
        %s227 = sld [smem:[#allocation3 + $0x8]]
        %s228 = sld [smem:[#allocation3 + $0x9]]
        %s229 = sld [smem:[#allocation3 + $0xa]]
        %s230 = sld [smem:[#allocation3 + $0xb]]
        %s231 = sld [smem:[#allocation3 + $0xc]]
        %s232 = sld [smem:[#allocation3 + $0xd]]
        %s233 = sld [smem:[#allocation3 + $0xe]]
        %s234 = sld [smem:[#allocation3 + $0xf]]
        %s235 = sld [smem:[#allocation3 + $0x10]]
        %s236 = sld [smem:[#allocation3 + $0x11]]
        %s237 = sld [smem:[#allocation3 + $0x12]]
        %s238 = sld [smem:[#allocation3 + $0x13]]
        %s239 = sld [smem:[#allocation3 + $0x14]]
        %s240 = sld [smem:[#allocation3 + $0x15]]
        %s241 = sld [smem:[#allocation3 + $0x16]]
        %s242 = sld [smem:[#allocation3 + $0x17]]
        %s243 = sld [smem:[#allocation3 + $0x18]]
        %s244 = sld [smem:[#allocation3 + $0x19]]
        %s245 = sld [smem:[#allocation3 + $0x1a]]
        %s246 = sld [smem:[#allocation3 + $0x1b]]
        %s247 = sld [smem:[#allocation3 + $0x1c]]
        %s248 = sld [smem:[#allocation3 + $0x1d]]
        %s249 = sld [smem:[#allocation3 + $0x1e]]
        %s250 = sld [smem:[#allocation3 + $0x1f]]
        %s251 = sld [smem:[#allocation3 + $0x20]]
        %s252 = sld [smem:[#allocation3 + $0x21]]
        %s253 = sld [smem:[#allocation3 + $0x22]]
        %s254 = sld [smem:[#allocation3 + $0x23]]
        %s255 = sld [smem:[#allocation3 + $0x24]]
        %s256 = sld [smem:[#allocation3 + $0x25]]
        %s257 = sld [smem:[#allocation3 + $0x26]]
        %s258 = sld [smem:[#allocation3 + $0x27]]
        %s259 = sld [smem:[#allocation3 + $0x28]]
        %s260 = sld [smem:[#allocation3 + $0x29]]
        %s261 = sld [smem:[#allocation3 + $0x2a]]
        %s262 = sld [smem:[#allocation3 + $0x2b]]
        %s263 = sld [smem:[#allocation3 + $0x2c]]
        %s264 = sld [smem:[#allocation3 + $0x2d]]
        %s265 = sld [smem:[#allocation3 + $0x2e]]
        %s266 = sld [smem:[#allocation3 + $0x2f]]
        %s267 = sld [smem:[#allocation3 + $0x30]]
        %s268 = sld [smem:[#allocation3 + $0x31]]
        %s269 = sld [smem:[#allocation3 + $0x32]]
        %s270 = sld [smem:[#allocation3 + $0x33]]
        %s271 = sld [smem:[#allocation3 + $0x34]]
        %s272 = sld [smem:[#allocation3 + $0x35]]
        %s273 = sld [smem:[#allocation3 + $0x36]]
        %s274 = sld [smem:[#allocation3 + $0x37]]
        %s275 = sld [smem:[#allocation3 + $0x38]]
        %s276 = sld [smem:[#allocation3 + $0x39]]
        %s277 = sld [smem:[#allocation3 + $0x3a]]
        %s278 = sld [smem:[#allocation3 + $0x3b]]
        %s279 = sld [smem:[#allocation3 + $0x3c]]
        %s280 = sld [smem:[#allocation3 + $0x3d]]
        %s281 = sld [smem:[#allocation3 + $0x3e]]
        %s282 = sld [smem:[#allocation3 + $0x3f]]
        %s283 = sld [smem:[#allocation3 + $0x40]]
        %s284 = sld [smem:[#allocation3 + $0x41]]
        %s285 = sld [smem:[#allocation3 + $0x42]]
        %s286 = sld [smem:[#allocation3 + $0x43]]
        %s287 = sld [smem:[#allocation3 + $0x44]]
        %s288 = sld [smem:[#allocation3 + $0x45]]
        %s289 = sld [smem:[#allocation3 + $0x46]]
        %s290 = sld [smem:[#allocation3 + $0x47]]
        %s291 = sld [smem:[#allocation3 + $0x48]]
        %s292 = sld [smem:[#allocation3 + $0x49]]
        %s293 = sld [smem:[#allocation3 + $0x4a]]
        %s294 = sld [smem:[#allocation3 + $0x4b]]
        %s295 = sld [smem:[#allocation3 + $0x4c]]
        %s296 = sld [smem:[#allocation3 + $0x4d]]
        %s297 = sld [smem:[#allocation3 + $0x4e]]
        %s298 = sld [smem:[#allocation3 + $0x4f]]
        %s299 = sld [smem:[#allocation3 + $0x50]]
        %s300 = sld [smem:[#allocation7]]
        %s301 = sld [smem:[#allocation7 + $0x1]]
        %s302 = sld [smem:[#allocation7 + $0x2]]
        %v303 = vld [vmem:[%s188] sm:$0xff]
        %v304 = vld [vmem:[%s188 + $0x8] sm:$0xff]
        %v305 = vld [vmem:[%s188 + $0x10] sm:$0xff]
        %v306 = vld [vmem:[%s188 + $0x18] sm:$0xff]
        %v307 = vld [vmem:[%s188 + $0x20] sm:$0xff]
        %v308 = vld [vmem:[%s188 + $0x28] sm:$0xff]
        %v309 = vld [vmem:[%s188 + $0x30] sm:$0xff]
        %v310 = vstv %s219
        %v311 = vmul.f32 %v310, %v303
        %v312 = vmul.f32 %v310, %v304
        %v313 = vmul.f32 %v310, %v305
        %v314 = vmul.f32 %v310, %v306
        %v315 = vmul.f32 %v310, %v307
        %v316 = vmul.f32 %v310, %v308
        %v317 = vmul.f32 %v310, %v309
        %v318 = vadd.f32 %v311, 0.0
        %v319 = vadd.f32 %v312, 0.0
        %v320 = vadd.f32 %v313, 0.0
        %v321 = vadd.f32 %v314, 0.0
        %v322 = vadd.f32 %v315, 0.0
        %v323 = vadd.f32 %v316, 0.0
        %v324 = vadd.f32 %v317, 0.0
        %v325 = vstv %s246
        %v326 = vmul.f32 %v325, %v303
        %v327 = vmul.f32 %v325, %v304
        %v328 = vmul.f32 %v325, %v305
        %v329 = vmul.f32 %v325, %v306
        %v330 = vmul.f32 %v325, %v307
        %v331 = vmul.f32 %v325, %v308
        %v332 = vmul.f32 %v325, %v309
        %v333 = vadd.f32 %v326, 0.0
        %v334 = vadd.f32 %v327, 0.0
        %v335 = vadd.f32 %v328, 0.0
        %v336 = vadd.f32 %v329, 0.0
        %v337 = vadd.f32 %v330, 0.0
        %v338 = vadd.f32 %v331, 0.0
        %v339 = vadd.f32 %v332, 0.0
        %v340 = vstv %s273
        %v341 = vmul.f32 %v340, %v303
        %v342 = vmul.f32 %v340, %v304
        %v343 = vmul.f32 %v340, %v305
        %v344 = vmul.f32 %v340, %v306
        %v345 = vmul.f32 %v340, %v307
        %v346 = vmul.f32 %v340, %v308
        %v347 = vmul.f32 %v340, %v309
        %v348 = vadd.f32 %v341, 0.0
        %v349 = vadd.f32 %v342, 0.0
        %v350 = vadd.f32 %v343, 0.0
        %v351 = vadd.f32 %v344, 0.0
        %v352 = vadd.f32 %v345, 0.0
        %v353 = vadd.f32 %v346, 0.0
        %v354 = vadd.f32 %v347, 0.0
        %v355 = vstv %s220
        %v356 = vmul.f32 %v355, %v303
        %v357 = vmul.f32 %v355, %v304
        %v358 = vmul.f32 %v355, %v305
        %v359 = vmul.f32 %v355, %v306
        %v360 = vmul.f32 %v355, %v307
        %v361 = vmul.f32 %v355, %v308
        %v362 = vmul.f32 %v355, %v309
        %370 = vrot.lane.b32.xlu0 %v356, 127
        %v371 = vpop.permute.xlu0 %370
        %372 = vrot.lane.b32.xlu0 %v357, 127
        %v373 = vpop.permute.xlu0 %372
        %374 = vrot.lane.b32.xlu0 %v358, 127
        %v375 = vpop.permute.xlu0 %374
        %376 = vrot.lane.b32.xlu0 %v359, 127
        %v377 = vpop.permute.xlu0 %376
        %378 = vrot.lane.b32.xlu0 %v360, 127
        %v379 = vpop.permute.xlu0 %378
        %380 = vrot.lane.b32.xlu0 %v361, 127
        %v381 = vpop.permute.xlu0 %380
        %382 = vrot.lane.b32.xlu0 %v362, 127
        %v383 = vpop.permute.xlu0 %382
        %v391 = vadd.f32 %v318, %v371
        %v392 = vadd.f32 %v319, %v373
        %v393 = vadd.f32 %v320, %v375
        %v394 = vadd.f32 %v321, %v377
        %v395 = vadd.f32 %v322, %v379
        %v396 = vadd.f32 %v323, %v381
        %v397 = vadd.f32 %v324, %v383
        %v398 = vstv %s247
        %v399 = vmul.f32 %v398, %v303
        %v400 = vmul.f32 %v398, %v304
        %v401 = vmul.f32 %v398, %v305
        %v402 = vmul.f32 %v398, %v306
        %v403 = vmul.f32 %v398, %v307
        %v404 = vmul.f32 %v398, %v308
        %v405 = vmul.f32 %v398, %v309
        %413 = vrot.lane.b32.xlu0 %v399, 127
        %v414 = vpop.permute.xlu0 %413
        %415 = vrot.lane.b32.xlu0 %v400, 127
        %v416 = vpop.permute.xlu0 %415
        %417 = vrot.lane.b32.xlu0 %v401, 127
        %v418 = vpop.permute.xlu0 %417
        %419 = vrot.lane.b32.xlu0 %v402, 127
        %v420 = vpop.permute.xlu0 %419
        %421 = vrot.lane.b32.xlu0 %v403, 127
        %v422 = vpop.permute.xlu0 %421
        %423 = vrot.lane.b32.xlu0 %v404, 127
        %v424 = vpop.permute.xlu0 %423
        %425 = vrot.lane.b32.xlu0 %v405, 127
        %v426 = vpop.permute.xlu0 %425
        %v434 = vadd.f32 %v333, %v414
        %v435 = vadd.f32 %v334, %v416
        %v436 = vadd.f32 %v335, %v418
        %v437 = vadd.f32 %v336, %v420
        %v438 = vadd.f32 %v337, %v422
        %v439 = vadd.f32 %v338, %v424
        %v440 = vadd.f32 %v339, %v426
        %v441 = vstv %s274
        %v442 = vmul.f32 %v441, %v303
        %v443 = vmul.f32 %v441, %v304
        %v444 = vmul.f32 %v441, %v305
        %v445 = vmul.f32 %v441, %v306
        %v446 = vmul.f32 %v441, %v307
        %v447 = vmul.f32 %v441, %v308
        %v448 = vmul.f32 %v441, %v309
        %456 = vrot.lane.b32.xlu0 %v442, 127
        %v457 = vpop.permute.xlu0 %456
        %458 = vrot.lane.b32.xlu0 %v443, 127
        %v459 = vpop.permute.xlu0 %458
        %460 = vrot.lane.b32.xlu0 %v444, 127
        %v461 = vpop.permute.xlu0 %460
        %462 = vrot.lane.b32.xlu0 %v445, 127
        %v463 = vpop.permute.xlu0 %462
        %464 = vrot.lane.b32.xlu0 %v446, 127
        %v465 = vpop.permute.xlu0 %464
        %466 = vrot.lane.b32.xlu0 %v447, 127
        %v467 = vpop.permute.xlu0 %466
        %468 = vrot.lane.b32.xlu0 %v448, 127
        %v469 = vpop.permute.xlu0 %468
        %v477 = vadd.f32 %v348, %v457
        %v478 = vadd.f32 %v349, %v459
        %v479 = vadd.f32 %v350, %v461
        %v480 = vadd.f32 %v351, %v463
        %v481 = vadd.f32 %v352, %v465
        %v482 = vadd.f32 %v353, %v467
        %v483 = vadd.f32 %v354, %v469
        %v484 = vstv %s221
        %v485 = vmul.f32 %v484, %v303
        %v486 = vmul.f32 %v484, %v304
        %v487 = vmul.f32 %v484, %v305
        %v488 = vmul.f32 %v484, %v306
        %v489 = vmul.f32 %v484, %v307
        %v490 = vmul.f32 %v484, %v308
        %v491 = vmul.f32 %v484, %v309
        %499 = vrot.lane.b32.xlu0 %v485, 126
        %v500 = vpop.permute.xlu0 %499
        %501 = vrot.lane.b32.xlu0 %v486, 126
        %v502 = vpop.permute.xlu0 %501
        %503 = vrot.lane.b32.xlu0 %v487, 126
        %v504 = vpop.permute.xlu0 %503
        %505 = vrot.lane.b32.xlu0 %v488, 126
        %v506 = vpop.permute.xlu0 %505
        %507 = vrot.lane.b32.xlu0 %v489, 126
        %v508 = vpop.permute.xlu0 %507
        %509 = vrot.lane.b32.xlu0 %v490, 126
        %v510 = vpop.permute.xlu0 %509
        %511 = vrot.lane.b32.xlu0 %v491, 126
        %v512 = vpop.permute.xlu0 %511
        %v520 = vadd.f32 %v391, %v500
        %v521 = vadd.f32 %v392, %v502
        %v522 = vadd.f32 %v393, %v504
        %v523 = vadd.f32 %v394, %v506
        %v524 = vadd.f32 %v395, %v508
        %v525 = vadd.f32 %v396, %v510
        %v526 = vadd.f32 %v397, %v512
        %v527 = vstv %s248
        %v528 = vmul.f32 %v527, %v303
        %v529 = vmul.f32 %v527, %v304
        %v530 = vmul.f32 %v527, %v305
        %v531 = vmul.f32 %v527, %v306
        %v532 = vmul.f32 %v527, %v307
        %v533 = vmul.f32 %v527, %v308
        %v534 = vmul.f32 %v527, %v309
        %542 = vrot.lane.b32.xlu0 %v528, 126
        %v543 = vpop.permute.xlu0 %542
        %544 = vrot.lane.b32.xlu0 %v529, 126
        %v545 = vpop.permute.xlu0 %544
        %546 = vrot.lane.b32.xlu0 %v530, 126
        %v547 = vpop.permute.xlu0 %546
        %548 = vrot.lane.b32.xlu0 %v531, 126
        %v549 = vpop.permute.xlu0 %548
        %550 = vrot.lane.b32.xlu0 %v532, 126
        %v551 = vpop.permute.xlu0 %550
        %552 = vrot.lane.b32.xlu0 %v533, 126
        %v553 = vpop.permute.xlu0 %552
        %554 = vrot.lane.b32.xlu0 %v534, 126
        %v555 = vpop.permute.xlu0 %554
        %v563 = vadd.f32 %v434, %v543
        %v564 = vadd.f32 %v435, %v545
        %v565 = vadd.f32 %v436, %v547
        %v566 = vadd.f32 %v437, %v549
        %v567 = vadd.f32 %v438, %v551
        %v568 = vadd.f32 %v439, %v553
        %v569 = vadd.f32 %v440, %v555
        %v570 = vstv %s275
        %v571 = vmul.f32 %v570, %v303
        %v572 = vmul.f32 %v570, %v304
        %v573 = vmul.f32 %v570, %v305
        %v574 = vmul.f32 %v570, %v306
        %v575 = vmul.f32 %v570, %v307
        %v576 = vmul.f32 %v570, %v308
        %v577 = vmul.f32 %v570, %v309
        %585 = vrot.lane.b32.xlu0 %v571, 126
        %v586 = vpop.permute.xlu0 %585
        %587 = vrot.lane.b32.xlu0 %v572, 126
        %v588 = vpop.permute.xlu0 %587
        %589 = vrot.lane.b32.xlu0 %v573, 126
        %v590 = vpop.permute.xlu0 %589
        %591 = vrot.lane.b32.xlu0 %v574, 126
        %v592 = vpop.permute.xlu0 %591
        %593 = vrot.lane.b32.xlu0 %v575, 126
        %v594 = vpop.permute.xlu0 %593
        %595 = vrot.lane.b32.xlu0 %v576, 126
        %v596 = vpop.permute.xlu0 %595
        %597 = vrot.lane.b32.xlu0 %v577, 126
        %v598 = vpop.permute.xlu0 %597
        %v606 = vadd.f32 %v477, %v586
        %v607 = vadd.f32 %v478, %v588
        %v608 = vadd.f32 %v479, %v590
        %v609 = vadd.f32 %v480, %v592
        %v610 = vadd.f32 %v481, %v594
        %v611 = vadd.f32 %v482, %v596
        %v612 = vadd.f32 %v483, %v598
        %v613 = vstv %s222
        %v614 = vmul.f32 %v613, %v303
        %v615 = vmul.f32 %v613, %v304
        %v616 = vmul.f32 %v613, %v305
        %v617 = vmul.f32 %v613, %v306
        %v618 = vmul.f32 %v613, %v307
        %v619 = vmul.f32 %v613, %v308
        %v620 = vmul.f32 %v613, %v309
        %vm628 = vcmask 1046528
        %v629 = vrot.slane %v614, 1
        %v630 = vrot.slane %v615, 1
        %v631 = vsel %vm628, %v629, %v630
        %v632 = vrot.slane %v616, 1
        %v633 = vsel %vm628, %v630, %v632
        %v634 = vrot.slane %v617, 1
        %v635 = vsel %vm628, %v632, %v634
        %v636 = vrot.slane %v618, 1
        %v637 = vsel %vm628, %v634, %v636
        %v638 = vrot.slane %v619, 1
        %v639 = vsel %vm628, %v636, %v638
        %v640 = vrot.slane %v620, 1
        %v641 = vsel %vm628, %v638, %v640
        %v649 = vadd.f32 %v520, %v631
        %v650 = vadd.f32 %v521, %v633
        %v651 = vadd.f32 %v522, %v635
        %v652 = vadd.f32 %v523, %v637
        %v653 = vadd.f32 %v524, %v639
        %v654 = vadd.f32 %v525, %v641
        %v655 = vadd.f32 %v526, %v640
        %v656 = vstv %s249
        %v657 = vmul.f32 %v656, %v303
        %v658 = vmul.f32 %v656, %v304
        %v659 = vmul.f32 %v656, %v305
        %v660 = vmul.f32 %v656, %v306
        %v661 = vmul.f32 %v656, %v307
        %v662 = vmul.f32 %v656, %v308
        %v663 = vmul.f32 %v656, %v309
        %v671 = vrot.slane %v657, 1
        %v672 = vrot.slane %v658, 1
        %v673 = vsel %vm628, %v671, %v672
        %v674 = vrot.slane %v659, 1
        %v675 = vsel %vm628, %v672, %v674
        %v676 = vrot.slane %v660, 1
        %v677 = vsel %vm628, %v674, %v676
        %v678 = vrot.slane %v661, 1
        %v679 = vsel %vm628, %v676, %v678
        %v680 = vrot.slane %v662, 1
        %v681 = vsel %vm628, %v678, %v680
        %v682 = vrot.slane %v663, 1
        %v683 = vsel %vm628, %v680, %v682
        %v691 = vadd.f32 %v563, %v673
        %v692 = vadd.f32 %v564, %v675
        %v693 = vadd.f32 %v565, %v677
        %v694 = vadd.f32 %v566, %v679
        %v695 = vadd.f32 %v567, %v681
        %v696 = vadd.f32 %v568, %v683
        %v697 = vadd.f32 %v569, %v682
        %v698 = vstv %s276
        %v699 = vmul.f32 %v698, %v303
        %v700 = vmul.f32 %v698, %v304
        %v701 = vmul.f32 %v698, %v305
        %v702 = vmul.f32 %v698, %v306
        %v703 = vmul.f32 %v698, %v307
        %v704 = vmul.f32 %v698, %v308
        %v705 = vmul.f32 %v698, %v309
        %v713 = vrot.slane %v699, 1
        %v714 = vrot.slane %v700, 1
        %v715 = vsel %vm628, %v713, %v714
        %v716 = vrot.slane %v701, 1
        %v717 = vsel %vm628, %v714, %v716
        %v718 = vrot.slane %v702, 1
        %v719 = vsel %vm628, %v716, %v718
        %v720 = vrot.slane %v703, 1
        %v721 = vsel %vm628, %v718, %v720
        %v722 = vrot.slane %v704, 1
        %v723 = vsel %vm628, %v720, %v722
        %v724 = vrot.slane %v705, 1
        %v725 = vsel %vm628, %v722, %v724
        %v733 = vadd.f32 %v606, %v715
        %v734 = vadd.f32 %v607, %v717
        %v735 = vadd.f32 %v608, %v719
        %v736 = vadd.f32 %v609, %v721
        %v737 = vadd.f32 %v610, %v723
        %v738 = vadd.f32 %v611, %v725
        %v739 = vadd.f32 %v612, %v724
        %v740 = vstv %s223
        %v741 = vmul.f32 %v740, %v303
        %v742 = vmul.f32 %v740, %v304
        %v743 = vmul.f32 %v740, %v305
        %v744 = vmul.f32 %v740, %v306
        %v745 = vmul.f32 %v740, %v307
        %v746 = vmul.f32 %v740, %v308
        %v747 = vmul.f32 %v740, %v309
        %v755 = vrot.slane %v741, 1
        %v756 = vrot.slane %v742, 1
        %v757 = vsel %vm628, %v755, %v756
        %v758 = vrot.slane %v743, 1
        %v759 = vsel %vm628, %v756, %v758
        %v760 = vrot.slane %v744, 1
        %v761 = vsel %vm628, %v758, %v760
        %v762 = vrot.slane %v745, 1
        %v763 = vsel %vm628, %v760, %v762
        %v764 = vrot.slane %v746, 1
        %v765 = vsel %vm628, %v762, %v764
        %v766 = vrot.slane %v747, 1
        %v767 = vsel %vm628, %v764, %v766
        %768 = vrot.lane.b32.xlu0 %v757, 127
        %v769 = vpop.permute.xlu0 %768
        %770 = vrot.lane.b32.xlu0 %v759, 127
        %v771 = vpop.permute.xlu0 %770
        %772 = vrot.lane.b32.xlu0 %v761, 127
        %v773 = vpop.permute.xlu0 %772
        %774 = vrot.lane.b32.xlu0 %v763, 127
        %v775 = vpop.permute.xlu0 %774
        %776 = vrot.lane.b32.xlu0 %v765, 127
        %v777 = vpop.permute.xlu0 %776
        %778 = vrot.lane.b32.xlu0 %v767, 127
        %v779 = vpop.permute.xlu0 %778
        %780 = vrot.lane.b32.xlu0 %v766, 127
        %v781 = vpop.permute.xlu0 %780
        %v789 = vadd.f32 %v649, %v769
        %v790 = vadd.f32 %v650, %v771
        %v791 = vadd.f32 %v651, %v773
        %v792 = vadd.f32 %v652, %v775
        %v793 = vadd.f32 %v653, %v777
        %v794 = vadd.f32 %v654, %v779
        %v795 = vadd.f32 %v655, %v781
        %v796 = vstv %s250
        %v797 = vmul.f32 %v796, %v303
        %v798 = vmul.f32 %v796, %v304
        %v799 = vmul.f32 %v796, %v305
        %v800 = vmul.f32 %v796, %v306
        %v801 = vmul.f32 %v796, %v307
        %v802 = vmul.f32 %v796, %v308
        %v803 = vmul.f32 %v796, %v309
        %v811 = vrot.slane %v797, 1
        %v812 = vrot.slane %v798, 1
        %v813 = vsel %vm628, %v811, %v812
        %v814 = vrot.slane %v799, 1
        %v815 = vsel %vm628, %v812, %v814
        %v816 = vrot.slane %v800, 1
        %v817 = vsel %vm628, %v814, %v816
        %v818 = vrot.slane %v801, 1
        %v819 = vsel %vm628, %v816, %v818
        %v820 = vrot.slane %v802, 1
        %v821 = vsel %vm628, %v818, %v820
        %v822 = vrot.slane %v803, 1
        %v823 = vsel %vm628, %v820, %v822
        %824 = vrot.lane.b32.xlu0 %v813, 127
        %v825 = vpop.permute.xlu0 %824
        %826 = vrot.lane.b32.xlu0 %v815, 127
        %v827 = vpop.permute.xlu0 %826
        %828 = vrot.lane.b32.xlu0 %v817, 127
        %v829 = vpop.permute.xlu0 %828
        %830 = vrot.lane.b32.xlu0 %v819, 127
        %v831 = vpop.permute.xlu0 %830
        %832 = vrot.lane.b32.xlu0 %v821, 127
        %v833 = vpop.permute.xlu0 %832
        %834 = vrot.lane.b32.xlu0 %v823, 127
        %v835 = vpop.permute.xlu0 %834
        %836 = vrot.lane.b32.xlu0 %v822, 127
        %v837 = vpop.permute.xlu0 %836
        %v845 = vadd.f32 %v691, %v825
        %v846 = vadd.f32 %v692, %v827
        %v847 = vadd.f32 %v693, %v829
        %v848 = vadd.f32 %v694, %v831
        %v849 = vadd.f32 %v695, %v833
        %v850 = vadd.f32 %v696, %v835
        %v851 = vadd.f32 %v697, %v837
        %v852 = vstv %s277
        %v853 = vmul.f32 %v852, %v303
        %v854 = vmul.f32 %v852, %v304
        %v855 = vmul.f32 %v852, %v305
        %v856 = vmul.f32 %v852, %v306
        %v857 = vmul.f32 %v852, %v307
        %v858 = vmul.f32 %v852, %v308
        %v859 = vmul.f32 %v852, %v309
        %v867 = vrot.slane %v853, 1
        %v868 = vrot.slane %v854, 1
        %v869 = vsel %vm628, %v867, %v868
        %v870 = vrot.slane %v855, 1
        %v871 = vsel %vm628, %v868, %v870
        %v872 = vrot.slane %v856, 1
        %v873 = vsel %vm628, %v870, %v872
        %v874 = vrot.slane %v857, 1
        %v875 = vsel %vm628, %v872, %v874
        %v876 = vrot.slane %v858, 1
        %v877 = vsel %vm628, %v874, %v876
        %v878 = vrot.slane %v859, 1
        %v879 = vsel %vm628, %v876, %v878
        %880 = vrot.lane.b32.xlu0 %v869, 127
        %v881 = vpop.permute.xlu0 %880
        %882 = vrot.lane.b32.xlu0 %v871, 127
        %v883 = vpop.permute.xlu0 %882
        %884 = vrot.lane.b32.xlu0 %v873, 127
        %v885 = vpop.permute.xlu0 %884
        %886 = vrot.lane.b32.xlu0 %v875, 127
        %v887 = vpop.permute.xlu0 %886
        %888 = vrot.lane.b32.xlu0 %v877, 127
        %v889 = vpop.permute.xlu0 %888
        %890 = vrot.lane.b32.xlu0 %v879, 127
        %v891 = vpop.permute.xlu0 %890
        %892 = vrot.lane.b32.xlu0 %v878, 127
        %v893 = vpop.permute.xlu0 %892
        %v901 = vadd.f32 %v733, %v881
        %v902 = vadd.f32 %v734, %v883
        %v903 = vadd.f32 %v735, %v885
        %v904 = vadd.f32 %v736, %v887
        %v905 = vadd.f32 %v737, %v889
        %v906 = vadd.f32 %v738, %v891
        %v907 = vadd.f32 %v739, %v893
        %v908 = vstv %s224
        %v909 = vmul.f32 %v908, %v303
        %v910 = vmul.f32 %v908, %v304
        %v911 = vmul.f32 %v908, %v305
        %v912 = vmul.f32 %v908, %v306
        %v913 = vmul.f32 %v908, %v307
        %v914 = vmul.f32 %v908, %v308
        %v915 = vmul.f32 %v908, %v309
        %v923 = vrot.slane %v909, 1
        %v924 = vrot.slane %v910, 1
        %v925 = vsel %vm628, %v923, %v924
        %v926 = vrot.slane %v911, 1
        %v927 = vsel %vm628, %v924, %v926
        %v928 = vrot.slane %v912, 1
        %v929 = vsel %vm628, %v926, %v928
        %v930 = vrot.slane %v913, 1
        %v931 = vsel %vm628, %v928, %v930
        %v932 = vrot.slane %v914, 1
        %v933 = vsel %vm628, %v930, %v932
        %v934 = vrot.slane %v915, 1
        %v935 = vsel %vm628, %v932, %v934
        %936 = vrot.lane.b32.xlu0 %v925, 126
        %v937 = vpop.permute.xlu0 %936
        %938 = vrot.lane.b32.xlu0 %v927, 126
        %v939 = vpop.permute.xlu0 %938
        %940 = vrot.lane.b32.xlu0 %v929, 126
        %v941 = vpop.permute.xlu0 %940
        %942 = vrot.lane.b32.xlu0 %v931, 126
        %v943 = vpop.permute.xlu0 %942
        %944 = vrot.lane.b32.xlu0 %v933, 126
        %v945 = vpop.permute.xlu0 %944
        %946 = vrot.lane.b32.xlu0 %v935, 126
        %v947 = vpop.permute.xlu0 %946
        %948 = vrot.lane.b32.xlu0 %v934, 126
        %v949 = vpop.permute.xlu0 %948
        %v957 = vadd.f32 %v789, %v937
        %v958 = vadd.f32 %v790, %v939
        %v959 = vadd.f32 %v791, %v941
        %v960 = vadd.f32 %v792, %v943
        %v961 = vadd.f32 %v793, %v945
        %v962 = vadd.f32 %v794, %v947
        %v963 = vadd.f32 %v795, %v949
        %v964 = vstv %s251
        %v965 = vmul.f32 %v964, %v303
        %v966 = vmul.f32 %v964, %v304
        %v967 = vmul.f32 %v964, %v305
        %v968 = vmul.f32 %v964, %v306
        %v969 = vmul.f32 %v964, %v307
        %v970 = vmul.f32 %v964, %v308
        %v971 = vmul.f32 %v964, %v309
        %v979 = vrot.slane %v965, 1
        %v980 = vrot.slane %v966, 1
        %v981 = vsel %vm628, %v979, %v980
        %v982 = vrot.slane %v967, 1
        %v983 = vsel %vm628, %v980, %v982
        %v984 = vrot.slane %v968, 1
        %v985 = vsel %vm628, %v982, %v984
        %v986 = vrot.slane %v969, 1
        %v987 = vsel %vm628, %v984, %v986
        %v988 = vrot.slane %v970, 1
        %v989 = vsel %vm628, %v986, %v988
        %v990 = vrot.slane %v971, 1
        %v991 = vsel %vm628, %v988, %v990
        %992 = vrot.lane.b32.xlu0 %v981, 126
        %v993 = vpop.permute.xlu0 %992
        %994 = vrot.lane.b32.xlu0 %v983, 126
        %v995 = vpop.permute.xlu0 %994
        %996 = vrot.lane.b32.xlu0 %v985, 126
        %v997 = vpop.permute.xlu0 %996
        %998 = vrot.lane.b32.xlu0 %v987, 126
        %v999 = vpop.permute.xlu0 %998
        %1000 = vrot.lane.b32.xlu0 %v989, 126
        %v1001 = vpop.permute.xlu0 %1000
        %1002 = vrot.lane.b32.xlu0 %v991, 126
        %v1003 = vpop.permute.xlu0 %1002
        %1004 = vrot.lane.b32.xlu0 %v990, 126
        %v1005 = vpop.permute.xlu0 %1004
        %v1013 = vadd.f32 %v845, %v993
        %v1014 = vadd.f32 %v846, %v995
        %v1015 = vadd.f32 %v847, %v997
        %v1016 = vadd.f32 %v848, %v999
        %v1017 = vadd.f32 %v849, %v1001
        %v1018 = vadd.f32 %v850, %v1003
        %v1019 = vadd.f32 %v851, %v1005
        %v1020 = vstv %s278
        %v1021 = vmul.f32 %v1020, %v303
        %v1022 = vmul.f32 %v1020, %v304
        %v1023 = vmul.f32 %v1020, %v305
        %v1024 = vmul.f32 %v1020, %v306
        %v1025 = vmul.f32 %v1020, %v307
        %v1026 = vmul.f32 %v1020, %v308
        %v1027 = vmul.f32 %v1020, %v309
        %v1035 = vrot.slane %v1021, 1
        %v1036 = vrot.slane %v1022, 1
        %v1037 = vsel %vm628, %v1035, %v1036
        %v1038 = vrot.slane %v1023, 1
        %v1039 = vsel %vm628, %v1036, %v1038
        %v1040 = vrot.slane %v1024, 1
        %v1041 = vsel %vm628, %v1038, %v1040
        %v1042 = vrot.slane %v1025, 1
        %v1043 = vsel %vm628, %v1040, %v1042
        %v1044 = vrot.slane %v1026, 1
        %v1045 = vsel %vm628, %v1042, %v1044
        %v1046 = vrot.slane %v1027, 1
        %v1047 = vsel %vm628, %v1044, %v1046
        %1048 = vrot.lane.b32.xlu0 %v1037, 126
        %v1049 = vpop.permute.xlu0 %1048
        %1050 = vrot.lane.b32.xlu0 %v1039, 126
        %v1051 = vpop.permute.xlu0 %1050
        %1052 = vrot.lane.b32.xlu0 %v1041, 126
        %v1053 = vpop.permute.xlu0 %1052
        %1054 = vrot.lane.b32.xlu0 %v1043, 126
        %v1055 = vpop.permute.xlu0 %1054
        %1056 = vrot.lane.b32.xlu0 %v1045, 126
        %v1057 = vpop.permute.xlu0 %1056
        %1058 = vrot.lane.b32.xlu0 %v1047, 126
        %v1059 = vpop.permute.xlu0 %1058
        %1060 = vrot.lane.b32.xlu0 %v1046, 126
        %v1061 = vpop.permute.xlu0 %1060
        %v1069 = vadd.f32 %v901, %v1049
        %v1070 = vadd.f32 %v902, %v1051
        %v1071 = vadd.f32 %v903, %v1053
        %v1072 = vadd.f32 %v904, %v1055
        %v1073 = vadd.f32 %v905, %v1057
        %v1074 = vadd.f32 %v906, %v1059
        %v1075 = vadd.f32 %v907, %v1061
        %v1076 = vstv %s225
        %v1077 = vmul.f32 %v1076, %v303
        %v1078 = vmul.f32 %v1076, %v304
        %v1079 = vmul.f32 %v1076, %v305
        %v1080 = vmul.f32 %v1076, %v306
        %v1081 = vmul.f32 %v1076, %v307
        %v1082 = vmul.f32 %v1076, %v308
        %v1083 = vmul.f32 %v1076, %v309
        %vm1091 = vcmask 1045504
        %v1092 = vrot.slane %v1077, 2
        %v1093 = vrot.slane %v1078, 2
        %v1094 = vsel %vm1091, %v1092, %v1093
        %v1095 = vrot.slane %v1079, 2
        %v1096 = vsel %vm1091, %v1093, %v1095
        %v1097 = vrot.slane %v1080, 2
        %v1098 = vsel %vm1091, %v1095, %v1097
        %v1099 = vrot.slane %v1081, 2
        %v1100 = vsel %vm1091, %v1097, %v1099
        %v1101 = vrot.slane %v1082, 2
        %v1102 = vsel %vm1091, %v1099, %v1101
        %v1103 = vrot.slane %v1083, 2
        %v1104 = vsel %vm1091, %v1101, %v1103
        %v1112 = vadd.f32 %v957, %v1094
        %v1113 = vadd.f32 %v958, %v1096
        %v1114 = vadd.f32 %v959, %v1098
        %v1115 = vadd.f32 %v960, %v1100
        %v1116 = vadd.f32 %v961, %v1102
        %v1117 = vadd.f32 %v962, %v1104
        %v1118 = vadd.f32 %v963, %v1103
        %v1119 = vstv %s252
        %v1120 = vmul.f32 %v1119, %v303
        %v1121 = vmul.f32 %v1119, %v304
        %v1122 = vmul.f32 %v1119, %v305
        %v1123 = vmul.f32 %v1119, %v306
        %v1124 = vmul.f32 %v1119, %v307
        %v1125 = vmul.f32 %v1119, %v308
        %v1126 = vmul.f32 %v1119, %v309
        %v1134 = vrot.slane %v1120, 2
        %v1135 = vrot.slane %v1121, 2
        %v1136 = vsel %vm1091, %v1134, %v1135
        %v1137 = vrot.slane %v1122, 2
        %v1138 = vsel %vm1091, %v1135, %v1137
        %v1139 = vrot.slane %v1123, 2
        %v1140 = vsel %vm1091, %v1137, %v1139
        %v1141 = vrot.slane %v1124, 2
        %v1142 = vsel %vm1091, %v1139, %v1141
        %v1143 = vrot.slane %v1125, 2
        %v1144 = vsel %vm1091, %v1141, %v1143
        %v1145 = vrot.slane %v1126, 2
        %v1146 = vsel %vm1091, %v1143, %v1145
        %v1154 = vadd.f32 %v1013, %v1136
        %v1155 = vadd.f32 %v1014, %v1138
        %v1156 = vadd.f32 %v1015, %v1140
        %v1157 = vadd.f32 %v1016, %v1142
        %v1158 = vadd.f32 %v1017, %v1144
        %v1159 = vadd.f32 %v1018, %v1146
        %v1160 = vadd.f32 %v1019, %v1145
        %v1161 = vstv %s279
        %v1162 = vmul.f32 %v1161, %v303
        %v1163 = vmul.f32 %v1161, %v304
        %v1164 = vmul.f32 %v1161, %v305
        %v1165 = vmul.f32 %v1161, %v306
        %v1166 = vmul.f32 %v1161, %v307
        %v1167 = vmul.f32 %v1161, %v308
        %v1168 = vmul.f32 %v1161, %v309
        %v1176 = vrot.slane %v1162, 2
        %v1177 = vrot.slane %v1163, 2
        %v1178 = vsel %vm1091, %v1176, %v1177
        %v1179 = vrot.slane %v1164, 2
        %v1180 = vsel %vm1091, %v1177, %v1179
        %v1181 = vrot.slane %v1165, 2
        %v1182 = vsel %vm1091, %v1179, %v1181
        %v1183 = vrot.slane %v1166, 2
        %v1184 = vsel %vm1091, %v1181, %v1183
        %v1185 = vrot.slane %v1167, 2
        %v1186 = vsel %vm1091, %v1183, %v1185
        %v1187 = vrot.slane %v1168, 2
        %v1188 = vsel %vm1091, %v1185, %v1187
        %v1196 = vadd.f32 %v1069, %v1178
        %v1197 = vadd.f32 %v1070, %v1180
        %v1198 = vadd.f32 %v1071, %v1182
        %v1199 = vadd.f32 %v1072, %v1184
        %v1200 = vadd.f32 %v1073, %v1186
        %v1201 = vadd.f32 %v1074, %v1188
        %v1202 = vadd.f32 %v1075, %v1187
        %v1203 = vstv %s226
        %v1204 = vmul.f32 %v1203, %v303
        %v1205 = vmul.f32 %v1203, %v304
        %v1206 = vmul.f32 %v1203, %v305
        %v1207 = vmul.f32 %v1203, %v306
        %v1208 = vmul.f32 %v1203, %v307
        %v1209 = vmul.f32 %v1203, %v308
        %v1210 = vmul.f32 %v1203, %v309
        %v1218 = vrot.slane %v1204, 2
        %v1219 = vrot.slane %v1205, 2
        %v1220 = vsel %vm1091, %v1218, %v1219
        %v1221 = vrot.slane %v1206, 2
        %v1222 = vsel %vm1091, %v1219, %v1221
        %v1223 = vrot.slane %v1207, 2
        %v1224 = vsel %vm1091, %v1221, %v1223
        %v1225 = vrot.slane %v1208, 2
        %v1226 = vsel %vm1091, %v1223, %v1225
        %v1227 = vrot.slane %v1209, 2
        %v1228 = vsel %vm1091, %v1225, %v1227
        %v1229 = vrot.slane %v1210, 2
        %v1230 = vsel %vm1091, %v1227, %v1229
        %1231 = vrot.lane.b32.xlu0 %v1220, 127
        %v1232 = vpop.permute.xlu0 %1231
        %1233 = vrot.lane.b32.xlu0 %v1222, 127
        %v1234 = vpop.permute.xlu0 %1233
        %1235 = vrot.lane.b32.xlu0 %v1224, 127
        %v1236 = vpop.permute.xlu0 %1235
        %1237 = vrot.lane.b32.xlu0 %v1226, 127
        %v1238 = vpop.permute.xlu0 %1237
        %1239 = vrot.lane.b32.xlu0 %v1228, 127
        %v1240 = vpop.permute.xlu0 %1239
        %1241 = vrot.lane.b32.xlu0 %v1230, 127
        %v1242 = vpop.permute.xlu0 %1241
        %1243 = vrot.lane.b32.xlu0 %v1229, 127
        %v1244 = vpop.permute.xlu0 %1243
        %v1252 = vadd.f32 %v1112, %v1232
        %v1253 = vadd.f32 %v1113, %v1234
        %v1254 = vadd.f32 %v1114, %v1236
        %v1255 = vadd.f32 %v1115, %v1238
        %v1256 = vadd.f32 %v1116, %v1240
        %v1257 = vadd.f32 %v1117, %v1242
        %v1258 = vadd.f32 %v1118, %v1244
        %v1259 = vstv %s253
        %v1260 = vmul.f32 %v1259, %v303
        %v1261 = vmul.f32 %v1259, %v304
        %v1262 = vmul.f32 %v1259, %v305
        %v1263 = vmul.f32 %v1259, %v306
        %v1264 = vmul.f32 %v1259, %v307
        %v1265 = vmul.f32 %v1259, %v308
        %v1266 = vmul.f32 %v1259, %v309
        %v1274 = vrot.slane %v1260, 2
        %v1275 = vrot.slane %v1261, 2
        %v1276 = vsel %vm1091, %v1274, %v1275
        %v1277 = vrot.slane %v1262, 2
        %v1278 = vsel %vm1091, %v1275, %v1277
        %v1279 = vrot.slane %v1263, 2
        %v1280 = vsel %vm1091, %v1277, %v1279
        %v1281 = vrot.slane %v1264, 2
        %v1282 = vsel %vm1091, %v1279, %v1281
        %v1283 = vrot.slane %v1265, 2
        %v1284 = vsel %vm1091, %v1281, %v1283
        %v1285 = vrot.slane %v1266, 2
        %v1286 = vsel %vm1091, %v1283, %v1285
        %1287 = vrot.lane.b32.xlu0 %v1276, 127
        %v1288 = vpop.permute.xlu0 %1287
        %1289 = vrot.lane.b32.xlu0 %v1278, 127
        %v1290 = vpop.permute.xlu0 %1289
        %1291 = vrot.lane.b32.xlu0 %v1280, 127
        %v1292 = vpop.permute.xlu0 %1291
        %1293 = vrot.lane.b32.xlu0 %v1282, 127
        %v1294 = vpop.permute.xlu0 %1293
        %1295 = vrot.lane.b32.xlu0 %v1284, 127
        %v1296 = vpop.permute.xlu0 %1295
        %1297 = vrot.lane.b32.xlu0 %v1286, 127
        %v1298 = vpop.permute.xlu0 %1297
        %1299 = vrot.lane.b32.xlu0 %v1285, 127
        %v1300 = vpop.permute.xlu0 %1299
        %v1308 = vadd.f32 %v1154, %v1288
        %v1309 = vadd.f32 %v1155, %v1290
        %v1310 = vadd.f32 %v1156, %v1292
        %v1311 = vadd.f32 %v1157, %v1294
        %v1312 = vadd.f32 %v1158, %v1296
        %v1313 = vadd.f32 %v1159, %v1298
        %v1314 = vadd.f32 %v1160, %v1300
        %v1315 = vstv %s280
        %v1316 = vmul.f32 %v1315, %v303
        %v1317 = vmul.f32 %v1315, %v304
        %v1318 = vmul.f32 %v1315, %v305
        %v1319 = vmul.f32 %v1315, %v306
        %v1320 = vmul.f32 %v1315, %v307
        %v1321 = vmul.f32 %v1315, %v308
        %v1322 = vmul.f32 %v1315, %v309
        %v1330 = vrot.slane %v1316, 2
        %v1331 = vrot.slane %v1317, 2
        %v1332 = vsel %vm1091, %v1330, %v1331
        %v1333 = vrot.slane %v1318, 2
        %v1334 = vsel %vm1091, %v1331, %v1333
        %v1335 = vrot.slane %v1319, 2
        %v1336 = vsel %vm1091, %v1333, %v1335
        %v1337 = vrot.slane %v1320, 2
        %v1338 = vsel %vm1091, %v1335, %v1337
        %v1339 = vrot.slane %v1321, 2
        %v1340 = vsel %vm1091, %v1337, %v1339
        %v1341 = vrot.slane %v1322, 2
        %v1342 = vsel %vm1091, %v1339, %v1341
        %1343 = vrot.lane.b32.xlu0 %v1332, 127
        %v1344 = vpop.permute.xlu0 %1343
        %1345 = vrot.lane.b32.xlu0 %v1334, 127
        %v1346 = vpop.permute.xlu0 %1345
        %1347 = vrot.lane.b32.xlu0 %v1336, 127
        %v1348 = vpop.permute.xlu0 %1347
        %1349 = vrot.lane.b32.xlu0 %v1338, 127
        %v1350 = vpop.permute.xlu0 %1349
        %1351 = vrot.lane.b32.xlu0 %v1340, 127
        %v1352 = vpop.permute.xlu0 %1351
        %1353 = vrot.lane.b32.xlu0 %v1342, 127
        %v1354 = vpop.permute.xlu0 %1353
        %1355 = vrot.lane.b32.xlu0 %v1341, 127
        %v1356 = vpop.permute.xlu0 %1355
        %v1364 = vadd.f32 %v1196, %v1344
        %v1365 = vadd.f32 %v1197, %v1346
        %v1366 = vadd.f32 %v1198, %v1348
        %v1367 = vadd.f32 %v1199, %v1350
        %v1368 = vadd.f32 %v1200, %v1352
        %v1369 = vadd.f32 %v1201, %v1354
        %v1370 = vadd.f32 %v1202, %v1356
        %v1371 = vstv %s227
        %v1372 = vmul.f32 %v1371, %v303
        %v1373 = vmul.f32 %v1371, %v304
        %v1374 = vmul.f32 %v1371, %v305
        %v1375 = vmul.f32 %v1371, %v306
        %v1376 = vmul.f32 %v1371, %v307
        %v1377 = vmul.f32 %v1371, %v308
        %v1378 = vmul.f32 %v1371, %v309
        %v1386 = vrot.slane %v1372, 2
        %v1387 = vrot.slane %v1373, 2
        %v1388 = vsel %vm1091, %v1386, %v1387
        %v1389 = vrot.slane %v1374, 2
        %v1390 = vsel %vm1091, %v1387, %v1389
        %v1391 = vrot.slane %v1375, 2
        %v1392 = vsel %vm1091, %v1389, %v1391
        %v1393 = vrot.slane %v1376, 2
        %v1394 = vsel %vm1091, %v1391, %v1393
        %v1395 = vrot.slane %v1377, 2
        %v1396 = vsel %vm1091, %v1393, %v1395
        %v1397 = vrot.slane %v1378, 2
        %v1398 = vsel %vm1091, %v1395, %v1397
        %1399 = vrot.lane.b32.xlu0 %v1388, 126
        %v1400 = vpop.permute.xlu0 %1399
        %1401 = vrot.lane.b32.xlu0 %v1390, 126
        %v1402 = vpop.permute.xlu0 %1401
        %1403 = vrot.lane.b32.xlu0 %v1392, 126
        %v1404 = vpop.permute.xlu0 %1403
        %1405 = vrot.lane.b32.xlu0 %v1394, 126
        %v1406 = vpop.permute.xlu0 %1405
        %1407 = vrot.lane.b32.xlu0 %v1396, 126
        %v1408 = vpop.permute.xlu0 %1407
        %1409 = vrot.lane.b32.xlu0 %v1398, 126
        %v1410 = vpop.permute.xlu0 %1409
        %1411 = vrot.lane.b32.xlu0 %v1397, 126
        %v1412 = vpop.permute.xlu0 %1411
        %v1420 = vadd.f32 %v1252, %v1400
        %v1421 = vadd.f32 %v1253, %v1402
        %v1422 = vadd.f32 %v1254, %v1404
        %v1423 = vadd.f32 %v1255, %v1406
        %v1424 = vadd.f32 %v1256, %v1408
        %v1425 = vadd.f32 %v1257, %v1410
        %v1426 = vadd.f32 %v1258, %v1412
        %v1427 = vstv %s254
        %v1428 = vmul.f32 %v1427, %v303
        %v1429 = vmul.f32 %v1427, %v304
        %v1430 = vmul.f32 %v1427, %v305
        %v1431 = vmul.f32 %v1427, %v306
        %v1432 = vmul.f32 %v1427, %v307
        %v1433 = vmul.f32 %v1427, %v308
        %v1434 = vmul.f32 %v1427, %v309
        %v1442 = vrot.slane %v1428, 2
        %v1443 = vrot.slane %v1429, 2
        %v1444 = vsel %vm1091, %v1442, %v1443
        %v1445 = vrot.slane %v1430, 2
        %v1446 = vsel %vm1091, %v1443, %v1445
        %v1447 = vrot.slane %v1431, 2
        %v1448 = vsel %vm1091, %v1445, %v1447
        %v1449 = vrot.slane %v1432, 2
        %v1450 = vsel %vm1091, %v1447, %v1449
        %v1451 = vrot.slane %v1433, 2
        %v1452 = vsel %vm1091, %v1449, %v1451
        %v1453 = vrot.slane %v1434, 2
        %v1454 = vsel %vm1091, %v1451, %v1453
        %1455 = vrot.lane.b32.xlu0 %v1444, 126
        %v1456 = vpop.permute.xlu0 %1455
        %1457 = vrot.lane.b32.xlu0 %v1446, 126
        %v1458 = vpop.permute.xlu0 %1457
        %1459 = vrot.lane.b32.xlu0 %v1448, 126
        %v1460 = vpop.permute.xlu0 %1459
        %1461 = vrot.lane.b32.xlu0 %v1450, 126
        %v1462 = vpop.permute.xlu0 %1461
        %1463 = vrot.lane.b32.xlu0 %v1452, 126
        %v1464 = vpop.permute.xlu0 %1463
        %1465 = vrot.lane.b32.xlu0 %v1454, 126
        %v1466 = vpop.permute.xlu0 %1465
        %1467 = vrot.lane.b32.xlu0 %v1453, 126
        %v1468 = vpop.permute.xlu0 %1467
        %v1476 = vadd.f32 %v1308, %v1456
        %v1477 = vadd.f32 %v1309, %v1458
        %v1478 = vadd.f32 %v1310, %v1460
        %v1479 = vadd.f32 %v1311, %v1462
        %v1480 = vadd.f32 %v1312, %v1464
        %v1481 = vadd.f32 %v1313, %v1466
        %v1482 = vadd.f32 %v1314, %v1468
        %v1483 = vstv %s281
        %v1484 = vmul.f32 %v1483, %v303
        %v1485 = vmul.f32 %v1483, %v304
        %v1486 = vmul.f32 %v1483, %v305
        %v1487 = vmul.f32 %v1483, %v306
        %v1488 = vmul.f32 %v1483, %v307
        %v1489 = vmul.f32 %v1483, %v308
        %v1490 = vmul.f32 %v1483, %v309
        %v1498 = vrot.slane %v1484, 2
        %v1499 = vrot.slane %v1485, 2
        %v1500 = vsel %vm1091, %v1498, %v1499
        %v1501 = vrot.slane %v1486, 2
        %v1502 = vsel %vm1091, %v1499, %v1501
        %v1503 = vrot.slane %v1487, 2
        %v1504 = vsel %vm1091, %v1501, %v1503
        %v1505 = vrot.slane %v1488, 2
        %v1506 = vsel %vm1091, %v1503, %v1505
        %v1507 = vrot.slane %v1489, 2
        %v1508 = vsel %vm1091, %v1505, %v1507
        %v1509 = vrot.slane %v1490, 2
        %v1510 = vsel %vm1091, %v1507, %v1509
        %1511 = vrot.lane.b32.xlu0 %v1500, 126
        %v1512 = vpop.permute.xlu0 %1511
        %1513 = vrot.lane.b32.xlu0 %v1502, 126
        %v1514 = vpop.permute.xlu0 %1513
        %1515 = vrot.lane.b32.xlu0 %v1504, 126
        %v1516 = vpop.permute.xlu0 %1515
        %1517 = vrot.lane.b32.xlu0 %v1506, 126
        %v1518 = vpop.permute.xlu0 %1517
        %1519 = vrot.lane.b32.xlu0 %v1508, 126
        %v1520 = vpop.permute.xlu0 %1519
        %1521 = vrot.lane.b32.xlu0 %v1510, 126
        %v1522 = vpop.permute.xlu0 %1521
        %1523 = vrot.lane.b32.xlu0 %v1509, 126
        %v1524 = vpop.permute.xlu0 %1523
        %v1532 = vadd.f32 %v1364, %v1512
        %v1533 = vadd.f32 %v1365, %v1514
        %v1534 = vadd.f32 %v1366, %v1516
        %v1535 = vadd.f32 %v1367, %v1518
        %v1536 = vadd.f32 %v1368, %v1520
        %v1537 = vadd.f32 %v1369, %v1522
        %v1538 = vadd.f32 %v1370, %v1524
        %s1539 = scalar_lea.vmem %s188, 56 [#allocation8]
        %v1540 = vld [vmem:[%s1539] sm:$0xff]
        %v1541 = vld [vmem:[%s1539 + $0x8] sm:$0xff]
        %v1542 = vld [vmem:[%s1539 + $0x10] sm:$0xff]
        %v1543 = vld [vmem:[%s1539 + $0x18] sm:$0xff]
        %v1544 = vld [vmem:[%s1539 + $0x20] sm:$0xff]
        %v1545 = vld [vmem:[%s1539 + $0x28] sm:$0xff]
        %v1546 = vld [vmem:[%s1539 + $0x30] sm:$0xff]
        %v1547 = vstv %s228
        %v1548 = vmul.f32 %v1547, %v1540
        %v1549 = vmul.f32 %v1547, %v1541
        %v1550 = vmul.f32 %v1547, %v1542
        %v1551 = vmul.f32 %v1547, %v1543
        %v1552 = vmul.f32 %v1547, %v1544
        %v1553 = vmul.f32 %v1547, %v1545
        %v1554 = vmul.f32 %v1547, %v1546
        %v1555 = vadd.f32 %v1420, %v1548
        %v1556 = vadd.f32 %v1421, %v1549
        %v1557 = vadd.f32 %v1422, %v1550
        %v1558 = vadd.f32 %v1423, %v1551
        %v1559 = vadd.f32 %v1424, %v1552
        %v1560 = vadd.f32 %v1425, %v1553
        %v1561 = vadd.f32 %v1426, %v1554
        %v1562 = vstv %s255
        %v1563 = vmul.f32 %v1562, %v1540
        %v1564 = vmul.f32 %v1562, %v1541
        %v1565 = vmul.f32 %v1562, %v1542
        %v1566 = vmul.f32 %v1562, %v1543
        %v1567 = vmul.f32 %v1562, %v1544
        %v1568 = vmul.f32 %v1562, %v1545
        %v1569 = vmul.f32 %v1562, %v1546
        %v1570 = vadd.f32 %v1476, %v1563
        %v1571 = vadd.f32 %v1477, %v1564
        %v1572 = vadd.f32 %v1478, %v1565
        %v1573 = vadd.f32 %v1479, %v1566
        %v1574 = vadd.f32 %v1480, %v1567
        %v1575 = vadd.f32 %v1481, %v1568
        %v1576 = vadd.f32 %v1482, %v1569
        %v1577 = vstv %s282
        %v1578 = vmul.f32 %v1577, %v1540
        %v1579 = vmul.f32 %v1577, %v1541
        %v1580 = vmul.f32 %v1577, %v1542
        %v1581 = vmul.f32 %v1577, %v1543
        %v1582 = vmul.f32 %v1577, %v1544
        %v1583 = vmul.f32 %v1577, %v1545
        %v1584 = vmul.f32 %v1577, %v1546
        %v1585 = vadd.f32 %v1532, %v1578
        %v1586 = vadd.f32 %v1533, %v1579
        %v1587 = vadd.f32 %v1534, %v1580
        %v1588 = vadd.f32 %v1535, %v1581
        %v1589 = vadd.f32 %v1536, %v1582
        %v1590 = vadd.f32 %v1537, %v1583
        %v1591 = vadd.f32 %v1538, %v1584
        %v1592 = vstv %s229
        %v1593 = vmul.f32 %v1592, %v1540
        %v1594 = vmul.f32 %v1592, %v1541
        %v1595 = vmul.f32 %v1592, %v1542
        %v1596 = vmul.f32 %v1592, %v1543
        %v1597 = vmul.f32 %v1592, %v1544
        %v1598 = vmul.f32 %v1592, %v1545
        %v1599 = vmul.f32 %v1592, %v1546
        %1607 = vrot.lane.b32.xlu0 %v1593, 127
        %v1608 = vpop.permute.xlu0 %1607
        %1609 = vrot.lane.b32.xlu0 %v1594, 127
        %v1610 = vpop.permute.xlu0 %1609
        %1611 = vrot.lane.b32.xlu0 %v1595, 127
        %v1612 = vpop.permute.xlu0 %1611
        %1613 = vrot.lane.b32.xlu0 %v1596, 127
        %v1614 = vpop.permute.xlu0 %1613
        %1615 = vrot.lane.b32.xlu0 %v1597, 127
        %v1616 = vpop.permute.xlu0 %1615
        %1617 = vrot.lane.b32.xlu0 %v1598, 127
        %v1618 = vpop.permute.xlu0 %1617
        %1619 = vrot.lane.b32.xlu0 %v1599, 127
        %v1620 = vpop.permute.xlu0 %1619
        %v1628 = vadd.f32 %v1555, %v1608
        %v1629 = vadd.f32 %v1556, %v1610
        %v1630 = vadd.f32 %v1557, %v1612
        %v1631 = vadd.f32 %v1558, %v1614
        %v1632 = vadd.f32 %v1559, %v1616
        %v1633 = vadd.f32 %v1560, %v1618
        %v1634 = vadd.f32 %v1561, %v1620
        %v1635 = vstv %s256
        %v1636 = vmul.f32 %v1635, %v1540
        %v1637 = vmul.f32 %v1635, %v1541
        %v1638 = vmul.f32 %v1635, %v1542
        %v1639 = vmul.f32 %v1635, %v1543
        %v1640 = vmul.f32 %v1635, %v1544
        %v1641 = vmul.f32 %v1635, %v1545
        %v1642 = vmul.f32 %v1635, %v1546
        %1650 = vrot.lane.b32.xlu0 %v1636, 127
        %v1651 = vpop.permute.xlu0 %1650
        %1652 = vrot.lane.b32.xlu0 %v1637, 127
        %v1653 = vpop.permute.xlu0 %1652
        %1654 = vrot.lane.b32.xlu0 %v1638, 127
        %v1655 = vpop.permute.xlu0 %1654
        %1656 = vrot.lane.b32.xlu0 %v1639, 127
        %v1657 = vpop.permute.xlu0 %1656
        %1658 = vrot.lane.b32.xlu0 %v1640, 127
        %v1659 = vpop.permute.xlu0 %1658
        %1660 = vrot.lane.b32.xlu0 %v1641, 127
        %v1661 = vpop.permute.xlu0 %1660
        %1662 = vrot.lane.b32.xlu0 %v1642, 127
        %v1663 = vpop.permute.xlu0 %1662
        %v1671 = vadd.f32 %v1570, %v1651
        %v1672 = vadd.f32 %v1571, %v1653
        %v1673 = vadd.f32 %v1572, %v1655
        %v1674 = vadd.f32 %v1573, %v1657
        %v1675 = vadd.f32 %v1574, %v1659
        %v1676 = vadd.f32 %v1575, %v1661
        %v1677 = vadd.f32 %v1576, %v1663
        %v1678 = vstv %s283
        %v1679 = vmul.f32 %v1678, %v1540
        %v1680 = vmul.f32 %v1678, %v1541
        %v1681 = vmul.f32 %v1678, %v1542
        %v1682 = vmul.f32 %v1678, %v1543
        %v1683 = vmul.f32 %v1678, %v1544
        %v1684 = vmul.f32 %v1678, %v1545
        %v1685 = vmul.f32 %v1678, %v1546
        %1693 = vrot.lane.b32.xlu0 %v1679, 127
        %v1694 = vpop.permute.xlu0 %1693
        %1695 = vrot.lane.b32.xlu0 %v1680, 127
        %v1696 = vpop.permute.xlu0 %1695
        %1697 = vrot.lane.b32.xlu0 %v1681, 127
        %v1698 = vpop.permute.xlu0 %1697
        %1699 = vrot.lane.b32.xlu0 %v1682, 127
        %v1700 = vpop.permute.xlu0 %1699
        %1701 = vrot.lane.b32.xlu0 %v1683, 127
        %v1702 = vpop.permute.xlu0 %1701
        %1703 = vrot.lane.b32.xlu0 %v1684, 127
        %v1704 = vpop.permute.xlu0 %1703
        %1705 = vrot.lane.b32.xlu0 %v1685, 127
        %v1706 = vpop.permute.xlu0 %1705
        %v1714 = vadd.f32 %v1585, %v1694
        %v1715 = vadd.f32 %v1586, %v1696
        %v1716 = vadd.f32 %v1587, %v1698
        %v1717 = vadd.f32 %v1588, %v1700
        %v1718 = vadd.f32 %v1589, %v1702
        %v1719 = vadd.f32 %v1590, %v1704
        %v1720 = vadd.f32 %v1591, %v1706
        %v1721 = vstv %s230
        %v1722 = vmul.f32 %v1721, %v1540
        %v1723 = vmul.f32 %v1721, %v1541
        %v1724 = vmul.f32 %v1721, %v1542
        %v1725 = vmul.f32 %v1721, %v1543
        %v1726 = vmul.f32 %v1721, %v1544
        %v1727 = vmul.f32 %v1721, %v1545
        %v1728 = vmul.f32 %v1721, %v1546
        %1736 = vrot.lane.b32.xlu0 %v1722, 126
        %v1737 = vpop.permute.xlu0 %1736
        %1738 = vrot.lane.b32.xlu0 %v1723, 126
        %v1739 = vpop.permute.xlu0 %1738
        %1740 = vrot.lane.b32.xlu0 %v1724, 126
        %v1741 = vpop.permute.xlu0 %1740
        %1742 = vrot.lane.b32.xlu0 %v1725, 126
        %v1743 = vpop.permute.xlu0 %1742
        %1744 = vrot.lane.b32.xlu0 %v1726, 126
        %v1745 = vpop.permute.xlu0 %1744
        %1746 = vrot.lane.b32.xlu0 %v1727, 126
        %v1747 = vpop.permute.xlu0 %1746
        %1748 = vrot.lane.b32.xlu0 %v1728, 126
        %v1749 = vpop.permute.xlu0 %1748
        %v1757 = vadd.f32 %v1628, %v1737
        %v1758 = vadd.f32 %v1629, %v1739
        %v1759 = vadd.f32 %v1630, %v1741
        %v1760 = vadd.f32 %v1631, %v1743
        %v1761 = vadd.f32 %v1632, %v1745
        %v1762 = vadd.f32 %v1633, %v1747
        %v1763 = vadd.f32 %v1634, %v1749
        %v1764 = vstv %s257
        %v1765 = vmul.f32 %v1764, %v1540
        %v1766 = vmul.f32 %v1764, %v1541
        %v1767 = vmul.f32 %v1764, %v1542
        %v1768 = vmul.f32 %v1764, %v1543
        %v1769 = vmul.f32 %v1764, %v1544
        %v1770 = vmul.f32 %v1764, %v1545
        %v1771 = vmul.f32 %v1764, %v1546
        %1779 = vrot.lane.b32.xlu0 %v1765, 126
        %v1780 = vpop.permute.xlu0 %1779
        %1781 = vrot.lane.b32.xlu0 %v1766, 126
        %v1782 = vpop.permute.xlu0 %1781
        %1783 = vrot.lane.b32.xlu0 %v1767, 126
        %v1784 = vpop.permute.xlu0 %1783
        %1785 = vrot.lane.b32.xlu0 %v1768, 126
        %v1786 = vpop.permute.xlu0 %1785
        %1787 = vrot.lane.b32.xlu0 %v1769, 126
        %v1788 = vpop.permute.xlu0 %1787
        %1789 = vrot.lane.b32.xlu0 %v1770, 126
        %v1790 = vpop.permute.xlu0 %1789
        %1791 = vrot.lane.b32.xlu0 %v1771, 126
        %v1792 = vpop.permute.xlu0 %1791
        %v1800 = vadd.f32 %v1671, %v1780
        %v1801 = vadd.f32 %v1672, %v1782
        %v1802 = vadd.f32 %v1673, %v1784
        %v1803 = vadd.f32 %v1674, %v1786
        %v1804 = vadd.f32 %v1675, %v1788
        %v1805 = vadd.f32 %v1676, %v1790
        %v1806 = vadd.f32 %v1677, %v1792
        %v1807 = vstv %s284
        %v1808 = vmul.f32 %v1807, %v1540
        %v1809 = vmul.f32 %v1807, %v1541
        %v1810 = vmul.f32 %v1807, %v1542
        %v1811 = vmul.f32 %v1807, %v1543
        %v1812 = vmul.f32 %v1807, %v1544
        %v1813 = vmul.f32 %v1807, %v1545
        %v1814 = vmul.f32 %v1807, %v1546
        %1822 = vrot.lane.b32.xlu0 %v1808, 126
        %v1823 = vpop.permute.xlu0 %1822
        %1824 = vrot.lane.b32.xlu0 %v1809, 126
        %v1825 = vpop.permute.xlu0 %1824
        %1826 = vrot.lane.b32.xlu0 %v1810, 126
        %v1827 = vpop.permute.xlu0 %1826
        %1828 = vrot.lane.b32.xlu0 %v1811, 126
        %v1829 = vpop.permute.xlu0 %1828
        %1830 = vrot.lane.b32.xlu0 %v1812, 126
        %v1831 = vpop.permute.xlu0 %1830
        %1832 = vrot.lane.b32.xlu0 %v1813, 126
        %v1833 = vpop.permute.xlu0 %1832
        %1834 = vrot.lane.b32.xlu0 %v1814, 126
        %v1835 = vpop.permute.xlu0 %1834
        %v1843 = vadd.f32 %v1714, %v1823
        %v1844 = vadd.f32 %v1715, %v1825
        %v1845 = vadd.f32 %v1716, %v1827
        %v1846 = vadd.f32 %v1717, %v1829
        %v1847 = vadd.f32 %v1718, %v1831
        %v1848 = vadd.f32 %v1719, %v1833
        %v1849 = vadd.f32 %v1720, %v1835
        %v1850 = vstv %s231
        %v1851 = vmul.f32 %v1850, %v1540
        %v1852 = vmul.f32 %v1850, %v1541
        %v1853 = vmul.f32 %v1850, %v1542
        %v1854 = vmul.f32 %v1850, %v1543
        %v1855 = vmul.f32 %v1850, %v1544
        %v1856 = vmul.f32 %v1850, %v1545
        %v1857 = vmul.f32 %v1850, %v1546
        %v1865 = vrot.slane %v1851, 1
        %v1866 = vrot.slane %v1852, 1
        %v1867 = vsel %vm628, %v1865, %v1866
        %v1868 = vrot.slane %v1853, 1
        %v1869 = vsel %vm628, %v1866, %v1868
        %v1870 = vrot.slane %v1854, 1
        %v1871 = vsel %vm628, %v1868, %v1870
        %v1872 = vrot.slane %v1855, 1
        %v1873 = vsel %vm628, %v1870, %v1872
        %v1874 = vrot.slane %v1856, 1
        %v1875 = vsel %vm628, %v1872, %v1874
        %v1876 = vrot.slane %v1857, 1
        %v1877 = vsel %vm628, %v1874, %v1876
        %v1885 = vadd.f32 %v1757, %v1867
        %v1886 = vadd.f32 %v1758, %v1869
        %v1887 = vadd.f32 %v1759, %v1871
        %v1888 = vadd.f32 %v1760, %v1873
        %v1889 = vadd.f32 %v1761, %v1875
        %v1890 = vadd.f32 %v1762, %v1877
        %v1891 = vadd.f32 %v1763, %v1876
        %v1892 = vstv %s258
        %v1893 = vmul.f32 %v1892, %v1540
        %v1894 = vmul.f32 %v1892, %v1541
        %v1895 = vmul.f32 %v1892, %v1542
        %v1896 = vmul.f32 %v1892, %v1543
        %v1897 = vmul.f32 %v1892, %v1544
        %v1898 = vmul.f32 %v1892, %v1545
        %v1899 = vmul.f32 %v1892, %v1546
        %v1907 = vrot.slane %v1893, 1
        %v1908 = vrot.slane %v1894, 1
        %v1909 = vsel %vm628, %v1907, %v1908
        %v1910 = vrot.slane %v1895, 1
        %v1911 = vsel %vm628, %v1908, %v1910
        %v1912 = vrot.slane %v1896, 1
        %v1913 = vsel %vm628, %v1910, %v1912
        %v1914 = vrot.slane %v1897, 1
        %v1915 = vsel %vm628, %v1912, %v1914
        %v1916 = vrot.slane %v1898, 1
        %v1917 = vsel %vm628, %v1914, %v1916
        %v1918 = vrot.slane %v1899, 1
        %v1919 = vsel %vm628, %v1916, %v1918
        %v1927 = vadd.f32 %v1800, %v1909
        %v1928 = vadd.f32 %v1801, %v1911
        %v1929 = vadd.f32 %v1802, %v1913
        %v1930 = vadd.f32 %v1803, %v1915
        %v1931 = vadd.f32 %v1804, %v1917
        %v1932 = vadd.f32 %v1805, %v1919
        %v1933 = vadd.f32 %v1806, %v1918
        %v1934 = vstv %s285
        %v1935 = vmul.f32 %v1934, %v1540
        %v1936 = vmul.f32 %v1934, %v1541
        %v1937 = vmul.f32 %v1934, %v1542
        %v1938 = vmul.f32 %v1934, %v1543
        %v1939 = vmul.f32 %v1934, %v1544
        %v1940 = vmul.f32 %v1934, %v1545
        %v1941 = vmul.f32 %v1934, %v1546
        %v1949 = vrot.slane %v1935, 1
        %v1950 = vrot.slane %v1936, 1
        %v1951 = vsel %vm628, %v1949, %v1950
        %v1952 = vrot.slane %v1937, 1
        %v1953 = vsel %vm628, %v1950, %v1952
        %v1954 = vrot.slane %v1938, 1
        %v1955 = vsel %vm628, %v1952, %v1954
        %v1956 = vrot.slane %v1939, 1
        %v1957 = vsel %vm628, %v1954, %v1956
        %v1958 = vrot.slane %v1940, 1
        %v1959 = vsel %vm628, %v1956, %v1958
        %v1960 = vrot.slane %v1941, 1
        %v1961 = vsel %vm628, %v1958, %v1960
        %v1969 = vadd.f32 %v1843, %v1951
        %v1970 = vadd.f32 %v1844, %v1953
        %v1971 = vadd.f32 %v1845, %v1955
        %v1972 = vadd.f32 %v1846, %v1957
        %v1973 = vadd.f32 %v1847, %v1959
        %v1974 = vadd.f32 %v1848, %v1961
        %v1975 = vadd.f32 %v1849, %v1960
        %v1976 = vstv %s232
        %v1977 = vmul.f32 %v1976, %v1540
        %v1978 = vmul.f32 %v1976, %v1541
        %v1979 = vmul.f32 %v1976, %v1542
        %v1980 = vmul.f32 %v1976, %v1543
        %v1981 = vmul.f32 %v1976, %v1544
        %v1982 = vmul.f32 %v1976, %v1545
        %v1983 = vmul.f32 %v1976, %v1546
        %v1991 = vrot.slane %v1977, 1
        %v1992 = vrot.slane %v1978, 1
        %v1993 = vsel %vm628, %v1991, %v1992
        %v1994 = vrot.slane %v1979, 1
        %v1995 = vsel %vm628, %v1992, %v1994
        %v1996 = vrot.slane %v1980, 1
        %v1997 = vsel %vm628, %v1994, %v1996
        %v1998 = vrot.slane %v1981, 1
        %v1999 = vsel %vm628, %v1996, %v1998
        %v2000 = vrot.slane %v1982, 1
        %v2001 = vsel %vm628, %v1998, %v2000
        %v2002 = vrot.slane %v1983, 1
        %v2003 = vsel %vm628, %v2000, %v2002
        %2004 = vrot.lane.b32.xlu0 %v1993, 127
        %v2005 = vpop.permute.xlu0 %2004
        %2006 = vrot.lane.b32.xlu0 %v1995, 127
        %v2007 = vpop.permute.xlu0 %2006
        %2008 = vrot.lane.b32.xlu0 %v1997, 127
        %v2009 = vpop.permute.xlu0 %2008
        %2010 = vrot.lane.b32.xlu0 %v1999, 127
        %v2011 = vpop.permute.xlu0 %2010
        %2012 = vrot.lane.b32.xlu0 %v2001, 127
        %v2013 = vpop.permute.xlu0 %2012
        %2014 = vrot.lane.b32.xlu0 %v2003, 127
        %v2015 = vpop.permute.xlu0 %2014
        %2016 = vrot.lane.b32.xlu0 %v2002, 127
        %v2017 = vpop.permute.xlu0 %2016
        %v2025 = vadd.f32 %v1885, %v2005
        %v2026 = vadd.f32 %v1886, %v2007
        %v2027 = vadd.f32 %v1887, %v2009
        %v2028 = vadd.f32 %v1888, %v2011
        %v2029 = vadd.f32 %v1889, %v2013
        %v2030 = vadd.f32 %v1890, %v2015
        %v2031 = vadd.f32 %v1891, %v2017
        %v2032 = vstv %s259
        %v2033 = vmul.f32 %v2032, %v1540
        %v2034 = vmul.f32 %v2032, %v1541
        %v2035 = vmul.f32 %v2032, %v1542
        %v2036 = vmul.f32 %v2032, %v1543
        %v2037 = vmul.f32 %v2032, %v1544
        %v2038 = vmul.f32 %v2032, %v1545
        %v2039 = vmul.f32 %v2032, %v1546
        %v2047 = vrot.slane %v2033, 1
        %v2048 = vrot.slane %v2034, 1
        %v2049 = vsel %vm628, %v2047, %v2048
        %v2050 = vrot.slane %v2035, 1
        %v2051 = vsel %vm628, %v2048, %v2050
        %v2052 = vrot.slane %v2036, 1
        %v2053 = vsel %vm628, %v2050, %v2052
        %v2054 = vrot.slane %v2037, 1
        %v2055 = vsel %vm628, %v2052, %v2054
        %v2056 = vrot.slane %v2038, 1
        %v2057 = vsel %vm628, %v2054, %v2056
        %v2058 = vrot.slane %v2039, 1
        %v2059 = vsel %vm628, %v2056, %v2058
        %2060 = vrot.lane.b32.xlu0 %v2049, 127
        %v2061 = vpop.permute.xlu0 %2060
        %2062 = vrot.lane.b32.xlu0 %v2051, 127
        %v2063 = vpop.permute.xlu0 %2062
        %2064 = vrot.lane.b32.xlu0 %v2053, 127
        %v2065 = vpop.permute.xlu0 %2064
        %2066 = vrot.lane.b32.xlu0 %v2055, 127
        %v2067 = vpop.permute.xlu0 %2066
        %2068 = vrot.lane.b32.xlu0 %v2057, 127
        %v2069 = vpop.permute.xlu0 %2068
        %2070 = vrot.lane.b32.xlu0 %v2059, 127
        %v2071 = vpop.permute.xlu0 %2070
        %2072 = vrot.lane.b32.xlu0 %v2058, 127
        %v2073 = vpop.permute.xlu0 %2072
        %v2081 = vadd.f32 %v1927, %v2061
        %v2082 = vadd.f32 %v1928, %v2063
        %v2083 = vadd.f32 %v1929, %v2065
        %v2084 = vadd.f32 %v1930, %v2067
        %v2085 = vadd.f32 %v1931, %v2069
        %v2086 = vadd.f32 %v1932, %v2071
        %v2087 = vadd.f32 %v1933, %v2073
        %v2088 = vstv %s286
        %v2089 = vmul.f32 %v2088, %v1540
        %v2090 = vmul.f32 %v2088, %v1541
        %v2091 = vmul.f32 %v2088, %v1542
        %v2092 = vmul.f32 %v2088, %v1543
        %v2093 = vmul.f32 %v2088, %v1544
        %v2094 = vmul.f32 %v2088, %v1545
        %v2095 = vmul.f32 %v2088, %v1546
        %v2103 = vrot.slane %v2089, 1
        %v2104 = vrot.slane %v2090, 1
        %v2105 = vsel %vm628, %v2103, %v2104
        %v2106 = vrot.slane %v2091, 1
        %v2107 = vsel %vm628, %v2104, %v2106
        %v2108 = vrot.slane %v2092, 1
        %v2109 = vsel %vm628, %v2106, %v2108
        %v2110 = vrot.slane %v2093, 1
        %v2111 = vsel %vm628, %v2108, %v2110
        %v2112 = vrot.slane %v2094, 1
        %v2113 = vsel %vm628, %v2110, %v2112
        %v2114 = vrot.slane %v2095, 1
        %v2115 = vsel %vm628, %v2112, %v2114
        %2116 = vrot.lane.b32.xlu0 %v2105, 127
        %v2117 = vpop.permute.xlu0 %2116
        %2118 = vrot.lane.b32.xlu0 %v2107, 127
        %v2119 = vpop.permute.xlu0 %2118
        %2120 = vrot.lane.b32.xlu0 %v2109, 127
        %v2121 = vpop.permute.xlu0 %2120
        %2122 = vrot.lane.b32.xlu0 %v2111, 127
        %v2123 = vpop.permute.xlu0 %2122
        %2124 = vrot.lane.b32.xlu0 %v2113, 127
        %v2125 = vpop.permute.xlu0 %2124
        %2126 = vrot.lane.b32.xlu0 %v2115, 127
        %v2127 = vpop.permute.xlu0 %2126
        %2128 = vrot.lane.b32.xlu0 %v2114, 127
        %v2129 = vpop.permute.xlu0 %2128
        %v2137 = vadd.f32 %v1969, %v2117
        %v2138 = vadd.f32 %v1970, %v2119
        %v2139 = vadd.f32 %v1971, %v2121
        %v2140 = vadd.f32 %v1972, %v2123
        %v2141 = vadd.f32 %v1973, %v2125
        %v2142 = vadd.f32 %v1974, %v2127
        %v2143 = vadd.f32 %v1975, %v2129
        %v2144 = vstv %s233
        %v2145 = vmul.f32 %v2144, %v1540
        %v2146 = vmul.f32 %v2144, %v1541
        %v2147 = vmul.f32 %v2144, %v1542
        %v2148 = vmul.f32 %v2144, %v1543
        %v2149 = vmul.f32 %v2144, %v1544
        %v2150 = vmul.f32 %v2144, %v1545
        %v2151 = vmul.f32 %v2144, %v1546
        %v2159 = vrot.slane %v2145, 1
        %v2160 = vrot.slane %v2146, 1
        %v2161 = vsel %vm628, %v2159, %v2160
        %v2162 = vrot.slane %v2147, 1
        %v2163 = vsel %vm628, %v2160, %v2162
        %v2164 = vrot.slane %v2148, 1
        %v2165 = vsel %vm628, %v2162, %v2164
        %v2166 = vrot.slane %v2149, 1
        %v2167 = vsel %vm628, %v2164, %v2166
        %v2168 = vrot.slane %v2150, 1
        %v2169 = vsel %vm628, %v2166, %v2168
        %v2170 = vrot.slane %v2151, 1
        %v2171 = vsel %vm628, %v2168, %v2170
        %2172 = vrot.lane.b32.xlu0 %v2161, 126
        %v2173 = vpop.permute.xlu0 %2172
        %2174 = vrot.lane.b32.xlu0 %v2163, 126
        %v2175 = vpop.permute.xlu0 %2174
        %2176 = vrot.lane.b32.xlu0 %v2165, 126
        %v2177 = vpop.permute.xlu0 %2176
        %2178 = vrot.lane.b32.xlu0 %v2167, 126
        %v2179 = vpop.permute.xlu0 %2178
        %2180 = vrot.lane.b32.xlu0 %v2169, 126
        %v2181 = vpop.permute.xlu0 %2180
        %2182 = vrot.lane.b32.xlu0 %v2171, 126
        %v2183 = vpop.permute.xlu0 %2182
        %2184 = vrot.lane.b32.xlu0 %v2170, 126
        %v2185 = vpop.permute.xlu0 %2184
        %v2193 = vadd.f32 %v2025, %v2173
        %v2194 = vadd.f32 %v2026, %v2175
        %v2195 = vadd.f32 %v2027, %v2177
        %v2196 = vadd.f32 %v2028, %v2179
        %v2197 = vadd.f32 %v2029, %v2181
        %v2198 = vadd.f32 %v2030, %v2183
        %v2199 = vadd.f32 %v2031, %v2185
        %v2200 = vstv %s260
        %v2201 = vmul.f32 %v2200, %v1540
        %v2202 = vmul.f32 %v2200, %v1541
        %v2203 = vmul.f32 %v2200, %v1542
        %v2204 = vmul.f32 %v2200, %v1543
        %v2205 = vmul.f32 %v2200, %v1544
        %v2206 = vmul.f32 %v2200, %v1545
        %v2207 = vmul.f32 %v2200, %v1546
        %v2215 = vrot.slane %v2201, 1
        %v2216 = vrot.slane %v2202, 1
        %v2217 = vsel %vm628, %v2215, %v2216
        %v2218 = vrot.slane %v2203, 1
        %v2219 = vsel %vm628, %v2216, %v2218
        %v2220 = vrot.slane %v2204, 1
        %v2221 = vsel %vm628, %v2218, %v2220
        %v2222 = vrot.slane %v2205, 1
        %v2223 = vsel %vm628, %v2220, %v2222
        %v2224 = vrot.slane %v2206, 1
        %v2225 = vsel %vm628, %v2222, %v2224
        %v2226 = vrot.slane %v2207, 1
        %v2227 = vsel %vm628, %v2224, %v2226
        %2228 = vrot.lane.b32.xlu0 %v2217, 126
        %v2229 = vpop.permute.xlu0 %2228
        %2230 = vrot.lane.b32.xlu0 %v2219, 126
        %v2231 = vpop.permute.xlu0 %2230
        %2232 = vrot.lane.b32.xlu0 %v2221, 126
        %v2233 = vpop.permute.xlu0 %2232
        %2234 = vrot.lane.b32.xlu0 %v2223, 126
        %v2235 = vpop.permute.xlu0 %2234
        %2236 = vrot.lane.b32.xlu0 %v2225, 126
        %v2237 = vpop.permute.xlu0 %2236
        %2238 = vrot.lane.b32.xlu0 %v2227, 126
        %v2239 = vpop.permute.xlu0 %2238
        %2240 = vrot.lane.b32.xlu0 %v2226, 126
        %v2241 = vpop.permute.xlu0 %2240
        %v2249 = vadd.f32 %v2081, %v2229
        %v2250 = vadd.f32 %v2082, %v2231
        %v2251 = vadd.f32 %v2083, %v2233
        %v2252 = vadd.f32 %v2084, %v2235
        %v2253 = vadd.f32 %v2085, %v2237
        %v2254 = vadd.f32 %v2086, %v2239
        %v2255 = vadd.f32 %v2087, %v2241
        %v2256 = vstv %s287
        %v2257 = vmul.f32 %v2256, %v1540
        %v2258 = vmul.f32 %v2256, %v1541
        %v2259 = vmul.f32 %v2256, %v1542
        %v2260 = vmul.f32 %v2256, %v1543
        %v2261 = vmul.f32 %v2256, %v1544
        %v2262 = vmul.f32 %v2256, %v1545
        %v2263 = vmul.f32 %v2256, %v1546
        %v2271 = vrot.slane %v2257, 1
        %v2272 = vrot.slane %v2258, 1
        %v2273 = vsel %vm628, %v2271, %v2272
        %v2274 = vrot.slane %v2259, 1
        %v2275 = vsel %vm628, %v2272, %v2274
        %v2276 = vrot.slane %v2260, 1
        %v2277 = vsel %vm628, %v2274, %v2276
        %v2278 = vrot.slane %v2261, 1
        %v2279 = vsel %vm628, %v2276, %v2278
        %v2280 = vrot.slane %v2262, 1
        %v2281 = vsel %vm628, %v2278, %v2280
        %v2282 = vrot.slane %v2263, 1
        %v2283 = vsel %vm628, %v2280, %v2282
        %2284 = vrot.lane.b32.xlu0 %v2273, 126
        %v2285 = vpop.permute.xlu0 %2284
        %2286 = vrot.lane.b32.xlu0 %v2275, 126
        %v2287 = vpop.permute.xlu0 %2286
        %2288 = vrot.lane.b32.xlu0 %v2277, 126
        %v2289 = vpop.permute.xlu0 %2288
        %2290 = vrot.lane.b32.xlu0 %v2279, 126
        %v2291 = vpop.permute.xlu0 %2290
        %2292 = vrot.lane.b32.xlu0 %v2281, 126
        %v2293 = vpop.permute.xlu0 %2292
        %2294 = vrot.lane.b32.xlu0 %v2283, 126
        %v2295 = vpop.permute.xlu0 %2294
        %2296 = vrot.lane.b32.xlu0 %v2282, 126
        %v2297 = vpop.permute.xlu0 %2296
        %v2305 = vadd.f32 %v2137, %v2285
        %v2306 = vadd.f32 %v2138, %v2287
        %v2307 = vadd.f32 %v2139, %v2289
        %v2308 = vadd.f32 %v2140, %v2291
        %v2309 = vadd.f32 %v2141, %v2293
        %v2310 = vadd.f32 %v2142, %v2295
        %v2311 = vadd.f32 %v2143, %v2297
        %v2312 = vstv %s234
        %v2313 = vmul.f32 %v2312, %v1540
        %v2314 = vmul.f32 %v2312, %v1541
        %v2315 = vmul.f32 %v2312, %v1542
        %v2316 = vmul.f32 %v2312, %v1543
        %v2317 = vmul.f32 %v2312, %v1544
        %v2318 = vmul.f32 %v2312, %v1545
        %v2319 = vmul.f32 %v2312, %v1546
        %v2327 = vrot.slane %v2313, 2
        %v2328 = vrot.slane %v2314, 2
        %v2329 = vsel %vm1091, %v2327, %v2328
        %v2330 = vrot.slane %v2315, 2
        %v2331 = vsel %vm1091, %v2328, %v2330
        %v2332 = vrot.slane %v2316, 2
        %v2333 = vsel %vm1091, %v2330, %v2332
        %v2334 = vrot.slane %v2317, 2
        %v2335 = vsel %vm1091, %v2332, %v2334
        %v2336 = vrot.slane %v2318, 2
        %v2337 = vsel %vm1091, %v2334, %v2336
        %v2338 = vrot.slane %v2319, 2
        %v2339 = vsel %vm1091, %v2336, %v2338
        %v2347 = vadd.f32 %v2193, %v2329
        %v2348 = vadd.f32 %v2194, %v2331
        %v2349 = vadd.f32 %v2195, %v2333
        %v2350 = vadd.f32 %v2196, %v2335
        %v2351 = vadd.f32 %v2197, %v2337
        %v2352 = vadd.f32 %v2198, %v2339
        %v2353 = vadd.f32 %v2199, %v2338
        %v2354 = vstv %s261
        %v2355 = vmul.f32 %v2354, %v1540
        %v2356 = vmul.f32 %v2354, %v1541
        %v2357 = vmul.f32 %v2354, %v1542
        %v2358 = vmul.f32 %v2354, %v1543
        %v2359 = vmul.f32 %v2354, %v1544
        %v2360 = vmul.f32 %v2354, %v1545
        %v2361 = vmul.f32 %v2354, %v1546
        %v2369 = vrot.slane %v2355, 2
        %v2370 = vrot.slane %v2356, 2
        %v2371 = vsel %vm1091, %v2369, %v2370
        %v2372 = vrot.slane %v2357, 2
        %v2373 = vsel %vm1091, %v2370, %v2372
        %v2374 = vrot.slane %v2358, 2
        %v2375 = vsel %vm1091, %v2372, %v2374
        %v2376 = vrot.slane %v2359, 2
        %v2377 = vsel %vm1091, %v2374, %v2376
        %v2378 = vrot.slane %v2360, 2
        %v2379 = vsel %vm1091, %v2376, %v2378
        %v2380 = vrot.slane %v2361, 2
        %v2381 = vsel %vm1091, %v2378, %v2380
        %v2389 = vadd.f32 %v2249, %v2371
        %v2390 = vadd.f32 %v2250, %v2373
        %v2391 = vadd.f32 %v2251, %v2375
        %v2392 = vadd.f32 %v2252, %v2377
        %v2393 = vadd.f32 %v2253, %v2379
        %v2394 = vadd.f32 %v2254, %v2381
        %v2395 = vadd.f32 %v2255, %v2380
        %v2396 = vstv %s288
        %v2397 = vmul.f32 %v2396, %v1540
        %v2398 = vmul.f32 %v2396, %v1541
        %v2399 = vmul.f32 %v2396, %v1542
        %v2400 = vmul.f32 %v2396, %v1543
        %v2401 = vmul.f32 %v2396, %v1544
        %v2402 = vmul.f32 %v2396, %v1545
        %v2403 = vmul.f32 %v2396, %v1546
        %v2411 = vrot.slane %v2397, 2
        %v2412 = vrot.slane %v2398, 2
        %v2413 = vsel %vm1091, %v2411, %v2412
        %v2414 = vrot.slane %v2399, 2
        %v2415 = vsel %vm1091, %v2412, %v2414
        %v2416 = vrot.slane %v2400, 2
        %v2417 = vsel %vm1091, %v2414, %v2416
        %v2418 = vrot.slane %v2401, 2
        %v2419 = vsel %vm1091, %v2416, %v2418
        %v2420 = vrot.slane %v2402, 2
        %v2421 = vsel %vm1091, %v2418, %v2420
        %v2422 = vrot.slane %v2403, 2
        %v2423 = vsel %vm1091, %v2420, %v2422
        %v2431 = vadd.f32 %v2305, %v2413
        %v2432 = vadd.f32 %v2306, %v2415
        %v2433 = vadd.f32 %v2307, %v2417
        %v2434 = vadd.f32 %v2308, %v2419
        %v2435 = vadd.f32 %v2309, %v2421
        %v2436 = vadd.f32 %v2310, %v2423
        %v2437 = vadd.f32 %v2311, %v2422
        %v2438 = vstv %s235
        %v2439 = vmul.f32 %v2438, %v1540
        %v2440 = vmul.f32 %v2438, %v1541
        %v2441 = vmul.f32 %v2438, %v1542
        %v2442 = vmul.f32 %v2438, %v1543
        %v2443 = vmul.f32 %v2438, %v1544
        %v2444 = vmul.f32 %v2438, %v1545
        %v2445 = vmul.f32 %v2438, %v1546
        %v2453 = vrot.slane %v2439, 2
        %v2454 = vrot.slane %v2440, 2
        %v2455 = vsel %vm1091, %v2453, %v2454
        %v2456 = vrot.slane %v2441, 2
        %v2457 = vsel %vm1091, %v2454, %v2456
        %v2458 = vrot.slane %v2442, 2
        %v2459 = vsel %vm1091, %v2456, %v2458
        %v2460 = vrot.slane %v2443, 2
        %v2461 = vsel %vm1091, %v2458, %v2460
        %v2462 = vrot.slane %v2444, 2
        %v2463 = vsel %vm1091, %v2460, %v2462
        %v2464 = vrot.slane %v2445, 2
        %v2465 = vsel %vm1091, %v2462, %v2464
        %2466 = vrot.lane.b32.xlu0 %v2455, 127
        %v2467 = vpop.permute.xlu0 %2466
        %2468 = vrot.lane.b32.xlu0 %v2457, 127
        %v2469 = vpop.permute.xlu0 %2468
        %2470 = vrot.lane.b32.xlu0 %v2459, 127
        %v2471 = vpop.permute.xlu0 %2470
        %2472 = vrot.lane.b32.xlu0 %v2461, 127
        %v2473 = vpop.permute.xlu0 %2472
        %2474 = vrot.lane.b32.xlu0 %v2463, 127
        %v2475 = vpop.permute.xlu0 %2474
        %2476 = vrot.lane.b32.xlu0 %v2465, 127
        %v2477 = vpop.permute.xlu0 %2476
        %2478 = vrot.lane.b32.xlu0 %v2464, 127
        %v2479 = vpop.permute.xlu0 %2478
        %v2487 = vadd.f32 %v2347, %v2467
        %v2488 = vadd.f32 %v2348, %v2469
        %v2489 = vadd.f32 %v2349, %v2471
        %v2490 = vadd.f32 %v2350, %v2473
        %v2491 = vadd.f32 %v2351, %v2475
        %v2492 = vadd.f32 %v2352, %v2477
        %v2493 = vadd.f32 %v2353, %v2479
        %v2494 = vstv %s262
        %v2495 = vmul.f32 %v2494, %v1540
        %v2496 = vmul.f32 %v2494, %v1541
        %v2497 = vmul.f32 %v2494, %v1542
        %v2498 = vmul.f32 %v2494, %v1543
        %v2499 = vmul.f32 %v2494, %v1544
        %v2500 = vmul.f32 %v2494, %v1545
        %v2501 = vmul.f32 %v2494, %v1546
        %v2509 = vrot.slane %v2495, 2
        %v2510 = vrot.slane %v2496, 2
        %v2511 = vsel %vm1091, %v2509, %v2510
        %v2512 = vrot.slane %v2497, 2
        %v2513 = vsel %vm1091, %v2510, %v2512
        %v2514 = vrot.slane %v2498, 2
        %v2515 = vsel %vm1091, %v2512, %v2514
        %v2516 = vrot.slane %v2499, 2
        %v2517 = vsel %vm1091, %v2514, %v2516
        %v2518 = vrot.slane %v2500, 2
        %v2519 = vsel %vm1091, %v2516, %v2518
        %v2520 = vrot.slane %v2501, 2
        %v2521 = vsel %vm1091, %v2518, %v2520
        %2522 = vrot.lane.b32.xlu0 %v2511, 127
        %v2523 = vpop.permute.xlu0 %2522
        %2524 = vrot.lane.b32.xlu0 %v2513, 127
        %v2525 = vpop.permute.xlu0 %2524
        %2526 = vrot.lane.b32.xlu0 %v2515, 127
        %v2527 = vpop.permute.xlu0 %2526
        %2528 = vrot.lane.b32.xlu0 %v2517, 127
        %v2529 = vpop.permute.xlu0 %2528
        %2530 = vrot.lane.b32.xlu0 %v2519, 127
        %v2531 = vpop.permute.xlu0 %2530
        %2532 = vrot.lane.b32.xlu0 %v2521, 127
        %v2533 = vpop.permute.xlu0 %2532
        %2534 = vrot.lane.b32.xlu0 %v2520, 127
        %v2535 = vpop.permute.xlu0 %2534
        %v2543 = vadd.f32 %v2389, %v2523
        %v2544 = vadd.f32 %v2390, %v2525
        %v2545 = vadd.f32 %v2391, %v2527
        %v2546 = vadd.f32 %v2392, %v2529
        %v2547 = vadd.f32 %v2393, %v2531
        %v2548 = vadd.f32 %v2394, %v2533
        %v2549 = vadd.f32 %v2395, %v2535
        %v2550 = vstv %s289
        %v2551 = vmul.f32 %v2550, %v1540
        %v2552 = vmul.f32 %v2550, %v1541
        %v2553 = vmul.f32 %v2550, %v1542
        %v2554 = vmul.f32 %v2550, %v1543
        %v2555 = vmul.f32 %v2550, %v1544
        %v2556 = vmul.f32 %v2550, %v1545
        %v2557 = vmul.f32 %v2550, %v1546
        %v2565 = vrot.slane %v2551, 2
        %v2566 = vrot.slane %v2552, 2
        %v2567 = vsel %vm1091, %v2565, %v2566
        %v2568 = vrot.slane %v2553, 2
        %v2569 = vsel %vm1091, %v2566, %v2568
        %v2570 = vrot.slane %v2554, 2
        %v2571 = vsel %vm1091, %v2568, %v2570
        %v2572 = vrot.slane %v2555, 2
        %v2573 = vsel %vm1091, %v2570, %v2572
        %v2574 = vrot.slane %v2556, 2
        %v2575 = vsel %vm1091, %v2572, %v2574
        %v2576 = vrot.slane %v2557, 2
        %v2577 = vsel %vm1091, %v2574, %v2576
        %2578 = vrot.lane.b32.xlu0 %v2567, 127
        %v2579 = vpop.permute.xlu0 %2578
        %2580 = vrot.lane.b32.xlu0 %v2569, 127
        %v2581 = vpop.permute.xlu0 %2580
        %2582 = vrot.lane.b32.xlu0 %v2571, 127
        %v2583 = vpop.permute.xlu0 %2582
        %2584 = vrot.lane.b32.xlu0 %v2573, 127
        %v2585 = vpop.permute.xlu0 %2584
        %2586 = vrot.lane.b32.xlu0 %v2575, 127
        %v2587 = vpop.permute.xlu0 %2586
        %2588 = vrot.lane.b32.xlu0 %v2577, 127
        %v2589 = vpop.permute.xlu0 %2588
        %2590 = vrot.lane.b32.xlu0 %v2576, 127
        %v2591 = vpop.permute.xlu0 %2590
        %v2599 = vadd.f32 %v2431, %v2579
        %v2600 = vadd.f32 %v2432, %v2581
        %v2601 = vadd.f32 %v2433, %v2583
        %v2602 = vadd.f32 %v2434, %v2585
        %v2603 = vadd.f32 %v2435, %v2587
        %v2604 = vadd.f32 %v2436, %v2589
        %v2605 = vadd.f32 %v2437, %v2591
        %v2606 = vstv %s236
        %v2607 = vmul.f32 %v2606, %v1540
        %v2608 = vmul.f32 %v2606, %v1541
        %v2609 = vmul.f32 %v2606, %v1542
        %v2610 = vmul.f32 %v2606, %v1543
        %v2611 = vmul.f32 %v2606, %v1544
        %v2612 = vmul.f32 %v2606, %v1545
        %v2613 = vmul.f32 %v2606, %v1546
        %v2621 = vrot.slane %v2607, 2
        %v2622 = vrot.slane %v2608, 2
        %v2623 = vsel %vm1091, %v2621, %v2622
        %v2624 = vrot.slane %v2609, 2
        %v2625 = vsel %vm1091, %v2622, %v2624
        %v2626 = vrot.slane %v2610, 2
        %v2627 = vsel %vm1091, %v2624, %v2626
        %v2628 = vrot.slane %v2611, 2
        %v2629 = vsel %vm1091, %v2626, %v2628
        %v2630 = vrot.slane %v2612, 2
        %v2631 = vsel %vm1091, %v2628, %v2630
        %v2632 = vrot.slane %v2613, 2
        %v2633 = vsel %vm1091, %v2630, %v2632
        %2634 = vrot.lane.b32.xlu0 %v2623, 126
        %v2635 = vpop.permute.xlu0 %2634
        %2636 = vrot.lane.b32.xlu0 %v2625, 126
        %v2637 = vpop.permute.xlu0 %2636
        %2638 = vrot.lane.b32.xlu0 %v2627, 126
        %v2639 = vpop.permute.xlu0 %2638
        %2640 = vrot.lane.b32.xlu0 %v2629, 126
        %v2641 = vpop.permute.xlu0 %2640
        %2642 = vrot.lane.b32.xlu0 %v2631, 126
        %v2643 = vpop.permute.xlu0 %2642
        %2644 = vrot.lane.b32.xlu0 %v2633, 126
        %v2645 = vpop.permute.xlu0 %2644
        %2646 = vrot.lane.b32.xlu0 %v2632, 126
        %v2647 = vpop.permute.xlu0 %2646
        %v2655 = vadd.f32 %v2487, %v2635
        %v2656 = vadd.f32 %v2488, %v2637
        %v2657 = vadd.f32 %v2489, %v2639
        %v2658 = vadd.f32 %v2490, %v2641
        %v2659 = vadd.f32 %v2491, %v2643
        %v2660 = vadd.f32 %v2492, %v2645
        %v2661 = vadd.f32 %v2493, %v2647
        %v2662 = vstv %s263
        %v2663 = vmul.f32 %v2662, %v1540
        %v2664 = vmul.f32 %v2662, %v1541
        %v2665 = vmul.f32 %v2662, %v1542
        %v2666 = vmul.f32 %v2662, %v1543
        %v2667 = vmul.f32 %v2662, %v1544
        %v2668 = vmul.f32 %v2662, %v1545
        %v2669 = vmul.f32 %v2662, %v1546
        %v2677 = vrot.slane %v2663, 2
        %v2678 = vrot.slane %v2664, 2
        %v2679 = vsel %vm1091, %v2677, %v2678
        %v2680 = vrot.slane %v2665, 2
        %v2681 = vsel %vm1091, %v2678, %v2680
        %v2682 = vrot.slane %v2666, 2
        %v2683 = vsel %vm1091, %v2680, %v2682
        %v2684 = vrot.slane %v2667, 2
        %v2685 = vsel %vm1091, %v2682, %v2684
        %v2686 = vrot.slane %v2668, 2
        %v2687 = vsel %vm1091, %v2684, %v2686
        %v2688 = vrot.slane %v2669, 2
        %v2689 = vsel %vm1091, %v2686, %v2688
        %2690 = vrot.lane.b32.xlu0 %v2679, 126
        %v2691 = vpop.permute.xlu0 %2690
        %2692 = vrot.lane.b32.xlu0 %v2681, 126
        %v2693 = vpop.permute.xlu0 %2692
        %2694 = vrot.lane.b32.xlu0 %v2683, 126
        %v2695 = vpop.permute.xlu0 %2694
        %2696 = vrot.lane.b32.xlu0 %v2685, 126
        %v2697 = vpop.permute.xlu0 %2696
        %2698 = vrot.lane.b32.xlu0 %v2687, 126
        %v2699 = vpop.permute.xlu0 %2698
        %2700 = vrot.lane.b32.xlu0 %v2689, 126
        %v2701 = vpop.permute.xlu0 %2700
        %2702 = vrot.lane.b32.xlu0 %v2688, 126
        %v2703 = vpop.permute.xlu0 %2702
        %v2711 = vadd.f32 %v2543, %v2691
        %v2712 = vadd.f32 %v2544, %v2693
        %v2713 = vadd.f32 %v2545, %v2695
        %v2714 = vadd.f32 %v2546, %v2697
        %v2715 = vadd.f32 %v2547, %v2699
        %v2716 = vadd.f32 %v2548, %v2701
        %v2717 = vadd.f32 %v2549, %v2703
        %v2718 = vstv %s290
        %v2719 = vmul.f32 %v2718, %v1540
        %v2720 = vmul.f32 %v2718, %v1541
        %v2721 = vmul.f32 %v2718, %v1542
        %v2722 = vmul.f32 %v2718, %v1543
        %v2723 = vmul.f32 %v2718, %v1544
        %v2724 = vmul.f32 %v2718, %v1545
        %v2725 = vmul.f32 %v2718, %v1546
        %v2733 = vrot.slane %v2719, 2
        %v2734 = vrot.slane %v2720, 2
        %v2735 = vsel %vm1091, %v2733, %v2734
        %v2736 = vrot.slane %v2721, 2
        %v2737 = vsel %vm1091, %v2734, %v2736
        %v2738 = vrot.slane %v2722, 2
        %v2739 = vsel %vm1091, %v2736, %v2738
        %v2740 = vrot.slane %v2723, 2
        %v2741 = vsel %vm1091, %v2738, %v2740
        %v2742 = vrot.slane %v2724, 2
        %v2743 = vsel %vm1091, %v2740, %v2742
        %v2744 = vrot.slane %v2725, 2
        %v2745 = vsel %vm1091, %v2742, %v2744
        %2746 = vrot.lane.b32.xlu0 %v2735, 126
        %v2747 = vpop.permute.xlu0 %2746
        %2748 = vrot.lane.b32.xlu0 %v2737, 126
        %v2749 = vpop.permute.xlu0 %2748
        %2750 = vrot.lane.b32.xlu0 %v2739, 126
        %v2751 = vpop.permute.xlu0 %2750
        %2752 = vrot.lane.b32.xlu0 %v2741, 126
        %v2753 = vpop.permute.xlu0 %2752
        %2754 = vrot.lane.b32.xlu0 %v2743, 126
        %v2755 = vpop.permute.xlu0 %2754
        %2756 = vrot.lane.b32.xlu0 %v2745, 126
        %v2757 = vpop.permute.xlu0 %2756
        %2758 = vrot.lane.b32.xlu0 %v2744, 126
        %v2759 = vpop.permute.xlu0 %2758
        %v2767 = vadd.f32 %v2599, %v2747
        %v2768 = vadd.f32 %v2600, %v2749
        %v2769 = vadd.f32 %v2601, %v2751
        %v2770 = vadd.f32 %v2602, %v2753
        %v2771 = vadd.f32 %v2603, %v2755
        %v2772 = vadd.f32 %v2604, %v2757
        %v2773 = vadd.f32 %v2605, %v2759
        %s2774 = scalar_lea.vmem %s188, 112 [#allocation8]
        %v2775 = vld [vmem:[%s2774] sm:$0xff]
        %v2776 = vld [vmem:[%s2774 + $0x8] sm:$0xff]
        %v2777 = vld [vmem:[%s2774 + $0x10] sm:$0xff]
        %v2778 = vld [vmem:[%s2774 + $0x18] sm:$0xff]
        %v2779 = vld [vmem:[%s2774 + $0x20] sm:$0xff]
        %v2780 = vld [vmem:[%s2774 + $0x28] sm:$0xff]
        %v2781 = vld [vmem:[%s2774 + $0x30] sm:$0xff]
        %v2782 = vstv %s237
        %v2783 = vmul.f32 %v2782, %v2775
        %v2784 = vmul.f32 %v2782, %v2776
        %v2785 = vmul.f32 %v2782, %v2777
        %v2786 = vmul.f32 %v2782, %v2778
        %v2787 = vmul.f32 %v2782, %v2779
        %v2788 = vmul.f32 %v2782, %v2780
        %v2789 = vmul.f32 %v2782, %v2781
        %v2790 = vadd.f32 %v2655, %v2783
        %v2791 = vadd.f32 %v2656, %v2784
        %v2792 = vadd.f32 %v2657, %v2785
        %v2793 = vadd.f32 %v2658, %v2786
        %v2794 = vadd.f32 %v2659, %v2787
        %v2795 = vadd.f32 %v2660, %v2788
        %v2796 = vadd.f32 %v2661, %v2789
        %v2797 = vstv %s264
        %v2798 = vmul.f32 %v2797, %v2775
        %v2799 = vmul.f32 %v2797, %v2776
        %v2800 = vmul.f32 %v2797, %v2777
        %v2801 = vmul.f32 %v2797, %v2778
        %v2802 = vmul.f32 %v2797, %v2779
        %v2803 = vmul.f32 %v2797, %v2780
        %v2804 = vmul.f32 %v2797, %v2781
        %v2805 = vadd.f32 %v2711, %v2798
        %v2806 = vadd.f32 %v2712, %v2799
        %v2807 = vadd.f32 %v2713, %v2800
        %v2808 = vadd.f32 %v2714, %v2801
        %v2809 = vadd.f32 %v2715, %v2802
        %v2810 = vadd.f32 %v2716, %v2803
        %v2811 = vadd.f32 %v2717, %v2804
        %v2812 = vstv %s291
        %v2813 = vmul.f32 %v2812, %v2775
        %v2814 = vmul.f32 %v2812, %v2776
        %v2815 = vmul.f32 %v2812, %v2777
        %v2816 = vmul.f32 %v2812, %v2778
        %v2817 = vmul.f32 %v2812, %v2779
        %v2818 = vmul.f32 %v2812, %v2780
        %v2819 = vmul.f32 %v2812, %v2781
        %v2820 = vadd.f32 %v2767, %v2813
        %v2821 = vadd.f32 %v2768, %v2814
        %v2822 = vadd.f32 %v2769, %v2815
        %v2823 = vadd.f32 %v2770, %v2816
        %v2824 = vadd.f32 %v2771, %v2817
        %v2825 = vadd.f32 %v2772, %v2818
        %v2826 = vadd.f32 %v2773, %v2819
        %v2827 = vstv %s238
        %v2828 = vmul.f32 %v2827, %v2775
        %v2829 = vmul.f32 %v2827, %v2776
        %v2830 = vmul.f32 %v2827, %v2777
        %v2831 = vmul.f32 %v2827, %v2778
        %v2832 = vmul.f32 %v2827, %v2779
        %v2833 = vmul.f32 %v2827, %v2780
        %v2834 = vmul.f32 %v2827, %v2781
        %2842 = vrot.lane.b32.xlu0 %v2828, 127
        %v2843 = vpop.permute.xlu0 %2842
        %2844 = vrot.lane.b32.xlu0 %v2829, 127
        %v2845 = vpop.permute.xlu0 %2844
        %2846 = vrot.lane.b32.xlu0 %v2830, 127
        %v2847 = vpop.permute.xlu0 %2846
        %2848 = vrot.lane.b32.xlu0 %v2831, 127
        %v2849 = vpop.permute.xlu0 %2848
        %2850 = vrot.lane.b32.xlu0 %v2832, 127
        %v2851 = vpop.permute.xlu0 %2850
        %2852 = vrot.lane.b32.xlu0 %v2833, 127
        %v2853 = vpop.permute.xlu0 %2852
        %2854 = vrot.lane.b32.xlu0 %v2834, 127
        %v2855 = vpop.permute.xlu0 %2854
        %v2863 = vadd.f32 %v2790, %v2843
        %v2864 = vadd.f32 %v2791, %v2845
        %v2865 = vadd.f32 %v2792, %v2847
        %v2866 = vadd.f32 %v2793, %v2849
        %v2867 = vadd.f32 %v2794, %v2851
        %v2868 = vadd.f32 %v2795, %v2853
        %v2869 = vadd.f32 %v2796, %v2855
        %v2870 = vstv %s265
        %v2871 = vmul.f32 %v2870, %v2775
        %v2872 = vmul.f32 %v2870, %v2776
        %v2873 = vmul.f32 %v2870, %v2777
        %v2874 = vmul.f32 %v2870, %v2778
        %v2875 = vmul.f32 %v2870, %v2779
        %v2876 = vmul.f32 %v2870, %v2780
        %v2877 = vmul.f32 %v2870, %v2781
        %2885 = vrot.lane.b32.xlu0 %v2871, 127
        %v2886 = vpop.permute.xlu0 %2885
        %2887 = vrot.lane.b32.xlu0 %v2872, 127
        %v2888 = vpop.permute.xlu0 %2887
        %2889 = vrot.lane.b32.xlu0 %v2873, 127
        %v2890 = vpop.permute.xlu0 %2889
        %2891 = vrot.lane.b32.xlu0 %v2874, 127
        %v2892 = vpop.permute.xlu0 %2891
        %2893 = vrot.lane.b32.xlu0 %v2875, 127
        %v2894 = vpop.permute.xlu0 %2893
        %2895 = vrot.lane.b32.xlu0 %v2876, 127
        %v2896 = vpop.permute.xlu0 %2895
        %2897 = vrot.lane.b32.xlu0 %v2877, 127
        %v2898 = vpop.permute.xlu0 %2897
        %v2906 = vadd.f32 %v2805, %v2886
        %v2907 = vadd.f32 %v2806, %v2888
        %v2908 = vadd.f32 %v2807, %v2890
        %v2909 = vadd.f32 %v2808, %v2892
        %v2910 = vadd.f32 %v2809, %v2894
        %v2911 = vadd.f32 %v2810, %v2896
        %v2912 = vadd.f32 %v2811, %v2898
        %v2913 = vstv %s292
        %v2914 = vmul.f32 %v2913, %v2775
        %v2915 = vmul.f32 %v2913, %v2776
        %v2916 = vmul.f32 %v2913, %v2777
        %v2917 = vmul.f32 %v2913, %v2778
        %v2918 = vmul.f32 %v2913, %v2779
        %v2919 = vmul.f32 %v2913, %v2780
        %v2920 = vmul.f32 %v2913, %v2781
        %2928 = vrot.lane.b32.xlu0 %v2914, 127
        %v2929 = vpop.permute.xlu0 %2928
        %2930 = vrot.lane.b32.xlu0 %v2915, 127
        %v2931 = vpop.permute.xlu0 %2930
        %2932 = vrot.lane.b32.xlu0 %v2916, 127
        %v2933 = vpop.permute.xlu0 %2932
        %2934 = vrot.lane.b32.xlu0 %v2917, 127
        %v2935 = vpop.permute.xlu0 %2934
        %2936 = vrot.lane.b32.xlu0 %v2918, 127
        %v2937 = vpop.permute.xlu0 %2936
        %2938 = vrot.lane.b32.xlu0 %v2919, 127
        %v2939 = vpop.permute.xlu0 %2938
        %2940 = vrot.lane.b32.xlu0 %v2920, 127
        %v2941 = vpop.permute.xlu0 %2940
        %v2949 = vadd.f32 %v2820, %v2929
        %v2950 = vadd.f32 %v2821, %v2931
        %v2951 = vadd.f32 %v2822, %v2933
        %v2952 = vadd.f32 %v2823, %v2935
        %v2953 = vadd.f32 %v2824, %v2937
        %v2954 = vadd.f32 %v2825, %v2939
        %v2955 = vadd.f32 %v2826, %v2941
        %v2956 = vstv %s239
        %v2957 = vmul.f32 %v2956, %v2775
        %v2958 = vmul.f32 %v2956, %v2776
        %v2959 = vmul.f32 %v2956, %v2777
        %v2960 = vmul.f32 %v2956, %v2778
        %v2961 = vmul.f32 %v2956, %v2779
        %v2962 = vmul.f32 %v2956, %v2780
        %v2963 = vmul.f32 %v2956, %v2781
        %2971 = vrot.lane.b32.xlu0 %v2957, 126
        %v2972 = vpop.permute.xlu0 %2971
        %2973 = vrot.lane.b32.xlu0 %v2958, 126
        %v2974 = vpop.permute.xlu0 %2973
        %2975 = vrot.lane.b32.xlu0 %v2959, 126
        %v2976 = vpop.permute.xlu0 %2975
        %2977 = vrot.lane.b32.xlu0 %v2960, 126
        %v2978 = vpop.permute.xlu0 %2977
        %2979 = vrot.lane.b32.xlu0 %v2961, 126
        %v2980 = vpop.permute.xlu0 %2979
        %2981 = vrot.lane.b32.xlu0 %v2962, 126
        %v2982 = vpop.permute.xlu0 %2981
        %2983 = vrot.lane.b32.xlu0 %v2963, 126
        %v2984 = vpop.permute.xlu0 %2983
        %v2992 = vadd.f32 %v2863, %v2972
        %v2993 = vadd.f32 %v2864, %v2974
        %v2994 = vadd.f32 %v2865, %v2976
        %v2995 = vadd.f32 %v2866, %v2978
        %v2996 = vadd.f32 %v2867, %v2980
        %v2997 = vadd.f32 %v2868, %v2982
        %v2998 = vadd.f32 %v2869, %v2984
        %v2999 = vstv %s266
        %v3000 = vmul.f32 %v2999, %v2775
        %v3001 = vmul.f32 %v2999, %v2776
        %v3002 = vmul.f32 %v2999, %v2777
        %v3003 = vmul.f32 %v2999, %v2778
        %v3004 = vmul.f32 %v2999, %v2779
        %v3005 = vmul.f32 %v2999, %v2780
        %v3006 = vmul.f32 %v2999, %v2781
        %3014 = vrot.lane.b32.xlu0 %v3000, 126
        %v3015 = vpop.permute.xlu0 %3014
        %3016 = vrot.lane.b32.xlu0 %v3001, 126
        %v3017 = vpop.permute.xlu0 %3016
        %3018 = vrot.lane.b32.xlu0 %v3002, 126
        %v3019 = vpop.permute.xlu0 %3018
        %3020 = vrot.lane.b32.xlu0 %v3003, 126
        %v3021 = vpop.permute.xlu0 %3020
        %3022 = vrot.lane.b32.xlu0 %v3004, 126
        %v3023 = vpop.permute.xlu0 %3022
        %3024 = vrot.lane.b32.xlu0 %v3005, 126
        %v3025 = vpop.permute.xlu0 %3024
        %3026 = vrot.lane.b32.xlu0 %v3006, 126
        %v3027 = vpop.permute.xlu0 %3026
        %v3035 = vadd.f32 %v2906, %v3015
        %v3036 = vadd.f32 %v2907, %v3017
        %v3037 = vadd.f32 %v2908, %v3019
        %v3038 = vadd.f32 %v2909, %v3021
        %v3039 = vadd.f32 %v2910, %v3023
        %v3040 = vadd.f32 %v2911, %v3025
        %v3041 = vadd.f32 %v2912, %v3027
        %v3042 = vstv %s293
        %v3043 = vmul.f32 %v3042, %v2775
        %v3044 = vmul.f32 %v3042, %v2776
        %v3045 = vmul.f32 %v3042, %v2777
        %v3046 = vmul.f32 %v3042, %v2778
        %v3047 = vmul.f32 %v3042, %v2779
        %v3048 = vmul.f32 %v3042, %v2780
        %v3049 = vmul.f32 %v3042, %v2781
        %3057 = vrot.lane.b32.xlu0 %v3043, 126
        %v3058 = vpop.permute.xlu0 %3057
        %3059 = vrot.lane.b32.xlu0 %v3044, 126
        %v3060 = vpop.permute.xlu0 %3059
        %3061 = vrot.lane.b32.xlu0 %v3045, 126
        %v3062 = vpop.permute.xlu0 %3061
        %3063 = vrot.lane.b32.xlu0 %v3046, 126
        %v3064 = vpop.permute.xlu0 %3063
        %3065 = vrot.lane.b32.xlu0 %v3047, 126
        %v3066 = vpop.permute.xlu0 %3065
        %3067 = vrot.lane.b32.xlu0 %v3048, 126
        %v3068 = vpop.permute.xlu0 %3067
        %3069 = vrot.lane.b32.xlu0 %v3049, 126
        %v3070 = vpop.permute.xlu0 %3069
        %v3078 = vadd.f32 %v2949, %v3058
        %v3079 = vadd.f32 %v2950, %v3060
        %v3080 = vadd.f32 %v2951, %v3062
        %v3081 = vadd.f32 %v2952, %v3064
        %v3082 = vadd.f32 %v2953, %v3066
        %v3083 = vadd.f32 %v2954, %v3068
        %v3084 = vadd.f32 %v2955, %v3070
        %v3085 = vstv %s240
        %v3086 = vmul.f32 %v3085, %v2775
        %v3087 = vmul.f32 %v3085, %v2776
        %v3088 = vmul.f32 %v3085, %v2777
        %v3089 = vmul.f32 %v3085, %v2778
        %v3090 = vmul.f32 %v3085, %v2779
        %v3091 = vmul.f32 %v3085, %v2780
        %v3092 = vmul.f32 %v3085, %v2781
        %v3100 = vrot.slane %v3086, 1
        %v3101 = vrot.slane %v3087, 1
        %v3102 = vsel %vm628, %v3100, %v3101
        %v3103 = vrot.slane %v3088, 1
        %v3104 = vsel %vm628, %v3101, %v3103
        %v3105 = vrot.slane %v3089, 1
        %v3106 = vsel %vm628, %v3103, %v3105
        %v3107 = vrot.slane %v3090, 1
        %v3108 = vsel %vm628, %v3105, %v3107
        %v3109 = vrot.slane %v3091, 1
        %v3110 = vsel %vm628, %v3107, %v3109
        %v3111 = vrot.slane %v3092, 1
        %v3112 = vsel %vm628, %v3109, %v3111
        %v3120 = vadd.f32 %v2992, %v3102
        %v3121 = vadd.f32 %v2993, %v3104
        %v3122 = vadd.f32 %v2994, %v3106
        %v3123 = vadd.f32 %v2995, %v3108
        %v3124 = vadd.f32 %v2996, %v3110
        %v3125 = vadd.f32 %v2997, %v3112
        %v3126 = vadd.f32 %v2998, %v3111
        %v3127 = vstv %s267
        %v3128 = vmul.f32 %v3127, %v2775
        %v3129 = vmul.f32 %v3127, %v2776
        %v3130 = vmul.f32 %v3127, %v2777
        %v3131 = vmul.f32 %v3127, %v2778
        %v3132 = vmul.f32 %v3127, %v2779
        %v3133 = vmul.f32 %v3127, %v2780
        %v3134 = vmul.f32 %v3127, %v2781
        %v3142 = vrot.slane %v3128, 1
        %v3143 = vrot.slane %v3129, 1
        %v3144 = vsel %vm628, %v3142, %v3143
        %v3145 = vrot.slane %v3130, 1
        %v3146 = vsel %vm628, %v3143, %v3145
        %v3147 = vrot.slane %v3131, 1
        %v3148 = vsel %vm628, %v3145, %v3147
        %v3149 = vrot.slane %v3132, 1
        %v3150 = vsel %vm628, %v3147, %v3149
        %v3151 = vrot.slane %v3133, 1
        %v3152 = vsel %vm628, %v3149, %v3151
        %v3153 = vrot.slane %v3134, 1
        %v3154 = vsel %vm628, %v3151, %v3153
        %v3162 = vadd.f32 %v3035, %v3144
        %v3163 = vadd.f32 %v3036, %v3146
        %v3164 = vadd.f32 %v3037, %v3148
        %v3165 = vadd.f32 %v3038, %v3150
        %v3166 = vadd.f32 %v3039, %v3152
        %v3167 = vadd.f32 %v3040, %v3154
        %v3168 = vadd.f32 %v3041, %v3153
        %v3169 = vstv %s294
        %v3170 = vmul.f32 %v3169, %v2775
        %v3171 = vmul.f32 %v3169, %v2776
        %v3172 = vmul.f32 %v3169, %v2777
        %v3173 = vmul.f32 %v3169, %v2778
        %v3174 = vmul.f32 %v3169, %v2779
        %v3175 = vmul.f32 %v3169, %v2780
        %v3176 = vmul.f32 %v3169, %v2781
        %v3184 = vrot.slane %v3170, 1
        %v3185 = vrot.slane %v3171, 1
        %v3186 = vsel %vm628, %v3184, %v3185
        %v3187 = vrot.slane %v3172, 1
        %v3188 = vsel %vm628, %v3185, %v3187
        %v3189 = vrot.slane %v3173, 1
        %v3190 = vsel %vm628, %v3187, %v3189
        %v3191 = vrot.slane %v3174, 1
        %v3192 = vsel %vm628, %v3189, %v3191
        %v3193 = vrot.slane %v3175, 1
        %v3194 = vsel %vm628, %v3191, %v3193
        %v3195 = vrot.slane %v3176, 1
        %v3196 = vsel %vm628, %v3193, %v3195
        %v3204 = vadd.f32 %v3078, %v3186
        %v3205 = vadd.f32 %v3079, %v3188
        %v3206 = vadd.f32 %v3080, %v3190
        %v3207 = vadd.f32 %v3081, %v3192
        %v3208 = vadd.f32 %v3082, %v3194
        %v3209 = vadd.f32 %v3083, %v3196
        %v3210 = vadd.f32 %v3084, %v3195
        %v3211 = vstv %s241
        %v3212 = vmul.f32 %v3211, %v2775
        %v3213 = vmul.f32 %v3211, %v2776
        %v3214 = vmul.f32 %v3211, %v2777
        %v3215 = vmul.f32 %v3211, %v2778
        %v3216 = vmul.f32 %v3211, %v2779
        %v3217 = vmul.f32 %v3211, %v2780
        %v3218 = vmul.f32 %v3211, %v2781
        %v3226 = vrot.slane %v3212, 1
        %v3227 = vrot.slane %v3213, 1
        %v3228 = vsel %vm628, %v3226, %v3227
        %v3229 = vrot.slane %v3214, 1
        %v3230 = vsel %vm628, %v3227, %v3229
        %v3231 = vrot.slane %v3215, 1
        %v3232 = vsel %vm628, %v3229, %v3231
        %v3233 = vrot.slane %v3216, 1
        %v3234 = vsel %vm628, %v3231, %v3233
        %v3235 = vrot.slane %v3217, 1
        %v3236 = vsel %vm628, %v3233, %v3235
        %v3237 = vrot.slane %v3218, 1
        %v3238 = vsel %vm628, %v3235, %v3237
        %3239 = vrot.lane.b32.xlu0 %v3228, 127
        %v3240 = vpop.permute.xlu0 %3239
        %3241 = vrot.lane.b32.xlu0 %v3230, 127
        %v3242 = vpop.permute.xlu0 %3241
        %3243 = vrot.lane.b32.xlu0 %v3232, 127
        %v3244 = vpop.permute.xlu0 %3243
        %3245 = vrot.lane.b32.xlu0 %v3234, 127
        %v3246 = vpop.permute.xlu0 %3245
        %3247 = vrot.lane.b32.xlu0 %v3236, 127
        %v3248 = vpop.permute.xlu0 %3247
        %3249 = vrot.lane.b32.xlu0 %v3238, 127
        %v3250 = vpop.permute.xlu0 %3249
        %3251 = vrot.lane.b32.xlu0 %v3237, 127
        %v3252 = vpop.permute.xlu0 %3251
        %v3260 = vadd.f32 %v3120, %v3240
        %v3261 = vadd.f32 %v3121, %v3242
        %v3262 = vadd.f32 %v3122, %v3244
        %v3263 = vadd.f32 %v3123, %v3246
        %v3264 = vadd.f32 %v3124, %v3248
        %v3265 = vadd.f32 %v3125, %v3250
        %v3266 = vadd.f32 %v3126, %v3252
        %v3267 = vstv %s268
        %v3268 = vmul.f32 %v3267, %v2775
        %v3269 = vmul.f32 %v3267, %v2776
        %v3270 = vmul.f32 %v3267, %v2777
        %v3271 = vmul.f32 %v3267, %v2778
        %v3272 = vmul.f32 %v3267, %v2779
        %v3273 = vmul.f32 %v3267, %v2780
        %v3274 = vmul.f32 %v3267, %v2781
        %v3282 = vrot.slane %v3268, 1
        %v3283 = vrot.slane %v3269, 1
        %v3284 = vsel %vm628, %v3282, %v3283
        %v3285 = vrot.slane %v3270, 1
        %v3286 = vsel %vm628, %v3283, %v3285
        %v3287 = vrot.slane %v3271, 1
        %v3288 = vsel %vm628, %v3285, %v3287
        %v3289 = vrot.slane %v3272, 1
        %v3290 = vsel %vm628, %v3287, %v3289
        %v3291 = vrot.slane %v3273, 1
        %v3292 = vsel %vm628, %v3289, %v3291
        %v3293 = vrot.slane %v3274, 1
        %v3294 = vsel %vm628, %v3291, %v3293
        %3295 = vrot.lane.b32.xlu0 %v3284, 127
        %v3296 = vpop.permute.xlu0 %3295
        %3297 = vrot.lane.b32.xlu0 %v3286, 127
        %v3298 = vpop.permute.xlu0 %3297
        %3299 = vrot.lane.b32.xlu0 %v3288, 127
        %v3300 = vpop.permute.xlu0 %3299
        %3301 = vrot.lane.b32.xlu0 %v3290, 127
        %v3302 = vpop.permute.xlu0 %3301
        %3303 = vrot.lane.b32.xlu0 %v3292, 127
        %v3304 = vpop.permute.xlu0 %3303
        %3305 = vrot.lane.b32.xlu0 %v3294, 127
        %v3306 = vpop.permute.xlu0 %3305
        %3307 = vrot.lane.b32.xlu0 %v3293, 127
        %v3308 = vpop.permute.xlu0 %3307
        %v3316 = vadd.f32 %v3162, %v3296
        %v3317 = vadd.f32 %v3163, %v3298
        %v3318 = vadd.f32 %v3164, %v3300
        %v3319 = vadd.f32 %v3165, %v3302
        %v3320 = vadd.f32 %v3166, %v3304
        %v3321 = vadd.f32 %v3167, %v3306
        %v3322 = vadd.f32 %v3168, %v3308
        %v3323 = vstv %s295
        %v3324 = vmul.f32 %v3323, %v2775
        %v3325 = vmul.f32 %v3323, %v2776
        %v3326 = vmul.f32 %v3323, %v2777
        %v3327 = vmul.f32 %v3323, %v2778
        %v3328 = vmul.f32 %v3323, %v2779
        %v3329 = vmul.f32 %v3323, %v2780
        %v3330 = vmul.f32 %v3323, %v2781
        %v3338 = vrot.slane %v3324, 1
        %v3339 = vrot.slane %v3325, 1
        %v3340 = vsel %vm628, %v3338, %v3339
        %v3341 = vrot.slane %v3326, 1
        %v3342 = vsel %vm628, %v3339, %v3341
        %v3343 = vrot.slane %v3327, 1
        %v3344 = vsel %vm628, %v3341, %v3343
        %v3345 = vrot.slane %v3328, 1
        %v3346 = vsel %vm628, %v3343, %v3345
        %v3347 = vrot.slane %v3329, 1
        %v3348 = vsel %vm628, %v3345, %v3347
        %v3349 = vrot.slane %v3330, 1
        %v3350 = vsel %vm628, %v3347, %v3349
        %3351 = vrot.lane.b32.xlu0 %v3340, 127
        %v3352 = vpop.permute.xlu0 %3351
        %3353 = vrot.lane.b32.xlu0 %v3342, 127
        %v3354 = vpop.permute.xlu0 %3353
        %3355 = vrot.lane.b32.xlu0 %v3344, 127
        %v3356 = vpop.permute.xlu0 %3355
        %3357 = vrot.lane.b32.xlu0 %v3346, 127
        %v3358 = vpop.permute.xlu0 %3357
        %3359 = vrot.lane.b32.xlu0 %v3348, 127
        %v3360 = vpop.permute.xlu0 %3359
        %3361 = vrot.lane.b32.xlu0 %v3350, 127
        %v3362 = vpop.permute.xlu0 %3361
        %3363 = vrot.lane.b32.xlu0 %v3349, 127
        %v3364 = vpop.permute.xlu0 %3363
        %v3372 = vadd.f32 %v3204, %v3352
        %v3373 = vadd.f32 %v3205, %v3354
        %v3374 = vadd.f32 %v3206, %v3356
        %v3375 = vadd.f32 %v3207, %v3358
        %v3376 = vadd.f32 %v3208, %v3360
        %v3377 = vadd.f32 %v3209, %v3362
        %v3378 = vadd.f32 %v3210, %v3364
        %v3379 = vstv %s242
        %v3380 = vmul.f32 %v3379, %v2775
        %v3381 = vmul.f32 %v3379, %v2776
        %v3382 = vmul.f32 %v3379, %v2777
        %v3383 = vmul.f32 %v3379, %v2778
        %v3384 = vmul.f32 %v3379, %v2779
        %v3385 = vmul.f32 %v3379, %v2780
        %v3386 = vmul.f32 %v3379, %v2781
        %v3394 = vrot.slane %v3380, 1
        %v3395 = vrot.slane %v3381, 1
        %v3396 = vsel %vm628, %v3394, %v3395
        %v3397 = vrot.slane %v3382, 1
        %v3398 = vsel %vm628, %v3395, %v3397
        %v3399 = vrot.slane %v3383, 1
        %v3400 = vsel %vm628, %v3397, %v3399
        %v3401 = vrot.slane %v3384, 1
        %v3402 = vsel %vm628, %v3399, %v3401
        %v3403 = vrot.slane %v3385, 1
        %v3404 = vsel %vm628, %v3401, %v3403
        %v3405 = vrot.slane %v3386, 1
        %v3406 = vsel %vm628, %v3403, %v3405
        %3407 = vrot.lane.b32.xlu0 %v3396, 126
        %v3408 = vpop.permute.xlu0 %3407
        %3409 = vrot.lane.b32.xlu0 %v3398, 126
        %v3410 = vpop.permute.xlu0 %3409
        %3411 = vrot.lane.b32.xlu0 %v3400, 126
        %v3412 = vpop.permute.xlu0 %3411
        %3413 = vrot.lane.b32.xlu0 %v3402, 126
        %v3414 = vpop.permute.xlu0 %3413
        %3415 = vrot.lane.b32.xlu0 %v3404, 126
        %v3416 = vpop.permute.xlu0 %3415
        %3417 = vrot.lane.b32.xlu0 %v3406, 126
        %v3418 = vpop.permute.xlu0 %3417
        %3419 = vrot.lane.b32.xlu0 %v3405, 126
        %v3420 = vpop.permute.xlu0 %3419
        %v3428 = vadd.f32 %v3260, %v3408
        %v3429 = vadd.f32 %v3261, %v3410
        %v3430 = vadd.f32 %v3262, %v3412
        %v3431 = vadd.f32 %v3263, %v3414
        %v3432 = vadd.f32 %v3264, %v3416
        %v3433 = vadd.f32 %v3265, %v3418
        %v3434 = vadd.f32 %v3266, %v3420
        %v3435 = vstv %s269
        %v3436 = vmul.f32 %v3435, %v2775
        %v3437 = vmul.f32 %v3435, %v2776
        %v3438 = vmul.f32 %v3435, %v2777
        %v3439 = vmul.f32 %v3435, %v2778
        %v3440 = vmul.f32 %v3435, %v2779
        %v3441 = vmul.f32 %v3435, %v2780
        %v3442 = vmul.f32 %v3435, %v2781
        %v3450 = vrot.slane %v3436, 1
        %v3451 = vrot.slane %v3437, 1
        %v3452 = vsel %vm628, %v3450, %v3451
        %v3453 = vrot.slane %v3438, 1
        %v3454 = vsel %vm628, %v3451, %v3453
        %v3455 = vrot.slane %v3439, 1
        %v3456 = vsel %vm628, %v3453, %v3455
        %v3457 = vrot.slane %v3440, 1
        %v3458 = vsel %vm628, %v3455, %v3457
        %v3459 = vrot.slane %v3441, 1
        %v3460 = vsel %vm628, %v3457, %v3459
        %v3461 = vrot.slane %v3442, 1
        %v3462 = vsel %vm628, %v3459, %v3461
        %3463 = vrot.lane.b32.xlu0 %v3452, 126
        %v3464 = vpop.permute.xlu0 %3463
        %3465 = vrot.lane.b32.xlu0 %v3454, 126
        %v3466 = vpop.permute.xlu0 %3465
        %3467 = vrot.lane.b32.xlu0 %v3456, 126
        %v3468 = vpop.permute.xlu0 %3467
        %3469 = vrot.lane.b32.xlu0 %v3458, 126
        %v3470 = vpop.permute.xlu0 %3469
        %3471 = vrot.lane.b32.xlu0 %v3460, 126
        %v3472 = vpop.permute.xlu0 %3471
        %3473 = vrot.lane.b32.xlu0 %v3462, 126
        %v3474 = vpop.permute.xlu0 %3473
        %3475 = vrot.lane.b32.xlu0 %v3461, 126
        %v3476 = vpop.permute.xlu0 %3475
        %v3484 = vadd.f32 %v3316, %v3464
        %v3485 = vadd.f32 %v3317, %v3466
        %v3486 = vadd.f32 %v3318, %v3468
        %v3487 = vadd.f32 %v3319, %v3470
        %v3488 = vadd.f32 %v3320, %v3472
        %v3489 = vadd.f32 %v3321, %v3474
        %v3490 = vadd.f32 %v3322, %v3476
        %v3491 = vstv %s296
        %v3492 = vmul.f32 %v3491, %v2775
        %v3493 = vmul.f32 %v3491, %v2776
        %v3494 = vmul.f32 %v3491, %v2777
        %v3495 = vmul.f32 %v3491, %v2778
        %v3496 = vmul.f32 %v3491, %v2779
        %v3497 = vmul.f32 %v3491, %v2780
        %v3498 = vmul.f32 %v3491, %v2781
        %v3506 = vrot.slane %v3492, 1
        %v3507 = vrot.slane %v3493, 1
        %v3508 = vsel %vm628, %v3506, %v3507
        %v3509 = vrot.slane %v3494, 1
        %v3510 = vsel %vm628, %v3507, %v3509
        %v3511 = vrot.slane %v3495, 1
        %v3512 = vsel %vm628, %v3509, %v3511
        %v3513 = vrot.slane %v3496, 1
        %v3514 = vsel %vm628, %v3511, %v3513
        %v3515 = vrot.slane %v3497, 1
        %v3516 = vsel %vm628, %v3513, %v3515
        %v3517 = vrot.slane %v3498, 1
        %v3518 = vsel %vm628, %v3515, %v3517
        %3519 = vrot.lane.b32.xlu0 %v3508, 126
        %v3520 = vpop.permute.xlu0 %3519
        %3521 = vrot.lane.b32.xlu0 %v3510, 126
        %v3522 = vpop.permute.xlu0 %3521
        %3523 = vrot.lane.b32.xlu0 %v3512, 126
        %v3524 = vpop.permute.xlu0 %3523
        %3525 = vrot.lane.b32.xlu0 %v3514, 126
        %v3526 = vpop.permute.xlu0 %3525
        %3527 = vrot.lane.b32.xlu0 %v3516, 126
        %v3528 = vpop.permute.xlu0 %3527
        %3529 = vrot.lane.b32.xlu0 %v3518, 126
        %v3530 = vpop.permute.xlu0 %3529
        %3531 = vrot.lane.b32.xlu0 %v3517, 126
        %v3532 = vpop.permute.xlu0 %3531
        %v3540 = vadd.f32 %v3372, %v3520
        %v3541 = vadd.f32 %v3373, %v3522
        %v3542 = vadd.f32 %v3374, %v3524
        %v3543 = vadd.f32 %v3375, %v3526
        %v3544 = vadd.f32 %v3376, %v3528
        %v3545 = vadd.f32 %v3377, %v3530
        %v3546 = vadd.f32 %v3378, %v3532
        %v3547 = vstv %s243
        %v3548 = vmul.f32 %v3547, %v2775
        %v3549 = vmul.f32 %v3547, %v2776
        %v3550 = vmul.f32 %v3547, %v2777
        %v3551 = vmul.f32 %v3547, %v2778
        %v3552 = vmul.f32 %v3547, %v2779
        %v3553 = vmul.f32 %v3547, %v2780
        %v3554 = vmul.f32 %v3547, %v2781
        %v3562 = vrot.slane %v3548, 2
        %v3563 = vrot.slane %v3549, 2
        %v3564 = vsel %vm1091, %v3562, %v3563
        %v3565 = vrot.slane %v3550, 2
        %v3566 = vsel %vm1091, %v3563, %v3565
        %v3567 = vrot.slane %v3551, 2
        %v3568 = vsel %vm1091, %v3565, %v3567
        %v3569 = vrot.slane %v3552, 2
        %v3570 = vsel %vm1091, %v3567, %v3569
        %v3571 = vrot.slane %v3553, 2
        %v3572 = vsel %vm1091, %v3569, %v3571
        %v3573 = vrot.slane %v3554, 2
        %v3574 = vsel %vm1091, %v3571, %v3573
        %v3582 = vadd.f32 %v3428, %v3564
        %v3583 = vadd.f32 %v3429, %v3566
        %v3584 = vadd.f32 %v3430, %v3568
        %v3585 = vadd.f32 %v3431, %v3570
        %v3586 = vadd.f32 %v3432, %v3572
        %v3587 = vadd.f32 %v3433, %v3574
        %v3588 = vadd.f32 %v3434, %v3573
        %v3589 = vstv %s270
        %v3590 = vmul.f32 %v3589, %v2775
        %v3591 = vmul.f32 %v3589, %v2776
        %v3592 = vmul.f32 %v3589, %v2777
        %v3593 = vmul.f32 %v3589, %v2778
        %v3594 = vmul.f32 %v3589, %v2779
        %v3595 = vmul.f32 %v3589, %v2780
        %v3596 = vmul.f32 %v3589, %v2781
        %v3604 = vrot.slane %v3590, 2
        %v3605 = vrot.slane %v3591, 2
        %v3606 = vsel %vm1091, %v3604, %v3605
        %v3607 = vrot.slane %v3592, 2
        %v3608 = vsel %vm1091, %v3605, %v3607
        %v3609 = vrot.slane %v3593, 2
        %v3610 = vsel %vm1091, %v3607, %v3609
        %v3611 = vrot.slane %v3594, 2
        %v3612 = vsel %vm1091, %v3609, %v3611
        %v3613 = vrot.slane %v3595, 2
        %v3614 = vsel %vm1091, %v3611, %v3613
        %v3615 = vrot.slane %v3596, 2
        %v3616 = vsel %vm1091, %v3613, %v3615
        %v3624 = vadd.f32 %v3484, %v3606
        %v3625 = vadd.f32 %v3485, %v3608
        %v3626 = vadd.f32 %v3486, %v3610
        %v3627 = vadd.f32 %v3487, %v3612
        %v3628 = vadd.f32 %v3488, %v3614
        %v3629 = vadd.f32 %v3489, %v3616
        %v3630 = vadd.f32 %v3490, %v3615
        %v3631 = vstv %s297
        %v3632 = vmul.f32 %v3631, %v2775
        %v3633 = vmul.f32 %v3631, %v2776
        %v3634 = vmul.f32 %v3631, %v2777
        %v3635 = vmul.f32 %v3631, %v2778
        %v3636 = vmul.f32 %v3631, %v2779
        %v3637 = vmul.f32 %v3631, %v2780
        %v3638 = vmul.f32 %v3631, %v2781
        %v3646 = vrot.slane %v3632, 2
        %v3647 = vrot.slane %v3633, 2
        %v3648 = vsel %vm1091, %v3646, %v3647
        %v3649 = vrot.slane %v3634, 2
        %v3650 = vsel %vm1091, %v3647, %v3649
        %v3651 = vrot.slane %v3635, 2
        %v3652 = vsel %vm1091, %v3649, %v3651
        %v3653 = vrot.slane %v3636, 2
        %v3654 = vsel %vm1091, %v3651, %v3653
        %v3655 = vrot.slane %v3637, 2
        %v3656 = vsel %vm1091, %v3653, %v3655
        %v3657 = vrot.slane %v3638, 2
        %v3658 = vsel %vm1091, %v3655, %v3657
        %v3666 = vadd.f32 %v3540, %v3648
        %v3667 = vadd.f32 %v3541, %v3650
        %v3668 = vadd.f32 %v3542, %v3652
        %v3669 = vadd.f32 %v3543, %v3654
        %v3670 = vadd.f32 %v3544, %v3656
        %v3671 = vadd.f32 %v3545, %v3658
        %v3672 = vadd.f32 %v3546, %v3657
        %v3673 = vstv %s244
        %v3674 = vmul.f32 %v3673, %v2775
        %v3675 = vmul.f32 %v3673, %v2776
        %v3676 = vmul.f32 %v3673, %v2777
        %v3677 = vmul.f32 %v3673, %v2778
        %v3678 = vmul.f32 %v3673, %v2779
        %v3679 = vmul.f32 %v3673, %v2780
        %v3680 = vmul.f32 %v3673, %v2781
        %v3688 = vrot.slane %v3674, 2
        %v3689 = vrot.slane %v3675, 2
        %v3690 = vsel %vm1091, %v3688, %v3689
        %v3691 = vrot.slane %v3676, 2
        %v3692 = vsel %vm1091, %v3689, %v3691
        %v3693 = vrot.slane %v3677, 2
        %v3694 = vsel %vm1091, %v3691, %v3693
        %v3695 = vrot.slane %v3678, 2
        %v3696 = vsel %vm1091, %v3693, %v3695
        %v3697 = vrot.slane %v3679, 2
        %v3698 = vsel %vm1091, %v3695, %v3697
        %v3699 = vrot.slane %v3680, 2
        %v3700 = vsel %vm1091, %v3697, %v3699
        %3701 = vrot.lane.b32.xlu0 %v3690, 127
        %v3702 = vpop.permute.xlu0 %3701
        %3703 = vrot.lane.b32.xlu0 %v3692, 127
        %v3704 = vpop.permute.xlu0 %3703
        %3705 = vrot.lane.b32.xlu0 %v3694, 127
        %v3706 = vpop.permute.xlu0 %3705
        %3707 = vrot.lane.b32.xlu0 %v3696, 127
        %v3708 = vpop.permute.xlu0 %3707
        %3709 = vrot.lane.b32.xlu0 %v3698, 127
        %v3710 = vpop.permute.xlu0 %3709
        %3711 = vrot.lane.b32.xlu0 %v3700, 127
        %v3712 = vpop.permute.xlu0 %3711
        %3713 = vrot.lane.b32.xlu0 %v3699, 127
        %v3714 = vpop.permute.xlu0 %3713
        %v3722 = vadd.f32 %v3582, %v3702
        %v3723 = vadd.f32 %v3583, %v3704
        %v3724 = vadd.f32 %v3584, %v3706
        %v3725 = vadd.f32 %v3585, %v3708
        %v3726 = vadd.f32 %v3586, %v3710
        %v3727 = vadd.f32 %v3587, %v3712
        %v3728 = vadd.f32 %v3588, %v3714
        %v3729 = vstv %s271
        %v3730 = vmul.f32 %v3729, %v2775
        %v3731 = vmul.f32 %v3729, %v2776
        %v3732 = vmul.f32 %v3729, %v2777
        %v3733 = vmul.f32 %v3729, %v2778
        %v3734 = vmul.f32 %v3729, %v2779
        %v3735 = vmul.f32 %v3729, %v2780
        %v3736 = vmul.f32 %v3729, %v2781
        %v3744 = vrot.slane %v3730, 2
        %v3745 = vrot.slane %v3731, 2
        %v3746 = vsel %vm1091, %v3744, %v3745
        %v3747 = vrot.slane %v3732, 2
        %v3748 = vsel %vm1091, %v3745, %v3747
        %v3749 = vrot.slane %v3733, 2
        %v3750 = vsel %vm1091, %v3747, %v3749
        %v3751 = vrot.slane %v3734, 2
        %v3752 = vsel %vm1091, %v3749, %v3751
        %v3753 = vrot.slane %v3735, 2
        %v3754 = vsel %vm1091, %v3751, %v3753
        %v3755 = vrot.slane %v3736, 2
        %v3756 = vsel %vm1091, %v3753, %v3755
        %3757 = vrot.lane.b32.xlu0 %v3746, 127
        %v3758 = vpop.permute.xlu0 %3757
        %3759 = vrot.lane.b32.xlu0 %v3748, 127
        %v3760 = vpop.permute.xlu0 %3759
        %3761 = vrot.lane.b32.xlu0 %v3750, 127
        %v3762 = vpop.permute.xlu0 %3761
        %3763 = vrot.lane.b32.xlu0 %v3752, 127
        %v3764 = vpop.permute.xlu0 %3763
        %3765 = vrot.lane.b32.xlu0 %v3754, 127
        %v3766 = vpop.permute.xlu0 %3765
        %3767 = vrot.lane.b32.xlu0 %v3756, 127
        %v3768 = vpop.permute.xlu0 %3767
        %3769 = vrot.lane.b32.xlu0 %v3755, 127
        %v3770 = vpop.permute.xlu0 %3769
        %v3778 = vadd.f32 %v3624, %v3758
        %v3779 = vadd.f32 %v3625, %v3760
        %v3780 = vadd.f32 %v3626, %v3762
        %v3781 = vadd.f32 %v3627, %v3764
        %v3782 = vadd.f32 %v3628, %v3766
        %v3783 = vadd.f32 %v3629, %v3768
        %v3784 = vadd.f32 %v3630, %v3770
        %v3785 = vstv %s298
        %v3786 = vmul.f32 %v3785, %v2775
        %v3787 = vmul.f32 %v3785, %v2776
        %v3788 = vmul.f32 %v3785, %v2777
        %v3789 = vmul.f32 %v3785, %v2778
        %v3790 = vmul.f32 %v3785, %v2779
        %v3791 = vmul.f32 %v3785, %v2780
        %v3792 = vmul.f32 %v3785, %v2781
        %v3800 = vrot.slane %v3786, 2
        %v3801 = vrot.slane %v3787, 2
        %v3802 = vsel %vm1091, %v3800, %v3801
        %v3803 = vrot.slane %v3788, 2
        %v3804 = vsel %vm1091, %v3801, %v3803
        %v3805 = vrot.slane %v3789, 2
        %v3806 = vsel %vm1091, %v3803, %v3805
        %v3807 = vrot.slane %v3790, 2
        %v3808 = vsel %vm1091, %v3805, %v3807
        %v3809 = vrot.slane %v3791, 2
        %v3810 = vsel %vm1091, %v3807, %v3809
        %v3811 = vrot.slane %v3792, 2
        %v3812 = vsel %vm1091, %v3809, %v3811
        %3813 = vrot.lane.b32.xlu0 %v3802, 127
        %v3814 = vpop.permute.xlu0 %3813
        %3815 = vrot.lane.b32.xlu0 %v3804, 127
        %v3816 = vpop.permute.xlu0 %3815
        %3817 = vrot.lane.b32.xlu0 %v3806, 127
        %v3818 = vpop.permute.xlu0 %3817
        %3819 = vrot.lane.b32.xlu0 %v3808, 127
        %v3820 = vpop.permute.xlu0 %3819
        %3821 = vrot.lane.b32.xlu0 %v3810, 127
        %v3822 = vpop.permute.xlu0 %3821
        %3823 = vrot.lane.b32.xlu0 %v3812, 127
        %v3824 = vpop.permute.xlu0 %3823
        %3825 = vrot.lane.b32.xlu0 %v3811, 127
        %v3826 = vpop.permute.xlu0 %3825
        %v3834 = vadd.f32 %v3666, %v3814
        %v3835 = vadd.f32 %v3667, %v3816
        %v3836 = vadd.f32 %v3668, %v3818
        %v3837 = vadd.f32 %v3669, %v3820
        %v3838 = vadd.f32 %v3670, %v3822
        %v3839 = vadd.f32 %v3671, %v3824
        %v3840 = vadd.f32 %v3672, %v3826
        %v3841 = vstv %s245
        %v3842 = vmul.f32 %v3841, %v2775
        %v3843 = vmul.f32 %v3841, %v2776
        %v3844 = vmul.f32 %v3841, %v2777
        %v3845 = vmul.f32 %v3841, %v2778
        %v3846 = vmul.f32 %v3841, %v2779
        %v3847 = vmul.f32 %v3841, %v2780
        %v3848 = vmul.f32 %v3841, %v2781
        %v3856 = vrot.slane %v3842, 2
        %v3857 = vrot.slane %v3843, 2
        %v3858 = vsel %vm1091, %v3856, %v3857
        %v3859 = vrot.slane %v3844, 2
        %v3860 = vsel %vm1091, %v3857, %v3859
        %v3861 = vrot.slane %v3845, 2
        %v3862 = vsel %vm1091, %v3859, %v3861
        %v3863 = vrot.slane %v3846, 2
        %v3864 = vsel %vm1091, %v3861, %v3863
        %v3865 = vrot.slane %v3847, 2
        %v3866 = vsel %vm1091, %v3863, %v3865
        %v3867 = vrot.slane %v3848, 2
        %v3868 = vsel %vm1091, %v3865, %v3867
        %3869 = vrot.lane.b32.xlu0 %v3858, 126
        %v3870 = vpop.permute.xlu0 %3869
        %3871 = vrot.lane.b32.xlu0 %v3860, 126
        %v3872 = vpop.permute.xlu0 %3871
        %3873 = vrot.lane.b32.xlu0 %v3862, 126
        %v3874 = vpop.permute.xlu0 %3873
        %3875 = vrot.lane.b32.xlu0 %v3864, 126
        %v3876 = vpop.permute.xlu0 %3875
        %3877 = vrot.lane.b32.xlu0 %v3866, 126
        %v3878 = vpop.permute.xlu0 %3877
        %3879 = vrot.lane.b32.xlu0 %v3868, 126
        %v3880 = vpop.permute.xlu0 %3879
        %3881 = vrot.lane.b32.xlu0 %v3867, 126
        %v3882 = vpop.permute.xlu0 %3881
        %v3890 = vadd.f32 %v3722, %v3870
        %v3891 = vadd.f32 %v3723, %v3872
        %v3892 = vadd.f32 %v3724, %v3874
        %v3893 = vadd.f32 %v3725, %v3876
        %v3894 = vadd.f32 %v3726, %v3878
        %v3895 = vadd.f32 %v3727, %v3880
        %v3896 = vadd.f32 %v3728, %v3882
        %v3897 = vstv %s272
        %v3898 = vmul.f32 %v3897, %v2775
        %v3899 = vmul.f32 %v3897, %v2776
        %v3900 = vmul.f32 %v3897, %v2777
        %v3901 = vmul.f32 %v3897, %v2778
        %v3902 = vmul.f32 %v3897, %v2779
        %v3903 = vmul.f32 %v3897, %v2780
        %v3904 = vmul.f32 %v3897, %v2781
        %v3912 = vrot.slane %v3898, 2
        %v3913 = vrot.slane %v3899, 2
        %v3914 = vsel %vm1091, %v3912, %v3913
        %v3915 = vrot.slane %v3900, 2
        %v3916 = vsel %vm1091, %v3913, %v3915
        %v3917 = vrot.slane %v3901, 2
        %v3918 = vsel %vm1091, %v3915, %v3917
        %v3919 = vrot.slane %v3902, 2
        %v3920 = vsel %vm1091, %v3917, %v3919
        %v3921 = vrot.slane %v3903, 2
        %v3922 = vsel %vm1091, %v3919, %v3921
        %v3923 = vrot.slane %v3904, 2
        %v3924 = vsel %vm1091, %v3921, %v3923
        %3925 = vrot.lane.b32.xlu0 %v3914, 126
        %v3926 = vpop.permute.xlu0 %3925
        %3927 = vrot.lane.b32.xlu0 %v3916, 126
        %v3928 = vpop.permute.xlu0 %3927
        %3929 = vrot.lane.b32.xlu0 %v3918, 126
        %v3930 = vpop.permute.xlu0 %3929
        %3931 = vrot.lane.b32.xlu0 %v3920, 126
        %v3932 = vpop.permute.xlu0 %3931
        %3933 = vrot.lane.b32.xlu0 %v3922, 126
        %v3934 = vpop.permute.xlu0 %3933
        %3935 = vrot.lane.b32.xlu0 %v3924, 126
        %v3936 = vpop.permute.xlu0 %3935
        %3937 = vrot.lane.b32.xlu0 %v3923, 126
        %v3938 = vpop.permute.xlu0 %3937
        %v3946 = vadd.f32 %v3778, %v3926
        %v3947 = vadd.f32 %v3779, %v3928
        %v3948 = vadd.f32 %v3780, %v3930
        %v3949 = vadd.f32 %v3781, %v3932
        %v3950 = vadd.f32 %v3782, %v3934
        %v3951 = vadd.f32 %v3783, %v3936
        %v3952 = vadd.f32 %v3784, %v3938
        %v3953 = vstv %s299
        %v3954 = vmul.f32 %v3953, %v2775
        %v3955 = vmul.f32 %v3953, %v2776
        %v3956 = vmul.f32 %v3953, %v2777
        %v3957 = vmul.f32 %v3953, %v2778
        %v3958 = vmul.f32 %v3953, %v2779
        %v3959 = vmul.f32 %v3953, %v2780
        %v3960 = vmul.f32 %v3953, %v2781
        %v3968 = vrot.slane %v3954, 2
        %v3969 = vrot.slane %v3955, 2
        %v3970 = vsel %vm1091, %v3968, %v3969
        %v3971 = vrot.slane %v3956, 2
        %v3972 = vsel %vm1091, %v3969, %v3971
        %v3973 = vrot.slane %v3957, 2
        %v3974 = vsel %vm1091, %v3971, %v3973
        %v3975 = vrot.slane %v3958, 2
        %v3976 = vsel %vm1091, %v3973, %v3975
        %v3977 = vrot.slane %v3959, 2
        %v3978 = vsel %vm1091, %v3975, %v3977
        %v3979 = vrot.slane %v3960, 2
        %v3980 = vsel %vm1091, %v3977, %v3979
        %3981 = vrot.lane.b32.xlu0 %v3970, 126
        %v3982 = vpop.permute.xlu0 %3981
        %3983 = vrot.lane.b32.xlu0 %v3972, 126
        %v3984 = vpop.permute.xlu0 %3983
        %3985 = vrot.lane.b32.xlu0 %v3974, 126
        %v3986 = vpop.permute.xlu0 %3985
        %3987 = vrot.lane.b32.xlu0 %v3976, 126
        %v3988 = vpop.permute.xlu0 %3987
        %3989 = vrot.lane.b32.xlu0 %v3978, 126
        %v3990 = vpop.permute.xlu0 %3989
        %3991 = vrot.lane.b32.xlu0 %v3980, 126
        %v3992 = vpop.permute.xlu0 %3991
        %3993 = vrot.lane.b32.xlu0 %v3979, 126
        %v3994 = vpop.permute.xlu0 %3993
        %v4002 = vadd.f32 %v3834, %v3982
        %v4003 = vadd.f32 %v3835, %v3984
        %v4004 = vadd.f32 %v3836, %v3986
        %v4005 = vadd.f32 %v3837, %v3988
        %v4006 = vadd.f32 %v3838, %v3990
        %v4007 = vadd.f32 %v3839, %v3992
        %v4008 = vadd.f32 %v3840, %v3994
        %v4009 = vstv %s300
        %v4010 = vadd.f32 %v3890, %v4009
        %v4011 = vadd.f32 %v3891, %v4009
        %v4012 = vadd.f32 %v3892, %v4009
        %v4013 = vadd.f32 %v3893, %v4009
        %v4014 = vadd.f32 %v3894, %v4009
        %v4015 = vadd.f32 %v3895, %v4009
        %v4016 = vadd.f32 %v3896, %v4009
        %vm4017 = vcmask 900096
        %4018 = vst.msk [vmem:[#allocation2] sm:$0xff] %vm4017, %v4010
        %4019 = vst.msk [vmem:[#allocation2 + $0x8] sm:$0xff] %vm4017, %v4011
        %4020 = vst.msk [vmem:[#allocation2 + $0x10] sm:$0xff] %vm4017, %v4012
        %4021 = vst.msk [vmem:[#allocation2 + $0x18] sm:$0xff] %vm4017, %v4013
        %4022 = vst.msk [vmem:[#allocation2 + $0x20] sm:$0xff] %vm4017, %v4014
        %4023 = vst.msk [vmem:[#allocation2 + $0x28] sm:$0xff] %vm4017, %v4015
        %vm4024 = vcmask 898048
        %4025 = vst.msk [vmem:[#allocation2 + $0x30] sm:$0x3f] %vm4024, %v4016
        %v4026 = vstv %s301
        %v4027 = vadd.f32 %v3946, %v4026
        %v4028 = vadd.f32 %v3947, %v4026
        %v4029 = vadd.f32 %v3948, %v4026
        %v4030 = vadd.f32 %v3949, %v4026
        %v4031 = vadd.f32 %v3950, %v4026
        %v4032 = vadd.f32 %v3951, %v4026
        %v4033 = vadd.f32 %v3952, %v4026
        %4034 = vst.msk [vmem:[#allocation2 + $0x36] sm:$0xff] %vm4017, %v4027
        %4035 = vst.msk [vmem:[#allocation2 + $0x3e] sm:$0xff] %vm4017, %v4028
        %4036 = vst.msk [vmem:[#allocation2 + $0x46] sm:$0xff] %vm4017, %v4029
        %4037 = vst.msk [vmem:[#allocation2 + $0x4e] sm:$0xff] %vm4017, %v4030
        %4038 = vst.msk [vmem:[#allocation2 + $0x56] sm:$0xff] %vm4017, %v4031
        %4039 = vst.msk [vmem:[#allocation2 + $0x5e] sm:$0xff] %vm4017, %v4032
        %4040 = vst.msk [vmem:[#allocation2 + $0x66] sm:$0x3f] %vm4024, %v4033
        %v4041 = vstv %s302
        %v4042 = vadd.f32 %v4002, %v4041
        %v4043 = vadd.f32 %v4003, %v4041
        %v4044 = vadd.f32 %v4004, %v4041
        %v4045 = vadd.f32 %v4005, %v4041
        %v4046 = vadd.f32 %v4006, %v4041
        %v4047 = vadd.f32 %v4007, %v4041
        %v4048 = vadd.f32 %v4008, %v4041
        %4049 = vst.msk [vmem:[#allocation2 + $0x6c] sm:$0xff] %vm4017, %v4042
        %4050 = vst.msk [vmem:[#allocation2 + $0x74] sm:$0xff] %vm4017, %v4043
        %4051 = vst.msk [vmem:[#allocation2 + $0x7c] sm:$0xff] %vm4017, %v4044
        %4052 = vst.msk [vmem:[#allocation2 + $0x84] sm:$0xff] %vm4017, %v4045
        %4053 = vst.msk [vmem:[#allocation2 + $0x8c] sm:$0xff] %vm4017, %v4046
        %4054 = vst.msk [vmem:[#allocation2 + $0x94] sm:$0xff] %vm4017, %v4047
        %4055 = vst.msk [vmem:[#allocation2 + $0x9c] sm:$0x3f] %vm4024, %v4048
        %s4056 = scalar_lea.vmem %s188, 168 [#allocation8]
        %v4057 = vld [vmem:[%s4056] sm:$0xff]
        %v4058 = vld [vmem:[%s4056 + $0x8] sm:$0xff]
        %v4059 = vld [vmem:[%s4056 + $0x10] sm:$0xff]
        %v4060 = vld [vmem:[%s4056 + $0x18] sm:$0xff]
        %v4061 = vld [vmem:[%s4056 + $0x20] sm:$0xff]
        %v4062 = vld [vmem:[%s4056 + $0x28] sm:$0xff]
        %v4063 = vld [vmem:[%s4056 + $0x30] sm:$0xff]
        %v4064 = vmul.f32 %v310, %v4057
        %v4065 = vmul.f32 %v310, %v4058
        %v4066 = vmul.f32 %v310, %v4059
        %v4067 = vmul.f32 %v310, %v4060
        %v4068 = vmul.f32 %v310, %v4061
        %v4069 = vmul.f32 %v310, %v4062
        %v4070 = vmul.f32 %v310, %v4063
        %v4071 = vadd.f32 %v4064, 0.0
        %v4072 = vadd.f32 %v4065, 0.0
        %v4073 = vadd.f32 %v4066, 0.0
        %v4074 = vadd.f32 %v4067, 0.0
        %v4075 = vadd.f32 %v4068, 0.0
        %v4076 = vadd.f32 %v4069, 0.0
        %v4077 = vadd.f32 %v4070, 0.0
        %v4078 = vmul.f32 %v325, %v4057
        %v4079 = vmul.f32 %v325, %v4058
        %v4080 = vmul.f32 %v325, %v4059
        %v4081 = vmul.f32 %v325, %v4060
        %v4082 = vmul.f32 %v325, %v4061
        %v4083 = vmul.f32 %v325, %v4062
        %v4084 = vmul.f32 %v325, %v4063
        %v4085 = vadd.f32 %v4078, 0.0
        %v4086 = vadd.f32 %v4079, 0.0
        %v4087 = vadd.f32 %v4080, 0.0
        %v4088 = vadd.f32 %v4081, 0.0
        %v4089 = vadd.f32 %v4082, 0.0
        %v4090 = vadd.f32 %v4083, 0.0
        %v4091 = vadd.f32 %v4084, 0.0
        %v4092 = vmul.f32 %v340, %v4057
        %v4093 = vmul.f32 %v340, %v4058
        %v4094 = vmul.f32 %v340, %v4059
        %v4095 = vmul.f32 %v340, %v4060
        %v4096 = vmul.f32 %v340, %v4061
        %v4097 = vmul.f32 %v340, %v4062
        %v4098 = vmul.f32 %v340, %v4063
        %v4099 = vadd.f32 %v4092, 0.0
        %v4100 = vadd.f32 %v4093, 0.0
        %v4101 = vadd.f32 %v4094, 0.0
        %v4102 = vadd.f32 %v4095, 0.0
        %v4103 = vadd.f32 %v4096, 0.0
        %v4104 = vadd.f32 %v4097, 0.0
        %v4105 = vadd.f32 %v4098, 0.0
        %v4106 = vmul.f32 %v355, %v4057
        %v4107 = vmul.f32 %v355, %v4058
        %v4108 = vmul.f32 %v355, %v4059
        %v4109 = vmul.f32 %v355, %v4060
        %v4110 = vmul.f32 %v355, %v4061
        %v4111 = vmul.f32 %v355, %v4062
        %v4112 = vmul.f32 %v355, %v4063
        %4120 = vrot.lane.b32.xlu0 %v4106, 127
        %v4121 = vpop.permute.xlu0 %4120
        %4122 = vrot.lane.b32.xlu0 %v4107, 127
        %v4123 = vpop.permute.xlu0 %4122
        %4124 = vrot.lane.b32.xlu0 %v4108, 127
        %v4125 = vpop.permute.xlu0 %4124
        %4126 = vrot.lane.b32.xlu0 %v4109, 127
        %v4127 = vpop.permute.xlu0 %4126
        %4128 = vrot.lane.b32.xlu0 %v4110, 127
        %v4129 = vpop.permute.xlu0 %4128
        %4130 = vrot.lane.b32.xlu0 %v4111, 127
        %v4131 = vpop.permute.xlu0 %4130
        %4132 = vrot.lane.b32.xlu0 %v4112, 127
        %v4133 = vpop.permute.xlu0 %4132
        %v4141 = vadd.f32 %v4071, %v4121
        %v4142 = vadd.f32 %v4072, %v4123
        %v4143 = vadd.f32 %v4073, %v4125
        %v4144 = vadd.f32 %v4074, %v4127
        %v4145 = vadd.f32 %v4075, %v4129
        %v4146 = vadd.f32 %v4076, %v4131
        %v4147 = vadd.f32 %v4077, %v4133
        %v4148 = vmul.f32 %v398, %v4057
        %v4149 = vmul.f32 %v398, %v4058
        %v4150 = vmul.f32 %v398, %v4059
        %v4151 = vmul.f32 %v398, %v4060
        %v4152 = vmul.f32 %v398, %v4061
        %v4153 = vmul.f32 %v398, %v4062
        %v4154 = vmul.f32 %v398, %v4063
        %4162 = vrot.lane.b32.xlu0 %v4148, 127
        %v4163 = vpop.permute.xlu0 %4162
        %4164 = vrot.lane.b32.xlu0 %v4149, 127
        %v4165 = vpop.permute.xlu0 %4164
        %4166 = vrot.lane.b32.xlu0 %v4150, 127
        %v4167 = vpop.permute.xlu0 %4166
        %4168 = vrot.lane.b32.xlu0 %v4151, 127
        %v4169 = vpop.permute.xlu0 %4168
        %4170 = vrot.lane.b32.xlu0 %v4152, 127
        %v4171 = vpop.permute.xlu0 %4170
        %4172 = vrot.lane.b32.xlu0 %v4153, 127
        %v4173 = vpop.permute.xlu0 %4172
        %4174 = vrot.lane.b32.xlu0 %v4154, 127
        %v4175 = vpop.permute.xlu0 %4174
        %v4183 = vadd.f32 %v4085, %v4163
        %v4184 = vadd.f32 %v4086, %v4165
        %v4185 = vadd.f32 %v4087, %v4167
        %v4186 = vadd.f32 %v4088, %v4169
        %v4187 = vadd.f32 %v4089, %v4171
        %v4188 = vadd.f32 %v4090, %v4173
        %v4189 = vadd.f32 %v4091, %v4175
        %v4190 = vmul.f32 %v441, %v4057
        %v4191 = vmul.f32 %v441, %v4058
        %v4192 = vmul.f32 %v441, %v4059
        %v4193 = vmul.f32 %v441, %v4060
        %v4194 = vmul.f32 %v441, %v4061
        %v4195 = vmul.f32 %v441, %v4062
        %v4196 = vmul.f32 %v441, %v4063
        %4204 = vrot.lane.b32.xlu0 %v4190, 127
        %v4205 = vpop.permute.xlu0 %4204
        %4206 = vrot.lane.b32.xlu0 %v4191, 127
        %v4207 = vpop.permute.xlu0 %4206
        %4208 = vrot.lane.b32.xlu0 %v4192, 127
        %v4209 = vpop.permute.xlu0 %4208
        %4210 = vrot.lane.b32.xlu0 %v4193, 127
        %v4211 = vpop.permute.xlu0 %4210
        %4212 = vrot.lane.b32.xlu0 %v4194, 127
        %v4213 = vpop.permute.xlu0 %4212
        %4214 = vrot.lane.b32.xlu0 %v4195, 127
        %v4215 = vpop.permute.xlu0 %4214
        %4216 = vrot.lane.b32.xlu0 %v4196, 127
        %v4217 = vpop.permute.xlu0 %4216
        %v4225 = vadd.f32 %v4099, %v4205
        %v4226 = vadd.f32 %v4100, %v4207
        %v4227 = vadd.f32 %v4101, %v4209
        %v4228 = vadd.f32 %v4102, %v4211
        %v4229 = vadd.f32 %v4103, %v4213
        %v4230 = vadd.f32 %v4104, %v4215
        %v4231 = vadd.f32 %v4105, %v4217
        %v4232 = vmul.f32 %v484, %v4057
        %v4233 = vmul.f32 %v484, %v4058
        %v4234 = vmul.f32 %v484, %v4059
        %v4235 = vmul.f32 %v484, %v4060
        %v4236 = vmul.f32 %v484, %v4061
        %v4237 = vmul.f32 %v484, %v4062
        %v4238 = vmul.f32 %v484, %v4063
        %4246 = vrot.lane.b32.xlu0 %v4232, 126
        %v4247 = vpop.permute.xlu0 %4246
        %4248 = vrot.lane.b32.xlu0 %v4233, 126
        %v4249 = vpop.permute.xlu0 %4248
        %4250 = vrot.lane.b32.xlu0 %v4234, 126
        %v4251 = vpop.permute.xlu0 %4250
        %4252 = vrot.lane.b32.xlu0 %v4235, 126
        %v4253 = vpop.permute.xlu0 %4252
        %4254 = vrot.lane.b32.xlu0 %v4236, 126
        %v4255 = vpop.permute.xlu0 %4254
        %4256 = vrot.lane.b32.xlu0 %v4237, 126
        %v4257 = vpop.permute.xlu0 %4256
        %4258 = vrot.lane.b32.xlu0 %v4238, 126
        %v4259 = vpop.permute.xlu0 %4258
        %v4267 = vadd.f32 %v4141, %v4247
        %v4268 = vadd.f32 %v4142, %v4249
        %v4269 = vadd.f32 %v4143, %v4251
        %v4270 = vadd.f32 %v4144, %v4253
        %v4271 = vadd.f32 %v4145, %v4255
        %v4272 = vadd.f32 %v4146, %v4257
        %v4273 = vadd.f32 %v4147, %v4259
        %v4274 = vmul.f32 %v527, %v4057
        %v4275 = vmul.f32 %v527, %v4058
        %v4276 = vmul.f32 %v527, %v4059
        %v4277 = vmul.f32 %v527, %v4060
        %v4278 = vmul.f32 %v527, %v4061
        %v4279 = vmul.f32 %v527, %v4062
        %v4280 = vmul.f32 %v527, %v4063
        %4288 = vrot.lane.b32.xlu0 %v4274, 126
        %v4289 = vpop.permute.xlu0 %4288
        %4290 = vrot.lane.b32.xlu0 %v4275, 126
        %v4291 = vpop.permute.xlu0 %4290
        %4292 = vrot.lane.b32.xlu0 %v4276, 126
        %v4293 = vpop.permute.xlu0 %4292
        %4294 = vrot.lane.b32.xlu0 %v4277, 126
        %v4295 = vpop.permute.xlu0 %4294
        %4296 = vrot.lane.b32.xlu0 %v4278, 126
        %v4297 = vpop.permute.xlu0 %4296
        %4298 = vrot.lane.b32.xlu0 %v4279, 126
        %v4299 = vpop.permute.xlu0 %4298
        %4300 = vrot.lane.b32.xlu0 %v4280, 126
        %v4301 = vpop.permute.xlu0 %4300
        %v4309 = vadd.f32 %v4183, %v4289
        %v4310 = vadd.f32 %v4184, %v4291
        %v4311 = vadd.f32 %v4185, %v4293
        %v4312 = vadd.f32 %v4186, %v4295
        %v4313 = vadd.f32 %v4187, %v4297
        %v4314 = vadd.f32 %v4188, %v4299
        %v4315 = vadd.f32 %v4189, %v4301
        %v4316 = vmul.f32 %v570, %v4057
        %v4317 = vmul.f32 %v570, %v4058
        %v4318 = vmul.f32 %v570, %v4059
        %v4319 = vmul.f32 %v570, %v4060
        %v4320 = vmul.f32 %v570, %v4061
        %v4321 = vmul.f32 %v570, %v4062
        %v4322 = vmul.f32 %v570, %v4063
        %4330 = vrot.lane.b32.xlu0 %v4316, 126
        %v4331 = vpop.permute.xlu0 %4330
        %4332 = vrot.lane.b32.xlu0 %v4317, 126
        %v4333 = vpop.permute.xlu0 %4332
        %4334 = vrot.lane.b32.xlu0 %v4318, 126
        %v4335 = vpop.permute.xlu0 %4334
        %4336 = vrot.lane.b32.xlu0 %v4319, 126
        %v4337 = vpop.permute.xlu0 %4336
        %4338 = vrot.lane.b32.xlu0 %v4320, 126
        %v4339 = vpop.permute.xlu0 %4338
        %4340 = vrot.lane.b32.xlu0 %v4321, 126
        %v4341 = vpop.permute.xlu0 %4340
        %4342 = vrot.lane.b32.xlu0 %v4322, 126
        %v4343 = vpop.permute.xlu0 %4342
        %v4351 = vadd.f32 %v4225, %v4331
        %v4352 = vadd.f32 %v4226, %v4333
        %v4353 = vadd.f32 %v4227, %v4335
        %v4354 = vadd.f32 %v4228, %v4337
        %v4355 = vadd.f32 %v4229, %v4339
        %v4356 = vadd.f32 %v4230, %v4341
        %v4357 = vadd.f32 %v4231, %v4343
        %v4358 = vmul.f32 %v613, %v4057
        %v4359 = vmul.f32 %v613, %v4058
        %v4360 = vmul.f32 %v613, %v4059
        %v4361 = vmul.f32 %v613, %v4060
        %v4362 = vmul.f32 %v613, %v4061
        %v4363 = vmul.f32 %v613, %v4062
        %v4364 = vmul.f32 %v613, %v4063
        %v4372 = vrot.slane %v4358, 1
        %v4373 = vrot.slane %v4359, 1
        %v4374 = vsel %vm628, %v4372, %v4373
        %v4375 = vrot.slane %v4360, 1
        %v4376 = vsel %vm628, %v4373, %v4375
        %v4377 = vrot.slane %v4361, 1
        %v4378 = vsel %vm628, %v4375, %v4377
        %v4379 = vrot.slane %v4362, 1
        %v4380 = vsel %vm628, %v4377, %v4379
        %v4381 = vrot.slane %v4363, 1
        %v4382 = vsel %vm628, %v4379, %v4381
        %v4383 = vrot.slane %v4364, 1
        %v4384 = vsel %vm628, %v4381, %v4383
        %v4392 = vadd.f32 %v4267, %v4374
        %v4393 = vadd.f32 %v4268, %v4376
        %v4394 = vadd.f32 %v4269, %v4378
        %v4395 = vadd.f32 %v4270, %v4380
        %v4396 = vadd.f32 %v4271, %v4382
        %v4397 = vadd.f32 %v4272, %v4384
        %v4398 = vadd.f32 %v4273, %v4383
        %v4399 = vmul.f32 %v656, %v4057
        %v4400 = vmul.f32 %v656, %v4058
        %v4401 = vmul.f32 %v656, %v4059
        %v4402 = vmul.f32 %v656, %v4060
        %v4403 = vmul.f32 %v656, %v4061
        %v4404 = vmul.f32 %v656, %v4062
        %v4405 = vmul.f32 %v656, %v4063
        %v4413 = vrot.slane %v4399, 1
        %v4414 = vrot.slane %v4400, 1
        %v4415 = vsel %vm628, %v4413, %v4414
        %v4416 = vrot.slane %v4401, 1
        %v4417 = vsel %vm628, %v4414, %v4416
        %v4418 = vrot.slane %v4402, 1
        %v4419 = vsel %vm628, %v4416, %v4418
        %v4420 = vrot.slane %v4403, 1
        %v4421 = vsel %vm628, %v4418, %v4420
        %v4422 = vrot.slane %v4404, 1
        %v4423 = vsel %vm628, %v4420, %v4422
        %v4424 = vrot.slane %v4405, 1
        %v4425 = vsel %vm628, %v4422, %v4424
        %v4433 = vadd.f32 %v4309, %v4415
        %v4434 = vadd.f32 %v4310, %v4417
        %v4435 = vadd.f32 %v4311, %v4419
        %v4436 = vadd.f32 %v4312, %v4421
        %v4437 = vadd.f32 %v4313, %v4423
        %v4438 = vadd.f32 %v4314, %v4425
        %v4439 = vadd.f32 %v4315, %v4424
        %v4440 = vmul.f32 %v698, %v4057
        %v4441 = vmul.f32 %v698, %v4058
        %v4442 = vmul.f32 %v698, %v4059
        %v4443 = vmul.f32 %v698, %v4060
        %v4444 = vmul.f32 %v698, %v4061
        %v4445 = vmul.f32 %v698, %v4062
        %v4446 = vmul.f32 %v698, %v4063
        %v4454 = vrot.slane %v4440, 1
        %v4455 = vrot.slane %v4441, 1
        %v4456 = vsel %vm628, %v4454, %v4455
        %v4457 = vrot.slane %v4442, 1
        %v4458 = vsel %vm628, %v4455, %v4457
        %v4459 = vrot.slane %v4443, 1
        %v4460 = vsel %vm628, %v4457, %v4459
        %v4461 = vrot.slane %v4444, 1
        %v4462 = vsel %vm628, %v4459, %v4461
        %v4463 = vrot.slane %v4445, 1
        %v4464 = vsel %vm628, %v4461, %v4463
        %v4465 = vrot.slane %v4446, 1
        %v4466 = vsel %vm628, %v4463, %v4465
        %v4474 = vadd.f32 %v4351, %v4456
        %v4475 = vadd.f32 %v4352, %v4458
        %v4476 = vadd.f32 %v4353, %v4460
        %v4477 = vadd.f32 %v4354, %v4462
        %v4478 = vadd.f32 %v4355, %v4464
        %v4479 = vadd.f32 %v4356, %v4466
        %v4480 = vadd.f32 %v4357, %v4465
        %v4481 = vmul.f32 %v740, %v4057
        %v4482 = vmul.f32 %v740, %v4058
        %v4483 = vmul.f32 %v740, %v4059
        %v4484 = vmul.f32 %v740, %v4060
        %v4485 = vmul.f32 %v740, %v4061
        %v4486 = vmul.f32 %v740, %v4062
        %v4487 = vmul.f32 %v740, %v4063
        %v4495 = vrot.slane %v4481, 1
        %v4496 = vrot.slane %v4482, 1
        %v4497 = vsel %vm628, %v4495, %v4496
        %v4498 = vrot.slane %v4483, 1
        %v4499 = vsel %vm628, %v4496, %v4498
        %v4500 = vrot.slane %v4484, 1
        %v4501 = vsel %vm628, %v4498, %v4500
        %v4502 = vrot.slane %v4485, 1
        %v4503 = vsel %vm628, %v4500, %v4502
        %v4504 = vrot.slane %v4486, 1
        %v4505 = vsel %vm628, %v4502, %v4504
        %v4506 = vrot.slane %v4487, 1
        %v4507 = vsel %vm628, %v4504, %v4506
        %4508 = vrot.lane.b32.xlu0 %v4497, 127
        %v4509 = vpop.permute.xlu0 %4508
        %4510 = vrot.lane.b32.xlu0 %v4499, 127
        %v4511 = vpop.permute.xlu0 %4510
        %4512 = vrot.lane.b32.xlu0 %v4501, 127
        %v4513 = vpop.permute.xlu0 %4512
        %4514 = vrot.lane.b32.xlu0 %v4503, 127
        %v4515 = vpop.permute.xlu0 %4514
        %4516 = vrot.lane.b32.xlu0 %v4505, 127
        %v4517 = vpop.permute.xlu0 %4516
        %4518 = vrot.lane.b32.xlu0 %v4507, 127
        %v4519 = vpop.permute.xlu0 %4518
        %4520 = vrot.lane.b32.xlu0 %v4506, 127
        %v4521 = vpop.permute.xlu0 %4520
        %v4529 = vadd.f32 %v4392, %v4509
        %v4530 = vadd.f32 %v4393, %v4511
        %v4531 = vadd.f32 %v4394, %v4513
        %v4532 = vadd.f32 %v4395, %v4515
        %v4533 = vadd.f32 %v4396, %v4517
        %v4534 = vadd.f32 %v4397, %v4519
        %v4535 = vadd.f32 %v4398, %v4521
        %v4536 = vmul.f32 %v796, %v4057
        %v4537 = vmul.f32 %v796, %v4058
        %v4538 = vmul.f32 %v796, %v4059
        %v4539 = vmul.f32 %v796, %v4060
        %v4540 = vmul.f32 %v796, %v4061
        %v4541 = vmul.f32 %v796, %v4062
        %v4542 = vmul.f32 %v796, %v4063
        %v4550 = vrot.slane %v4536, 1
        %v4551 = vrot.slane %v4537, 1
        %v4552 = vsel %vm628, %v4550, %v4551
        %v4553 = vrot.slane %v4538, 1
        %v4554 = vsel %vm628, %v4551, %v4553
        %v4555 = vrot.slane %v4539, 1
        %v4556 = vsel %vm628, %v4553, %v4555
        %v4557 = vrot.slane %v4540, 1
        %v4558 = vsel %vm628, %v4555, %v4557
        %v4559 = vrot.slane %v4541, 1
        %v4560 = vsel %vm628, %v4557, %v4559
        %v4561 = vrot.slane %v4542, 1
        %v4562 = vsel %vm628, %v4559, %v4561
        %4563 = vrot.lane.b32.xlu0 %v4552, 127
        %v4564 = vpop.permute.xlu0 %4563
        %4565 = vrot.lane.b32.xlu0 %v4554, 127
        %v4566 = vpop.permute.xlu0 %4565
        %4567 = vrot.lane.b32.xlu0 %v4556, 127
        %v4568 = vpop.permute.xlu0 %4567
        %4569 = vrot.lane.b32.xlu0 %v4558, 127
        %v4570 = vpop.permute.xlu0 %4569
        %4571 = vrot.lane.b32.xlu0 %v4560, 127
        %v4572 = vpop.permute.xlu0 %4571
        %4573 = vrot.lane.b32.xlu0 %v4562, 127
        %v4574 = vpop.permute.xlu0 %4573
        %4575 = vrot.lane.b32.xlu0 %v4561, 127
        %v4576 = vpop.permute.xlu0 %4575
        %v4584 = vadd.f32 %v4433, %v4564
        %v4585 = vadd.f32 %v4434, %v4566
        %v4586 = vadd.f32 %v4435, %v4568
        %v4587 = vadd.f32 %v4436, %v4570
        %v4588 = vadd.f32 %v4437, %v4572
        %v4589 = vadd.f32 %v4438, %v4574
        %v4590 = vadd.f32 %v4439, %v4576
        %v4591 = vmul.f32 %v852, %v4057
        %v4592 = vmul.f32 %v852, %v4058
        %v4593 = vmul.f32 %v852, %v4059
        %v4594 = vmul.f32 %v852, %v4060
        %v4595 = vmul.f32 %v852, %v4061
        %v4596 = vmul.f32 %v852, %v4062
        %v4597 = vmul.f32 %v852, %v4063
        %v4605 = vrot.slane %v4591, 1
        %v4606 = vrot.slane %v4592, 1
        %v4607 = vsel %vm628, %v4605, %v4606
        %v4608 = vrot.slane %v4593, 1
        %v4609 = vsel %vm628, %v4606, %v4608
        %v4610 = vrot.slane %v4594, 1
        %v4611 = vsel %vm628, %v4608, %v4610
        %v4612 = vrot.slane %v4595, 1
        %v4613 = vsel %vm628, %v4610, %v4612
        %v4614 = vrot.slane %v4596, 1
        %v4615 = vsel %vm628, %v4612, %v4614
        %v4616 = vrot.slane %v4597, 1
        %v4617 = vsel %vm628, %v4614, %v4616
        %4618 = vrot.lane.b32.xlu0 %v4607, 127
        %v4619 = vpop.permute.xlu0 %4618
        %4620 = vrot.lane.b32.xlu0 %v4609, 127
        %v4621 = vpop.permute.xlu0 %4620
        %4622 = vrot.lane.b32.xlu0 %v4611, 127
        %v4623 = vpop.permute.xlu0 %4622
        %4624 = vrot.lane.b32.xlu0 %v4613, 127
        %v4625 = vpop.permute.xlu0 %4624
        %4626 = vrot.lane.b32.xlu0 %v4615, 127
        %v4627 = vpop.permute.xlu0 %4626
        %4628 = vrot.lane.b32.xlu0 %v4617, 127
        %v4629 = vpop.permute.xlu0 %4628
        %4630 = vrot.lane.b32.xlu0 %v4616, 127
        %v4631 = vpop.permute.xlu0 %4630
        %v4639 = vadd.f32 %v4474, %v4619
        %v4640 = vadd.f32 %v4475, %v4621
        %v4641 = vadd.f32 %v4476, %v4623
        %v4642 = vadd.f32 %v4477, %v4625
        %v4643 = vadd.f32 %v4478, %v4627
        %v4644 = vadd.f32 %v4479, %v4629
        %v4645 = vadd.f32 %v4480, %v4631
        %v4646 = vmul.f32 %v908, %v4057
        %v4647 = vmul.f32 %v908, %v4058
        %v4648 = vmul.f32 %v908, %v4059
        %v4649 = vmul.f32 %v908, %v4060
        %v4650 = vmul.f32 %v908, %v4061
        %v4651 = vmul.f32 %v908, %v4062
        %v4652 = vmul.f32 %v908, %v4063
        %v4660 = vrot.slane %v4646, 1
        %v4661 = vrot.slane %v4647, 1
        %v4662 = vsel %vm628, %v4660, %v4661
        %v4663 = vrot.slane %v4648, 1
        %v4664 = vsel %vm628, %v4661, %v4663
        %v4665 = vrot.slane %v4649, 1
        %v4666 = vsel %vm628, %v4663, %v4665
        %v4667 = vrot.slane %v4650, 1
        %v4668 = vsel %vm628, %v4665, %v4667
        %v4669 = vrot.slane %v4651, 1
        %v4670 = vsel %vm628, %v4667, %v4669
        %v4671 = vrot.slane %v4652, 1
        %v4672 = vsel %vm628, %v4669, %v4671
        %4673 = vrot.lane.b32.xlu0 %v4662, 126
        %v4674 = vpop.permute.xlu0 %4673
        %4675 = vrot.lane.b32.xlu0 %v4664, 126
        %v4676 = vpop.permute.xlu0 %4675
        %4677 = vrot.lane.b32.xlu0 %v4666, 126
        %v4678 = vpop.permute.xlu0 %4677
        %4679 = vrot.lane.b32.xlu0 %v4668, 126
        %v4680 = vpop.permute.xlu0 %4679
        %4681 = vrot.lane.b32.xlu0 %v4670, 126
        %v4682 = vpop.permute.xlu0 %4681
        %4683 = vrot.lane.b32.xlu0 %v4672, 126
        %v4684 = vpop.permute.xlu0 %4683
        %4685 = vrot.lane.b32.xlu0 %v4671, 126
        %v4686 = vpop.permute.xlu0 %4685
        %v4694 = vadd.f32 %v4529, %v4674
        %v4695 = vadd.f32 %v4530, %v4676
        %v4696 = vadd.f32 %v4531, %v4678
        %v4697 = vadd.f32 %v4532, %v4680
        %v4698 = vadd.f32 %v4533, %v4682
        %v4699 = vadd.f32 %v4534, %v4684
        %v4700 = vadd.f32 %v4535, %v4686
        %v4701 = vmul.f32 %v964, %v4057
        %v4702 = vmul.f32 %v964, %v4058
        %v4703 = vmul.f32 %v964, %v4059
        %v4704 = vmul.f32 %v964, %v4060
        %v4705 = vmul.f32 %v964, %v4061
        %v4706 = vmul.f32 %v964, %v4062
        %v4707 = vmul.f32 %v964, %v4063
        %v4715 = vrot.slane %v4701, 1
        %v4716 = vrot.slane %v4702, 1
        %v4717 = vsel %vm628, %v4715, %v4716
        %v4718 = vrot.slane %v4703, 1
        %v4719 = vsel %vm628, %v4716, %v4718
        %v4720 = vrot.slane %v4704, 1
        %v4721 = vsel %vm628, %v4718, %v4720
        %v4722 = vrot.slane %v4705, 1
        %v4723 = vsel %vm628, %v4720, %v4722
        %v4724 = vrot.slane %v4706, 1
        %v4725 = vsel %vm628, %v4722, %v4724
        %v4726 = vrot.slane %v4707, 1
        %v4727 = vsel %vm628, %v4724, %v4726
        %4728 = vrot.lane.b32.xlu0 %v4717, 126
        %v4729 = vpop.permute.xlu0 %4728
        %4730 = vrot.lane.b32.xlu0 %v4719, 126
        %v4731 = vpop.permute.xlu0 %4730
        %4732 = vrot.lane.b32.xlu0 %v4721, 126
        %v4733 = vpop.permute.xlu0 %4732
        %4734 = vrot.lane.b32.xlu0 %v4723, 126
        %v4735 = vpop.permute.xlu0 %4734
        %4736 = vrot.lane.b32.xlu0 %v4725, 126
        %v4737 = vpop.permute.xlu0 %4736
        %4738 = vrot.lane.b32.xlu0 %v4727, 126
        %v4739 = vpop.permute.xlu0 %4738
        %4740 = vrot.lane.b32.xlu0 %v4726, 126
        %v4741 = vpop.permute.xlu0 %4740
        %v4749 = vadd.f32 %v4584, %v4729
        %v4750 = vadd.f32 %v4585, %v4731
        %v4751 = vadd.f32 %v4586, %v4733
        %v4752 = vadd.f32 %v4587, %v4735
        %v4753 = vadd.f32 %v4588, %v4737
        %v4754 = vadd.f32 %v4589, %v4739
        %v4755 = vadd.f32 %v4590, %v4741
        %v4756 = vmul.f32 %v1020, %v4057
        %v4757 = vmul.f32 %v1020, %v4058
        %v4758 = vmul.f32 %v1020, %v4059
        %v4759 = vmul.f32 %v1020, %v4060
        %v4760 = vmul.f32 %v1020, %v4061
        %v4761 = vmul.f32 %v1020, %v4062
        %v4762 = vmul.f32 %v1020, %v4063
        %v4770 = vrot.slane %v4756, 1
        %v4771 = vrot.slane %v4757, 1
        %v4772 = vsel %vm628, %v4770, %v4771
        %v4773 = vrot.slane %v4758, 1
        %v4774 = vsel %vm628, %v4771, %v4773
        %v4775 = vrot.slane %v4759, 1
        %v4776 = vsel %vm628, %v4773, %v4775
        %v4777 = vrot.slane %v4760, 1
        %v4778 = vsel %vm628, %v4775, %v4777
        %v4779 = vrot.slane %v4761, 1
        %v4780 = vsel %vm628, %v4777, %v4779
        %v4781 = vrot.slane %v4762, 1
        %v4782 = vsel %vm628, %v4779, %v4781
        %4783 = vrot.lane.b32.xlu0 %v4772, 126
        %v4784 = vpop.permute.xlu0 %4783
        %4785 = vrot.lane.b32.xlu0 %v4774, 126
        %v4786 = vpop.permute.xlu0 %4785
        %4787 = vrot.lane.b32.xlu0 %v4776, 126
        %v4788 = vpop.permute.xlu0 %4787
        %4789 = vrot.lane.b32.xlu0 %v4778, 126
        %v4790 = vpop.permute.xlu0 %4789
        %4791 = vrot.lane.b32.xlu0 %v4780, 126
        %v4792 = vpop.permute.xlu0 %4791
        %4793 = vrot.lane.b32.xlu0 %v4782, 126
        %v4794 = vpop.permute.xlu0 %4793
        %4795 = vrot.lane.b32.xlu0 %v4781, 126
        %v4796 = vpop.permute.xlu0 %4795
        %v4804 = vadd.f32 %v4639, %v4784
        %v4805 = vadd.f32 %v4640, %v4786
        %v4806 = vadd.f32 %v4641, %v4788
        %v4807 = vadd.f32 %v4642, %v4790
        %v4808 = vadd.f32 %v4643, %v4792
        %v4809 = vadd.f32 %v4644, %v4794
        %v4810 = vadd.f32 %v4645, %v4796
        %v4811 = vmul.f32 %v1076, %v4057
        %v4812 = vmul.f32 %v1076, %v4058
        %v4813 = vmul.f32 %v1076, %v4059
        %v4814 = vmul.f32 %v1076, %v4060
        %v4815 = vmul.f32 %v1076, %v4061
        %v4816 = vmul.f32 %v1076, %v4062
        %v4817 = vmul.f32 %v1076, %v4063
        %v4825 = vrot.slane %v4811, 2
        %v4826 = vrot.slane %v4812, 2
        %v4827 = vsel %vm1091, %v4825, %v4826
        %v4828 = vrot.slane %v4813, 2
        %v4829 = vsel %vm1091, %v4826, %v4828
        %v4830 = vrot.slane %v4814, 2
        %v4831 = vsel %vm1091, %v4828, %v4830
        %v4832 = vrot.slane %v4815, 2
        %v4833 = vsel %vm1091, %v4830, %v4832
        %v4834 = vrot.slane %v4816, 2
        %v4835 = vsel %vm1091, %v4832, %v4834
        %v4836 = vrot.slane %v4817, 2
        %v4837 = vsel %vm1091, %v4834, %v4836
        %v4845 = vadd.f32 %v4694, %v4827
        %v4846 = vadd.f32 %v4695, %v4829
        %v4847 = vadd.f32 %v4696, %v4831
        %v4848 = vadd.f32 %v4697, %v4833
        %v4849 = vadd.f32 %v4698, %v4835
        %v4850 = vadd.f32 %v4699, %v4837
        %v4851 = vadd.f32 %v4700, %v4836
        %v4852 = vmul.f32 %v1119, %v4057
        %v4853 = vmul.f32 %v1119, %v4058
        %v4854 = vmul.f32 %v1119, %v4059
        %v4855 = vmul.f32 %v1119, %v4060
        %v4856 = vmul.f32 %v1119, %v4061
        %v4857 = vmul.f32 %v1119, %v4062
        %v4858 = vmul.f32 %v1119, %v4063
        %v4866 = vrot.slane %v4852, 2
        %v4867 = vrot.slane %v4853, 2
        %v4868 = vsel %vm1091, %v4866, %v4867
        %v4869 = vrot.slane %v4854, 2
        %v4870 = vsel %vm1091, %v4867, %v4869
        %v4871 = vrot.slane %v4855, 2
        %v4872 = vsel %vm1091, %v4869, %v4871
        %v4873 = vrot.slane %v4856, 2
        %v4874 = vsel %vm1091, %v4871, %v4873
        %v4875 = vrot.slane %v4857, 2
        %v4876 = vsel %vm1091, %v4873, %v4875
        %v4877 = vrot.slane %v4858, 2
        %v4878 = vsel %vm1091, %v4875, %v4877
        %v4886 = vadd.f32 %v4749, %v4868
        %v4887 = vadd.f32 %v4750, %v4870
        %v4888 = vadd.f32 %v4751, %v4872
        %v4889 = vadd.f32 %v4752, %v4874
        %v4890 = vadd.f32 %v4753, %v4876
        %v4891 = vadd.f32 %v4754, %v4878
        %v4892 = vadd.f32 %v4755, %v4877
        %v4893 = vmul.f32 %v1161, %v4057
        %v4894 = vmul.f32 %v1161, %v4058
        %v4895 = vmul.f32 %v1161, %v4059
        %v4896 = vmul.f32 %v1161, %v4060
        %v4897 = vmul.f32 %v1161, %v4061
        %v4898 = vmul.f32 %v1161, %v4062
        %v4899 = vmul.f32 %v1161, %v4063
        %v4907 = vrot.slane %v4893, 2
        %v4908 = vrot.slane %v4894, 2
        %v4909 = vsel %vm1091, %v4907, %v4908
        %v4910 = vrot.slane %v4895, 2
        %v4911 = vsel %vm1091, %v4908, %v4910
        %v4912 = vrot.slane %v4896, 2
        %v4913 = vsel %vm1091, %v4910, %v4912
        %v4914 = vrot.slane %v4897, 2
        %v4915 = vsel %vm1091, %v4912, %v4914
        %v4916 = vrot.slane %v4898, 2
        %v4917 = vsel %vm1091, %v4914, %v4916
        %v4918 = vrot.slane %v4899, 2
        %v4919 = vsel %vm1091, %v4916, %v4918
        %v4927 = vadd.f32 %v4804, %v4909
        %v4928 = vadd.f32 %v4805, %v4911
        %v4929 = vadd.f32 %v4806, %v4913
        %v4930 = vadd.f32 %v4807, %v4915
        %v4931 = vadd.f32 %v4808, %v4917
        %v4932 = vadd.f32 %v4809, %v4919
        %v4933 = vadd.f32 %v4810, %v4918
        %v4934 = vmul.f32 %v1203, %v4057
        %v4935 = vmul.f32 %v1203, %v4058
        %v4936 = vmul.f32 %v1203, %v4059
        %v4937 = vmul.f32 %v1203, %v4060
        %v4938 = vmul.f32 %v1203, %v4061
        %v4939 = vmul.f32 %v1203, %v4062
        %v4940 = vmul.f32 %v1203, %v4063
        %v4948 = vrot.slane %v4934, 2
        %v4949 = vrot.slane %v4935, 2
        %v4950 = vsel %vm1091, %v4948, %v4949
        %v4951 = vrot.slane %v4936, 2
        %v4952 = vsel %vm1091, %v4949, %v4951
        %v4953 = vrot.slane %v4937, 2
        %v4954 = vsel %vm1091, %v4951, %v4953
        %v4955 = vrot.slane %v4938, 2
        %v4956 = vsel %vm1091, %v4953, %v4955
        %v4957 = vrot.slane %v4939, 2
        %v4958 = vsel %vm1091, %v4955, %v4957
        %v4959 = vrot.slane %v4940, 2
        %v4960 = vsel %vm1091, %v4957, %v4959
        %4961 = vrot.lane.b32.xlu0 %v4950, 127
        %v4962 = vpop.permute.xlu0 %4961
        %4963 = vrot.lane.b32.xlu0 %v4952, 127
        %v4964 = vpop.permute.xlu0 %4963
        %4965 = vrot.lane.b32.xlu0 %v4954, 127
        %v4966 = vpop.permute.xlu0 %4965
        %4967 = vrot.lane.b32.xlu0 %v4956, 127
        %v4968 = vpop.permute.xlu0 %4967
        %4969 = vrot.lane.b32.xlu0 %v4958, 127
        %v4970 = vpop.permute.xlu0 %4969
        %4971 = vrot.lane.b32.xlu0 %v4960, 127
        %v4972 = vpop.permute.xlu0 %4971
        %4973 = vrot.lane.b32.xlu0 %v4959, 127
        %v4974 = vpop.permute.xlu0 %4973
        %v4982 = vadd.f32 %v4845, %v4962
        %v4983 = vadd.f32 %v4846, %v4964
        %v4984 = vadd.f32 %v4847, %v4966
        %v4985 = vadd.f32 %v4848, %v4968
        %v4986 = vadd.f32 %v4849, %v4970
        %v4987 = vadd.f32 %v4850, %v4972
        %v4988 = vadd.f32 %v4851, %v4974
        %v4989 = vmul.f32 %v1259, %v4057
        %v4990 = vmul.f32 %v1259, %v4058
        %v4991 = vmul.f32 %v1259, %v4059
        %v4992 = vmul.f32 %v1259, %v4060
        %v4993 = vmul.f32 %v1259, %v4061
        %v4994 = vmul.f32 %v1259, %v4062
        %v4995 = vmul.f32 %v1259, %v4063
        %v5003 = vrot.slane %v4989, 2
        %v5004 = vrot.slane %v4990, 2
        %v5005 = vsel %vm1091, %v5003, %v5004
        %v5006 = vrot.slane %v4991, 2
        %v5007 = vsel %vm1091, %v5004, %v5006
        %v5008 = vrot.slane %v4992, 2
        %v5009 = vsel %vm1091, %v5006, %v5008
        %v5010 = vrot.slane %v4993, 2
        %v5011 = vsel %vm1091, %v5008, %v5010
        %v5012 = vrot.slane %v4994, 2
        %v5013 = vsel %vm1091, %v5010, %v5012
        %v5014 = vrot.slane %v4995, 2
        %v5015 = vsel %vm1091, %v5012, %v5014
        %5016 = vrot.lane.b32.xlu0 %v5005, 127
        %v5017 = vpop.permute.xlu0 %5016
        %5018 = vrot.lane.b32.xlu0 %v5007, 127
        %v5019 = vpop.permute.xlu0 %5018
        %5020 = vrot.lane.b32.xlu0 %v5009, 127
        %v5021 = vpop.permute.xlu0 %5020
        %5022 = vrot.lane.b32.xlu0 %v5011, 127
        %v5023 = vpop.permute.xlu0 %5022
        %5024 = vrot.lane.b32.xlu0 %v5013, 127
        %v5025 = vpop.permute.xlu0 %5024
        %5026 = vrot.lane.b32.xlu0 %v5015, 127
        %v5027 = vpop.permute.xlu0 %5026
        %5028 = vrot.lane.b32.xlu0 %v5014, 127
        %v5029 = vpop.permute.xlu0 %5028
        %v5037 = vadd.f32 %v4886, %v5017
        %v5038 = vadd.f32 %v4887, %v5019
        %v5039 = vadd.f32 %v4888, %v5021
        %v5040 = vadd.f32 %v4889, %v5023
        %v5041 = vadd.f32 %v4890, %v5025
        %v5042 = vadd.f32 %v4891, %v5027
        %v5043 = vadd.f32 %v4892, %v5029
        %v5044 = vmul.f32 %v1315, %v4057
        %v5045 = vmul.f32 %v1315, %v4058
        %v5046 = vmul.f32 %v1315, %v4059
        %v5047 = vmul.f32 %v1315, %v4060
        %v5048 = vmul.f32 %v1315, %v4061
        %v5049 = vmul.f32 %v1315, %v4062
        %v5050 = vmul.f32 %v1315, %v4063
        %v5058 = vrot.slane %v5044, 2
        %v5059 = vrot.slane %v5045, 2
        %v5060 = vsel %vm1091, %v5058, %v5059
        %v5061 = vrot.slane %v5046, 2
        %v5062 = vsel %vm1091, %v5059, %v5061
        %v5063 = vrot.slane %v5047, 2
        %v5064 = vsel %vm1091, %v5061, %v5063
        %v5065 = vrot.slane %v5048, 2
        %v5066 = vsel %vm1091, %v5063, %v5065
        %v5067 = vrot.slane %v5049, 2
        %v5068 = vsel %vm1091, %v5065, %v5067
        %v5069 = vrot.slane %v5050, 2
        %v5070 = vsel %vm1091, %v5067, %v5069
        %5071 = vrot.lane.b32.xlu0 %v5060, 127
        %v5072 = vpop.permute.xlu0 %5071
        %5073 = vrot.lane.b32.xlu0 %v5062, 127
        %v5074 = vpop.permute.xlu0 %5073
        %5075 = vrot.lane.b32.xlu0 %v5064, 127
        %v5076 = vpop.permute.xlu0 %5075
        %5077 = vrot.lane.b32.xlu0 %v5066, 127
        %v5078 = vpop.permute.xlu0 %5077
        %5079 = vrot.lane.b32.xlu0 %v5068, 127
        %v5080 = vpop.permute.xlu0 %5079
        %5081 = vrot.lane.b32.xlu0 %v5070, 127
        %v5082 = vpop.permute.xlu0 %5081
        %5083 = vrot.lane.b32.xlu0 %v5069, 127
        %v5084 = vpop.permute.xlu0 %5083
        %v5092 = vadd.f32 %v4927, %v5072
        %v5093 = vadd.f32 %v4928, %v5074
        %v5094 = vadd.f32 %v4929, %v5076
        %v5095 = vadd.f32 %v4930, %v5078
        %v5096 = vadd.f32 %v4931, %v5080
        %v5097 = vadd.f32 %v4932, %v5082
        %v5098 = vadd.f32 %v4933, %v5084
        %v5099 = vmul.f32 %v1371, %v4057
        %v5100 = vmul.f32 %v1371, %v4058
        %v5101 = vmul.f32 %v1371, %v4059
        %v5102 = vmul.f32 %v1371, %v4060
        %v5103 = vmul.f32 %v1371, %v4061
        %v5104 = vmul.f32 %v1371, %v4062
        %v5105 = vmul.f32 %v1371, %v4063
        %v5113 = vrot.slane %v5099, 2
        %v5114 = vrot.slane %v5100, 2
        %v5115 = vsel %vm1091, %v5113, %v5114
        %v5116 = vrot.slane %v5101, 2
        %v5117 = vsel %vm1091, %v5114, %v5116
        %v5118 = vrot.slane %v5102, 2
        %v5119 = vsel %vm1091, %v5116, %v5118
        %v5120 = vrot.slane %v5103, 2
        %v5121 = vsel %vm1091, %v5118, %v5120
        %v5122 = vrot.slane %v5104, 2
        %v5123 = vsel %vm1091, %v5120, %v5122
        %v5124 = vrot.slane %v5105, 2
        %v5125 = vsel %vm1091, %v5122, %v5124
        %5126 = vrot.lane.b32.xlu0 %v5115, 126
        %v5127 = vpop.permute.xlu0 %5126
        %5128 = vrot.lane.b32.xlu0 %v5117, 126
        %v5129 = vpop.permute.xlu0 %5128
        %5130 = vrot.lane.b32.xlu0 %v5119, 126
        %v5131 = vpop.permute.xlu0 %5130
        %5132 = vrot.lane.b32.xlu0 %v5121, 126
        %v5133 = vpop.permute.xlu0 %5132
        %5134 = vrot.lane.b32.xlu0 %v5123, 126
        %v5135 = vpop.permute.xlu0 %5134
        %5136 = vrot.lane.b32.xlu0 %v5125, 126
        %v5137 = vpop.permute.xlu0 %5136
        %5138 = vrot.lane.b32.xlu0 %v5124, 126
        %v5139 = vpop.permute.xlu0 %5138
        %v5147 = vadd.f32 %v4982, %v5127
        %v5148 = vadd.f32 %v4983, %v5129
        %v5149 = vadd.f32 %v4984, %v5131
        %v5150 = vadd.f32 %v4985, %v5133
        %v5151 = vadd.f32 %v4986, %v5135
        %v5152 = vadd.f32 %v4987, %v5137
        %v5153 = vadd.f32 %v4988, %v5139
        %v5154 = vmul.f32 %v1427, %v4057
        %v5155 = vmul.f32 %v1427, %v4058
        %v5156 = vmul.f32 %v1427, %v4059
        %v5157 = vmul.f32 %v1427, %v4060
        %v5158 = vmul.f32 %v1427, %v4061
        %v5159 = vmul.f32 %v1427, %v4062
        %v5160 = vmul.f32 %v1427, %v4063
        %v5168 = vrot.slane %v5154, 2
        %v5169 = vrot.slane %v5155, 2
        %v5170 = vsel %vm1091, %v5168, %v5169
        %v5171 = vrot.slane %v5156, 2
        %v5172 = vsel %vm1091, %v5169, %v5171
        %v5173 = vrot.slane %v5157, 2
        %v5174 = vsel %vm1091, %v5171, %v5173
        %v5175 = vrot.slane %v5158, 2
        %v5176 = vsel %vm1091, %v5173, %v5175
        %v5177 = vrot.slane %v5159, 2
        %v5178 = vsel %vm1091, %v5175, %v5177
        %v5179 = vrot.slane %v5160, 2
        %v5180 = vsel %vm1091, %v5177, %v5179
        %5181 = vrot.lane.b32.xlu0 %v5170, 126
        %v5182 = vpop.permute.xlu0 %5181
        %5183 = vrot.lane.b32.xlu0 %v5172, 126
        %v5184 = vpop.permute.xlu0 %5183
        %5185 = vrot.lane.b32.xlu0 %v5174, 126
        %v5186 = vpop.permute.xlu0 %5185
        %5187 = vrot.lane.b32.xlu0 %v5176, 126
        %v5188 = vpop.permute.xlu0 %5187
        %5189 = vrot.lane.b32.xlu0 %v5178, 126
        %v5190 = vpop.permute.xlu0 %5189
        %5191 = vrot.lane.b32.xlu0 %v5180, 126
        %v5192 = vpop.permute.xlu0 %5191
        %5193 = vrot.lane.b32.xlu0 %v5179, 126
        %v5194 = vpop.permute.xlu0 %5193
        %v5202 = vadd.f32 %v5037, %v5182
        %v5203 = vadd.f32 %v5038, %v5184
        %v5204 = vadd.f32 %v5039, %v5186
        %v5205 = vadd.f32 %v5040, %v5188
        %v5206 = vadd.f32 %v5041, %v5190
        %v5207 = vadd.f32 %v5042, %v5192
        %v5208 = vadd.f32 %v5043, %v5194
        %v5209 = vmul.f32 %v1483, %v4057
        %v5210 = vmul.f32 %v1483, %v4058
        %v5211 = vmul.f32 %v1483, %v4059
        %v5212 = vmul.f32 %v1483, %v4060
        %v5213 = vmul.f32 %v1483, %v4061
        %v5214 = vmul.f32 %v1483, %v4062
        %v5215 = vmul.f32 %v1483, %v4063
        %v5223 = vrot.slane %v5209, 2
        %v5224 = vrot.slane %v5210, 2
        %v5225 = vsel %vm1091, %v5223, %v5224
        %v5226 = vrot.slane %v5211, 2
        %v5227 = vsel %vm1091, %v5224, %v5226
        %v5228 = vrot.slane %v5212, 2
        %v5229 = vsel %vm1091, %v5226, %v5228
        %v5230 = vrot.slane %v5213, 2
        %v5231 = vsel %vm1091, %v5228, %v5230
        %v5232 = vrot.slane %v5214, 2
        %v5233 = vsel %vm1091, %v5230, %v5232
        %v5234 = vrot.slane %v5215, 2
        %v5235 = vsel %vm1091, %v5232, %v5234
        %5236 = vrot.lane.b32.xlu0 %v5225, 126
        %v5237 = vpop.permute.xlu0 %5236
        %5238 = vrot.lane.b32.xlu0 %v5227, 126
        %v5239 = vpop.permute.xlu0 %5238
        %5240 = vrot.lane.b32.xlu0 %v5229, 126
        %v5241 = vpop.permute.xlu0 %5240
        %5242 = vrot.lane.b32.xlu0 %v5231, 126
        %v5243 = vpop.permute.xlu0 %5242
        %5244 = vrot.lane.b32.xlu0 %v5233, 126
        %v5245 = vpop.permute.xlu0 %5244
        %5246 = vrot.lane.b32.xlu0 %v5235, 126
        %v5247 = vpop.permute.xlu0 %5246
        %5248 = vrot.lane.b32.xlu0 %v5234, 126
        %v5249 = vpop.permute.xlu0 %5248
        %v5257 = vadd.f32 %v5092, %v5237
        %v5258 = vadd.f32 %v5093, %v5239
        %v5259 = vadd.f32 %v5094, %v5241
        %v5260 = vadd.f32 %v5095, %v5243
        %v5261 = vadd.f32 %v5096, %v5245
        %v5262 = vadd.f32 %v5097, %v5247
        %v5263 = vadd.f32 %v5098, %v5249
        %s5264 = scalar_lea.vmem %s188, 224 [#allocation8]
        %v5265 = vld [vmem:[%s5264] sm:$0xff]
        %v5266 = vld [vmem:[%s5264 + $0x8] sm:$0xff]
        %v5267 = vld [vmem:[%s5264 + $0x10] sm:$0xff]
        %v5268 = vld [vmem:[%s5264 + $0x18] sm:$0xff]
        %v5269 = vld [vmem:[%s5264 + $0x20] sm:$0xff]
        %v5270 = vld [vmem:[%s5264 + $0x28] sm:$0xff]
        %v5271 = vld [vmem:[%s5264 + $0x30] sm:$0xff]
        %v5272 = vmul.f32 %v1547, %v5265
        %v5273 = vmul.f32 %v1547, %v5266
        %v5274 = vmul.f32 %v1547, %v5267
        %v5275 = vmul.f32 %v1547, %v5268
        %v5276 = vmul.f32 %v1547, %v5269
        %v5277 = vmul.f32 %v1547, %v5270
        %v5278 = vmul.f32 %v1547, %v5271
        %v5279 = vadd.f32 %v5147, %v5272
        %v5280 = vadd.f32 %v5148, %v5273
        %v5281 = vadd.f32 %v5149, %v5274
        %v5282 = vadd.f32 %v5150, %v5275
        %v5283 = vadd.f32 %v5151, %v5276
        %v5284 = vadd.f32 %v5152, %v5277
        %v5285 = vadd.f32 %v5153, %v5278
        %v5286 = vmul.f32 %v1562, %v5265
        %v5287 = vmul.f32 %v1562, %v5266
        %v5288 = vmul.f32 %v1562, %v5267
        %v5289 = vmul.f32 %v1562, %v5268
        %v5290 = vmul.f32 %v1562, %v5269
        %v5291 = vmul.f32 %v1562, %v5270
        %v5292 = vmul.f32 %v1562, %v5271
        %v5293 = vadd.f32 %v5202, %v5286
        %v5294 = vadd.f32 %v5203, %v5287
        %v5295 = vadd.f32 %v5204, %v5288
        %v5296 = vadd.f32 %v5205, %v5289
        %v5297 = vadd.f32 %v5206, %v5290
        %v5298 = vadd.f32 %v5207, %v5291
        %v5299 = vadd.f32 %v5208, %v5292
        %v5300 = vmul.f32 %v1577, %v5265
        %v5301 = vmul.f32 %v1577, %v5266
        %v5302 = vmul.f32 %v1577, %v5267
        %v5303 = vmul.f32 %v1577, %v5268
        %v5304 = vmul.f32 %v1577, %v5269
        %v5305 = vmul.f32 %v1577, %v5270
        %v5306 = vmul.f32 %v1577, %v5271
        %v5307 = vadd.f32 %v5257, %v5300
        %v5308 = vadd.f32 %v5258, %v5301
        %v5309 = vadd.f32 %v5259, %v5302
        %v5310 = vadd.f32 %v5260, %v5303
        %v5311 = vadd.f32 %v5261, %v5304
        %v5312 = vadd.f32 %v5262, %v5305
        %v5313 = vadd.f32 %v5263, %v5306
        %v5314 = vmul.f32 %v1592, %v5265
        %v5315 = vmul.f32 %v1592, %v5266
        %v5316 = vmul.f32 %v1592, %v5267
        %v5317 = vmul.f32 %v1592, %v5268
        %v5318 = vmul.f32 %v1592, %v5269
        %v5319 = vmul.f32 %v1592, %v5270
        %v5320 = vmul.f32 %v1592, %v5271
        %5328 = vrot.lane.b32.xlu0 %v5314, 127
        %v5329 = vpop.permute.xlu0 %5328
        %5330 = vrot.lane.b32.xlu0 %v5315, 127
        %v5331 = vpop.permute.xlu0 %5330
        %5332 = vrot.lane.b32.xlu0 %v5316, 127
        %v5333 = vpop.permute.xlu0 %5332
        %5334 = vrot.lane.b32.xlu0 %v5317, 127
        %v5335 = vpop.permute.xlu0 %5334
        %5336 = vrot.lane.b32.xlu0 %v5318, 127
        %v5337 = vpop.permute.xlu0 %5336
        %5338 = vrot.lane.b32.xlu0 %v5319, 127
        %v5339 = vpop.permute.xlu0 %5338
        %5340 = vrot.lane.b32.xlu0 %v5320, 127
        %v5341 = vpop.permute.xlu0 %5340
        %v5349 = vadd.f32 %v5279, %v5329
        %v5350 = vadd.f32 %v5280, %v5331
        %v5351 = vadd.f32 %v5281, %v5333
        %v5352 = vadd.f32 %v5282, %v5335
        %v5353 = vadd.f32 %v5283, %v5337
        %v5354 = vadd.f32 %v5284, %v5339
        %v5355 = vadd.f32 %v5285, %v5341
        %v5356 = vmul.f32 %v1635, %v5265
        %v5357 = vmul.f32 %v1635, %v5266
        %v5358 = vmul.f32 %v1635, %v5267
        %v5359 = vmul.f32 %v1635, %v5268
        %v5360 = vmul.f32 %v1635, %v5269
        %v5361 = vmul.f32 %v1635, %v5270
        %v5362 = vmul.f32 %v1635, %v5271
        %5370 = vrot.lane.b32.xlu0 %v5356, 127
        %v5371 = vpop.permute.xlu0 %5370
        %5372 = vrot.lane.b32.xlu0 %v5357, 127
        %v5373 = vpop.permute.xlu0 %5372
        %5374 = vrot.lane.b32.xlu0 %v5358, 127
        %v5375 = vpop.permute.xlu0 %5374
        %5376 = vrot.lane.b32.xlu0 %v5359, 127
        %v5377 = vpop.permute.xlu0 %5376
        %5378 = vrot.lane.b32.xlu0 %v5360, 127
        %v5379 = vpop.permute.xlu0 %5378
        %5380 = vrot.lane.b32.xlu0 %v5361, 127
        %v5381 = vpop.permute.xlu0 %5380
        %5382 = vrot.lane.b32.xlu0 %v5362, 127
        %v5383 = vpop.permute.xlu0 %5382
        %v5391 = vadd.f32 %v5293, %v5371
        %v5392 = vadd.f32 %v5294, %v5373
        %v5393 = vadd.f32 %v5295, %v5375
        %v5394 = vadd.f32 %v5296, %v5377
        %v5395 = vadd.f32 %v5297, %v5379
        %v5396 = vadd.f32 %v5298, %v5381
        %v5397 = vadd.f32 %v5299, %v5383
        %v5398 = vmul.f32 %v1678, %v5265
        %v5399 = vmul.f32 %v1678, %v5266
        %v5400 = vmul.f32 %v1678, %v5267
        %v5401 = vmul.f32 %v1678, %v5268
        %v5402 = vmul.f32 %v1678, %v5269
        %v5403 = vmul.f32 %v1678, %v5270
        %v5404 = vmul.f32 %v1678, %v5271
        %5412 = vrot.lane.b32.xlu0 %v5398, 127
        %v5413 = vpop.permute.xlu0 %5412
        %5414 = vrot.lane.b32.xlu0 %v5399, 127
        %v5415 = vpop.permute.xlu0 %5414
        %5416 = vrot.lane.b32.xlu0 %v5400, 127
        %v5417 = vpop.permute.xlu0 %5416
        %5418 = vrot.lane.b32.xlu0 %v5401, 127
        %v5419 = vpop.permute.xlu0 %5418
        %5420 = vrot.lane.b32.xlu0 %v5402, 127
        %v5421 = vpop.permute.xlu0 %5420
        %5422 = vrot.lane.b32.xlu0 %v5403, 127
        %v5423 = vpop.permute.xlu0 %5422
        %5424 = vrot.lane.b32.xlu0 %v5404, 127
        %v5425 = vpop.permute.xlu0 %5424
        %v5433 = vadd.f32 %v5307, %v5413
        %v5434 = vadd.f32 %v5308, %v5415
        %v5435 = vadd.f32 %v5309, %v5417
        %v5436 = vadd.f32 %v5310, %v5419
        %v5437 = vadd.f32 %v5311, %v5421
        %v5438 = vadd.f32 %v5312, %v5423
        %v5439 = vadd.f32 %v5313, %v5425
        %v5440 = vmul.f32 %v1721, %v5265
        %v5441 = vmul.f32 %v1721, %v5266
        %v5442 = vmul.f32 %v1721, %v5267
        %v5443 = vmul.f32 %v1721, %v5268
        %v5444 = vmul.f32 %v1721, %v5269
        %v5445 = vmul.f32 %v1721, %v5270
        %v5446 = vmul.f32 %v1721, %v5271
        %5454 = vrot.lane.b32.xlu0 %v5440, 126
        %v5455 = vpop.permute.xlu0 %5454
        %5456 = vrot.lane.b32.xlu0 %v5441, 126
        %v5457 = vpop.permute.xlu0 %5456
        %5458 = vrot.lane.b32.xlu0 %v5442, 126
        %v5459 = vpop.permute.xlu0 %5458
        %5460 = vrot.lane.b32.xlu0 %v5443, 126
        %v5461 = vpop.permute.xlu0 %5460
        %5462 = vrot.lane.b32.xlu0 %v5444, 126
        %v5463 = vpop.permute.xlu0 %5462
        %5464 = vrot.lane.b32.xlu0 %v5445, 126
        %v5465 = vpop.permute.xlu0 %5464
        %5466 = vrot.lane.b32.xlu0 %v5446, 126
        %v5467 = vpop.permute.xlu0 %5466
        %v5475 = vadd.f32 %v5349, %v5455
        %v5476 = vadd.f32 %v5350, %v5457
        %v5477 = vadd.f32 %v5351, %v5459
        %v5478 = vadd.f32 %v5352, %v5461
        %v5479 = vadd.f32 %v5353, %v5463
        %v5480 = vadd.f32 %v5354, %v5465
        %v5481 = vadd.f32 %v5355, %v5467
        %v5482 = vmul.f32 %v1764, %v5265
        %v5483 = vmul.f32 %v1764, %v5266
        %v5484 = vmul.f32 %v1764, %v5267
        %v5485 = vmul.f32 %v1764, %v5268
        %v5486 = vmul.f32 %v1764, %v5269
        %v5487 = vmul.f32 %v1764, %v5270
        %v5488 = vmul.f32 %v1764, %v5271
        %5496 = vrot.lane.b32.xlu0 %v5482, 126
        %v5497 = vpop.permute.xlu0 %5496
        %5498 = vrot.lane.b32.xlu0 %v5483, 126
        %v5499 = vpop.permute.xlu0 %5498
        %5500 = vrot.lane.b32.xlu0 %v5484, 126
        %v5501 = vpop.permute.xlu0 %5500
        %5502 = vrot.lane.b32.xlu0 %v5485, 126
        %v5503 = vpop.permute.xlu0 %5502
        %5504 = vrot.lane.b32.xlu0 %v5486, 126
        %v5505 = vpop.permute.xlu0 %5504
        %5506 = vrot.lane.b32.xlu0 %v5487, 126
        %v5507 = vpop.permute.xlu0 %5506
        %5508 = vrot.lane.b32.xlu0 %v5488, 126
        %v5509 = vpop.permute.xlu0 %5508
        %v5517 = vadd.f32 %v5391, %v5497
        %v5518 = vadd.f32 %v5392, %v5499
        %v5519 = vadd.f32 %v5393, %v5501
        %v5520 = vadd.f32 %v5394, %v5503
        %v5521 = vadd.f32 %v5395, %v5505
        %v5522 = vadd.f32 %v5396, %v5507
        %v5523 = vadd.f32 %v5397, %v5509
        %v5524 = vmul.f32 %v1807, %v5265
        %v5525 = vmul.f32 %v1807, %v5266
        %v5526 = vmul.f32 %v1807, %v5267
        %v5527 = vmul.f32 %v1807, %v5268
        %v5528 = vmul.f32 %v1807, %v5269
        %v5529 = vmul.f32 %v1807, %v5270
        %v5530 = vmul.f32 %v1807, %v5271
        %5538 = vrot.lane.b32.xlu0 %v5524, 126
        %v5539 = vpop.permute.xlu0 %5538
        %5540 = vrot.lane.b32.xlu0 %v5525, 126
        %v5541 = vpop.permute.xlu0 %5540
        %5542 = vrot.lane.b32.xlu0 %v5526, 126
        %v5543 = vpop.permute.xlu0 %5542
        %5544 = vrot.lane.b32.xlu0 %v5527, 126
        %v5545 = vpop.permute.xlu0 %5544
        %5546 = vrot.lane.b32.xlu0 %v5528, 126
        %v5547 = vpop.permute.xlu0 %5546
        %5548 = vrot.lane.b32.xlu0 %v5529, 126
        %v5549 = vpop.permute.xlu0 %5548
        %5550 = vrot.lane.b32.xlu0 %v5530, 126
        %v5551 = vpop.permute.xlu0 %5550
        %v5559 = vadd.f32 %v5433, %v5539
        %v5560 = vadd.f32 %v5434, %v5541
        %v5561 = vadd.f32 %v5435, %v5543
        %v5562 = vadd.f32 %v5436, %v5545
        %v5563 = vadd.f32 %v5437, %v5547
        %v5564 = vadd.f32 %v5438, %v5549
        %v5565 = vadd.f32 %v5439, %v5551
        %v5566 = vmul.f32 %v1850, %v5265
        %v5567 = vmul.f32 %v1850, %v5266
        %v5568 = vmul.f32 %v1850, %v5267
        %v5569 = vmul.f32 %v1850, %v5268
        %v5570 = vmul.f32 %v1850, %v5269
        %v5571 = vmul.f32 %v1850, %v5270
        %v5572 = vmul.f32 %v1850, %v5271
        %v5580 = vrot.slane %v5566, 1
        %v5581 = vrot.slane %v5567, 1
        %v5582 = vsel %vm628, %v5580, %v5581
        %v5583 = vrot.slane %v5568, 1
        %v5584 = vsel %vm628, %v5581, %v5583
        %v5585 = vrot.slane %v5569, 1
        %v5586 = vsel %vm628, %v5583, %v5585
        %v5587 = vrot.slane %v5570, 1
        %v5588 = vsel %vm628, %v5585, %v5587
        %v5589 = vrot.slane %v5571, 1
        %v5590 = vsel %vm628, %v5587, %v5589
        %v5591 = vrot.slane %v5572, 1
        %v5592 = vsel %vm628, %v5589, %v5591
        %v5600 = vadd.f32 %v5475, %v5582
        %v5601 = vadd.f32 %v5476, %v5584
        %v5602 = vadd.f32 %v5477, %v5586
        %v5603 = vadd.f32 %v5478, %v5588
        %v5604 = vadd.f32 %v5479, %v5590
        %v5605 = vadd.f32 %v5480, %v5592
        %v5606 = vadd.f32 %v5481, %v5591
        %v5607 = vmul.f32 %v1892, %v5265
        %v5608 = vmul.f32 %v1892, %v5266
        %v5609 = vmul.f32 %v1892, %v5267
        %v5610 = vmul.f32 %v1892, %v5268
        %v5611 = vmul.f32 %v1892, %v5269
        %v5612 = vmul.f32 %v1892, %v5270
        %v5613 = vmul.f32 %v1892, %v5271
        %v5621 = vrot.slane %v5607, 1
        %v5622 = vrot.slane %v5608, 1
        %v5623 = vsel %vm628, %v5621, %v5622
        %v5624 = vrot.slane %v5609, 1
        %v5625 = vsel %vm628, %v5622, %v5624
        %v5626 = vrot.slane %v5610, 1
        %v5627 = vsel %vm628, %v5624, %v5626
        %v5628 = vrot.slane %v5611, 1
        %v5629 = vsel %vm628, %v5626, %v5628
        %v5630 = vrot.slane %v5612, 1
        %v5631 = vsel %vm628, %v5628, %v5630
        %v5632 = vrot.slane %v5613, 1
        %v5633 = vsel %vm628, %v5630, %v5632
        %v5641 = vadd.f32 %v5517, %v5623
        %v5642 = vadd.f32 %v5518, %v5625
        %v5643 = vadd.f32 %v5519, %v5627
        %v5644 = vadd.f32 %v5520, %v5629
        %v5645 = vadd.f32 %v5521, %v5631
        %v5646 = vadd.f32 %v5522, %v5633
        %v5647 = vadd.f32 %v5523, %v5632
        %v5648 = vmul.f32 %v1934, %v5265
        %v5649 = vmul.f32 %v1934, %v5266
        %v5650 = vmul.f32 %v1934, %v5267
        %v5651 = vmul.f32 %v1934, %v5268
        %v5652 = vmul.f32 %v1934, %v5269
        %v5653 = vmul.f32 %v1934, %v5270
        %v5654 = vmul.f32 %v1934, %v5271
        %v5662 = vrot.slane %v5648, 1
        %v5663 = vrot.slane %v5649, 1
        %v5664 = vsel %vm628, %v5662, %v5663
        %v5665 = vrot.slane %v5650, 1
        %v5666 = vsel %vm628, %v5663, %v5665
        %v5667 = vrot.slane %v5651, 1
        %v5668 = vsel %vm628, %v5665, %v5667
        %v5669 = vrot.slane %v5652, 1
        %v5670 = vsel %vm628, %v5667, %v5669
        %v5671 = vrot.slane %v5653, 1
        %v5672 = vsel %vm628, %v5669, %v5671
        %v5673 = vrot.slane %v5654, 1
        %v5674 = vsel %vm628, %v5671, %v5673
        %v5682 = vadd.f32 %v5559, %v5664
        %v5683 = vadd.f32 %v5560, %v5666
        %v5684 = vadd.f32 %v5561, %v5668
        %v5685 = vadd.f32 %v5562, %v5670
        %v5686 = vadd.f32 %v5563, %v5672
        %v5687 = vadd.f32 %v5564, %v5674
        %v5688 = vadd.f32 %v5565, %v5673
        %v5689 = vmul.f32 %v1976, %v5265
        %v5690 = vmul.f32 %v1976, %v5266
        %v5691 = vmul.f32 %v1976, %v5267
        %v5692 = vmul.f32 %v1976, %v5268
        %v5693 = vmul.f32 %v1976, %v5269
        %v5694 = vmul.f32 %v1976, %v5270
        %v5695 = vmul.f32 %v1976, %v5271
        %v5703 = vrot.slane %v5689, 1
        %v5704 = vrot.slane %v5690, 1
        %v5705 = vsel %vm628, %v5703, %v5704
        %v5706 = vrot.slane %v5691, 1
        %v5707 = vsel %vm628, %v5704, %v5706
        %v5708 = vrot.slane %v5692, 1
        %v5709 = vsel %vm628, %v5706, %v5708
        %v5710 = vrot.slane %v5693, 1
        %v5711 = vsel %vm628, %v5708, %v5710
        %v5712 = vrot.slane %v5694, 1
        %v5713 = vsel %vm628, %v5710, %v5712
        %v5714 = vrot.slane %v5695, 1
        %v5715 = vsel %vm628, %v5712, %v5714
        %5716 = vrot.lane.b32.xlu0 %v5705, 127
        %v5717 = vpop.permute.xlu0 %5716
        %5718 = vrot.lane.b32.xlu0 %v5707, 127
        %v5719 = vpop.permute.xlu0 %5718
        %5720 = vrot.lane.b32.xlu0 %v5709, 127
        %v5721 = vpop.permute.xlu0 %5720
        %5722 = vrot.lane.b32.xlu0 %v5711, 127
        %v5723 = vpop.permute.xlu0 %5722
        %5724 = vrot.lane.b32.xlu0 %v5713, 127
        %v5725 = vpop.permute.xlu0 %5724
        %5726 = vrot.lane.b32.xlu0 %v5715, 127
        %v5727 = vpop.permute.xlu0 %5726
        %5728 = vrot.lane.b32.xlu0 %v5714, 127
        %v5729 = vpop.permute.xlu0 %5728
        %v5737 = vadd.f32 %v5600, %v5717
        %v5738 = vadd.f32 %v5601, %v5719
        %v5739 = vadd.f32 %v5602, %v5721
        %v5740 = vadd.f32 %v5603, %v5723
        %v5741 = vadd.f32 %v5604, %v5725
        %v5742 = vadd.f32 %v5605, %v5727
        %v5743 = vadd.f32 %v5606, %v5729
        %v5744 = vmul.f32 %v2032, %v5265
        %v5745 = vmul.f32 %v2032, %v5266
        %v5746 = vmul.f32 %v2032, %v5267
        %v5747 = vmul.f32 %v2032, %v5268
        %v5748 = vmul.f32 %v2032, %v5269
        %v5749 = vmul.f32 %v2032, %v5270
        %v5750 = vmul.f32 %v2032, %v5271
        %v5758 = vrot.slane %v5744, 1
        %v5759 = vrot.slane %v5745, 1
        %v5760 = vsel %vm628, %v5758, %v5759
        %v5761 = vrot.slane %v5746, 1
        %v5762 = vsel %vm628, %v5759, %v5761
        %v5763 = vrot.slane %v5747, 1
        %v5764 = vsel %vm628, %v5761, %v5763
        %v5765 = vrot.slane %v5748, 1
        %v5766 = vsel %vm628, %v5763, %v5765
        %v5767 = vrot.slane %v5749, 1
        %v5768 = vsel %vm628, %v5765, %v5767
        %v5769 = vrot.slane %v5750, 1
        %v5770 = vsel %vm628, %v5767, %v5769
        %5771 = vrot.lane.b32.xlu0 %v5760, 127
        %v5772 = vpop.permute.xlu0 %5771
        %5773 = vrot.lane.b32.xlu0 %v5762, 127
        %v5774 = vpop.permute.xlu0 %5773
        %5775 = vrot.lane.b32.xlu0 %v5764, 127
        %v5776 = vpop.permute.xlu0 %5775
        %5777 = vrot.lane.b32.xlu0 %v5766, 127
        %v5778 = vpop.permute.xlu0 %5777
        %5779 = vrot.lane.b32.xlu0 %v5768, 127
        %v5780 = vpop.permute.xlu0 %5779
        %5781 = vrot.lane.b32.xlu0 %v5770, 127
        %v5782 = vpop.permute.xlu0 %5781
        %5783 = vrot.lane.b32.xlu0 %v5769, 127
        %v5784 = vpop.permute.xlu0 %5783
        %v5792 = vadd.f32 %v5641, %v5772
        %v5793 = vadd.f32 %v5642, %v5774
        %v5794 = vadd.f32 %v5643, %v5776
        %v5795 = vadd.f32 %v5644, %v5778
        %v5796 = vadd.f32 %v5645, %v5780
        %v5797 = vadd.f32 %v5646, %v5782
        %v5798 = vadd.f32 %v5647, %v5784
        %v5799 = vmul.f32 %v2088, %v5265
        %v5800 = vmul.f32 %v2088, %v5266
        %v5801 = vmul.f32 %v2088, %v5267
        %v5802 = vmul.f32 %v2088, %v5268
        %v5803 = vmul.f32 %v2088, %v5269
        %v5804 = vmul.f32 %v2088, %v5270
        %v5805 = vmul.f32 %v2088, %v5271
        %v5813 = vrot.slane %v5799, 1
        %v5814 = vrot.slane %v5800, 1
        %v5815 = vsel %vm628, %v5813, %v5814
        %v5816 = vrot.slane %v5801, 1
        %v5817 = vsel %vm628, %v5814, %v5816
        %v5818 = vrot.slane %v5802, 1
        %v5819 = vsel %vm628, %v5816, %v5818
        %v5820 = vrot.slane %v5803, 1
        %v5821 = vsel %vm628, %v5818, %v5820
        %v5822 = vrot.slane %v5804, 1
        %v5823 = vsel %vm628, %v5820, %v5822
        %v5824 = vrot.slane %v5805, 1
        %v5825 = vsel %vm628, %v5822, %v5824
        %5826 = vrot.lane.b32.xlu0 %v5815, 127
        %v5827 = vpop.permute.xlu0 %5826
        %5828 = vrot.lane.b32.xlu0 %v5817, 127
        %v5829 = vpop.permute.xlu0 %5828
        %5830 = vrot.lane.b32.xlu0 %v5819, 127
        %v5831 = vpop.permute.xlu0 %5830
        %5832 = vrot.lane.b32.xlu0 %v5821, 127
        %v5833 = vpop.permute.xlu0 %5832
        %5834 = vrot.lane.b32.xlu0 %v5823, 127
        %v5835 = vpop.permute.xlu0 %5834
        %5836 = vrot.lane.b32.xlu0 %v5825, 127
        %v5837 = vpop.permute.xlu0 %5836
        %5838 = vrot.lane.b32.xlu0 %v5824, 127
        %v5839 = vpop.permute.xlu0 %5838
        %v5847 = vadd.f32 %v5682, %v5827
        %v5848 = vadd.f32 %v5683, %v5829
        %v5849 = vadd.f32 %v5684, %v5831
        %v5850 = vadd.f32 %v5685, %v5833
        %v5851 = vadd.f32 %v5686, %v5835
        %v5852 = vadd.f32 %v5687, %v5837
        %v5853 = vadd.f32 %v5688, %v5839
        %v5854 = vmul.f32 %v2144, %v5265
        %v5855 = vmul.f32 %v2144, %v5266
        %v5856 = vmul.f32 %v2144, %v5267
        %v5857 = vmul.f32 %v2144, %v5268
        %v5858 = vmul.f32 %v2144, %v5269
        %v5859 = vmul.f32 %v2144, %v5270
        %v5860 = vmul.f32 %v2144, %v5271
        %v5868 = vrot.slane %v5854, 1
        %v5869 = vrot.slane %v5855, 1
        %v5870 = vsel %vm628, %v5868, %v5869
        %v5871 = vrot.slane %v5856, 1
        %v5872 = vsel %vm628, %v5869, %v5871
        %v5873 = vrot.slane %v5857, 1
        %v5874 = vsel %vm628, %v5871, %v5873
        %v5875 = vrot.slane %v5858, 1
        %v5876 = vsel %vm628, %v5873, %v5875
        %v5877 = vrot.slane %v5859, 1
        %v5878 = vsel %vm628, %v5875, %v5877
        %v5879 = vrot.slane %v5860, 1
        %v5880 = vsel %vm628, %v5877, %v5879
        %5881 = vrot.lane.b32.xlu0 %v5870, 126
        %v5882 = vpop.permute.xlu0 %5881
        %5883 = vrot.lane.b32.xlu0 %v5872, 126
        %v5884 = vpop.permute.xlu0 %5883
        %5885 = vrot.lane.b32.xlu0 %v5874, 126
        %v5886 = vpop.permute.xlu0 %5885
        %5887 = vrot.lane.b32.xlu0 %v5876, 126
        %v5888 = vpop.permute.xlu0 %5887
        %5889 = vrot.lane.b32.xlu0 %v5878, 126
        %v5890 = vpop.permute.xlu0 %5889
        %5891 = vrot.lane.b32.xlu0 %v5880, 126
        %v5892 = vpop.permute.xlu0 %5891
        %5893 = vrot.lane.b32.xlu0 %v5879, 126
        %v5894 = vpop.permute.xlu0 %5893
        %v5902 = vadd.f32 %v5737, %v5882
        %v5903 = vadd.f32 %v5738, %v5884
        %v5904 = vadd.f32 %v5739, %v5886
        %v5905 = vadd.f32 %v5740, %v5888
        %v5906 = vadd.f32 %v5741, %v5890
        %v5907 = vadd.f32 %v5742, %v5892
        %v5908 = vadd.f32 %v5743, %v5894
        %v5909 = vmul.f32 %v2200, %v5265
        %v5910 = vmul.f32 %v2200, %v5266
        %v5911 = vmul.f32 %v2200, %v5267
        %v5912 = vmul.f32 %v2200, %v5268
        %v5913 = vmul.f32 %v2200, %v5269
        %v5914 = vmul.f32 %v2200, %v5270
        %v5915 = vmul.f32 %v2200, %v5271
        %v5923 = vrot.slane %v5909, 1
        %v5924 = vrot.slane %v5910, 1
        %v5925 = vsel %vm628, %v5923, %v5924
        %v5926 = vrot.slane %v5911, 1
        %v5927 = vsel %vm628, %v5924, %v5926
        %v5928 = vrot.slane %v5912, 1
        %v5929 = vsel %vm628, %v5926, %v5928
        %v5930 = vrot.slane %v5913, 1
        %v5931 = vsel %vm628, %v5928, %v5930
        %v5932 = vrot.slane %v5914, 1
        %v5933 = vsel %vm628, %v5930, %v5932
        %v5934 = vrot.slane %v5915, 1
        %v5935 = vsel %vm628, %v5932, %v5934
        %5936 = vrot.lane.b32.xlu0 %v5925, 126
        %v5937 = vpop.permute.xlu0 %5936
        %5938 = vrot.lane.b32.xlu0 %v5927, 126
        %v5939 = vpop.permute.xlu0 %5938
        %5940 = vrot.lane.b32.xlu0 %v5929, 126
        %v5941 = vpop.permute.xlu0 %5940
        %5942 = vrot.lane.b32.xlu0 %v5931, 126
        %v5943 = vpop.permute.xlu0 %5942
        %5944 = vrot.lane.b32.xlu0 %v5933, 126
        %v5945 = vpop.permute.xlu0 %5944
        %5946 = vrot.lane.b32.xlu0 %v5935, 126
        %v5947 = vpop.permute.xlu0 %5946
        %5948 = vrot.lane.b32.xlu0 %v5934, 126
        %v5949 = vpop.permute.xlu0 %5948
        %v5957 = vadd.f32 %v5792, %v5937
        %v5958 = vadd.f32 %v5793, %v5939
        %v5959 = vadd.f32 %v5794, %v5941
        %v5960 = vadd.f32 %v5795, %v5943
        %v5961 = vadd.f32 %v5796, %v5945
        %v5962 = vadd.f32 %v5797, %v5947
        %v5963 = vadd.f32 %v5798, %v5949
        %v5964 = vmul.f32 %v2256, %v5265
        %v5965 = vmul.f32 %v2256, %v5266
        %v5966 = vmul.f32 %v2256, %v5267
        %v5967 = vmul.f32 %v2256, %v5268
        %v5968 = vmul.f32 %v2256, %v5269
        %v5969 = vmul.f32 %v2256, %v5270
        %v5970 = vmul.f32 %v2256, %v5271
        %v5978 = vrot.slane %v5964, 1
        %v5979 = vrot.slane %v5965, 1
        %v5980 = vsel %vm628, %v5978, %v5979
        %v5981 = vrot.slane %v5966, 1
        %v5982 = vsel %vm628, %v5979, %v5981
        %v5983 = vrot.slane %v5967, 1
        %v5984 = vsel %vm628, %v5981, %v5983
        %v5985 = vrot.slane %v5968, 1
        %v5986 = vsel %vm628, %v5983, %v5985
        %v5987 = vrot.slane %v5969, 1
        %v5988 = vsel %vm628, %v5985, %v5987
        %v5989 = vrot.slane %v5970, 1
        %v5990 = vsel %vm628, %v5987, %v5989
        %5991 = vrot.lane.b32.xlu0 %v5980, 126
        %v5992 = vpop.permute.xlu0 %5991
        %5993 = vrot.lane.b32.xlu0 %v5982, 126
        %v5994 = vpop.permute.xlu0 %5993
        %5995 = vrot.lane.b32.xlu0 %v5984, 126
        %v5996 = vpop.permute.xlu0 %5995
        %5997 = vrot.lane.b32.xlu0 %v5986, 126
        %v5998 = vpop.permute.xlu0 %5997
        %5999 = vrot.lane.b32.xlu0 %v5988, 126
        %v6000 = vpop.permute.xlu0 %5999
        %6001 = vrot.lane.b32.xlu0 %v5990, 126
        %v6002 = vpop.permute.xlu0 %6001
        %6003 = vrot.lane.b32.xlu0 %v5989, 126
        %v6004 = vpop.permute.xlu0 %6003
        %v6012 = vadd.f32 %v5847, %v5992
        %v6013 = vadd.f32 %v5848, %v5994
        %v6014 = vadd.f32 %v5849, %v5996
        %v6015 = vadd.f32 %v5850, %v5998
        %v6016 = vadd.f32 %v5851, %v6000
        %v6017 = vadd.f32 %v5852, %v6002
        %v6018 = vadd.f32 %v5853, %v6004
        %v6019 = vmul.f32 %v2312, %v5265
        %v6020 = vmul.f32 %v2312, %v5266
        %v6021 = vmul.f32 %v2312, %v5267
        %v6022 = vmul.f32 %v2312, %v5268
        %v6023 = vmul.f32 %v2312, %v5269
        %v6024 = vmul.f32 %v2312, %v5270
        %v6025 = vmul.f32 %v2312, %v5271
        %v6033 = vrot.slane %v6019, 2
        %v6034 = vrot.slane %v6020, 2
        %v6035 = vsel %vm1091, %v6033, %v6034
        %v6036 = vrot.slane %v6021, 2
        %v6037 = vsel %vm1091, %v6034, %v6036
        %v6038 = vrot.slane %v6022, 2
        %v6039 = vsel %vm1091, %v6036, %v6038
        %v6040 = vrot.slane %v6023, 2
        %v6041 = vsel %vm1091, %v6038, %v6040
        %v6042 = vrot.slane %v6024, 2
        %v6043 = vsel %vm1091, %v6040, %v6042
        %v6044 = vrot.slane %v6025, 2
        %v6045 = vsel %vm1091, %v6042, %v6044
        %v6053 = vadd.f32 %v5902, %v6035
        %v6054 = vadd.f32 %v5903, %v6037
        %v6055 = vadd.f32 %v5904, %v6039
        %v6056 = vadd.f32 %v5905, %v6041
        %v6057 = vadd.f32 %v5906, %v6043
        %v6058 = vadd.f32 %v5907, %v6045
        %v6059 = vadd.f32 %v5908, %v6044
        %v6060 = vmul.f32 %v2354, %v5265
        %v6061 = vmul.f32 %v2354, %v5266
        %v6062 = vmul.f32 %v2354, %v5267
        %v6063 = vmul.f32 %v2354, %v5268
        %v6064 = vmul.f32 %v2354, %v5269
        %v6065 = vmul.f32 %v2354, %v5270
        %v6066 = vmul.f32 %v2354, %v5271
        %v6074 = vrot.slane %v6060, 2
        %v6075 = vrot.slane %v6061, 2
        %v6076 = vsel %vm1091, %v6074, %v6075
        %v6077 = vrot.slane %v6062, 2
        %v6078 = vsel %vm1091, %v6075, %v6077
        %v6079 = vrot.slane %v6063, 2
        %v6080 = vsel %vm1091, %v6077, %v6079
        %v6081 = vrot.slane %v6064, 2
        %v6082 = vsel %vm1091, %v6079, %v6081
        %v6083 = vrot.slane %v6065, 2
        %v6084 = vsel %vm1091, %v6081, %v6083
        %v6085 = vrot.slane %v6066, 2
        %v6086 = vsel %vm1091, %v6083, %v6085
        %v6094 = vadd.f32 %v5957, %v6076
        %v6095 = vadd.f32 %v5958, %v6078
        %v6096 = vadd.f32 %v5959, %v6080
        %v6097 = vadd.f32 %v5960, %v6082
        %v6098 = vadd.f32 %v5961, %v6084
        %v6099 = vadd.f32 %v5962, %v6086
        %v6100 = vadd.f32 %v5963, %v6085
        %v6101 = vmul.f32 %v2396, %v5265
        %v6102 = vmul.f32 %v2396, %v5266
        %v6103 = vmul.f32 %v2396, %v5267
        %v6104 = vmul.f32 %v2396, %v5268
        %v6105 = vmul.f32 %v2396, %v5269
        %v6106 = vmul.f32 %v2396, %v5270
        %v6107 = vmul.f32 %v2396, %v5271
        %v6115 = vrot.slane %v6101, 2
        %v6116 = vrot.slane %v6102, 2
        %v6117 = vsel %vm1091, %v6115, %v6116
        %v6118 = vrot.slane %v6103, 2
        %v6119 = vsel %vm1091, %v6116, %v6118
        %v6120 = vrot.slane %v6104, 2
        %v6121 = vsel %vm1091, %v6118, %v6120
        %v6122 = vrot.slane %v6105, 2
        %v6123 = vsel %vm1091, %v6120, %v6122
        %v6124 = vrot.slane %v6106, 2
        %v6125 = vsel %vm1091, %v6122, %v6124
        %v6126 = vrot.slane %v6107, 2
        %v6127 = vsel %vm1091, %v6124, %v6126
        %v6135 = vadd.f32 %v6012, %v6117
        %v6136 = vadd.f32 %v6013, %v6119
        %v6137 = vadd.f32 %v6014, %v6121
        %v6138 = vadd.f32 %v6015, %v6123
        %v6139 = vadd.f32 %v6016, %v6125
        %v6140 = vadd.f32 %v6017, %v6127
        %v6141 = vadd.f32 %v6018, %v6126
        %v6142 = vmul.f32 %v2438, %v5265
        %v6143 = vmul.f32 %v2438, %v5266
        %v6144 = vmul.f32 %v2438, %v5267
        %v6145 = vmul.f32 %v2438, %v5268
        %v6146 = vmul.f32 %v2438, %v5269
        %v6147 = vmul.f32 %v2438, %v5270
        %v6148 = vmul.f32 %v2438, %v5271
        %v6156 = vrot.slane %v6142, 2
        %v6157 = vrot.slane %v6143, 2
        %v6158 = vsel %vm1091, %v6156, %v6157
        %v6159 = vrot.slane %v6144, 2
        %v6160 = vsel %vm1091, %v6157, %v6159
        %v6161 = vrot.slane %v6145, 2
        %v6162 = vsel %vm1091, %v6159, %v6161
        %v6163 = vrot.slane %v6146, 2
        %v6164 = vsel %vm1091, %v6161, %v6163
        %v6165 = vrot.slane %v6147, 2
        %v6166 = vsel %vm1091, %v6163, %v6165
        %v6167 = vrot.slane %v6148, 2
        %v6168 = vsel %vm1091, %v6165, %v6167
        %6169 = vrot.lane.b32.xlu0 %v6158, 127
        %v6170 = vpop.permute.xlu0 %6169
        %6171 = vrot.lane.b32.xlu0 %v6160, 127
        %v6172 = vpop.permute.xlu0 %6171
        %6173 = vrot.lane.b32.xlu0 %v6162, 127
        %v6174 = vpop.permute.xlu0 %6173
        %6175 = vrot.lane.b32.xlu0 %v6164, 127
        %v6176 = vpop.permute.xlu0 %6175
        %6177 = vrot.lane.b32.xlu0 %v6166, 127
        %v6178 = vpop.permute.xlu0 %6177
        %6179 = vrot.lane.b32.xlu0 %v6168, 127
        %v6180 = vpop.permute.xlu0 %6179
        %6181 = vrot.lane.b32.xlu0 %v6167, 127
        %v6182 = vpop.permute.xlu0 %6181
        %v6190 = vadd.f32 %v6053, %v6170
        %v6191 = vadd.f32 %v6054, %v6172
        %v6192 = vadd.f32 %v6055, %v6174
        %v6193 = vadd.f32 %v6056, %v6176
        %v6194 = vadd.f32 %v6057, %v6178
        %v6195 = vadd.f32 %v6058, %v6180
        %v6196 = vadd.f32 %v6059, %v6182
        %v6197 = vmul.f32 %v2494, %v5265
        %v6198 = vmul.f32 %v2494, %v5266
        %v6199 = vmul.f32 %v2494, %v5267
        %v6200 = vmul.f32 %v2494, %v5268
        %v6201 = vmul.f32 %v2494, %v5269
        %v6202 = vmul.f32 %v2494, %v5270
        %v6203 = vmul.f32 %v2494, %v5271
        %v6211 = vrot.slane %v6197, 2
        %v6212 = vrot.slane %v6198, 2
        %v6213 = vsel %vm1091, %v6211, %v6212
        %v6214 = vrot.slane %v6199, 2
        %v6215 = vsel %vm1091, %v6212, %v6214
        %v6216 = vrot.slane %v6200, 2
        %v6217 = vsel %vm1091, %v6214, %v6216
        %v6218 = vrot.slane %v6201, 2
        %v6219 = vsel %vm1091, %v6216, %v6218
        %v6220 = vrot.slane %v6202, 2
        %v6221 = vsel %vm1091, %v6218, %v6220
        %v6222 = vrot.slane %v6203, 2
        %v6223 = vsel %vm1091, %v6220, %v6222
        %6224 = vrot.lane.b32.xlu0 %v6213, 127
        %v6225 = vpop.permute.xlu0 %6224
        %6226 = vrot.lane.b32.xlu0 %v6215, 127
        %v6227 = vpop.permute.xlu0 %6226
        %6228 = vrot.lane.b32.xlu0 %v6217, 127
        %v6229 = vpop.permute.xlu0 %6228
        %6230 = vrot.lane.b32.xlu0 %v6219, 127
        %v6231 = vpop.permute.xlu0 %6230
        %6232 = vrot.lane.b32.xlu0 %v6221, 127
        %v6233 = vpop.permute.xlu0 %6232
        %6234 = vrot.lane.b32.xlu0 %v6223, 127
        %v6235 = vpop.permute.xlu0 %6234
        %6236 = vrot.lane.b32.xlu0 %v6222, 127
        %v6237 = vpop.permute.xlu0 %6236
        %v6245 = vadd.f32 %v6094, %v6225
        %v6246 = vadd.f32 %v6095, %v6227
        %v6247 = vadd.f32 %v6096, %v6229
        %v6248 = vadd.f32 %v6097, %v6231
        %v6249 = vadd.f32 %v6098, %v6233
        %v6250 = vadd.f32 %v6099, %v6235
        %v6251 = vadd.f32 %v6100, %v6237
        %v6252 = vmul.f32 %v2550, %v5265
        %v6253 = vmul.f32 %v2550, %v5266
        %v6254 = vmul.f32 %v2550, %v5267
        %v6255 = vmul.f32 %v2550, %v5268
        %v6256 = vmul.f32 %v2550, %v5269
        %v6257 = vmul.f32 %v2550, %v5270
        %v6258 = vmul.f32 %v2550, %v5271
        %v6266 = vrot.slane %v6252, 2
        %v6267 = vrot.slane %v6253, 2
        %v6268 = vsel %vm1091, %v6266, %v6267
        %v6269 = vrot.slane %v6254, 2
        %v6270 = vsel %vm1091, %v6267, %v6269
        %v6271 = vrot.slane %v6255, 2
        %v6272 = vsel %vm1091, %v6269, %v6271
        %v6273 = vrot.slane %v6256, 2
        %v6274 = vsel %vm1091, %v6271, %v6273
        %v6275 = vrot.slane %v6257, 2
        %v6276 = vsel %vm1091, %v6273, %v6275
        %v6277 = vrot.slane %v6258, 2
        %v6278 = vsel %vm1091, %v6275, %v6277
        %6279 = vrot.lane.b32.xlu0 %v6268, 127
        %v6280 = vpop.permute.xlu0 %6279
        %6281 = vrot.lane.b32.xlu0 %v6270, 127
        %v6282 = vpop.permute.xlu0 %6281
        %6283 = vrot.lane.b32.xlu0 %v6272, 127
        %v6284 = vpop.permute.xlu0 %6283
        %6285 = vrot.lane.b32.xlu0 %v6274, 127
        %v6286 = vpop.permute.xlu0 %6285
        %6287 = vrot.lane.b32.xlu0 %v6276, 127
        %v6288 = vpop.permute.xlu0 %6287
        %6289 = vrot.lane.b32.xlu0 %v6278, 127
        %v6290 = vpop.permute.xlu0 %6289
        %6291 = vrot.lane.b32.xlu0 %v6277, 127
        %v6292 = vpop.permute.xlu0 %6291
        %v6300 = vadd.f32 %v6135, %v6280
        %v6301 = vadd.f32 %v6136, %v6282
        %v6302 = vadd.f32 %v6137, %v6284
        %v6303 = vadd.f32 %v6138, %v6286
        %v6304 = vadd.f32 %v6139, %v6288
        %v6305 = vadd.f32 %v6140, %v6290
        %v6306 = vadd.f32 %v6141, %v6292
        %v6307 = vmul.f32 %v2606, %v5265
        %v6308 = vmul.f32 %v2606, %v5266
        %v6309 = vmul.f32 %v2606, %v5267
        %v6310 = vmul.f32 %v2606, %v5268
        %v6311 = vmul.f32 %v2606, %v5269
        %v6312 = vmul.f32 %v2606, %v5270
        %v6313 = vmul.f32 %v2606, %v5271
        %v6321 = vrot.slane %v6307, 2
        %v6322 = vrot.slane %v6308, 2
        %v6323 = vsel %vm1091, %v6321, %v6322
        %v6324 = vrot.slane %v6309, 2
        %v6325 = vsel %vm1091, %v6322, %v6324
        %v6326 = vrot.slane %v6310, 2
        %v6327 = vsel %vm1091, %v6324, %v6326
        %v6328 = vrot.slane %v6311, 2
        %v6329 = vsel %vm1091, %v6326, %v6328
        %v6330 = vrot.slane %v6312, 2
        %v6331 = vsel %vm1091, %v6328, %v6330
        %v6332 = vrot.slane %v6313, 2
        %v6333 = vsel %vm1091, %v6330, %v6332
        %6334 = vrot.lane.b32.xlu0 %v6323, 126
        %v6335 = vpop.permute.xlu0 %6334
        %6336 = vrot.lane.b32.xlu0 %v6325, 126
        %v6337 = vpop.permute.xlu0 %6336
        %6338 = vrot.lane.b32.xlu0 %v6327, 126
        %v6339 = vpop.permute.xlu0 %6338
        %6340 = vrot.lane.b32.xlu0 %v6329, 126
        %v6341 = vpop.permute.xlu0 %6340
        %6342 = vrot.lane.b32.xlu0 %v6331, 126
        %v6343 = vpop.permute.xlu0 %6342
        %6344 = vrot.lane.b32.xlu0 %v6333, 126
        %v6345 = vpop.permute.xlu0 %6344
        %6346 = vrot.lane.b32.xlu0 %v6332, 126
        %v6347 = vpop.permute.xlu0 %6346
        %v6355 = vadd.f32 %v6190, %v6335
        %v6356 = vadd.f32 %v6191, %v6337
        %v6357 = vadd.f32 %v6192, %v6339
        %v6358 = vadd.f32 %v6193, %v6341
        %v6359 = vadd.f32 %v6194, %v6343
        %v6360 = vadd.f32 %v6195, %v6345
        %v6361 = vadd.f32 %v6196, %v6347
        %v6362 = vmul.f32 %v2662, %v5265
        %v6363 = vmul.f32 %v2662, %v5266
        %v6364 = vmul.f32 %v2662, %v5267
        %v6365 = vmul.f32 %v2662, %v5268
        %v6366 = vmul.f32 %v2662, %v5269
        %v6367 = vmul.f32 %v2662, %v5270
        %v6368 = vmul.f32 %v2662, %v5271
        %v6376 = vrot.slane %v6362, 2
        %v6377 = vrot.slane %v6363, 2
        %v6378 = vsel %vm1091, %v6376, %v6377
        %v6379 = vrot.slane %v6364, 2
        %v6380 = vsel %vm1091, %v6377, %v6379
        %v6381 = vrot.slane %v6365, 2
        %v6382 = vsel %vm1091, %v6379, %v6381
        %v6383 = vrot.slane %v6366, 2
        %v6384 = vsel %vm1091, %v6381, %v6383
        %v6385 = vrot.slane %v6367, 2
        %v6386 = vsel %vm1091, %v6383, %v6385
        %v6387 = vrot.slane %v6368, 2
        %v6388 = vsel %vm1091, %v6385, %v6387
        %6389 = vrot.lane.b32.xlu0 %v6378, 126
        %v6390 = vpop.permute.xlu0 %6389
        %6391 = vrot.lane.b32.xlu0 %v6380, 126
        %v6392 = vpop.permute.xlu0 %6391
        %6393 = vrot.lane.b32.xlu0 %v6382, 126
        %v6394 = vpop.permute.xlu0 %6393
        %6395 = vrot.lane.b32.xlu0 %v6384, 126
        %v6396 = vpop.permute.xlu0 %6395
        %6397 = vrot.lane.b32.xlu0 %v6386, 126
        %v6398 = vpop.permute.xlu0 %6397
        %6399 = vrot.lane.b32.xlu0 %v6388, 126
        %v6400 = vpop.permute.xlu0 %6399
        %6401 = vrot.lane.b32.xlu0 %v6387, 126
        %v6402 = vpop.permute.xlu0 %6401
        %v6410 = vadd.f32 %v6245, %v6390
        %v6411 = vadd.f32 %v6246, %v6392
        %v6412 = vadd.f32 %v6247, %v6394
        %v6413 = vadd.f32 %v6248, %v6396
        %v6414 = vadd.f32 %v6249, %v6398
        %v6415 = vadd.f32 %v6250, %v6400
        %v6416 = vadd.f32 %v6251, %v6402
        %v6417 = vmul.f32 %v2718, %v5265
        %v6418 = vmul.f32 %v2718, %v5266
        %v6419 = vmul.f32 %v2718, %v5267
        %v6420 = vmul.f32 %v2718, %v5268
        %v6421 = vmul.f32 %v2718, %v5269
        %v6422 = vmul.f32 %v2718, %v5270
        %v6423 = vmul.f32 %v2718, %v5271
        %v6431 = vrot.slane %v6417, 2
        %v6432 = vrot.slane %v6418, 2
        %v6433 = vsel %vm1091, %v6431, %v6432
        %v6434 = vrot.slane %v6419, 2
        %v6435 = vsel %vm1091, %v6432, %v6434
        %v6436 = vrot.slane %v6420, 2
        %v6437 = vsel %vm1091, %v6434, %v6436
        %v6438 = vrot.slane %v6421, 2
        %v6439 = vsel %vm1091, %v6436, %v6438
        %v6440 = vrot.slane %v6422, 2
        %v6441 = vsel %vm1091, %v6438, %v6440
        %v6442 = vrot.slane %v6423, 2
        %v6443 = vsel %vm1091, %v6440, %v6442
        %6444 = vrot.lane.b32.xlu0 %v6433, 126
        %v6445 = vpop.permute.xlu0 %6444
        %6446 = vrot.lane.b32.xlu0 %v6435, 126
        %v6447 = vpop.permute.xlu0 %6446
        %6448 = vrot.lane.b32.xlu0 %v6437, 126
        %v6449 = vpop.permute.xlu0 %6448
        %6450 = vrot.lane.b32.xlu0 %v6439, 126
        %v6451 = vpop.permute.xlu0 %6450
        %6452 = vrot.lane.b32.xlu0 %v6441, 126
        %v6453 = vpop.permute.xlu0 %6452
        %6454 = vrot.lane.b32.xlu0 %v6443, 126
        %v6455 = vpop.permute.xlu0 %6454
        %6456 = vrot.lane.b32.xlu0 %v6442, 126
        %v6457 = vpop.permute.xlu0 %6456
        %v6465 = vadd.f32 %v6300, %v6445
        %v6466 = vadd.f32 %v6301, %v6447
        %v6467 = vadd.f32 %v6302, %v6449
        %v6468 = vadd.f32 %v6303, %v6451
        %v6469 = vadd.f32 %v6304, %v6453
        %v6470 = vadd.f32 %v6305, %v6455
        %v6471 = vadd.f32 %v6306, %v6457
        %s6472 = scalar_lea.vmem %s188, 280 [#allocation8]
        %v6473 = vld [vmem:[%s6472] sm:$0xff]
        %v6474 = vld [vmem:[%s6472 + $0x8] sm:$0xff]
        %v6475 = vld [vmem:[%s6472 + $0x10] sm:$0xff]
        %v6476 = vld [vmem:[%s6472 + $0x18] sm:$0xff]
        %v6477 = vld [vmem:[%s6472 + $0x20] sm:$0xff]
        %v6478 = vld [vmem:[%s6472 + $0x28] sm:$0xff]
        %v6479 = vld [vmem:[%s6472 + $0x30] sm:$0xff]
        %v6480 = vmul.f32 %v2782, %v6473
        %v6481 = vmul.f32 %v2782, %v6474
        %v6482 = vmul.f32 %v2782, %v6475
        %v6483 = vmul.f32 %v2782, %v6476
        %v6484 = vmul.f32 %v2782, %v6477
        %v6485 = vmul.f32 %v2782, %v6478
        %v6486 = vmul.f32 %v2782, %v6479
        %v6487 = vadd.f32 %v6355, %v6480
        %v6488 = vadd.f32 %v6356, %v6481
        %v6489 = vadd.f32 %v6357, %v6482
        %v6490 = vadd.f32 %v6358, %v6483
        %v6491 = vadd.f32 %v6359, %v6484
        %v6492 = vadd.f32 %v6360, %v6485
        %v6493 = vadd.f32 %v6361, %v6486
        %v6494 = vmul.f32 %v2797, %v6473
        %v6495 = vmul.f32 %v2797, %v6474
        %v6496 = vmul.f32 %v2797, %v6475
        %v6497 = vmul.f32 %v2797, %v6476
        %v6498 = vmul.f32 %v2797, %v6477
        %v6499 = vmul.f32 %v2797, %v6478
        %v6500 = vmul.f32 %v2797, %v6479
        %v6501 = vadd.f32 %v6410, %v6494
        %v6502 = vadd.f32 %v6411, %v6495
        %v6503 = vadd.f32 %v6412, %v6496
        %v6504 = vadd.f32 %v6413, %v6497
        %v6505 = vadd.f32 %v6414, %v6498
        %v6506 = vadd.f32 %v6415, %v6499
        %v6507 = vadd.f32 %v6416, %v6500
        %v6508 = vmul.f32 %v2812, %v6473
        %v6509 = vmul.f32 %v2812, %v6474
        %v6510 = vmul.f32 %v2812, %v6475
        %v6511 = vmul.f32 %v2812, %v6476
        %v6512 = vmul.f32 %v2812, %v6477
        %v6513 = vmul.f32 %v2812, %v6478
        %v6514 = vmul.f32 %v2812, %v6479
        %v6515 = vadd.f32 %v6465, %v6508
        %v6516 = vadd.f32 %v6466, %v6509
        %v6517 = vadd.f32 %v6467, %v6510
        %v6518 = vadd.f32 %v6468, %v6511
        %v6519 = vadd.f32 %v6469, %v6512
        %v6520 = vadd.f32 %v6470, %v6513
        %v6521 = vadd.f32 %v6471, %v6514
        %v6522 = vmul.f32 %v2827, %v6473
        %v6523 = vmul.f32 %v2827, %v6474
        %v6524 = vmul.f32 %v2827, %v6475
        %v6525 = vmul.f32 %v2827, %v6476
        %v6526 = vmul.f32 %v2827, %v6477
        %v6527 = vmul.f32 %v2827, %v6478
        %v6528 = vmul.f32 %v2827, %v6479
        %6536 = vrot.lane.b32.xlu0 %v6522, 127
        %v6537 = vpop.permute.xlu0 %6536
        %6538 = vrot.lane.b32.xlu0 %v6523, 127
        %v6539 = vpop.permute.xlu0 %6538
        %6540 = vrot.lane.b32.xlu0 %v6524, 127
        %v6541 = vpop.permute.xlu0 %6540
        %6542 = vrot.lane.b32.xlu0 %v6525, 127
        %v6543 = vpop.permute.xlu0 %6542
        %6544 = vrot.lane.b32.xlu0 %v6526, 127
        %v6545 = vpop.permute.xlu0 %6544
        %6546 = vrot.lane.b32.xlu0 %v6527, 127
        %v6547 = vpop.permute.xlu0 %6546
        %6548 = vrot.lane.b32.xlu0 %v6528, 127
        %v6549 = vpop.permute.xlu0 %6548
        %v6557 = vadd.f32 %v6487, %v6537
        %v6558 = vadd.f32 %v6488, %v6539
        %v6559 = vadd.f32 %v6489, %v6541
        %v6560 = vadd.f32 %v6490, %v6543
        %v6561 = vadd.f32 %v6491, %v6545
        %v6562 = vadd.f32 %v6492, %v6547
        %v6563 = vadd.f32 %v6493, %v6549
        %v6564 = vmul.f32 %v2870, %v6473
        %v6565 = vmul.f32 %v2870, %v6474
        %v6566 = vmul.f32 %v2870, %v6475
        %v6567 = vmul.f32 %v2870, %v6476
        %v6568 = vmul.f32 %v2870, %v6477
        %v6569 = vmul.f32 %v2870, %v6478
        %v6570 = vmul.f32 %v2870, %v6479
        %6578 = vrot.lane.b32.xlu0 %v6564, 127
        %v6579 = vpop.permute.xlu0 %6578
        %6580 = vrot.lane.b32.xlu0 %v6565, 127
        %v6581 = vpop.permute.xlu0 %6580
        %6582 = vrot.lane.b32.xlu0 %v6566, 127
        %v6583 = vpop.permute.xlu0 %6582
        %6584 = vrot.lane.b32.xlu0 %v6567, 127
        %v6585 = vpop.permute.xlu0 %6584
        %6586 = vrot.lane.b32.xlu0 %v6568, 127
        %v6587 = vpop.permute.xlu0 %6586
        %6588 = vrot.lane.b32.xlu0 %v6569, 127
        %v6589 = vpop.permute.xlu0 %6588
        %6590 = vrot.lane.b32.xlu0 %v6570, 127
        %v6591 = vpop.permute.xlu0 %6590
        %v6599 = vadd.f32 %v6501, %v6579
        %v6600 = vadd.f32 %v6502, %v6581
        %v6601 = vadd.f32 %v6503, %v6583
        %v6602 = vadd.f32 %v6504, %v6585
        %v6603 = vadd.f32 %v6505, %v6587
        %v6604 = vadd.f32 %v6506, %v6589
        %v6605 = vadd.f32 %v6507, %v6591
        %v6606 = vmul.f32 %v2913, %v6473
        %v6607 = vmul.f32 %v2913, %v6474
        %v6608 = vmul.f32 %v2913, %v6475
        %v6609 = vmul.f32 %v2913, %v6476
        %v6610 = vmul.f32 %v2913, %v6477
        %v6611 = vmul.f32 %v2913, %v6478
        %v6612 = vmul.f32 %v2913, %v6479
        %6620 = vrot.lane.b32.xlu0 %v6606, 127
        %v6621 = vpop.permute.xlu0 %6620
        %6622 = vrot.lane.b32.xlu0 %v6607, 127
        %v6623 = vpop.permute.xlu0 %6622
        %6624 = vrot.lane.b32.xlu0 %v6608, 127
        %v6625 = vpop.permute.xlu0 %6624
        %6626 = vrot.lane.b32.xlu0 %v6609, 127
        %v6627 = vpop.permute.xlu0 %6626
        %6628 = vrot.lane.b32.xlu0 %v6610, 127
        %v6629 = vpop.permute.xlu0 %6628
        %6630 = vrot.lane.b32.xlu0 %v6611, 127
        %v6631 = vpop.permute.xlu0 %6630
        %6632 = vrot.lane.b32.xlu0 %v6612, 127
        %v6633 = vpop.permute.xlu0 %6632
        %v6641 = vadd.f32 %v6515, %v6621
        %v6642 = vadd.f32 %v6516, %v6623
        %v6643 = vadd.f32 %v6517, %v6625
        %v6644 = vadd.f32 %v6518, %v6627
        %v6645 = vadd.f32 %v6519, %v6629
        %v6646 = vadd.f32 %v6520, %v6631
        %v6647 = vadd.f32 %v6521, %v6633
        %v6648 = vmul.f32 %v2956, %v6473
        %v6649 = vmul.f32 %v2956, %v6474
        %v6650 = vmul.f32 %v2956, %v6475
        %v6651 = vmul.f32 %v2956, %v6476
        %v6652 = vmul.f32 %v2956, %v6477
        %v6653 = vmul.f32 %v2956, %v6478
        %v6654 = vmul.f32 %v2956, %v6479
        %6662 = vrot.lane.b32.xlu0 %v6648, 126
        %v6663 = vpop.permute.xlu0 %6662
        %6664 = vrot.lane.b32.xlu0 %v6649, 126
        %v6665 = vpop.permute.xlu0 %6664
        %6666 = vrot.lane.b32.xlu0 %v6650, 126
        %v6667 = vpop.permute.xlu0 %6666
        %6668 = vrot.lane.b32.xlu0 %v6651, 126
        %v6669 = vpop.permute.xlu0 %6668
        %6670 = vrot.lane.b32.xlu0 %v6652, 126
        %v6671 = vpop.permute.xlu0 %6670
        %6672 = vrot.lane.b32.xlu0 %v6653, 126
        %v6673 = vpop.permute.xlu0 %6672
        %6674 = vrot.lane.b32.xlu0 %v6654, 126
        %v6675 = vpop.permute.xlu0 %6674
        %v6683 = vadd.f32 %v6557, %v6663
        %v6684 = vadd.f32 %v6558, %v6665
        %v6685 = vadd.f32 %v6559, %v6667
        %v6686 = vadd.f32 %v6560, %v6669
        %v6687 = vadd.f32 %v6561, %v6671
        %v6688 = vadd.f32 %v6562, %v6673
        %v6689 = vadd.f32 %v6563, %v6675
        %v6690 = vmul.f32 %v2999, %v6473
        %v6691 = vmul.f32 %v2999, %v6474
        %v6692 = vmul.f32 %v2999, %v6475
        %v6693 = vmul.f32 %v2999, %v6476
        %v6694 = vmul.f32 %v2999, %v6477
        %v6695 = vmul.f32 %v2999, %v6478
        %v6696 = vmul.f32 %v2999, %v6479
        %6704 = vrot.lane.b32.xlu0 %v6690, 126
        %v6705 = vpop.permute.xlu0 %6704
        %6706 = vrot.lane.b32.xlu0 %v6691, 126
        %v6707 = vpop.permute.xlu0 %6706
        %6708 = vrot.lane.b32.xlu0 %v6692, 126
        %v6709 = vpop.permute.xlu0 %6708
        %6710 = vrot.lane.b32.xlu0 %v6693, 126
        %v6711 = vpop.permute.xlu0 %6710
        %6712 = vrot.lane.b32.xlu0 %v6694, 126
        %v6713 = vpop.permute.xlu0 %6712
        %6714 = vrot.lane.b32.xlu0 %v6695, 126
        %v6715 = vpop.permute.xlu0 %6714
        %6716 = vrot.lane.b32.xlu0 %v6696, 126
        %v6717 = vpop.permute.xlu0 %6716
        %v6725 = vadd.f32 %v6599, %v6705
        %v6726 = vadd.f32 %v6600, %v6707
        %v6727 = vadd.f32 %v6601, %v6709
        %v6728 = vadd.f32 %v6602, %v6711
        %v6729 = vadd.f32 %v6603, %v6713
        %v6730 = vadd.f32 %v6604, %v6715
        %v6731 = vadd.f32 %v6605, %v6717
        %v6732 = vmul.f32 %v3042, %v6473
        %v6733 = vmul.f32 %v3042, %v6474
        %v6734 = vmul.f32 %v3042, %v6475
        %v6735 = vmul.f32 %v3042, %v6476
        %v6736 = vmul.f32 %v3042, %v6477
        %v6737 = vmul.f32 %v3042, %v6478
        %v6738 = vmul.f32 %v3042, %v6479
        %6746 = vrot.lane.b32.xlu0 %v6732, 126
        %v6747 = vpop.permute.xlu0 %6746
        %6748 = vrot.lane.b32.xlu0 %v6733, 126
        %v6749 = vpop.permute.xlu0 %6748
        %6750 = vrot.lane.b32.xlu0 %v6734, 126
        %v6751 = vpop.permute.xlu0 %6750
        %6752 = vrot.lane.b32.xlu0 %v6735, 126
        %v6753 = vpop.permute.xlu0 %6752
        %6754 = vrot.lane.b32.xlu0 %v6736, 126
        %v6755 = vpop.permute.xlu0 %6754
        %6756 = vrot.lane.b32.xlu0 %v6737, 126
        %v6757 = vpop.permute.xlu0 %6756
        %6758 = vrot.lane.b32.xlu0 %v6738, 126
        %v6759 = vpop.permute.xlu0 %6758
        %v6767 = vadd.f32 %v6641, %v6747
        %v6768 = vadd.f32 %v6642, %v6749
        %v6769 = vadd.f32 %v6643, %v6751
        %v6770 = vadd.f32 %v6644, %v6753
        %v6771 = vadd.f32 %v6645, %v6755
        %v6772 = vadd.f32 %v6646, %v6757
        %v6773 = vadd.f32 %v6647, %v6759
        %v6774 = vmul.f32 %v3085, %v6473
        %v6775 = vmul.f32 %v3085, %v6474
        %v6776 = vmul.f32 %v3085, %v6475
        %v6777 = vmul.f32 %v3085, %v6476
        %v6778 = vmul.f32 %v3085, %v6477
        %v6779 = vmul.f32 %v3085, %v6478
        %v6780 = vmul.f32 %v3085, %v6479
        %v6788 = vrot.slane %v6774, 1
        %v6789 = vrot.slane %v6775, 1
        %v6790 = vsel %vm628, %v6788, %v6789
        %v6791 = vrot.slane %v6776, 1
        %v6792 = vsel %vm628, %v6789, %v6791
        %v6793 = vrot.slane %v6777, 1
        %v6794 = vsel %vm628, %v6791, %v6793
        %v6795 = vrot.slane %v6778, 1
        %v6796 = vsel %vm628, %v6793, %v6795
        %v6797 = vrot.slane %v6779, 1
        %v6798 = vsel %vm628, %v6795, %v6797
        %v6799 = vrot.slane %v6780, 1
        %v6800 = vsel %vm628, %v6797, %v6799
        %v6808 = vadd.f32 %v6683, %v6790
        %v6809 = vadd.f32 %v6684, %v6792
        %v6810 = vadd.f32 %v6685, %v6794
        %v6811 = vadd.f32 %v6686, %v6796
        %v6812 = vadd.f32 %v6687, %v6798
        %v6813 = vadd.f32 %v6688, %v6800
        %v6814 = vadd.f32 %v6689, %v6799
        %v6815 = vmul.f32 %v3127, %v6473
        %v6816 = vmul.f32 %v3127, %v6474
        %v6817 = vmul.f32 %v3127, %v6475
        %v6818 = vmul.f32 %v3127, %v6476
        %v6819 = vmul.f32 %v3127, %v6477
        %v6820 = vmul.f32 %v3127, %v6478
        %v6821 = vmul.f32 %v3127, %v6479
        %v6829 = vrot.slane %v6815, 1
        %v6830 = vrot.slane %v6816, 1
        %v6831 = vsel %vm628, %v6829, %v6830
        %v6832 = vrot.slane %v6817, 1
        %v6833 = vsel %vm628, %v6830, %v6832
        %v6834 = vrot.slane %v6818, 1
        %v6835 = vsel %vm628, %v6832, %v6834
        %v6836 = vrot.slane %v6819, 1
        %v6837 = vsel %vm628, %v6834, %v6836
        %v6838 = vrot.slane %v6820, 1
        %v6839 = vsel %vm628, %v6836, %v6838
        %v6840 = vrot.slane %v6821, 1
        %v6841 = vsel %vm628, %v6838, %v6840
        %v6849 = vadd.f32 %v6725, %v6831
        %v6850 = vadd.f32 %v6726, %v6833
        %v6851 = vadd.f32 %v6727, %v6835
        %v6852 = vadd.f32 %v6728, %v6837
        %v6853 = vadd.f32 %v6729, %v6839
        %v6854 = vadd.f32 %v6730, %v6841
        %v6855 = vadd.f32 %v6731, %v6840
        %v6856 = vmul.f32 %v3169, %v6473
        %v6857 = vmul.f32 %v3169, %v6474
        %v6858 = vmul.f32 %v3169, %v6475
        %v6859 = vmul.f32 %v3169, %v6476
        %v6860 = vmul.f32 %v3169, %v6477
        %v6861 = vmul.f32 %v3169, %v6478
        %v6862 = vmul.f32 %v3169, %v6479
        %v6870 = vrot.slane %v6856, 1
        %v6871 = vrot.slane %v6857, 1
        %v6872 = vsel %vm628, %v6870, %v6871
        %v6873 = vrot.slane %v6858, 1
        %v6874 = vsel %vm628, %v6871, %v6873
        %v6875 = vrot.slane %v6859, 1
        %v6876 = vsel %vm628, %v6873, %v6875
        %v6877 = vrot.slane %v6860, 1
        %v6878 = vsel %vm628, %v6875, %v6877
        %v6879 = vrot.slane %v6861, 1
        %v6880 = vsel %vm628, %v6877, %v6879
        %v6881 = vrot.slane %v6862, 1
        %v6882 = vsel %vm628, %v6879, %v6881
        %v6890 = vadd.f32 %v6767, %v6872
        %v6891 = vadd.f32 %v6768, %v6874
        %v6892 = vadd.f32 %v6769, %v6876
        %v6893 = vadd.f32 %v6770, %v6878
        %v6894 = vadd.f32 %v6771, %v6880
        %v6895 = vadd.f32 %v6772, %v6882
        %v6896 = vadd.f32 %v6773, %v6881
        %v6897 = vmul.f32 %v3211, %v6473
        %v6898 = vmul.f32 %v3211, %v6474
        %v6899 = vmul.f32 %v3211, %v6475
        %v6900 = vmul.f32 %v3211, %v6476
        %v6901 = vmul.f32 %v3211, %v6477
        %v6902 = vmul.f32 %v3211, %v6478
        %v6903 = vmul.f32 %v3211, %v6479
        %v6911 = vrot.slane %v6897, 1
        %v6912 = vrot.slane %v6898, 1
        %v6913 = vsel %vm628, %v6911, %v6912
        %v6914 = vrot.slane %v6899, 1
        %v6915 = vsel %vm628, %v6912, %v6914
        %v6916 = vrot.slane %v6900, 1
        %v6917 = vsel %vm628, %v6914, %v6916
        %v6918 = vrot.slane %v6901, 1
        %v6919 = vsel %vm628, %v6916, %v6918
        %v6920 = vrot.slane %v6902, 1
        %v6921 = vsel %vm628, %v6918, %v6920
        %v6922 = vrot.slane %v6903, 1
        %v6923 = vsel %vm628, %v6920, %v6922
        %6924 = vrot.lane.b32.xlu0 %v6913, 127
        %v6925 = vpop.permute.xlu0 %6924
        %6926 = vrot.lane.b32.xlu0 %v6915, 127
        %v6927 = vpop.permute.xlu0 %6926
        %6928 = vrot.lane.b32.xlu0 %v6917, 127
        %v6929 = vpop.permute.xlu0 %6928
        %6930 = vrot.lane.b32.xlu0 %v6919, 127
        %v6931 = vpop.permute.xlu0 %6930
        %6932 = vrot.lane.b32.xlu0 %v6921, 127
        %v6933 = vpop.permute.xlu0 %6932
        %6934 = vrot.lane.b32.xlu0 %v6923, 127
        %v6935 = vpop.permute.xlu0 %6934
        %6936 = vrot.lane.b32.xlu0 %v6922, 127
        %v6937 = vpop.permute.xlu0 %6936
        %v6945 = vadd.f32 %v6808, %v6925
        %v6946 = vadd.f32 %v6809, %v6927
        %v6947 = vadd.f32 %v6810, %v6929
        %v6948 = vadd.f32 %v6811, %v6931
        %v6949 = vadd.f32 %v6812, %v6933
        %v6950 = vadd.f32 %v6813, %v6935
        %v6951 = vadd.f32 %v6814, %v6937
        %v6952 = vmul.f32 %v3267, %v6473
        %v6953 = vmul.f32 %v3267, %v6474
        %v6954 = vmul.f32 %v3267, %v6475
        %v6955 = vmul.f32 %v3267, %v6476
        %v6956 = vmul.f32 %v3267, %v6477
        %v6957 = vmul.f32 %v3267, %v6478
        %v6958 = vmul.f32 %v3267, %v6479
        %v6966 = vrot.slane %v6952, 1
        %v6967 = vrot.slane %v6953, 1
        %v6968 = vsel %vm628, %v6966, %v6967
        %v6969 = vrot.slane %v6954, 1
        %v6970 = vsel %vm628, %v6967, %v6969
        %v6971 = vrot.slane %v6955, 1
        %v6972 = vsel %vm628, %v6969, %v6971
        %v6973 = vrot.slane %v6956, 1
        %v6974 = vsel %vm628, %v6971, %v6973
        %v6975 = vrot.slane %v6957, 1
        %v6976 = vsel %vm628, %v6973, %v6975
        %v6977 = vrot.slane %v6958, 1
        %v6978 = vsel %vm628, %v6975, %v6977
        %6979 = vrot.lane.b32.xlu0 %v6968, 127
        %v6980 = vpop.permute.xlu0 %6979
        %6981 = vrot.lane.b32.xlu0 %v6970, 127
        %v6982 = vpop.permute.xlu0 %6981
        %6983 = vrot.lane.b32.xlu0 %v6972, 127
        %v6984 = vpop.permute.xlu0 %6983
        %6985 = vrot.lane.b32.xlu0 %v6974, 127
        %v6986 = vpop.permute.xlu0 %6985
        %6987 = vrot.lane.b32.xlu0 %v6976, 127
        %v6988 = vpop.permute.xlu0 %6987
        %6989 = vrot.lane.b32.xlu0 %v6978, 127
        %v6990 = vpop.permute.xlu0 %6989
        %6991 = vrot.lane.b32.xlu0 %v6977, 127
        %v6992 = vpop.permute.xlu0 %6991
        %v7000 = vadd.f32 %v6849, %v6980
        %v7001 = vadd.f32 %v6850, %v6982
        %v7002 = vadd.f32 %v6851, %v6984
        %v7003 = vadd.f32 %v6852, %v6986
        %v7004 = vadd.f32 %v6853, %v6988
        %v7005 = vadd.f32 %v6854, %v6990
        %v7006 = vadd.f32 %v6855, %v6992
        %v7007 = vmul.f32 %v3323, %v6473
        %v7008 = vmul.f32 %v3323, %v6474
        %v7009 = vmul.f32 %v3323, %v6475
        %v7010 = vmul.f32 %v3323, %v6476
        %v7011 = vmul.f32 %v3323, %v6477
        %v7012 = vmul.f32 %v3323, %v6478
        %v7013 = vmul.f32 %v3323, %v6479
        %v7021 = vrot.slane %v7007, 1
        %v7022 = vrot.slane %v7008, 1
        %v7023 = vsel %vm628, %v7021, %v7022
        %v7024 = vrot.slane %v7009, 1
        %v7025 = vsel %vm628, %v7022, %v7024
        %v7026 = vrot.slane %v7010, 1
        %v7027 = vsel %vm628, %v7024, %v7026
        %v7028 = vrot.slane %v7011, 1
        %v7029 = vsel %vm628, %v7026, %v7028
        %v7030 = vrot.slane %v7012, 1
        %v7031 = vsel %vm628, %v7028, %v7030
        %v7032 = vrot.slane %v7013, 1
        %v7033 = vsel %vm628, %v7030, %v7032
        %7034 = vrot.lane.b32.xlu0 %v7023, 127
        %v7035 = vpop.permute.xlu0 %7034
        %7036 = vrot.lane.b32.xlu0 %v7025, 127
        %v7037 = vpop.permute.xlu0 %7036
        %7038 = vrot.lane.b32.xlu0 %v7027, 127
        %v7039 = vpop.permute.xlu0 %7038
        %7040 = vrot.lane.b32.xlu0 %v7029, 127
        %v7041 = vpop.permute.xlu0 %7040
        %7042 = vrot.lane.b32.xlu0 %v7031, 127
        %v7043 = vpop.permute.xlu0 %7042
        %7044 = vrot.lane.b32.xlu0 %v7033, 127
        %v7045 = vpop.permute.xlu0 %7044
        %7046 = vrot.lane.b32.xlu0 %v7032, 127
        %v7047 = vpop.permute.xlu0 %7046
        %v7055 = vadd.f32 %v6890, %v7035
        %v7056 = vadd.f32 %v6891, %v7037
        %v7057 = vadd.f32 %v6892, %v7039
        %v7058 = vadd.f32 %v6893, %v7041
        %v7059 = vadd.f32 %v6894, %v7043
        %v7060 = vadd.f32 %v6895, %v7045
        %v7061 = vadd.f32 %v6896, %v7047
        %v7062 = vmul.f32 %v3379, %v6473
        %v7063 = vmul.f32 %v3379, %v6474
        %v7064 = vmul.f32 %v3379, %v6475
        %v7065 = vmul.f32 %v3379, %v6476
        %v7066 = vmul.f32 %v3379, %v6477
        %v7067 = vmul.f32 %v3379, %v6478
        %v7068 = vmul.f32 %v3379, %v6479
        %v7076 = vrot.slane %v7062, 1
        %v7077 = vrot.slane %v7063, 1
        %v7078 = vsel %vm628, %v7076, %v7077
        %v7079 = vrot.slane %v7064, 1
        %v7080 = vsel %vm628, %v7077, %v7079
        %v7081 = vrot.slane %v7065, 1
        %v7082 = vsel %vm628, %v7079, %v7081
        %v7083 = vrot.slane %v7066, 1
        %v7084 = vsel %vm628, %v7081, %v7083
        %v7085 = vrot.slane %v7067, 1
        %v7086 = vsel %vm628, %v7083, %v7085
        %v7087 = vrot.slane %v7068, 1
        %v7088 = vsel %vm628, %v7085, %v7087
        %7089 = vrot.lane.b32.xlu0 %v7078, 126
        %v7090 = vpop.permute.xlu0 %7089
        %7091 = vrot.lane.b32.xlu0 %v7080, 126
        %v7092 = vpop.permute.xlu0 %7091
        %7093 = vrot.lane.b32.xlu0 %v7082, 126
        %v7094 = vpop.permute.xlu0 %7093
        %7095 = vrot.lane.b32.xlu0 %v7084, 126
        %v7096 = vpop.permute.xlu0 %7095
        %7097 = vrot.lane.b32.xlu0 %v7086, 126
        %v7098 = vpop.permute.xlu0 %7097
        %7099 = vrot.lane.b32.xlu0 %v7088, 126
        %v7100 = vpop.permute.xlu0 %7099
        %7101 = vrot.lane.b32.xlu0 %v7087, 126
        %v7102 = vpop.permute.xlu0 %7101
        %v7110 = vadd.f32 %v6945, %v7090
        %v7111 = vadd.f32 %v6946, %v7092
        %v7112 = vadd.f32 %v6947, %v7094
        %v7113 = vadd.f32 %v6948, %v7096
        %v7114 = vadd.f32 %v6949, %v7098
        %v7115 = vadd.f32 %v6950, %v7100
        %v7116 = vadd.f32 %v6951, %v7102
        %v7117 = vmul.f32 %v3435, %v6473
        %v7118 = vmul.f32 %v3435, %v6474
        %v7119 = vmul.f32 %v3435, %v6475
        %v7120 = vmul.f32 %v3435, %v6476
        %v7121 = vmul.f32 %v3435, %v6477
        %v7122 = vmul.f32 %v3435, %v6478
        %v7123 = vmul.f32 %v3435, %v6479
        %v7131 = vrot.slane %v7117, 1
        %v7132 = vrot.slane %v7118, 1
        %v7133 = vsel %vm628, %v7131, %v7132
        %v7134 = vrot.slane %v7119, 1
        %v7135 = vsel %vm628, %v7132, %v7134
        %v7136 = vrot.slane %v7120, 1
        %v7137 = vsel %vm628, %v7134, %v7136
        %v7138 = vrot.slane %v7121, 1
        %v7139 = vsel %vm628, %v7136, %v7138
        %v7140 = vrot.slane %v7122, 1
        %v7141 = vsel %vm628, %v7138, %v7140
        %v7142 = vrot.slane %v7123, 1
        %v7143 = vsel %vm628, %v7140, %v7142
        %7144 = vrot.lane.b32.xlu0 %v7133, 126
        %v7145 = vpop.permute.xlu0 %7144
        %7146 = vrot.lane.b32.xlu0 %v7135, 126
        %v7147 = vpop.permute.xlu0 %7146
        %7148 = vrot.lane.b32.xlu0 %v7137, 126
        %v7149 = vpop.permute.xlu0 %7148
        %7150 = vrot.lane.b32.xlu0 %v7139, 126
        %v7151 = vpop.permute.xlu0 %7150
        %7152 = vrot.lane.b32.xlu0 %v7141, 126
        %v7153 = vpop.permute.xlu0 %7152
        %7154 = vrot.lane.b32.xlu0 %v7143, 126
        %v7155 = vpop.permute.xlu0 %7154
        %7156 = vrot.lane.b32.xlu0 %v7142, 126
        %v7157 = vpop.permute.xlu0 %7156
        %v7165 = vadd.f32 %v7000, %v7145
        %v7166 = vadd.f32 %v7001, %v7147
        %v7167 = vadd.f32 %v7002, %v7149
        %v7168 = vadd.f32 %v7003, %v7151
        %v7169 = vadd.f32 %v7004, %v7153
        %v7170 = vadd.f32 %v7005, %v7155
        %v7171 = vadd.f32 %v7006, %v7157
        %v7172 = vmul.f32 %v3491, %v6473
        %v7173 = vmul.f32 %v3491, %v6474
        %v7174 = vmul.f32 %v3491, %v6475
        %v7175 = vmul.f32 %v3491, %v6476
        %v7176 = vmul.f32 %v3491, %v6477
        %v7177 = vmul.f32 %v3491, %v6478
        %v7178 = vmul.f32 %v3491, %v6479
        %v7186 = vrot.slane %v7172, 1
        %v7187 = vrot.slane %v7173, 1
        %v7188 = vsel %vm628, %v7186, %v7187
        %v7189 = vrot.slane %v7174, 1
        %v7190 = vsel %vm628, %v7187, %v7189
        %v7191 = vrot.slane %v7175, 1
        %v7192 = vsel %vm628, %v7189, %v7191
        %v7193 = vrot.slane %v7176, 1
        %v7194 = vsel %vm628, %v7191, %v7193
        %v7195 = vrot.slane %v7177, 1
        %v7196 = vsel %vm628, %v7193, %v7195
        %v7197 = vrot.slane %v7178, 1
        %v7198 = vsel %vm628, %v7195, %v7197
        %7199 = vrot.lane.b32.xlu0 %v7188, 126
        %v7200 = vpop.permute.xlu0 %7199
        %7201 = vrot.lane.b32.xlu0 %v7190, 126
        %v7202 = vpop.permute.xlu0 %7201
        %7203 = vrot.lane.b32.xlu0 %v7192, 126
        %v7204 = vpop.permute.xlu0 %7203
        %7205 = vrot.lane.b32.xlu0 %v7194, 126
        %v7206 = vpop.permute.xlu0 %7205
        %7207 = vrot.lane.b32.xlu0 %v7196, 126
        %v7208 = vpop.permute.xlu0 %7207
        %7209 = vrot.lane.b32.xlu0 %v7198, 126
        %v7210 = vpop.permute.xlu0 %7209
        %7211 = vrot.lane.b32.xlu0 %v7197, 126
        %v7212 = vpop.permute.xlu0 %7211
        %v7220 = vadd.f32 %v7055, %v7200
        %v7221 = vadd.f32 %v7056, %v7202
        %v7222 = vadd.f32 %v7057, %v7204
        %v7223 = vadd.f32 %v7058, %v7206
        %v7224 = vadd.f32 %v7059, %v7208
        %v7225 = vadd.f32 %v7060, %v7210
        %v7226 = vadd.f32 %v7061, %v7212
        %v7227 = vmul.f32 %v3547, %v6473
        %v7228 = vmul.f32 %v3547, %v6474
        %v7229 = vmul.f32 %v3547, %v6475
        %v7230 = vmul.f32 %v3547, %v6476
        %v7231 = vmul.f32 %v3547, %v6477
        %v7232 = vmul.f32 %v3547, %v6478
        %v7233 = vmul.f32 %v3547, %v6479
        %v7241 = vrot.slane %v7227, 2
        %v7242 = vrot.slane %v7228, 2
        %v7243 = vsel %vm1091, %v7241, %v7242
        %v7244 = vrot.slane %v7229, 2
        %v7245 = vsel %vm1091, %v7242, %v7244
        %v7246 = vrot.slane %v7230, 2
        %v7247 = vsel %vm1091, %v7244, %v7246
        %v7248 = vrot.slane %v7231, 2
        %v7249 = vsel %vm1091, %v7246, %v7248
        %v7250 = vrot.slane %v7232, 2
        %v7251 = vsel %vm1091, %v7248, %v7250
        %v7252 = vrot.slane %v7233, 2
        %v7253 = vsel %vm1091, %v7250, %v7252
        %v7261 = vadd.f32 %v7110, %v7243
        %v7262 = vadd.f32 %v7111, %v7245
        %v7263 = vadd.f32 %v7112, %v7247
        %v7264 = vadd.f32 %v7113, %v7249
        %v7265 = vadd.f32 %v7114, %v7251
        %v7266 = vadd.f32 %v7115, %v7253
        %v7267 = vadd.f32 %v7116, %v7252
        %v7268 = vmul.f32 %v3589, %v6473
        %v7269 = vmul.f32 %v3589, %v6474
        %v7270 = vmul.f32 %v3589, %v6475
        %v7271 = vmul.f32 %v3589, %v6476
        %v7272 = vmul.f32 %v3589, %v6477
        %v7273 = vmul.f32 %v3589, %v6478
        %v7274 = vmul.f32 %v3589, %v6479
        %v7282 = vrot.slane %v7268, 2
        %v7283 = vrot.slane %v7269, 2
        %v7284 = vsel %vm1091, %v7282, %v7283
        %v7285 = vrot.slane %v7270, 2
        %v7286 = vsel %vm1091, %v7283, %v7285
        %v7287 = vrot.slane %v7271, 2
        %v7288 = vsel %vm1091, %v7285, %v7287
        %v7289 = vrot.slane %v7272, 2
        %v7290 = vsel %vm1091, %v7287, %v7289
        %v7291 = vrot.slane %v7273, 2
        %v7292 = vsel %vm1091, %v7289, %v7291
        %v7293 = vrot.slane %v7274, 2
        %v7294 = vsel %vm1091, %v7291, %v7293
        %v7302 = vadd.f32 %v7165, %v7284
        %v7303 = vadd.f32 %v7166, %v7286
        %v7304 = vadd.f32 %v7167, %v7288
        %v7305 = vadd.f32 %v7168, %v7290
        %v7306 = vadd.f32 %v7169, %v7292
        %v7307 = vadd.f32 %v7170, %v7294
        %v7308 = vadd.f32 %v7171, %v7293
        %v7309 = vmul.f32 %v3631, %v6473
        %v7310 = vmul.f32 %v3631, %v6474
        %v7311 = vmul.f32 %v3631, %v6475
        %v7312 = vmul.f32 %v3631, %v6476
        %v7313 = vmul.f32 %v3631, %v6477
        %v7314 = vmul.f32 %v3631, %v6478
        %v7315 = vmul.f32 %v3631, %v6479
        %v7323 = vrot.slane %v7309, 2
        %v7324 = vrot.slane %v7310, 2
        %v7325 = vsel %vm1091, %v7323, %v7324
        %v7326 = vrot.slane %v7311, 2
        %v7327 = vsel %vm1091, %v7324, %v7326
        %v7328 = vrot.slane %v7312, 2
        %v7329 = vsel %vm1091, %v7326, %v7328
        %v7330 = vrot.slane %v7313, 2
        %v7331 = vsel %vm1091, %v7328, %v7330
        %v7332 = vrot.slane %v7314, 2
        %v7333 = vsel %vm1091, %v7330, %v7332
        %v7334 = vrot.slane %v7315, 2
        %v7335 = vsel %vm1091, %v7332, %v7334
        %v7343 = vadd.f32 %v7220, %v7325
        %v7344 = vadd.f32 %v7221, %v7327
        %v7345 = vadd.f32 %v7222, %v7329
        %v7346 = vadd.f32 %v7223, %v7331
        %v7347 = vadd.f32 %v7224, %v7333
        %v7348 = vadd.f32 %v7225, %v7335
        %v7349 = vadd.f32 %v7226, %v7334
        %v7350 = vmul.f32 %v3673, %v6473
        %v7351 = vmul.f32 %v3673, %v6474
        %v7352 = vmul.f32 %v3673, %v6475
        %v7353 = vmul.f32 %v3673, %v6476
        %v7354 = vmul.f32 %v3673, %v6477
        %v7355 = vmul.f32 %v3673, %v6478
        %v7356 = vmul.f32 %v3673, %v6479
        %v7364 = vrot.slane %v7350, 2
        %v7365 = vrot.slane %v7351, 2
        %v7366 = vsel %vm1091, %v7364, %v7365
        %v7367 = vrot.slane %v7352, 2
        %v7368 = vsel %vm1091, %v7365, %v7367
        %v7369 = vrot.slane %v7353, 2
        %v7370 = vsel %vm1091, %v7367, %v7369
        %v7371 = vrot.slane %v7354, 2
        %v7372 = vsel %vm1091, %v7369, %v7371
        %v7373 = vrot.slane %v7355, 2
        %v7374 = vsel %vm1091, %v7371, %v7373
        %v7375 = vrot.slane %v7356, 2
        %v7376 = vsel %vm1091, %v7373, %v7375
        %7377 = vrot.lane.b32.xlu0 %v7366, 127
        %v7378 = vpop.permute.xlu0 %7377
        %7379 = vrot.lane.b32.xlu0 %v7368, 127
        %v7380 = vpop.permute.xlu0 %7379
        %7381 = vrot.lane.b32.xlu0 %v7370, 127
        %v7382 = vpop.permute.xlu0 %7381
        %7383 = vrot.lane.b32.xlu0 %v7372, 127
        %v7384 = vpop.permute.xlu0 %7383
        %7385 = vrot.lane.b32.xlu0 %v7374, 127
        %v7386 = vpop.permute.xlu0 %7385
        %7387 = vrot.lane.b32.xlu0 %v7376, 127
        %v7388 = vpop.permute.xlu0 %7387
        %7389 = vrot.lane.b32.xlu0 %v7375, 127
        %v7390 = vpop.permute.xlu0 %7389
        %v7398 = vadd.f32 %v7261, %v7378
        %v7399 = vadd.f32 %v7262, %v7380
        %v7400 = vadd.f32 %v7263, %v7382
        %v7401 = vadd.f32 %v7264, %v7384
        %v7402 = vadd.f32 %v7265, %v7386
        %v7403 = vadd.f32 %v7266, %v7388
        %v7404 = vadd.f32 %v7267, %v7390
        %v7405 = vmul.f32 %v3729, %v6473
        %v7406 = vmul.f32 %v3729, %v6474
        %v7407 = vmul.f32 %v3729, %v6475
        %v7408 = vmul.f32 %v3729, %v6476
        %v7409 = vmul.f32 %v3729, %v6477
        %v7410 = vmul.f32 %v3729, %v6478
        %v7411 = vmul.f32 %v3729, %v6479
        %v7419 = vrot.slane %v7405, 2
        %v7420 = vrot.slane %v7406, 2
        %v7421 = vsel %vm1091, %v7419, %v7420
        %v7422 = vrot.slane %v7407, 2
        %v7423 = vsel %vm1091, %v7420, %v7422
        %v7424 = vrot.slane %v7408, 2
        %v7425 = vsel %vm1091, %v7422, %v7424
        %v7426 = vrot.slane %v7409, 2
        %v7427 = vsel %vm1091, %v7424, %v7426
        %v7428 = vrot.slane %v7410, 2
        %v7429 = vsel %vm1091, %v7426, %v7428
        %v7430 = vrot.slane %v7411, 2
        %v7431 = vsel %vm1091, %v7428, %v7430
        %7432 = vrot.lane.b32.xlu0 %v7421, 127
        %v7433 = vpop.permute.xlu0 %7432
        %7434 = vrot.lane.b32.xlu0 %v7423, 127
        %v7435 = vpop.permute.xlu0 %7434
        %7436 = vrot.lane.b32.xlu0 %v7425, 127
        %v7437 = vpop.permute.xlu0 %7436
        %7438 = vrot.lane.b32.xlu0 %v7427, 127
        %v7439 = vpop.permute.xlu0 %7438
        %7440 = vrot.lane.b32.xlu0 %v7429, 127
        %v7441 = vpop.permute.xlu0 %7440
        %7442 = vrot.lane.b32.xlu0 %v7431, 127
        %v7443 = vpop.permute.xlu0 %7442
        %7444 = vrot.lane.b32.xlu0 %v7430, 127
        %v7445 = vpop.permute.xlu0 %7444
        %v7453 = vadd.f32 %v7302, %v7433
        %v7454 = vadd.f32 %v7303, %v7435
        %v7455 = vadd.f32 %v7304, %v7437
        %v7456 = vadd.f32 %v7305, %v7439
        %v7457 = vadd.f32 %v7306, %v7441
        %v7458 = vadd.f32 %v7307, %v7443
        %v7459 = vadd.f32 %v7308, %v7445
        %v7460 = vmul.f32 %v3785, %v6473
        %v7461 = vmul.f32 %v3785, %v6474
        %v7462 = vmul.f32 %v3785, %v6475
        %v7463 = vmul.f32 %v3785, %v6476
        %v7464 = vmul.f32 %v3785, %v6477
        %v7465 = vmul.f32 %v3785, %v6478
        %v7466 = vmul.f32 %v3785, %v6479
        %v7474 = vrot.slane %v7460, 2
        %v7475 = vrot.slane %v7461, 2
        %v7476 = vsel %vm1091, %v7474, %v7475
        %v7477 = vrot.slane %v7462, 2
        %v7478 = vsel %vm1091, %v7475, %v7477
        %v7479 = vrot.slane %v7463, 2
        %v7480 = vsel %vm1091, %v7477, %v7479
        %v7481 = vrot.slane %v7464, 2
        %v7482 = vsel %vm1091, %v7479, %v7481
        %v7483 = vrot.slane %v7465, 2
        %v7484 = vsel %vm1091, %v7481, %v7483
        %v7485 = vrot.slane %v7466, 2
        %v7486 = vsel %vm1091, %v7483, %v7485
        %7487 = vrot.lane.b32.xlu0 %v7476, 127
        %v7488 = vpop.permute.xlu0 %7487
        %7489 = vrot.lane.b32.xlu0 %v7478, 127
        %v7490 = vpop.permute.xlu0 %7489
        %7491 = vrot.lane.b32.xlu0 %v7480, 127
        %v7492 = vpop.permute.xlu0 %7491
        %7493 = vrot.lane.b32.xlu0 %v7482, 127
        %v7494 = vpop.permute.xlu0 %7493
        %7495 = vrot.lane.b32.xlu0 %v7484, 127
        %v7496 = vpop.permute.xlu0 %7495
        %7497 = vrot.lane.b32.xlu0 %v7486, 127
        %v7498 = vpop.permute.xlu0 %7497
        %7499 = vrot.lane.b32.xlu0 %v7485, 127
        %v7500 = vpop.permute.xlu0 %7499
        %v7508 = vadd.f32 %v7343, %v7488
        %v7509 = vadd.f32 %v7344, %v7490
        %v7510 = vadd.f32 %v7345, %v7492
        %v7511 = vadd.f32 %v7346, %v7494
        %v7512 = vadd.f32 %v7347, %v7496
        %v7513 = vadd.f32 %v7348, %v7498
        %v7514 = vadd.f32 %v7349, %v7500
        %v7515 = vmul.f32 %v3841, %v6473
        %v7516 = vmul.f32 %v3841, %v6474
        %v7517 = vmul.f32 %v3841, %v6475
        %v7518 = vmul.f32 %v3841, %v6476
        %v7519 = vmul.f32 %v3841, %v6477
        %v7520 = vmul.f32 %v3841, %v6478
        %v7521 = vmul.f32 %v3841, %v6479
        %v7529 = vrot.slane %v7515, 2
        %v7530 = vrot.slane %v7516, 2
        %v7531 = vsel %vm1091, %v7529, %v7530
        %v7532 = vrot.slane %v7517, 2
        %v7533 = vsel %vm1091, %v7530, %v7532
        %v7534 = vrot.slane %v7518, 2
        %v7535 = vsel %vm1091, %v7532, %v7534
        %v7536 = vrot.slane %v7519, 2
        %v7537 = vsel %vm1091, %v7534, %v7536
        %v7538 = vrot.slane %v7520, 2
        %v7539 = vsel %vm1091, %v7536, %v7538
        %v7540 = vrot.slane %v7521, 2
        %v7541 = vsel %vm1091, %v7538, %v7540
        %7542 = vrot.lane.b32.xlu0 %v7531, 126
        %v7543 = vpop.permute.xlu0 %7542
        %7544 = vrot.lane.b32.xlu0 %v7533, 126
        %v7545 = vpop.permute.xlu0 %7544
        %7546 = vrot.lane.b32.xlu0 %v7535, 126
        %v7547 = vpop.permute.xlu0 %7546
        %7548 = vrot.lane.b32.xlu0 %v7537, 126
        %v7549 = vpop.permute.xlu0 %7548
        %7550 = vrot.lane.b32.xlu0 %v7539, 126
        %v7551 = vpop.permute.xlu0 %7550
        %7552 = vrot.lane.b32.xlu0 %v7541, 126
        %v7553 = vpop.permute.xlu0 %7552
        %7554 = vrot.lane.b32.xlu0 %v7540, 126
        %v7555 = vpop.permute.xlu0 %7554
        %v7563 = vadd.f32 %v7398, %v7543
        %v7564 = vadd.f32 %v7399, %v7545
        %v7565 = vadd.f32 %v7400, %v7547
        %v7566 = vadd.f32 %v7401, %v7549
        %v7567 = vadd.f32 %v7402, %v7551
        %v7568 = vadd.f32 %v7403, %v7553
        %v7569 = vadd.f32 %v7404, %v7555
        %v7570 = vmul.f32 %v3897, %v6473
        %v7571 = vmul.f32 %v3897, %v6474
        %v7572 = vmul.f32 %v3897, %v6475
        %v7573 = vmul.f32 %v3897, %v6476
        %v7574 = vmul.f32 %v3897, %v6477
        %v7575 = vmul.f32 %v3897, %v6478
        %v7576 = vmul.f32 %v3897, %v6479
        %v7584 = vrot.slane %v7570, 2
        %v7585 = vrot.slane %v7571, 2
        %v7586 = vsel %vm1091, %v7584, %v7585
        %v7587 = vrot.slane %v7572, 2
        %v7588 = vsel %vm1091, %v7585, %v7587
        %v7589 = vrot.slane %v7573, 2
        %v7590 = vsel %vm1091, %v7587, %v7589
        %v7591 = vrot.slane %v7574, 2
        %v7592 = vsel %vm1091, %v7589, %v7591
        %v7593 = vrot.slane %v7575, 2
        %v7594 = vsel %vm1091, %v7591, %v7593
        %v7595 = vrot.slane %v7576, 2
        %v7596 = vsel %vm1091, %v7593, %v7595
        %7597 = vrot.lane.b32.xlu0 %v7586, 126
        %v7598 = vpop.permute.xlu0 %7597
        %7599 = vrot.lane.b32.xlu0 %v7588, 126
        %v7600 = vpop.permute.xlu0 %7599
        %7601 = vrot.lane.b32.xlu0 %v7590, 126
        %v7602 = vpop.permute.xlu0 %7601
        %7603 = vrot.lane.b32.xlu0 %v7592, 126
        %v7604 = vpop.permute.xlu0 %7603
        %7605 = vrot.lane.b32.xlu0 %v7594, 126
        %v7606 = vpop.permute.xlu0 %7605
        %7607 = vrot.lane.b32.xlu0 %v7596, 126
        %v7608 = vpop.permute.xlu0 %7607
        %7609 = vrot.lane.b32.xlu0 %v7595, 126
        %v7610 = vpop.permute.xlu0 %7609
        %v7618 = vadd.f32 %v7453, %v7598
        %v7619 = vadd.f32 %v7454, %v7600
        %v7620 = vadd.f32 %v7455, %v7602
        %v7621 = vadd.f32 %v7456, %v7604
        %v7622 = vadd.f32 %v7457, %v7606
        %v7623 = vadd.f32 %v7458, %v7608
        %v7624 = vadd.f32 %v7459, %v7610
        %v7625 = vmul.f32 %v3953, %v6473
        %v7626 = vmul.f32 %v3953, %v6474
        %v7627 = vmul.f32 %v3953, %v6475
        %v7628 = vmul.f32 %v3953, %v6476
        %v7629 = vmul.f32 %v3953, %v6477
        %v7630 = vmul.f32 %v3953, %v6478
        %v7631 = vmul.f32 %v3953, %v6479
        %v7639 = vrot.slane %v7625, 2
        %v7640 = vrot.slane %v7626, 2
        %v7641 = vsel %vm1091, %v7639, %v7640
        %v7642 = vrot.slane %v7627, 2
        %v7643 = vsel %vm1091, %v7640, %v7642
        %v7644 = vrot.slane %v7628, 2
        %v7645 = vsel %vm1091, %v7642, %v7644
        %v7646 = vrot.slane %v7629, 2
        %v7647 = vsel %vm1091, %v7644, %v7646
        %v7648 = vrot.slane %v7630, 2
        %v7649 = vsel %vm1091, %v7646, %v7648
        %v7650 = vrot.slane %v7631, 2
        %v7651 = vsel %vm1091, %v7648, %v7650
        %7652 = vrot.lane.b32.xlu0 %v7641, 126
        %v7653 = vpop.permute.xlu0 %7652
        %7654 = vrot.lane.b32.xlu0 %v7643, 126
        %v7655 = vpop.permute.xlu0 %7654
        %7656 = vrot.lane.b32.xlu0 %v7645, 126
        %v7657 = vpop.permute.xlu0 %7656
        %7658 = vrot.lane.b32.xlu0 %v7647, 126
        %v7659 = vpop.permute.xlu0 %7658
        %7660 = vrot.lane.b32.xlu0 %v7649, 126
        %v7661 = vpop.permute.xlu0 %7660
        %7662 = vrot.lane.b32.xlu0 %v7651, 126
        %v7663 = vpop.permute.xlu0 %7662
        %7664 = vrot.lane.b32.xlu0 %v7650, 126
        %v7665 = vpop.permute.xlu0 %7664
        %v7673 = vadd.f32 %v7508, %v7653
        %v7674 = vadd.f32 %v7509, %v7655
        %v7675 = vadd.f32 %v7510, %v7657
        %v7676 = vadd.f32 %v7511, %v7659
        %v7677 = vadd.f32 %v7512, %v7661
        %v7678 = vadd.f32 %v7513, %v7663
        %v7679 = vadd.f32 %v7514, %v7665
        %v7680 = vadd.f32 %v7563, %v4009
        %v7681 = vadd.f32 %v7564, %v4009
        %v7682 = vadd.f32 %v7565, %v4009
        %v7683 = vadd.f32 %v7566, %v4009
        %v7684 = vadd.f32 %v7567, %v4009
        %v7685 = vadd.f32 %v7568, %v4009
        %v7686 = vadd.f32 %v7569, %v4009
        %7687 = vst.msk [vmem:[#allocation2 + $0xa2] sm:$0xff] %vm4017, %v7680
        %7688 = vst.msk [vmem:[#allocation2 + $0xaa] sm:$0xff] %vm4017, %v7681
        %7689 = vst.msk [vmem:[#allocation2 + $0xb2] sm:$0xff] %vm4017, %v7682
        %7690 = vst.msk [vmem:[#allocation2 + $0xba] sm:$0xff] %vm4017, %v7683
        %7691 = vst.msk [vmem:[#allocation2 + $0xc2] sm:$0xff] %vm4017, %v7684
        %7692 = vst.msk [vmem:[#allocation2 + $0xca] sm:$0xff] %vm4017, %v7685
        %7693 = vst.msk [vmem:[#allocation2 + $0xd2] sm:$0x3f] %vm4024, %v7686
        %v7694 = vadd.f32 %v7618, %v4026
        %v7695 = vadd.f32 %v7619, %v4026
        %v7696 = vadd.f32 %v7620, %v4026
        %v7697 = vadd.f32 %v7621, %v4026
        %v7698 = vadd.f32 %v7622, %v4026
        %v7699 = vadd.f32 %v7623, %v4026
        %v7700 = vadd.f32 %v7624, %v4026
        %7701 = vst.msk [vmem:[#allocation2 + $0xd8] sm:$0xff] %vm4017, %v7694
        %7702 = vst.msk [vmem:[#allocation2 + $0xe0] sm:$0xff] %vm4017, %v7695
        %7703 = vst.msk [vmem:[#allocation2 + $0xe8] sm:$0xff] %vm4017, %v7696
        %7704 = vst.msk [vmem:[#allocation2 + $0xf0] sm:$0xff] %vm4017, %v7697
        %7705 = vst.msk [vmem:[#allocation2 + $0xf8] sm:$0xff] %vm4017, %v7698
        %7706 = vst.msk [vmem:[#allocation2 + $0x100] sm:$0xff] %vm4017, %v7699
        %7707 = vst.msk [vmem:[#allocation2 + $0x108] sm:$0x3f] %vm4024, %v7700
        %v7708 = vadd.f32 %v7673, %v4041
        %v7709 = vadd.f32 %v7674, %v4041
        %v7710 = vadd.f32 %v7675, %v4041
        %v7711 = vadd.f32 %v7676, %v4041
        %v7712 = vadd.f32 %v7677, %v4041
        %v7713 = vadd.f32 %v7678, %v4041
        %v7714 = vadd.f32 %v7679, %v4041
        %7715 = vst.msk [vmem:[#allocation2 + $0x10e] sm:$0xff] %vm4017, %v7708
        %7716 = vst.msk [vmem:[#allocation2 + $0x116] sm:$0xff] %vm4017, %v7709
        %7717 = vst.msk [vmem:[#allocation2 + $0x11e] sm:$0xff] %vm4017, %v7710
        %7718 = vst.msk [vmem:[#allocation2 + $0x126] sm:$0xff] %vm4017, %v7711
        %7719 = vst.msk [vmem:[#allocation2 + $0x12e] sm:$0xff] %vm4017, %v7712
        %7720 = vst.msk [vmem:[#allocation2 + $0x136] sm:$0xff] %vm4017, %v7713
        %7721 = vst.msk [vmem:[#allocation2 + $0x13e] sm:$0x3f] %vm4024, %v7714
        %v7722 = vld [vmem:[#allocation2] ss:$27 sm:$0xff]
        %s7723 = scalar_lea.vmem [#allocation2], 216
        %v7724 = vld [vmem:[%s7723] ss:$27 sm:$0xf]
        %s7725 = scalar_lea.vmem [#allocation2], 1
        %v7726 = vld [vmem:[%s7725] ss:$27 sm:$0xff]
        %s7727 = scalar_lea.vmem [#allocation2], 217
        %v7728 = vld [vmem:[%s7727] ss:$27 sm:$0xf]
        %s7729 = scalar_lea.vmem [#allocation2], 2
        %v7730 = vld [vmem:[%s7729] ss:$27 sm:$0xff]
        %s7731 = scalar_lea.vmem [#allocation2], 218
        %v7732 = vld [vmem:[%s7731] ss:$27 sm:$0xf]
        %s7733 = scalar_lea.vmem [#allocation2], 3
        %v7734 = vld [vmem:[%s7733] ss:$27 sm:$0xff]
        %s7735 = scalar_lea.vmem [#allocation2], 219
        %v7736 = vld [vmem:[%s7735] ss:$27 sm:$0xf]
        %s7737 = scalar_lea.vmem [#allocation2], 4
        %v7738 = vld [vmem:[%s7737] ss:$27 sm:$0xff]
        %s7739 = scalar_lea.vmem [#allocation2], 220
        %v7740 = vld [vmem:[%s7739] ss:$27 sm:$0xf]
        %s7741 = scalar_lea.vmem [#allocation2], 5
        %v7742 = vld [vmem:[%s7741] ss:$27 sm:$0xff]
        %s7743 = scalar_lea.vmem [#allocation2], 221
        %v7744 = vld [vmem:[%s7743] ss:$27 sm:$0xf]
        %s7745 = scalar_lea.vmem [#allocation2], 6
        %v7746 = vld [vmem:[%s7745] ss:$27 sm:$0xff]
        %s7747 = scalar_lea.vmem [#allocation2], 222
        %v7748 = vld [vmem:[%s7747] ss:$27 sm:$0xf]
        %s7749 = scalar_lea.vmem [#allocation2], 7
        %v7750 = vld [vmem:[%s7749] ss:$27 sm:$0xff]
        %s7751 = scalar_lea.vmem [#allocation2], 223
        %v7752 = vld [vmem:[%s7751] ss:$27 sm:$0xf]
        %s7753 = scalar_lea.vmem [#allocation2], 8
        %v7754 = vld [vmem:[%s7753] ss:$27 sm:$0xff]
        %s7755 = scalar_lea.vmem [#allocation2], 224
        %v7756 = vld [vmem:[%s7755] ss:$27 sm:$0xf]
        %s7757 = scalar_lea.vmem [#allocation2], 9
        %v7758 = vld [vmem:[%s7757] ss:$27 sm:$0xff]
        %s7759 = scalar_lea.vmem [#allocation2], 225
        %v7760 = vld [vmem:[%s7759] ss:$27 sm:$0xf]
        %s7761 = scalar_lea.vmem [#allocation2], 10
        %v7762 = vld [vmem:[%s7761] ss:$27 sm:$0xff]
        %s7763 = scalar_lea.vmem [#allocation2], 226
        %v7764 = vld [vmem:[%s7763] ss:$27 sm:$0xf]
        %s7765 = scalar_lea.vmem [#allocation2], 11
        %v7766 = vld [vmem:[%s7765] ss:$27 sm:$0xff]
        %s7767 = scalar_lea.vmem [#allocation2], 227
        %v7768 = vld [vmem:[%s7767] ss:$27 sm:$0xf]
        %s7769 = scalar_lea.vmem [#allocation2], 12
        %v7770 = vld [vmem:[%s7769] ss:$27 sm:$0xff]
        %s7771 = scalar_lea.vmem [#allocation2], 228
        %v7772 = vld [vmem:[%s7771] ss:$27 sm:$0xf]
        %s7773 = scalar_lea.vmem [#allocation2], 13
        %v7774 = vld [vmem:[%s7773] ss:$27 sm:$0xff]
        %s7775 = scalar_lea.vmem [#allocation2], 229
        %v7776 = vld [vmem:[%s7775] ss:$27 sm:$0xf]
        %s7777 = scalar_lea.vmem [#allocation2], 14
        %v7778 = vld [vmem:[%s7777] ss:$27 sm:$0xff]
        %s7779 = scalar_lea.vmem [#allocation2], 230
        %v7780 = vld [vmem:[%s7779] ss:$27 sm:$0xf]
        %s7781 = scalar_lea.vmem [#allocation2], 15
        %v7782 = vld [vmem:[%s7781] ss:$27 sm:$0xff]
        %s7783 = scalar_lea.vmem [#allocation2], 231
        %v7784 = vld [vmem:[%s7783] ss:$27 sm:$0xf]
        %s7785 = scalar_lea.vmem [#allocation2], 16
        %v7786 = vld [vmem:[%s7785] ss:$27 sm:$0xff]
        %s7787 = scalar_lea.vmem [#allocation2], 232
        %v7788 = vld [vmem:[%s7787] ss:$27 sm:$0xf]
        %s7789 = scalar_lea.vmem [#allocation2], 17
        %v7790 = vld [vmem:[%s7789] ss:$27 sm:$0xff]
        %s7791 = scalar_lea.vmem [#allocation2], 233
        %v7792 = vld [vmem:[%s7791] ss:$27 sm:$0xf]
        %s7793 = scalar_lea.vmem [#allocation2], 18
        %v7794 = vld [vmem:[%s7793] ss:$27 sm:$0xff]
        %s7795 = scalar_lea.vmem [#allocation2], 234
        %v7796 = vld [vmem:[%s7795] ss:$27 sm:$0xf]
        %s7797 = scalar_lea.vmem [#allocation2], 19
        %v7798 = vld [vmem:[%s7797] ss:$27 sm:$0xff]
        %s7799 = scalar_lea.vmem [#allocation2], 235
        %v7800 = vld [vmem:[%s7799] ss:$27 sm:$0xf]
        %s7801 = scalar_lea.vmem [#allocation2], 20
        %v7802 = vld [vmem:[%s7801] ss:$27 sm:$0xff]
        %s7803 = scalar_lea.vmem [#allocation2], 236
        %v7804 = vld [vmem:[%s7803] ss:$27 sm:$0xf]
        %s7805 = scalar_lea.vmem [#allocation2], 21
        %v7806 = vld [vmem:[%s7805] ss:$27 sm:$0xff]
        %s7807 = scalar_lea.vmem [#allocation2], 237
        %v7808 = vld [vmem:[%s7807] ss:$27 sm:$0xf]
        %s7809 = scalar_lea.vmem [#allocation2], 22
        %v7810 = vld [vmem:[%s7809] ss:$27 sm:$0xff]
        %s7811 = scalar_lea.vmem [#allocation2], 238
        %v7812 = vld [vmem:[%s7811] ss:$27 sm:$0xf]
        %s7813 = scalar_lea.vmem [#allocation2], 23
        %v7814 = vld [vmem:[%s7813] ss:$27 sm:$0xff]
        %s7815 = scalar_lea.vmem [#allocation2], 239
        %v7816 = vld [vmem:[%s7815] ss:$27 sm:$0xf]
        %s7817 = scalar_lea.vmem [#allocation2], 24
        %v7818 = vld [vmem:[%s7817] ss:$27 sm:$0xff]
        %s7819 = scalar_lea.vmem [#allocation2], 240
        %v7820 = vld [vmem:[%s7819] ss:$27 sm:$0xf]
        %s7821 = scalar_lea.vmem [#allocation2], 25
        %v7822 = vld [vmem:[%s7821] ss:$27 sm:$0xff]
        %s7823 = scalar_lea.vmem [#allocation2], 241
        %v7824 = vld [vmem:[%s7823] ss:$27 sm:$0xf]
        %s7825 = scalar_lea.vmem [#allocation2], 26
        %v7826 = vld [vmem:[%s7825] ss:$27 sm:$0xff]
        %s7827 = scalar_lea.vmem [#allocation2], 242
        %v7828 = vld [vmem:[%s7827] ss:$27 sm:$0xf]
        %v7829 = vmax.f32 %v7722, %v7726
        %v7830 = vmax.f32 %v7724, %v7728
        %v7831 = vmax.f32 %v7730, %v7734
        %v7832 = vmax.f32 %v7732, %v7736
        %v7833 = vmax.f32 %v7738, %v7742
        %v7834 = vmax.f32 %v7740, %v7744
        %v7835 = vmax.f32 %v7746, %v7750
        %v7836 = vmax.f32 %v7748, %v7752
        %v7837 = vmax.f32 %v7754, %v7758
        %v7838 = vmax.f32 %v7756, %v7760
        %v7839 = vmax.f32 %v7762, %v7766
        %v7840 = vmax.f32 %v7764, %v7768
        %v7841 = vmax.f32 %v7770, %v7774
        %v7842 = vmax.f32 %v7772, %v7776
        %v7843 = vmax.f32 %v7778, %v7782
        %v7844 = vmax.f32 %v7780, %v7784
        %v7845 = vmax.f32 %v7786, %v7790
        %v7846 = vmax.f32 %v7788, %v7792
        %v7847 = vmax.f32 %v7794, %v7798
        %v7848 = vmax.f32 %v7796, %v7800
        %v7849 = vmax.f32 %v7802, %v7806
        %v7850 = vmax.f32 %v7804, %v7808
        %v7851 = vmax.f32 %v7810, %v7814
        %v7852 = vmax.f32 %v7812, %v7816
        %v7853 = vmax.f32 %v7818, %v7822
        %v7854 = vmax.f32 %v7820, %v7824
        %v7855 = vmax.f32 %v7829, %v7831
        %v7856 = vmax.f32 %v7830, %v7832
        %v7857 = vmax.f32 %v7833, %v7835
        %v7858 = vmax.f32 %v7834, %v7836
        %v7859 = vmax.f32 %v7837, %v7839
        %v7860 = vmax.f32 %v7838, %v7840
        %v7861 = vmax.f32 %v7841, %v7843
        %v7862 = vmax.f32 %v7842, %v7844
        %v7863 = vmax.f32 %v7845, %v7847
        %v7864 = vmax.f32 %v7846, %v7848
        %v7865 = vmax.f32 %v7849, %v7851
        %v7866 = vmax.f32 %v7850, %v7852
        %v7867 = vmax.f32 %v7853, %v7826
        %v7868 = vmax.f32 %v7854, %v7828
        %v7869 = vmax.f32 %v7855, %v7857
        %v7870 = vmax.f32 %v7856, %v7858
        %v7871 = vmax.f32 %v7859, %v7861
        %v7872 = vmax.f32 %v7860, %v7862
        %v7873 = vmax.f32 %v7863, %v7865
        %v7874 = vmax.f32 %v7864, %v7866
        %v7875 = vmax.f32 %v7869, %v7871
        %v7876 = vmax.f32 %v7870, %v7872
        %v7877 = vmax.f32 %v7873, %v7867
        %v7878 = vmax.f32 %v7874, %v7868
        %v7879 = vmax.f32 %v7875, %v7877
        %v7880 = vmax.f32 %v7876, %v7878
        %vm7881 = vcmask 220160
        %v7882 = vsel %vm7881, %v7879, -inf
        %7883 = vmax.xlane.f32.xlu0 %v7882
        %v7884 = vpop.xlane.xlu0 %7883
        %vm7885 = vcmask 216064
        %v7886 = vsel %vm7885, %v7880, -inf
        %7887 = vmax.xlane.f32.xlu0 %v7886
        %v7888 = vpop.xlane.xlu0 %7887
        %vm7889 = vcmask 441560
        %v7890 = vsel %vm7889, %v7879, -inf
        %7891 = vmax.xlane.f32.xlu0 %v7890
        %v7892 = vpop.xlane.xlu0 %7891
        %vm7893 = vcmask 437464
        %v7894 = vsel %vm7893, %v7880, -inf
        %7895 = vmax.xlane.f32.xlu0 %v7894
        %v7896 = vpop.xlane.xlu0 %7895
        %vm7897 = vcmask 679360
        %v7898 = vsel %vm7897, %v7879, -inf
        %7899 = vmax.xlane.f32.xlu0 %v7898
        %v7900 = vpop.xlane.xlu0 %7899
        %vm7901 = vcmask 675264
        %v7902 = vsel %vm7901, %v7880, -inf
        %7903 = vmax.xlane.f32.xlu0 %v7902
        %v7904 = vpop.xlane.xlu0 %7903
        %vm7905 = vcmask 900760
        %v7906 = vsel %vm7905, %v7879, -inf
        %7907 = vmax.xlane.f32.xlu0 %v7906
        %v7908 = vpop.xlane.xlu0 %7907
        %vm7909 = vcmask 896664
        %v7910 = vsel %vm7909, %v7880, -inf
        %7911 = vmax.xlane.f32.xlu0 %v7910
        %v7912 = vpop.xlane.xlu0 %7911
        %vm7913 = vcmask 7168
        %v7914 = vsel %vm7913, %v7884, %v7892
        %v7915 = vsel %vm7913, %v7888, %v7896
        %vm7916 = vcmask 15360
        %v7917 = vsel %vm7916, %v7914, %v7900
        %v7918 = vsel %vm7916, %v7915, %v7904
        %vm7919 = vcmask 23552
        %v7920 = vsel %vm7919, %v7917, %v7908
        %v7921 = vsel %vm7919, %v7918, %v7912
        %vm7922 = vcmask 29696
        %7923 = vst.msk [vmem:[%s217] sm:$0x3f] %vm7922, %v7920
        %s7924 = scalar_lea.vmem %s217, 8
        %vm7925 = vcmask 31750
        %7926 = vst.msk [vmem:[%s7924 - $0x6] sm:$0xc0] %vm7925, %v7920
        %vm7927 = vcmask 27648
        %7928 = vst.msk [vmem:[%s7924 + $0x2] sm:$0xf] %vm7927, %v7921
        %s7929 = smul.u32 2, %s19
        %p7930 = scmp.lt.s32.totalorder %s7929, 3
        %s7931 = scalar_select %p7930, %s7929, 3
        %s7932 = smul.addr %s7931, 8
        %s7933 = scalar_lea.vmem %s3, %s7932
        // Predicated region
        $region45: #{tpu_custom_call.1} parent=31 // pred_check
          %p7934 = pneg %p105
        $region46: #{tpu_custom_call.1} parent=31 // pred_check_branch
          %7936 = sbr.rel (%p7934) target = $region48
        $region47: #{tpu_custom_call.1} parent=31 // pred_region
          %s7937 = smul.u32 2, %s19
        $region48: #{tpu_custom_call.1} parent=31 // pred_fallthru
          _
      $region32: #{tpu_custom_call.1} parent=5 // pred_fallthru
        _
      %p7938 = scmp.le.s32.totalorder 2, %s14
      // Predicated region
      $region49: #{tpu_custom_call.1} parent=5 // pred_check
        %p7939 = pneg %p7938
      $region50: #{tpu_custom_call.1} parent=5 // pred_check_branch
        %7941 = sbr.rel (%p7939) target = $region52
      $region51: #{tpu_custom_call.1} parent=5 // pred_region
        %s7942 = ssub.s32 %s14, 2
        // Predicated region
        $region53: #{tpu_custom_call.1} parent=51 // pred_check
          %p7943 = pneg %p111
        $region54: #{tpu_custom_call.1} parent=51 // pred_check_branch
          %7945 = sbr.rel (%p7943) target = $region56
        $region55: #{tpu_custom_call.1} parent=51 // pred_region
          %s7946 = smul.u32 2, %s20
          %p7947 = scmp.lt.s32.totalorder %s7946, 3
          %s7948 = scalar_select %p7947, %s7946, 3
          %s7949 = smul.addr %s7948, 8
          %s7950 = scalar_lea.vmem %s3, %s7949
        $region56: #{tpu_custom_call.1} parent=51 // pred_fallthru
          _
      $region52: #{tpu_custom_call.1} parent=5 // pred_fallthru
        _
    $region6: #{tpu_custom_call.1} parent=1 // loop_footer
      %s18 = sadd.s32 1, %s14
    $region7: #{tpu_custom_call.1} parent=1 // loop_footer_branch
      %13 = sbr.rel target = $region3
    $region8: #{tpu_custom_call.1} parent=1 // loop_exit
      _
    %7951 = vsyncpa [#allocation4], 1
    %s7952 = scalar_lea.sflag [#allocation4], 1
    %7953 = vsyncpa %s7952, 1
    %7954 = vsyncpa [#allocation5], 1
    %s7955 = scalar_lea.sflag [#allocation5], 1
    %7956 = vsyncpa %s7955, 1
    %7957 = vsyncpa [#allocation6], 1
    %s7958 = scalar_lea.sflag [#allocation6], 1
    %7959 = vsyncpa %s7958, 1

</llo_original>
